<compile_context>
chip_gen: v5e
topology: v5e:2x2
jax: 0.10.0
libtpu: 0.0.40
codegen_flags: <defaults>
</compile_context>

<pallas_src>
import functools

import jax
import jax.numpy as jnp
from jax.experimental import pallas as pl
from jax.experimental.pallas import tpu as pltpu

NUM_CLASSES = 10
HIDDEN_CONV = 32                 # conv output channels
HIDDEN_FC = 128                  # fc1 width
IMG_HW = 32                      # input spatial size (CIFAR-like)
CIN = 3
K_IM2COL = 9 * CIN               # 27
K_PAD = 32                       # per-pixel conv contraction dim (zero padded)
PIX_PACK = 4                     # pixels packed per MXU row -> 4*32 = 128 lanes
POOL_HW = IMG_HW // 2            # 16
Q_GROUPS = POOL_HW // PIX_PACK   # 4 groups of 4 pooled w-positions
FEAT = HIDDEN_CONV * POOL_HW * POOL_HW   # 8192
FEAT_LANES = PIX_PACK * HIDDEN_CONV      # 128 lanes per pooled row
N_BLOCKS = POOL_HW * Q_GROUPS            # 64 fc1 contraction blocks of 128
N_CHUNKS = 4                             # fc1 weight DMA chunks (~1 MB each)
BLOCKS_PER_CHUNK = N_BLOCKS // N_CHUNKS  # 16
CHUNK_ROWS = BLOCKS_PER_CHUNK * FEAT_LANES   # 2048


# ----------------------------------------------------------------------------
# One fused kernel for the whole network
# ----------------------------------------------------------------------------
def fakenet_kernel(patches_ref, wbd_ref, bc_ref, w1_hbm, b1_ref, w2_ref, b2_ref,
                   out_ref, w1_vmem, feat_ref, dma_sems, *,
                   batch, n_chunks, blocks_per_chunk):
    """small_fakenet forward for one whole (small) batch, fully VMEM-resident.

    patches_ref: (4*npb, 128)  packed im2col; rows (yr, xc, hq, q, b), lanes (j, k)
    wbd_ref:     (128, 128)    block-diagonal conv weight (4 copies of (K_PAD, C))
    bc_ref:      (1, 128)      conv bias tiled 4x
    w1_hbm:      (n_chunks, CHUNK_ROWS, HIDDEN_FC)  fc1 weight, left in HBM
    b1_ref:      (1, HIDDEN_FC)
    w2_ref:      (HIDDEN_FC, NUM_CLASSES)
    b2_ref:      (1, NUM_CLASSES)
    out_ref:     (batch, NUM_CLASSES)
    w1_vmem:     (n_chunks, CHUNK_ROWS, HIDDEN_FC)  streamed fc1 weight scratch
    feat_ref:    (npb, 128)    lane-dense pooled features, rows (hq, q, b)
    dma_sems:    (n_chunks,)   DMA completion semaphores
    """
    # (1) Kick off the fc1 weight stream immediately so the dominant ~4 MB DMA
    #     overlaps the conv / pool / flatten phase.
    for c in range(n_chunks):
        pltpu.make_async_copy(w1_hbm.at[c], w1_vmem.at[c], dma_sems.at[c]).start()

    # (2) conv1 (3x3, pad=1) as ONE lane-dense MXU matmul: 4 pixels per row
    #     against a 128x128 block-diagonal weight.  Bias + ReLU on the VPU.
    y = jnp.dot(patches_ref[...], wbd_ref[...],
                preferred_element_type=jnp.float32)            # (4*npb, 128)
    y = jnp.maximum(y + bc_ref[...], 0.0)

    # (3) 2x2 max-pool, stride 2: the four (yr, xc) pool partners are four
    #     contiguous, vreg-aligned row blocks -> three elementwise maxima,
    #     no relayout, no masked lanes.
    npb = feat_ref.shape[0]
    pooled = jnp.maximum(jnp.maximum(y[0 * npb:1 * npb], y[1 * npb:2 * npb]),
                         jnp.maximum(y[2 * npb:3 * npb], y[3 * npb:4 * npb]))

    # (4) "flatten": one full lane-dense store.  Rows are (hq, q, b); lanes are
    #     (j, c) -- exactly the fc1 contraction-block order (weight pre-permuted).
    feat_ref[...] = pooled

    # (5) fc1: wait for each streamed weight chunk right before its partial
    #     matmuls; accumulate (B, 128) in float32.
    fl = feat_ref.shape[1]                                      # 128
    acc = jnp.zeros((batch, b1_ref.shape[-1]), jnp.float32)
    for c in range(n_chunks):
        pltpu.make_async_copy(w1_hbm.at[c], w1_vmem.at[c], dma_sems.at[c]).wait()
        for j in range(blocks_per_chunk):
            blk = c * blocks_per_chunk + j
            lhs = feat_ref[blk * batch:(blk + 1) * batch, :]    # (B, 128)
            rhs = w1_vmem[c, j * fl:(j + 1) * fl, :]            # (128, 128)
            acc = acc + jnp.dot(lhs, rhs, preferred_element_type=jnp.float32)
    h1 = acc + b1_ref[...]

    # (6) fc2
    logits = jnp.dot(h1, w2_ref[...], preferred_element_type=jnp.float32)
    out_ref[...] = (logits + b2_ref[...]).astype(out_ref.dtype)


# ----------------------------------------------------------------------------
# Wrapper
# ----------------------------------------------------------------------------
def _build_packed_patches(x_nchw):
    """(B,3,32,32) -> (4*npb, 128) packed im2col.

    Rows ordered (yr, xc, hq, q, b); lanes (j, k) with j = pixel-in-group,
    k = (ky, kx, ci) zero-padded to 32.  Pixel (y, x) = (2*hq+yr, 8*q+2*j+xc).
    """
    b = x_nchw.shape[0]
    x = jnp.transpose(x_nchw, (0, 2, 3, 1))                       # NHWC (tiny)
    xp = jnp.pad(x, ((0, 0), (1, 1), (1, 1), (0, 0)))
    cols = [xp[:, ky:ky + IMG_HW, kx:kx + IMG_HW, :]
            for ky in range(3) for kx in range(3)]
    pat = jnp.concatenate(cols, axis=-1)                          # (B,32,32,27)
    pat = jnp.pad(pat, ((0, 0), (0, 0), (0, 0), (0, K_PAD - K_IM2COL)))
    pat = pat.reshape(b, POOL_HW, 2, Q_GROUPS, PIX_PACK, 2, K_PAD)
    #            dims: (b,  hq,   yr, q,        j,        xc, k)
    pat = jnp.transpose(pat, (2, 5, 1, 3, 0, 4, 6))               # (yr,xc,hq,q,b,j,k)
    return pat.reshape(4 * POOL_HW * Q_GROUPS * b, PIX_PACK * K_PAD)


@jax.jit
def net_forward(x_nchw, params):
    b = x_nchw.shape[0]
    patches = _build_packed_patches(x_nchw)          # (256*B, 128), ~256 KB at B=2
    npb = POOL_HW * Q_GROUPS * b                     # pooled rows (128 at B=2)

    kernel = functools.partial(
        fakenet_kernel, batch=b, n_chunks=N_CHUNKS,
        blocks_per_chunk=BLOCKS_PER_CHUNK)
    vmem = pl.BlockSpec(memory_space=pltpu.MemorySpace.VMEM)

    # Single grid-less invocation: the kernel is dominated by the fc1 weight
    # DMA, which is streamed manually (chunked async copies) and overlapped
    # with the conv phase.  A per-image grid would only add per-step overhead.
    return pl.pallas_call(
        kernel,
        out_shape=jax.ShapeDtypeStruct((b, NUM_CLASSES), jnp.float32),
        in_specs=[vmem, vmem, vmem,
                  pl.BlockSpec(memory_space=pl.ANY),   # fc1 weight stays in HBM
                  vmem, vmem, vmem],
        out_specs=vmem,
        scratch_shapes=[
            pltpu.VMEM((N_CHUNKS, CHUNK_ROWS, HIDDEN_FC), jnp.float32),  # w1 stream
            pltpu.VMEM((npb, FEAT_LANES), jnp.float32),                  # feat
            pltpu.SemaphoreType.DMA((N_CHUNKS,)),
        ],
        compiler_params=pltpu.CompilerParams(
            vmem_limit_bytes=32 * 1024 * 1024),
    )(patches, params["conv_wbd"], params["conv_bc"],
      params["fc1_wk"], params["fc1_bk"],
      params["fc2_wk"], params["fc2_bk"])


# ----------------------------------------------------------------------------
# Parameters (PyTorch layout + pre-permuted kernel layout)
# ----------------------------------------------------------------------------
def init_params(key):
    ks = jax.random.split(key, 6)
    conv_w = 0.1 * jax.random.normal(ks[0], (HIDDEN_CONV, CIN, 3, 3), jnp.float32)  # OIHW
    conv_b = 0.1 * jax.random.normal(ks[1], (HIDDEN_CONV,), jnp.float32)
    fc1_w = 0.02 * jax.random.normal(ks[2], (HIDDEN_FC, FEAT), jnp.float32)  # (out, c*h*w)
    fc1_b = 0.1 * jax.random.normal(ks[3], (HIDDEN_FC,), jnp.float32)
    fc2_w = 0.1 * jax.random.normal(ks[4], (NUM_CLASSES, HIDDEN_FC), jnp.float32)
    fc2_b = 0.1 * jax.random.normal(ks[5], (NUM_CLASSES,), jnp.float32)

    # conv weight -> im2col columns (k = (ky,kx,ci), zero-padded), then replicated
    # on a 128x128 block diagonal so 4 packed pixels share one MXU matmul.
    wc = jnp.transpose(conv_w, (2, 3, 1, 0)).reshape(K_IM2COL, HIDDEN_CONV)
    wc = jnp.pad(wc, ((0, K_PAD - K_IM2COL), (0, 0)))                   # (32, 32)
    wbd = jnp.kron(jnp.eye(PIX_PACK, dtype=jnp.float32), wc)            # (128, 128)
    bc = jnp.tile(conv_b, PIX_PACK)[None, :]                            # (1, 128)

    # fc1 weight: torch (out, c*h*w) -> kernel row order ((hq*4+q)*128 + j*32 + c),
    # i.e. contraction blocks matching the pooled (hq, q) rows / (j, c) lanes.
    w1 = fc1_w.reshape(HIDDEN_FC, HIDDEN_CONV, POOL_HW, Q_GROUPS, PIX_PACK)  # (n,c,h,q,j)
    w1 = jnp.transpose(w1, (2, 3, 4, 1, 0))                                  # (h,q,j,c,n)
    w1 = w1.reshape(N_CHUNKS, CHUNK_ROWS, HIDDEN_FC)

    kernel_params = dict(
        conv_wbd=wbd, conv_bc=bc,
        fc1_wk=w1, fc1_bk=fc1_b[None, :],
        fc2_wk=fc2_w.T, fc2_bk=fc2_b[None, :],
    )
    torch_params = dict(conv_w=conv_w, conv_b=conv_b,
                        fc1_w=fc1_w, fc1_b=fc1_b, fc2_w=fc2_w, fc2_b=fc2_b)
    return kernel_params, torch_params


def reference_forward(x_nchw, p):
    """Pure-JAX replica of the PyTorch small_fakenet forward (NCHW)."""
    y = jax.lax.conv_general_dilated(
        x_nchw, p["conv_w"], window_strides=(1, 1), padding=((1, 1), (1, 1)),
        dimension_numbers=("NCHW", "OIHW", "NCHW"))
    y = y + p["conv_b"][None, :, None, None]
    y = jnp.maximum(y, 0.0)                                          # ReLU
    b, c, h, w = y.shape
    y = jnp.max(y.reshape(b, c, h // 2, 2, w // 2, 2), axis=(3, 5))  # MaxPool2d(2)
    feat = y.reshape(b, -1)                                          # NCHW flatten
    h1 = feat @ p["fc1_w"].T + p["fc1_b"]
    return h1 @ p["fc2_w"].T + p["fc2_b"]


if __name__ == "__main__":
    key = jax.random.PRNGKey(0)
    pkey, xkey = jax.random.split(key)
    params, torch_params = init_params(pkey)

    # CIFAR-like NCHW input as in the PyTorch module: (batch=2, C=3, H=32, W=32)
    x = jax.random.normal(xkey, (2, CIN, IMG_HW, IMG_HW), jnp.float32)

    out = jax.block_until_ready(net_forward(x, params))
    ref = reference_forward(x, torch_params)

    assert out.shape == (2, NUM_CLASSES), out.shape
    assert jnp.allclose(out, ref, rtol=1e-3, atol=1e-4), (
        f"max abs diff {float(jnp.max(jnp.abs(out - ref)))}")
    print("KERNEL_OK")
</pallas_src>

<mosaic_0001>
module attributes {stable_mosaic.version = 11 : i64} {
  func.func @fakenet_kernel(%arg0: memref<512x128xf32, #tpu.memory_space<vmem>>, %arg1: memref<128x128xf32, #tpu.memory_space<vmem>>, %arg2: memref<1x128xf32, #tpu.memory_space<vmem>>, %arg3: memref<4x2048x128xf32, #tpu.memory_space<any>>, %arg4: memref<1x128xf32, #tpu.memory_space<vmem>>, %arg5: memref<128x10xf32, #tpu.memory_space<vmem>>, %arg6: memref<1x10xf32, #tpu.memory_space<vmem>>, %arg7: memref<2x10xf32, #tpu.memory_space<vmem>>, %arg8: memref<4x2048x128xf32, #tpu.memory_space<vmem>>, %arg9: memref<128x128xf32, #tpu.memory_space<vmem>>, %arg10: memref<4x!tpu.dma_semaphore, #tpu.memory_space<semaphore_mem>>) attributes {dimension_semantics = [], scalar_prefetch = 0 : i64, scratch_operands = 3 : i64, tpu.core_type = #tpu.core_type<tc>} {
    %c0_i32 = arith.constant 0 : i32
    %c0_i32_0 = arith.constant 0 : i32
    %c0_i32_1 = arith.constant 0 : i32
    %c0_i32_2 = arith.constant 0 : i32
    %c0_i32_3 = arith.constant 0 : i32
    %0 = tpu.memref_slice %arg3[%c0_i32, %c0_i32_2, %c0_i32_3] : memref<4x2048x128xf32, #tpu.memory_space<any>> -> memref<1x2048x128xf32, #tpu.memory_space<any>>
    %1 = tpu.memref_squeeze %0 : memref<1x2048x128xf32, #tpu.memory_space<any>> -> memref<2048x128xf32, #tpu.memory_space<any>>
    %c0_i32_4 = arith.constant 0 : i32
    %c0_i32_5 = arith.constant 0 : i32
    %2 = tpu.memref_slice %arg8[%c0_i32_0, %c0_i32_4, %c0_i32_5] : memref<4x2048x128xf32, #tpu.memory_space<vmem>> -> memref<1x2048x128xf32, #tpu.memory_space<vmem>>
    %3 = tpu.memref_squeeze %2 : memref<1x2048x128xf32, #tpu.memory_space<vmem>> -> memref<2048x128xf32, #tpu.memory_space<vmem>>
    %4 = tpu.memref_slice %arg10[%c0_i32_1] : memref<4x!tpu.dma_semaphore, #tpu.memory_space<semaphore_mem>> -> memref<1x!tpu.dma_semaphore, #tpu.memory_space<semaphore_mem>>
    %5 = tpu.memref_squeeze %4 : memref<1x!tpu.dma_semaphore, #tpu.memory_space<semaphore_mem>> -> memref<!tpu.dma_semaphore, #tpu.memory_space<semaphore_mem>>
    tpu.enqueue_dma source(%1 : memref<2048x128xf32, #tpu.memory_space<any>>) target(%3 : memref<2048x128xf32, #tpu.memory_space<vmem>>) target_semaphore(%5 : memref<!tpu.dma_semaphore, #tpu.memory_space<semaphore_mem>>)
    %c1_i32 = arith.constant 1 : i32
    %c1_i32_6 = arith.constant 1 : i32
    %c1_i32_7 = arith.constant 1 : i32
    %c0_i32_8 = arith.constant 0 : i32
    %c0_i32_9 = arith.constant 0 : i32
    %6 = tpu.memref_slice %arg3[%c1_i32, %c0_i32_8, %c0_i32_9] : memref<4x2048x128xf32, #tpu.memory_space<any>> -> memref<1x2048x128xf32, #tpu.memory_space<any>>
    %7 = tpu.memref_squeeze %6 : memref<1x2048x128xf32, #tpu.memory_space<any>> -> memref<2048x128xf32, #tpu.memory_space<any>>
    %c0_i32_10 = arith.constant 0 : i32
    %c0_i32_11 = arith.constant 0 : i32
    %8 = tpu.memref_slice %arg8[%c1_i32_6, %c0_i32_10, %c0_i32_11] : memref<4x2048x128xf32, #tpu.memory_space<vmem>> -> memref<1x2048x128xf32, #tpu.memory_space<vmem>>
    %9 = tpu.memref_squeeze %8 : memref<1x2048x128xf32, #tpu.memory_space<vmem>> -> memref<2048x128xf32, #tpu.memory_space<vmem>>
    %10 = tpu.memref_slice %arg10[%c1_i32_7] : memref<4x!tpu.dma_semaphore, #tpu.memory_space<semaphore_mem>> -> memref<1x!tpu.dma_semaphore, #tpu.memory_space<semaphore_mem>>
    %11 = tpu.memref_squeeze %10 : memref<1x!tpu.dma_semaphore, #tpu.memory_space<semaphore_mem>> -> memref<!tpu.dma_semaphore, #tpu.memory_space<semaphore_mem>>
    tpu.enqueue_dma source(%7 : memref<2048x128xf32, #tpu.memory_space<any>>) target(%9 : memref<2048x128xf32, #tpu.memory_space<vmem>>) target_semaphore(%11 : memref<!tpu.dma_semaphore, #tpu.memory_space<semaphore_mem>>)
    %c2_i32 = arith.constant 2 : i32
    %c2_i32_12 = arith.constant 2 : i32
    %c2_i32_13 = arith.constant 2 : i32
    %c0_i32_14 = arith.constant 0 : i32
    %c0_i32_15 = arith.constant 0 : i32
    %12 = tpu.memref_slice %arg3[%c2_i32, %c0_i32_14, %c0_i32_15] : memref<4x2048x128xf32, #tpu.memory_space<any>> -> memref<1x2048x128xf32, #tpu.memory_space<any>>
    %13 = tpu.memref_squeeze %12 : memref<1x2048x128xf32, #tpu.memory_space<any>> -> memref<2048x128xf32, #tpu.memory_space<any>>
    %c0_i32_16 = arith.constant 0 : i32
    %c0_i32_17 = arith.constant 0 : i32
    %14 = tpu.memref_slice %arg8[%c2_i32_12, %c0_i32_16, %c0_i32_17] : memref<4x2048x128xf32, #tpu.memory_space<vmem>> -> memref<1x2048x128xf32, #tpu.memory_space<vmem>>
    %15 = tpu.memref_squeeze %14 : memref<1x2048x128xf32, #tpu.memory_space<vmem>> -> memref<2048x128xf32, #tpu.memory_space<vmem>>
    %16 = tpu.memref_slice %arg10[%c2_i32_13] : memref<4x!tpu.dma_semaphore, #tpu.memory_space<semaphore_mem>> -> memref<1x!tpu.dma_semaphore, #tpu.memory_space<semaphore_mem>>
    %17 = tpu.memref_squeeze %16 : memref<1x!tpu.dma_semaphore, #tpu.memory_space<semaphore_mem>> -> memref<!tpu.dma_semaphore, #tpu.memory_space<semaphore_mem>>
    tpu.enqueue_dma source(%13 : memref<2048x128xf32, #tpu.memory_space<any>>) target(%15 : memref<2048x128xf32, #tpu.memory_space<vmem>>) target_semaphore(%17 : memref<!tpu.dma_semaphore, #tpu.memory_space<semaphore_mem>>)
    %c3_i32 = arith.constant 3 : i32
    %c3_i32_18 = arith.constant 3 : i32
    %c3_i32_19 = arith.constant 3 : i32
    %c0_i32_20 = arith.constant 0 : i32
    %c0_i32_21 = arith.constant 0 : i32
    %18 = tpu.memref_slice %arg3[%c3_i32, %c0_i32_20, %c0_i32_21] : memref<4x2048x128xf32, #tpu.memory_space<any>> -> memref<1x2048x128xf32, #tpu.memory_space<any>>
    %19 = tpu.memref_squeeze %18 : memref<1x2048x128xf32, #tpu.memory_space<any>> -> memref<2048x128xf32, #tpu.memory_space<any>>
    %c0_i32_22 = arith.constant 0 : i32
    %c0_i32_23 = arith.constant 0 : i32
    %20 = tpu.memref_slice %arg8[%c3_i32_18, %c0_i32_22, %c0_i32_23] : memref<4x2048x128xf32, #tpu.memory_space<vmem>> -> memref<1x2048x128xf32, #tpu.memory_space<vmem>>
    %21 = tpu.memref_squeeze %20 : memref<1x2048x128xf32, #tpu.memory_space<vmem>> -> memref<2048x128xf32, #tpu.memory_space<vmem>>
    %22 = tpu.memref_slice %arg10[%c3_i32_19] : memref<4x!tpu.dma_semaphore, #tpu.memory_space<semaphore_mem>> -> memref<1x!tpu.dma_semaphore, #tpu.memory_space<semaphore_mem>>
    %23 = tpu.memref_squeeze %22 : memref<1x!tpu.dma_semaphore, #tpu.memory_space<semaphore_mem>> -> memref<!tpu.dma_semaphore, #tpu.memory_space<semaphore_mem>>
    tpu.enqueue_dma source(%19 : memref<2048x128xf32, #tpu.memory_space<any>>) target(%21 : memref<2048x128xf32, #tpu.memory_space<vmem>>) target_semaphore(%23 : memref<!tpu.dma_semaphore, #tpu.memory_space<semaphore_mem>>)
    %c0 = arith.constant 0 : index
    %c0_24 = arith.constant 0 : index
    %24 = vector.load %arg0[%c0, %c0_24] : memref<512x128xf32, #tpu.memory_space<vmem>>, vector<512x128xf32>
    %c0_25 = arith.constant 0 : index
    %c0_26 = arith.constant 0 : index
    %25 = vector.load %arg1[%c0_25, %c0_26] : memref<128x128xf32, #tpu.memory_space<vmem>>, vector<128x128xf32>
    %cst = arith.constant dense<0.000000e+00> : vector<512x128xf32>
    %26 = tpu.matmul %24, %25, %cst {dimension_numbers = #tpu.dot_dimension_numbers<[1], [0], [0], [1], [0, 0, 1, 1], [], []>} : vector<512x128xf32>, vector<128x128xf32>, vector<512x128xf32> -> vector<512x128xf32>
    %c0_27 = arith.constant 0 : index
    %c0_28 = arith.constant 0 : index
    %27 = vector.load %arg2[%c0_27, %c0_28] : memref<1x128xf32, #tpu.memory_space<vmem>>, vector<1x128xf32>
    %28 = vector.broadcast %27 : vector<1x128xf32> to vector<512x128xf32>
    %29 = arith.addf %26, %28 : vector<512x128xf32>
    %cst_29 = arith.constant 0.000000e+00 : f32
    %30 = vector.broadcast %cst_29 : f32 to vector<512x128xf32>
    %31 = arith.maximumf %29, %30 : vector<512x128xf32>
    %32 = vector.extract_strided_slice %31 {offsets = [0, 0], sizes = [128, 128], strides = [1, 1]} : vector<512x128xf32> to vector<128x128xf32>
    %33 = vector.extract_strided_slice %31 {offsets = [128, 0], sizes = [128, 128], strides = [1, 1]} : vector<512x128xf32> to vector<128x128xf32>
    %34 = arith.maximumf %32, %33 : vector<128x128xf32>
    %35 = vector.extract_strided_slice %31 {offsets = [256, 0], sizes = [128, 128], strides = [1, 1]} : vector<512x128xf32> to vector<128x128xf32>
    %36 = vector.extract_strided_slice %31 {offsets = [384, 0], sizes = [128, 128], strides = [1, 1]} : vector<512x128xf32> to vector<128x128xf32>
    %37 = arith.maximumf %35, %36 : vector<128x128xf32>
    %38 = arith.maximumf %34, %37 : vector<128x128xf32>
    %c0_30 = arith.constant 0 : index
    %c0_31 = arith.constant 0 : index
    %39 = vector.load %arg9[%c0_30, %c0_31] : memref<128x128xf32, #tpu.memory_space<vmem>>, vector<128x128xf32>
    tpu.vector_store %arg9[%c0_30, %c0_31], %38 {strides = array<i32>} : memref<128x128xf32, #tpu.memory_space<vmem>>, vector<128x128xf32>,
    %cst_32 = arith.constant 0.000000e+00 : f32
    %40 = vector.broadcast %cst_32 : f32 to vector<2x128xf32>
    %c0_i32_33 = arith.constant 0 : i32
    %c0_i32_34 = arith.constant 0 : i32
    %c0_i32_35 = arith.constant 0 : i32
    %c0_i32_36 = arith.constant 0 : i32
    %c0_i32_37 = arith.constant 0 : i32
    %41 = tpu.memref_slice %arg3[%c0_i32_33, %c0_i32_36, %c0_i32_37] : memref<4x2048x128xf32, #tpu.memory_space<any>> -> memref<1x2048x128xf32, #tpu.memory_space<any>>
    %42 = tpu.memref_squeeze %41 : memref<1x2048x128xf32, #tpu.memory_space<any>> -> memref<2048x128xf32, #tpu.memory_space<any>>
    %c0_i32_38 = arith.constant 0 : i32
    %c0_i32_39 = arith.constant 0 : i32
    %43 = tpu.memref_slice %arg8[%c0_i32_34, %c0_i32_38, %c0_i32_39] : memref<4x2048x128xf32, #tpu.memory_space<vmem>> -> memref<1x2048x128xf32, #tpu.memory_space<vmem>>
    %44 = tpu.memref_squeeze %43 : memref<1x2048x128xf32, #tpu.memory_space<vmem>> -> memref<2048x128xf32, #tpu.memory_space<vmem>>
    %45 = tpu.memref_slice %arg10[%c0_i32_35] : memref<4x!tpu.dma_semaphore, #tpu.memory_space<semaphore_mem>> -> memref<1x!tpu.dma_semaphore, #tpu.memory_space<semaphore_mem>>
    %46 = tpu.memref_squeeze %45 : memref<1x!tpu.dma_semaphore, #tpu.memory_space<semaphore_mem>> -> memref<!tpu.dma_semaphore, #tpu.memory_space<semaphore_mem>>
    tpu.wait_dma2 semaphore(%46 : memref<!tpu.dma_semaphore, #tpu.memory_space<semaphore_mem>>) src(%42 : memref<2048x128xf32, #tpu.memory_space<any>>) dst(%44 : memref<2048x128xf32, #tpu.memory_space<vmem>>)
    %c0_40 = arith.constant 0 : index
    %c0_41 = arith.constant 0 : index
    %47 = vector.load %arg9[%c0_40, %c0_41] : memref<128x128xf32, #tpu.memory_space<vmem>>, vector<2x128xf32>
    %c0_42 = arith.constant 0 : index
    %c0_43 = arith.constant 0 : index
    %c0_44 = arith.constant 0 : index
    %48 = vector.load %arg8[%c0_42, %c0_43, %c0_44] : memref<4x2048x128xf32, #tpu.memory_space<vmem>>, vector<1x128x128xf32>
    %49 = vector.shape_cast %48 : vector<1x128x128xf32> to vector<128x128xf32>
    %cst_45 = arith.constant dense<0.000000e+00> : vector<2x128xf32>
    %50 = tpu.matmul %47, %49, %cst_45 {dimension_numbers = #tpu.dot_dimension_numbers<[1], [0], [0], [1], [0, 0, 1, 1], [], []>} : vector<2x128xf32>, vector<128x128xf32>, vector<2x128xf32> -> vector<2x128xf32>
    %51 = arith.addf %40, %50 : vector<2x128xf32>
    %c2 = arith.constant 2 : index
    %c0_46 = arith.constant 0 : index
    %52 = vector.load %arg9[%c2, %c0_46] : memref<128x128xf32, #tpu.memory_space<vmem>>, vector<2x128xf32>
    %c0_47 = arith.constant 0 : index
    %c128 = arith.constant 128 : index
    %c0_48 = arith.constant 0 : index
    %53 = vector.load %arg8[%c0_47, %c128, %c0_48] : memref<4x2048x128xf32, #tpu.memory_space<vmem>>, vector<1x128x128xf32>
    %54 = vector.shape_cast %53 : vector<1x128x128xf32> to vector<128x128xf32>
    %cst_49 = arith.constant dense<0.000000e+00> : vector<2x128xf32>
    %55 = tpu.matmul %52, %54, %cst_49 {dimension_numbers = #tpu.dot_dimension_numbers<[1], [0], [0], [1], [0, 0, 1, 1], [], []>} : vector<2x128xf32>, vector<128x128xf32>, vector<2x128xf32> -> vector<2x128xf32>
    %56 = arith.addf %51, %55 : vector<2x128xf32>
    %c4 = arith.constant 4 : index
    %c0_50 = arith.constant 0 : index
    %57 = vector.load %arg9[%c4, %c0_50] : memref<128x128xf32, #tpu.memory_space<vmem>>, vector<2x128xf32>
    %c0_51 = arith.constant 0 : index
    %c256 = arith.constant 256 : index
    %c0_52 = arith.constant 0 : index
    %58 = vector.load %arg8[%c0_51, %c256, %c0_52] : memref<4x2048x128xf32, #tpu.memory_space<vmem>>, vector<1x128x128xf32>
    %59 = vector.shape_cast %58 : vector<1x128x128xf32> to vector<128x128xf32>
    %cst_53 = arith.constant dense<0.000000e+00> : vector<2x128xf32>
    %60 = tpu.matmul %57, %59, %cst_53 {dimension_numbers = #tpu.dot_dimension_numbers<[1], [0], [0], [1], [0, 0, 1, 1], [], []>} : vector<2x128xf32>, vector<128x128xf32>, vector<2x128xf32> -> vector<2x128xf32>
    %61 = arith.addf %56, %60 : vector<2x128xf32>
    %c6 = arith.constant 6 : index
    %c0_54 = arith.constant 0 : index
    %62 = vector.load %arg9[%c6, %c0_54] : memref<128x128xf32, #tpu.memory_space<vmem>>, vector<2x128xf32>
    %c0_55 = arith.constant 0 : index
    %c384 = arith.constant 384 : index
    %c0_56 = arith.constant 0 : index
    %63 = vector.load %arg8[%c0_55, %c384, %c0_56] : memref<4x2048x128xf32, #tpu.memory_space<vmem>>, vector<1x128x128xf32>
    %64 = vector.shape_cast %63 : vector<1x128x128xf32> to vector<128x128xf32>
    %cst_57 = arith.constant dense<0.000000e+00> : vector<2x128xf32>
    %65 = tpu.matmul %62, %64, %cst_57 {dimension_numbers = #tpu.dot_dimension_numbers<[1], [0], [0], [1], [0, 0, 1, 1], [], []>} : vector<2x128xf32>, vector<128x128xf32>, vector<2x128xf32> -> vector<2x128xf32>
    %66 = arith.addf %61, %65 : vector<2x128xf32>
    %c8 = arith.constant 8 : index
    %c0_58 = arith.constant 0 : index
    %67 = vector.load %arg9[%c8, %c0_58] : memref<128x128xf32, #tpu.memory_space<vmem>>, vector<2x128xf32>
    %c0_59 = arith.constant 0 : index
    %c512 = arith.constant 512 : index
    %c0_60 = arith.constant 0 : index
    %68 = vector.load %arg8[%c0_59, %c512, %c0_60] : memref<4x2048x128xf32, #tpu.memory_space<vmem>>, vector<1x128x128xf32>
    %69 = vector.shape_cast %68 : vector<1x128x128xf32> to vector<128x128xf32>
    %cst_61 = arith.constant dense<0.000000e+00> : vector<2x128xf32>
    %70 = tpu.matmul %67, %69, %cst_61 {dimension_numbers = #tpu.dot_dimension_numbers<[1], [0], [0], [1], [0, 0, 1, 1], [], []>} : vector<2x128xf32>, vector<128x128xf32>, vector<2x128xf32> -> vector<2x128xf32>
    %71 = arith.addf %66, %70 : vector<2x128xf32>
    %c10 = arith.constant 10 : index
    %c0_62 = arith.constant 0 : index
    %72 = vector.load %arg9[%c10, %c0_62] : memref<128x128xf32, #tpu.memory_space<vmem>>, vector<2x128xf32>
    %c0_63 = arith.constant 0 : index
    %c640 = arith.constant 640 : index
    %c0_64 = arith.constant 0 : index
    %73 = vector.load %arg8[%c0_63, %c640, %c0_64] : memref<4x2048x128xf32, #tpu.memory_space<vmem>>, vector<1x128x128xf32>
    %74 = vector.shape_cast %73 : vector<1x128x128xf32> to vector<128x128xf32>
    %cst_65 = arith.constant dense<0.000000e+00> : vector<2x128xf32>
    %75 = tpu.matmul %72, %74, %cst_65 {dimension_numbers = #tpu.dot_dimension_numbers<[1], [0], [0], [1], [0, 0, 1, 1], [], []>} : vector<2x128xf32>, vector<128x128xf32>, vector<2x128xf32> -> vector<2x128xf32>
    %76 = arith.addf %71, %75 : vector<2x128xf32>
    %c12 = arith.constant 12 : index
    %c0_66 = arith.constant 0 : index
    %77 = vector.load %arg9[%c12, %c0_66] : memref<128x128xf32, #tpu.memory_space<vmem>>, vector<2x128xf32>
    %c0_67 = arith.constant 0 : index
    %c768 = arith.constant 768 : index
    %c0_68 = arith.constant 0 : index
    %78 = vector.load %arg8[%c0_67, %c768, %c0_68] : memref<4x2048x128xf32, #tpu.memory_space<vmem>>, vector<1x128x128xf32>
    %79 = vector.shape_cast %78 : vector<1x128x128xf32> to vector<128x128xf32>
    %cst_69 = arith.constant dense<0.000000e+00> : vector<2x128xf32>
    %80 = tpu.matmul %77, %79, %cst_69 {dimension_numbers = #tpu.dot_dimension_numbers<[1], [0], [0], [1], [0, 0, 1, 1], [], []>} : vector<2x128xf32>, vector<128x128xf32>, vector<2x128xf32> -> vector<2x128xf32>
    %81 = arith.addf %76, %80 : vector<2x128xf32>
    %c14 = arith.constant 14 : index
    %c0_70 = arith.constant 0 : index
    %82 = vector.load %arg9[%c14, %c0_70] : memref<128x128xf32, #tpu.memory_space<vmem>>, vector<2x128xf32>
    %c0_71 = arith.constant 0 : index
    %c896 = arith.constant 896 : index
    %c0_72 = arith.constant 0 : index
    %83 = vector.load %arg8[%c0_71, %c896, %c0_72] : memref<4x2048x128xf32, #tpu.memory_space<vmem>>, vector<1x128x128xf32>
    %84 = vector.shape_cast %83 : vector<1x128x128xf32> to vector<128x128xf32>
    %cst_73 = arith.constant dense<0.000000e+00> : vector<2x128xf32>
    %85 = tpu.matmul %82, %84, %cst_73 {dimension_numbers = #tpu.dot_dimension_numbers<[1], [0], [0], [1], [0, 0, 1, 1], [], []>} : vector<2x128xf32>, vector<128x128xf32>, vector<2x128xf32> -> vector<2x128xf32>
    %86 = arith.addf %81, %85 : vector<2x128xf32>
    %c16 = arith.constant 16 : index
    %c0_74 = arith.constant 0 : index
    %87 = vector.load %arg9[%c16, %c0_74] : memref<128x128xf32, #tpu.memory_space<vmem>>, vector<2x128xf32>
    %c0_75 = arith.constant 0 : index
    %c1024 = arith.constant 1024 : index
    %c0_76 = arith.constant 0 : index
    %88 = vector.load %arg8[%c0_75, %c1024, %c0_76] : memref<4x2048x128xf32, #tpu.memory_space<vmem>>, vector<1x128x128xf32>
    %89 = vector.shape_cast %88 : vector<1x128x128xf32> to vector<128x128xf32>
    %cst_77 = arith.constant dense<0.000000e+00> : vector<2x128xf32>
    %90 = tpu.matmul %87, %89, %cst_77 {dimension_numbers = #tpu.dot_dimension_numbers<[1], [0], [0], [1], [0, 0, 1, 1], [], []>} : vector<2x128xf32>, vector<128x128xf32>, vector<2x128xf32> -> vector<2x128xf32>
    %91 = arith.addf %86, %90 : vector<2x128xf32>
    %c18 = arith.constant 18 : index
    %c0_78 = arith.constant 0 : index
    %92 = vector.load %arg9[%c18, %c0_78] : memref<128x128xf32, #tpu.memory_space<vmem>>, vector<2x128xf32>
    %c0_79 = arith.constant 0 : index
    %c1152 = arith.constant 1152 : index
    %c0_80 = arith.constant 0 : index
    %93 = vector.load %arg8[%c0_79, %c1152, %c0_80] : memref<4x2048x128xf32, #tpu.memory_space<vmem>>, vector<1x128x128xf32>
    %94 = vector.shape_cast %93 : vector<1x128x128xf32> to vector<128x128xf32>
    %cst_81 = arith.constant dense<0.000000e+00> : vector<2x128xf32>
    %95 = tpu.matmul %92, %94, %cst_81 {dimension_numbers = #tpu.dot_dimension_numbers<[1], [0], [0], [1], [0, 0, 1, 1], [], []>} : vector<2x128xf32>, vector<128x128xf32>, vector<2x128xf32> -> vector<2x128xf32>
    %96 = arith.addf %91, %95 : vector<2x128xf32>
    %c20 = arith.constant 20 : index
    %c0_82 = arith.constant 0 : index
    %97 = vector.load %arg9[%c20, %c0_82] : memref<128x128xf32, #tpu.memory_space<vmem>>, vector<2x128xf32>
    %c0_83 = arith.constant 0 : index
    %c1280 = arith.constant 1280 : index
    %c0_84 = arith.constant 0 : index
    %98 = vector.load %arg8[%c0_83, %c1280, %c0_84] : memref<4x2048x128xf32, #tpu.memory_space<vmem>>, vector<1x128x128xf32>
    %99 = vector.shape_cast %98 : vector<1x128x128xf32> to vector<128x128xf32>
    %cst_85 = arith.constant dense<0.000000e+00> : vector<2x128xf32>
    %100 = tpu.matmul %97, %99, %cst_85 {dimension_numbers = #tpu.dot_dimension_numbers<[1], [0], [0], [1], [0, 0, 1, 1], [], []>} : vector<2x128xf32>, vector<128x128xf32>, vector<2x128xf32> -> vector<2x128xf32>
    %101 = arith.addf %96, %100 : vector<2x128xf32>
    %c22 = arith.constant 22 : index
    %c0_86 = arith.constant 0 : index
    %102 = vector.load %arg9[%c22, %c0_86] : memref<128x128xf32, #tpu.memory_space<vmem>>, vector<2x128xf32>
    %c0_87 = arith.constant 0 : index
    %c1408 = arith.constant 1408 : index
    %c0_88 = arith.constant 0 : index
    %103 = vector.load %arg8[%c0_87, %c1408, %c0_88] : memref<4x2048x128xf32, #tpu.memory_space<vmem>>, vector<1x128x128xf32>
    %104 = vector.shape_cast %103 : vector<1x128x128xf32> to vector<128x128xf32>
    %cst_89 = arith.constant dense<0.000000e+00> : vector<2x128xf32>
    %105 = tpu.matmul %102, %104, %cst_89 {dimension_numbers = #tpu.dot_dimension_numbers<[1], [0], [0], [1], [0, 0, 1, 1], [], []>} : vector<2x128xf32>, vector<128x128xf32>, vector<2x128xf32> -> vector<2x128xf32>
    %106 = arith.addf %101, %105 : vector<2x128xf32>
    %c24 = arith.constant 24 : index
    %c0_90 = arith.constant 0 : index
    %107 = vector.load %arg9[%c24, %c0_90] : memref<128x128xf32, #tpu.memory_space<vmem>>, vector<2x128xf32>
    %c0_91 = arith.constant 0 : index
    %c1536 = arith.constant 1536 : index
    %c0_92 = arith.constant 0 : index
    %108 = vector.load %arg8[%c0_91, %c1536, %c0_92] : memref<4x2048x128xf32, #tpu.memory_space<vmem>>, vector<1x128x128xf32>
    %109 = vector.shape_cast %108 : vector<1x128x128xf32> to vector<128x128xf32>
    %cst_93 = arith.constant dense<0.000000e+00> : vector<2x128xf32>
    %110 = tpu.matmul %107, %109, %cst_93 {dimension_numbers = #tpu.dot_dimension_numbers<[1], [0], [0], [1], [0, 0, 1, 1], [], []>} : vector<2x128xf32>, vector<128x128xf32>, vector<2x128xf32> -> vector<2x128xf32>
    %111 = arith.addf %106, %110 : vector<2x128xf32>
    %c26 = arith.constant 26 : index
    %c0_94 = arith.constant 0 : index
    %112 = vector.load %arg9[%c26, %c0_94] : memref<128x128xf32, #tpu.memory_space<vmem>>, vector<2x128xf32>
    %c0_95 = arith.constant 0 : index
    %c1664 = arith.constant 1664 : index
    %c0_96 = arith.constant 0 : index
    %113 = vector.load %arg8[%c0_95, %c1664, %c0_96] : memref<4x2048x128xf32, #tpu.memory_space<vmem>>, vector<1x128x128xf32>
    %114 = vector.shape_cast %113 : vector<1x128x128xf32> to vector<128x128xf32>
    %cst_97 = arith.constant dense<0.000000e+00> : vector<2x128xf32>
    %115 = tpu.matmul %112, %114, %cst_97 {dimension_numbers = #tpu.dot_dimension_numbers<[1], [0], [0], [1], [0, 0, 1, 1], [], []>} : vector<2x128xf32>, vector<128x128xf32>, vector<2x128xf32> -> vector<2x128xf32>
    %116 = arith.addf %111, %115 : vector<2x128xf32>
    %c28 = arith.constant 28 : index
    %c0_98 = arith.constant 0 : index
    %117 = vector.load %arg9[%c28, %c0_98] : memref<128x128xf32, #tpu.memory_space<vmem>>, vector<2x128xf32>
    %c0_99 = arith.constant 0 : index
    %c1792 = arith.constant 1792 : index
    %c0_100 = arith.constant 0 : index
    %118 = vector.load %arg8[%c0_99, %c1792, %c0_100] : memref<4x2048x128xf32, #tpu.memory_space<vmem>>, vector<1x128x128xf32>
    %119 = vector.shape_cast %118 : vector<1x128x128xf32> to vector<128x128xf32>
    %cst_101 = arith.constant dense<0.000000e+00> : vector<2x128xf32>
    %120 = tpu.matmul %117, %119, %cst_101 {dimension_numbers = #tpu.dot_dimension_numbers<[1], [0], [0], [1], [0, 0, 1, 1], [], []>} : vector<2x128xf32>, vector<128x128xf32>, vector<2x128xf32> -> vector<2x128xf32>
    %121 = arith.addf %116, %120 : vector<2x128xf32>
    %c30 = arith.constant 30 : index
    %c0_102 = arith.constant 0 : index
    %122 = vector.load %arg9[%c30, %c0_102] : memref<128x128xf32, #tpu.memory_space<vmem>>, vector<2x128xf32>
    %c0_103 = arith.constant 0 : index
    %c1920 = arith.constant 1920 : index
    %c0_104 = arith.constant 0 : index
    %123 = vector.load %arg8[%c0_103, %c1920, %c0_104] : memref<4x2048x128xf32, #tpu.memory_space<vmem>>, vector<1x128x128xf32>
    %124 = vector.shape_cast %123 : vector<1x128x128xf32> to vector<128x128xf32>
    %cst_105 = arith.constant dense<0.000000e+00> : vector<2x128xf32>
    %125 = tpu.matmul %122, %124, %cst_105 {dimension_numbers = #tpu.dot_dimension_numbers<[1], [0], [0], [1], [0, 0, 1, 1], [], []>} : vector<2x128xf32>, vector<128x128xf32>, vector<2x128xf32> -> vector<2x128xf32>
    %126 = arith.addf %121, %125 : vector<2x128xf32>
    %c1_i32_106 = arith.constant 1 : i32
    %c1_i32_107 = arith.constant 1 : i32
    %c1_i32_108 = arith.constant 1 : i32
    %c0_i32_109 = arith.constant 0 : i32
    %c0_i32_110 = arith.constant 0 : i32
    %127 = tpu.memref_slice %arg3[%c1_i32_106, %c0_i32_109, %c0_i32_110] : memref<4x2048x128xf32, #tpu.memory_space<any>> -> memref<1x2048x128xf32, #tpu.memory_space<any>>
    %128 = tpu.memref_squeeze %127 : memref<1x2048x128xf32, #tpu.memory_space<any>> -> memref<2048x128xf32, #tpu.memory_space<any>>
    %c0_i32_111 = arith.constant 0 : i32
    %c0_i32_112 = arith.constant 0 : i32
    %129 = tpu.memref_slice %arg8[%c1_i32_107, %c0_i32_111, %c0_i32_112] : memref<4x2048x128xf32, #tpu.memory_space<vmem>> -> memref<1x2048x128xf32, #tpu.memory_space<vmem>>
    %130 = tpu.memref_squeeze %129 : memref<1x2048x128xf32, #tpu.memory_space<vmem>> -> memref<2048x128xf32, #tpu.memory_space<vmem>>
    %131 = tpu.memref_slice %arg10[%c1_i32_108] : memref<4x!tpu.dma_semaphore, #tpu.memory_space<semaphore_mem>> -> memref<1x!tpu.dma_semaphore, #tpu.memory_space<semaphore_mem>>
    %132 = tpu.memref_squeeze %131 : memref<1x!tpu.dma_semaphore, #tpu.memory_space<semaphore_mem>> -> memref<!tpu.dma_semaphore, #tpu.memory_space<semaphore_mem>>
    tpu.wait_dma2 semaphore(%132 : memref<!tpu.dma_semaphore, #tpu.memory_space<semaphore_mem>>) src(%128 : memref<2048x128xf32, #tpu.memory_space<any>>) dst(%130 : memref<2048x128xf32, #tpu.memory_space<vmem>>)
    %c32 = arith.constant 32 : index
    %c0_113 = arith.constant 0 : index
    %133 = vector.load %arg9[%c32, %c0_113] : memref<128x128xf32, #tpu.memory_space<vmem>>, vector<2x128xf32>
    %c1 = arith.constant 1 : index
    %c0_114 = arith.constant 0 : index
    %c0_115 = arith.constant 0 : index
    %134 = vector.load %arg8[%c1, %c0_114, %c0_115] : memref<4x2048x128xf32, #tpu.memory_space<vmem>>, vector<1x128x128xf32>
    %135 = vector.shape_cast %134 : vector<1x128x128xf32> to vector<128x128xf32>
    %cst_116 = arith.constant dense<0.000000e+00> : vector<2x128xf32>
    %136 = tpu.matmul %133, %135, %cst_116 {dimension_numbers = #tpu.dot_dimension_numbers<[1], [0], [0], [1], [0, 0, 1, 1], [], []>} : vector<2x128xf32>, vector<128x128xf32>, vector<2x128xf32> -> vector<2x128xf32>
    %137 = arith.addf %126, %136 : vector<2x128xf32>
    %c34 = arith.constant 34 : index
    %c0_117 = arith.constant 0 : index
    %138 = vector.load %arg9[%c34, %c0_117] : memref<128x128xf32, #tpu.memory_space<vmem>>, vector<2x128xf32>
    %c1_118 = arith.constant 1 : index
    %c128_119 = arith.constant 128 : index
    %c0_120 = arith.constant 0 : index
    %139 = vector.load %arg8[%c1_118, %c128_119, %c0_120] : memref<4x2048x128xf32, #tpu.memory_space<vmem>>, vector<1x128x128xf32>
    %140 = vector.shape_cast %139 : vector<1x128x128xf32> to vector<128x128xf32>
    %cst_121 = arith.constant dense<0.000000e+00> : vector<2x128xf32>
    %141 = tpu.matmul %138, %140, %cst_121 {dimension_numbers = #tpu.dot_dimension_numbers<[1], [0], [0], [1], [0, 0, 1, 1], [], []>} : vector<2x128xf32>, vector<128x128xf32>, vector<2x128xf32> -> vector<2x128xf32>
    %142 = arith.addf %137, %141 : vector<2x128xf32>
    %c36 = arith.constant 36 : index
    %c0_122 = arith.constant 0 : index
    %143 = vector.load %arg9[%c36, %c0_122] : memref<128x128xf32, #tpu.memory_space<vmem>>, vector<2x128xf32>
    %c1_123 = arith.constant 1 : index
    %c256_124 = arith.constant 256 : index
    %c0_125 = arith.constant 0 : index
    %144 = vector.load %arg8[%c1_123, %c256_124, %c0_125] : memref<4x2048x128xf32, #tpu.memory_space<vmem>>, vector<1x128x128xf32>
    %145 = vector.shape_cast %144 : vector<1x128x128xf32> to vector<128x128xf32>
    %cst_126 = arith.constant dense<0.000000e+00> : vector<2x128xf32>
    %146 = tpu.matmul %143, %145, %cst_126 {dimension_numbers = #tpu.dot_dimension_numbers<[1], [0], [0], [1], [0, 0, 1, 1], [], []>} : vector<2x128xf32>, vector<128x128xf32>, vector<2x128xf32> -> vector<2x128xf32>
    %147 = arith.addf %142, %146 : vector<2x128xf32>
    %c38 = arith.constant 38 : index
    %c0_127 = arith.constant 0 : index
    %148 = vector.load %arg9[%c38, %c0_127] : memref<128x128xf32, #tpu.memory_space<vmem>>, vector<2x128xf32>
    %c1_128 = arith.constant 1 : index
    %c384_129 = arith.constant 384 : index
    %c0_130 = arith.constant 0 : index
    %149 = vector.load %arg8[%c1_128, %c384_129, %c0_130] : memref<4x2048x128xf32, #tpu.memory_space<vmem>>, vector<1x128x128xf32>
    %150 = vector.shape_cast %149 : vector<1x128x128xf32> to vector<128x128xf32>
    %cst_131 = arith.constant dense<0.000000e+00> : vector<2x128xf32>
    %151 = tpu.matmul %148, %150, %cst_131 {dimension_numbers = #tpu.dot_dimension_numbers<[1], [0], [0], [1], [0, 0, 1, 1], [], []>} : vector<2x128xf32>, vector<128x128xf32>, vector<2x128xf32> -> vector<2x128xf32>
    %152 = arith.addf %147, %151 : vector<2x128xf32>
    %c40 = arith.constant 40 : index
    %c0_132 = arith.constant 0 : index
    %153 = vector.load %arg9[%c40, %c0_132] : memref<128x128xf32, #tpu.memory_space<vmem>>, vector<2x128xf32>
    %c1_133 = arith.constant 1 : index
    %c512_134 = arith.constant 512 : index
    %c0_135 = arith.constant 0 : index
    %154 = vector.load %arg8[%c1_133, %c512_134, %c0_135] : memref<4x2048x128xf32, #tpu.memory_space<vmem>>, vector<1x128x128xf32>
    %155 = vector.shape_cast %154 : vector<1x128x128xf32> to vector<128x128xf32>
    %cst_136 = arith.constant dense<0.000000e+00> : vector<2x128xf32>
    %156 = tpu.matmul %153, %155, %cst_136 {dimension_numbers = #tpu.dot_dimension_numbers<[1], [0], [0], [1], [0, 0, 1, 1], [], []>} : vector<2x128xf32>, vector<128x128xf32>, vector<2x128xf32> -> vector<2x128xf32>
    %157 = arith.addf %152, %156 : vector<2x128xf32>
    %c42 = arith.constant 42 : index
    %c0_137 = arith.constant 0 : index
    %158 = vector.load %arg9[%c42, %c0_137] : memref<128x128xf32, #tpu.memory_space<vmem>>, vector<2x128xf32>
    %c1_138 = arith.constant 1 : index
    %c640_139 = arith.constant 640 : index
    %c0_140 = arith.constant 0 : index
    %159 = vector.load %arg8[%c1_138, %c640_139, %c0_140] : memref<4x2048x128xf32, #tpu.memory_space<vmem>>, vector<1x128x128xf32>
    %160 = vector.shape_cast %159 : vector<1x128x128xf32> to vector<128x128xf32>
    %cst_141 = arith.constant dense<0.000000e+00> : vector<2x128xf32>
    %161 = tpu.matmul %158, %160, %cst_141 {dimension_numbers = #tpu.dot_dimension_numbers<[1], [0], [0], [1], [0, 0, 1, 1], [], []>} : vector<2x128xf32>, vector<128x128xf32>, vector<2x128xf32> -> vector<2x128xf32>
    %162 = arith.addf %157, %161 : vector<2x128xf32>
    %c44 = arith.constant 44 : index
    %c0_142 = arith.constant 0 : index
    %163 = vector.load %arg9[%c44, %c0_142] : memref<128x128xf32, #tpu.memory_space<vmem>>, vector<2x128xf32>
    %c1_143 = arith.constant 1 : index
    %c768_144 = arith.constant 768 : index
    %c0_145 = arith.constant 0 : index
    %164 = vector.load %arg8[%c1_143, %c768_144, %c0_145] : memref<4x2048x128xf32, #tpu.memory_space<vmem>>, vector<1x128x128xf32>
    %165 = vector.shape_cast %164 : vector<1x128x128xf32> to vector<128x128xf32>
    %cst_146 = arith.constant dense<0.000000e+00> : vector<2x128xf32>
    %166 = tpu.matmul %163, %165, %cst_146 {dimension_numbers = #tpu.dot_dimension_numbers<[1], [0], [0], [1], [0, 0, 1, 1], [], []>} : vector<2x128xf32>, vector<128x128xf32>, vector<2x128xf32> -> vector<2x128xf32>
    %167 = arith.addf %162, %166 : vector<2x128xf32>
    %c46 = arith.constant 46 : index
    %c0_147 = arith.constant 0 : index
    %168 = vector.load %arg9[%c46, %c0_147] : memref<128x128xf32, #tpu.memory_space<vmem>>, vector<2x128xf32>
    %c1_148 = arith.constant 1 : index
    %c896_149 = arith.constant 896 : index
    %c0_150 = arith.constant 0 : index
    %169 = vector.load %arg8[%c1_148, %c896_149, %c0_150] : memref<4x2048x128xf32, #tpu.memory_space<vmem>>, vector<1x128x128xf32>
    %170 = vector.shape_cast %169 : vector<1x128x128xf32> to vector<128x128xf32>
    %cst_151 = arith.constant dense<0.000000e+00> : vector<2x128xf32>
    %171 = tpu.matmul %168, %170, %cst_151 {dimension_numbers = #tpu.dot_dimension_numbers<[1], [0], [0], [1], [0, 0, 1, 1], [], []>} : vector<2x128xf32>, vector<128x128xf32>, vector<2x128xf32> -> vector<2x128xf32>
    %172 = arith.addf %167, %171 : vector<2x128xf32>
    %c48 = arith.constant 48 : index
    %c0_152 = arith.constant 0 : index
    %173 = vector.load %arg9[%c48, %c0_152] : memref<128x128xf32, #tpu.memory_space<vmem>>, vector<2x128xf32>
    %c1_153 = arith.constant 1 : index
    %c1024_154 = arith.constant 1024 : index
    %c0_155 = arith.constant 0 : index
    %174 = vector.load %arg8[%c1_153, %c1024_154, %c0_155] : memref<4x2048x128xf32, #tpu.memory_space<vmem>>, vector<1x128x128xf32>
    %175 = vector.shape_cast %174 : vector<1x128x128xf32> to vector<128x128xf32>
    %cst_156 = arith.constant dense<0.000000e+00> : vector<2x128xf32>
    %176 = tpu.matmul %173, %175, %cst_156 {dimension_numbers = #tpu.dot_dimension_numbers<[1], [0], [0], [1], [0, 0, 1, 1], [], []>} : vector<2x128xf32>, vector<128x128xf32>, vector<2x128xf32> -> vector<2x128xf32>
    %177 = arith.addf %172, %176 : vector<2x128xf32>
    %c50 = arith.constant 50 : index
    %c0_157 = arith.constant 0 : index
    %178 = vector.load %arg9[%c50, %c0_157] : memref<128x128xf32, #tpu.memory_space<vmem>>, vector<2x128xf32>
    %c1_158 = arith.constant 1 : index
    %c1152_159 = arith.constant 1152 : index
    %c0_160 = arith.constant 0 : index
    %179 = vector.load %arg8[%c1_158, %c1152_159, %c0_160] : memref<4x2048x128xf32, #tpu.memory_space<vmem>>, vector<1x128x128xf32>
    %180 = vector.shape_cast %179 : vector<1x128x128xf32> to vector<128x128xf32>
    %cst_161 = arith.constant dense<0.000000e+00> : vector<2x128xf32>
    %181 = tpu.matmul %178, %180, %cst_161 {dimension_numbers = #tpu.dot_dimension_numbers<[1], [0], [0], [1], [0, 0, 1, 1], [], []>} : vector<2x128xf32>, vector<128x128xf32>, vector<2x128xf32> -> vector<2x128xf32>
    %182 = arith.addf %177, %181 : vector<2x128xf32>
    %c52 = arith.constant 52 : index
    %c0_162 = arith.constant 0 : index
    %183 = vector.load %arg9[%c52, %c0_162] : memref<128x128xf32, #tpu.memory_space<vmem>>, vector<2x128xf32>
    %c1_163 = arith.constant 1 : index
    %c1280_164 = arith.constant 1280 : index
    %c0_165 = arith.constant 0 : index
    %184 = vector.load %arg8[%c1_163, %c1280_164, %c0_165] : memref<4x2048x128xf32, #tpu.memory_space<vmem>>, vector<1x128x128xf32>
    %185 = vector.shape_cast %184 : vector<1x128x128xf32> to vector<128x128xf32>
    %cst_166 = arith.constant dense<0.000000e+00> : vector<2x128xf32>
    %186 = tpu.matmul %183, %185, %cst_166 {dimension_numbers = #tpu.dot_dimension_numbers<[1], [0], [0], [1], [0, 0, 1, 1], [], []>} : vector<2x128xf32>, vector<128x128xf32>, vector<2x128xf32> -> vector<2x128xf32>
    %187 = arith.addf %182, %186 : vector<2x128xf32>
    %c54 = arith.constant 54 : index
    %c0_167 = arith.constant 0 : index
    %188 = vector.load %arg9[%c54, %c0_167] : memref<128x128xf32, #tpu.memory_space<vmem>>, vector<2x128xf32>
    %c1_168 = arith.constant 1 : index
    %c1408_169 = arith.constant 1408 : index
    %c0_170 = arith.constant 0 : index
    %189 = vector.load %arg8[%c1_168, %c1408_169, %c0_170] : memref<4x2048x128xf32, #tpu.memory_space<vmem>>, vector<1x128x128xf32>
    %190 = vector.shape_cast %189 : vector<1x128x128xf32> to vector<128x128xf32>
    %cst_171 = arith.constant dense<0.000000e+00> : vector<2x128xf32>
    %191 = tpu.matmul %188, %190, %cst_171 {dimension_numbers = #tpu.dot_dimension_numbers<[1], [0], [0], [1], [0, 0, 1, 1], [], []>} : vector<2x128xf32>, vector<128x128xf32>, vector<2x128xf32> -> vector<2x128xf32>
    %192 = arith.addf %187, %191 : vector<2x128xf32>
    %c56 = arith.constant 56 : index
    %c0_172 = arith.constant 0 : index
    %193 = vector.load %arg9[%c56, %c0_172] : memref<128x128xf32, #tpu.memory_space<vmem>>, vector<2x128xf32>
    %c1_173 = arith.constant 1 : index
    %c1536_174 = arith.constant 1536 : index
    %c0_175 = arith.constant 0 : index
    %194 = vector.load %arg8[%c1_173, %c1536_174, %c0_175] : memref<4x2048x128xf32, #tpu.memory_space<vmem>>, vector<1x128x128xf32>
    %195 = vector.shape_cast %194 : vector<1x128x128xf32> to vector<128x128xf32>
    %cst_176 = arith.constant dense<0.000000e+00> : vector<2x128xf32>
    %196 = tpu.matmul %193, %195, %cst_176 {dimension_numbers = #tpu.dot_dimension_numbers<[1], [0], [0], [1], [0, 0, 1, 1], [], []>} : vector<2x128xf32>, vector<128x128xf32>, vector<2x128xf32> -> vector<2x128xf32>
    %197 = arith.addf %192, %196 : vector<2x128xf32>
    %c58 = arith.constant 58 : index
    %c0_177 = arith.constant 0 : index
    %198 = vector.load %arg9[%c58, %c0_177] : memref<128x128xf32, #tpu.memory_space<vmem>>, vector<2x128xf32>
    %c1_178 = arith.constant 1 : index
    %c1664_179 = arith.constant 1664 : index
    %c0_180 = arith.constant 0 : index
    %199 = vector.load %arg8[%c1_178, %c1664_179, %c0_180] : memref<4x2048x128xf32, #tpu.memory_space<vmem>>, vector<1x128x128xf32>
    %200 = vector.shape_cast %199 : vector<1x128x128xf32> to vector<128x128xf32>
    %cst_181 = arith.constant dense<0.000000e+00> : vector<2x128xf32>
    %201 = tpu.matmul %198, %200, %cst_181 {dimension_numbers = #tpu.dot_dimension_numbers<[1], [0], [0], [1], [0, 0, 1, 1], [], []>} : vector<2x128xf32>, vector<128x128xf32>, vector<2x128xf32> -> vector<2x128xf32>
    %202 = arith.addf %197, %201 : vector<2x128xf32>
    %c60 = arith.constant 60 : index
    %c0_182 = arith.constant 0 : index
    %203 = vector.load %arg9[%c60, %c0_182] : memref<128x128xf32, #tpu.memory_space<vmem>>, vector<2x128xf32>
    %c1_183 = arith.constant 1 : index
    %c1792_184 = arith.constant 1792 : index
    %c0_185 = arith.constant 0 : index
    %204 = vector.load %arg8[%c1_183, %c1792_184, %c0_185] : memref<4x2048x128xf32, #tpu.memory_space<vmem>>, vector<1x128x128xf32>
    %205 = vector.shape_cast %204 : vector<1x128x128xf32> to vector<128x128xf32>
    %cst_186 = arith.constant dense<0.000000e+00> : vector<2x128xf32>
    %206 = tpu.matmul %203, %205, %cst_186 {dimension_numbers = #tpu.dot_dimension_numbers<[1], [0], [0], [1], [0, 0, 1, 1], [], []>} : vector<2x128xf32>, vector<128x128xf32>, vector<2x128xf32> -> vector<2x128xf32>
    %207 = arith.addf %202, %206 : vector<2x128xf32>
    %c62 = arith.constant 62 : index
    %c0_187 = arith.constant 0 : index
    %208 = vector.load %arg9[%c62, %c0_187] : memref<128x128xf32, #tpu.memory_space<vmem>>, vector<2x128xf32>
    %c1_188 = arith.constant 1 : index
    %c1920_189 = arith.constant 1920 : index
    %c0_190 = arith.constant 0 : index
    %209 = vector.load %arg8[%c1_188, %c1920_189, %c0_190] : memref<4x2048x128xf32, #tpu.memory_space<vmem>>, vector<1x128x128xf32>
    %210 = vector.shape_cast %209 : vector<1x128x128xf32> to vector<128x128xf32>
    %cst_191 = arith.constant dense<0.000000e+00> : vector<2x128xf32>
    %211 = tpu.matmul %208, %210, %cst_191 {dimension_numbers = #tpu.dot_dimension_numbers<[1], [0], [0], [1], [0, 0, 1, 1], [], []>} : vector<2x128xf32>, vector<128x128xf32>, vector<2x128xf32> -> vector<2x128xf32>
    %212 = arith.addf %207, %211 : vector<2x128xf32>
    %c2_i32_192 = arith.constant 2 : i32
    %c2_i32_193 = arith.constant 2 : i32
    %c2_i32_194 = arith.constant 2 : i32
    %c0_i32_195 = arith.constant 0 : i32
    %c0_i32_196 = arith.constant 0 : i32
    %213 = tpu.memref_slice %arg3[%c2_i32_192, %c0_i32_195, %c0_i32_196] : memref<4x2048x128xf32, #tpu.memory_space<any>> -> memref<1x2048x128xf32, #tpu.memory_space<any>>
    %214 = tpu.memref_squeeze %213 : memref<1x2048x128xf32, #tpu.memory_space<any>> -> memref<2048x128xf32, #tpu.memory_space<any>>
    %c0_i32_197 = arith.constant 0 : i32
    %c0_i32_198 = arith.constant 0 : i32
    %215 = tpu.memref_slice %arg8[%c2_i32_193, %c0_i32_197, %c0_i32_198] : memref<4x2048x128xf32, #tpu.memory_space<vmem>> -> memref<1x2048x128xf32, #tpu.memory_space<vmem>>
    %216 = tpu.memref_squeeze %215 : memref<1x2048x128xf32, #tpu.memory_space<vmem>> -> memref<2048x128xf32, #tpu.memory_space<vmem>>
    %217 = tpu.memref_slice %arg10[%c2_i32_194] : memref<4x!tpu.dma_semaphore, #tpu.memory_space<semaphore_mem>> -> memref<1x!tpu.dma_semaphore, #tpu.memory_space<semaphore_mem>>
    %218 = tpu.memref_squeeze %217 : memref<1x!tpu.dma_semaphore, #tpu.memory_space<semaphore_mem>> -> memref<!tpu.dma_semaphore, #tpu.memory_space<semaphore_mem>>
    tpu.wait_dma2 semaphore(%218 : memref<!tpu.dma_semaphore, #tpu.memory_space<semaphore_mem>>) src(%214 : memref<2048x128xf32, #tpu.memory_space<any>>) dst(%216 : memref<2048x128xf32, #tpu.memory_space<vmem>>)
    %c64 = arith.constant 64 : index
    %c0_199 = arith.constant 0 : index
    %219 = vector.load %arg9[%c64, %c0_199] : memref<128x128xf32, #tpu.memory_space<vmem>>, vector<2x128xf32>
    %c2_200 = arith.constant 2 : index
    %c0_201 = arith.constant 0 : index
    %c0_202 = arith.constant 0 : index
    %220 = vector.load %arg8[%c2_200, %c0_201, %c0_202] : memref<4x2048x128xf32, #tpu.memory_space<vmem>>, vector<1x128x128xf32>
    %221 = vector.shape_cast %220 : vector<1x128x128xf32> to vector<128x128xf32>
    %cst_203 = arith.constant dense<0.000000e+00> : vector<2x128xf32>
    %222 = tpu.matmul %219, %221, %cst_203 {dimension_numbers = #tpu.dot_dimension_numbers<[1], [0], [0], [1], [0, 0, 1, 1], [], []>} : vector<2x128xf32>, vector<128x128xf32>, vector<2x128xf32> -> vector<2x128xf32>
    %223 = arith.addf %212, %222 : vector<2x128xf32>
    %c66 = arith.constant 66 : index
    %c0_204 = arith.constant 0 : index
    %224 = vector.load %arg9[%c66, %c0_204] : memref<128x128xf32, #tpu.memory_space<vmem>>, vector<2x128xf32>
    %c2_205 = arith.constant 2 : index
    %c128_206 = arith.constant 128 : index
    %c0_207 = arith.constant 0 : index
    %225 = vector.load %arg8[%c2_205, %c128_206, %c0_207] : memref<4x2048x128xf32, #tpu.memory_space<vmem>>, vector<1x128x128xf32>
    %226 = vector.shape_cast %225 : vector<1x128x128xf32> to vector<128x128xf32>
    %cst_208 = arith.constant dense<0.000000e+00> : vector<2x128xf32>
    %227 = tpu.matmul %224, %226, %cst_208 {dimension_numbers = #tpu.dot_dimension_numbers<[1], [0], [0], [1], [0, 0, 1, 1], [], []>} : vector<2x128xf32>, vector<128x128xf32>, vector<2x128xf32> -> vector<2x128xf32>
    %228 = arith.addf %223, %227 : vector<2x128xf32>
    %c68 = arith.constant 68 : index
    %c0_209 = arith.constant 0 : index
    %229 = vector.load %arg9[%c68, %c0_209] : memref<128x128xf32, #tpu.memory_space<vmem>>, vector<2x128xf32>
    %c2_210 = arith.constant 2 : index
    %c256_211 = arith.constant 256 : index
    %c0_212 = arith.constant 0 : index
    %230 = vector.load %arg8[%c2_210, %c256_211, %c0_212] : memref<4x2048x128xf32, #tpu.memory_space<vmem>>, vector<1x128x128xf32>
    %231 = vector.shape_cast %230 : vector<1x128x128xf32> to vector<128x128xf32>
    %cst_213 = arith.constant dense<0.000000e+00> : vector<2x128xf32>
    %232 = tpu.matmul %229, %231, %cst_213 {dimension_numbers = #tpu.dot_dimension_numbers<[1], [0], [0], [1], [0, 0, 1, 1], [], []>} : vector<2x128xf32>, vector<128x128xf32>, vector<2x128xf32> -> vector<2x128xf32>
    %233 = arith.addf %228, %232 : vector<2x128xf32>
    %c70 = arith.constant 70 : index
    %c0_214 = arith.constant 0 : index
    %234 = vector.load %arg9[%c70, %c0_214] : memref<128x128xf32, #tpu.memory_space<vmem>>, vector<2x128xf32>
    %c2_215 = arith.constant 2 : index
    %c384_216 = arith.constant 384 : index
    %c0_217 = arith.constant 0 : index
    %235 = vector.load %arg8[%c2_215, %c384_216, %c0_217] : memref<4x2048x128xf32, #tpu.memory_space<vmem>>, vector<1x128x128xf32>
    %236 = vector.shape_cast %235 : vector<1x128x128xf32> to vector<128x128xf32>
    %cst_218 = arith.constant dense<0.000000e+00> : vector<2x128xf32>
    %237 = tpu.matmul %234, %236, %cst_218 {dimension_numbers = #tpu.dot_dimension_numbers<[1], [0], [0], [1], [0, 0, 1, 1], [], []>} : vector<2x128xf32>, vector<128x128xf32>, vector<2x128xf32> -> vector<2x128xf32>
    %238 = arith.addf %233, %237 : vector<2x128xf32>
    %c72 = arith.constant 72 : index
    %c0_219 = arith.constant 0 : index
    %239 = vector.load %arg9[%c72, %c0_219] : memref<128x128xf32, #tpu.memory_space<vmem>>, vector<2x128xf32>
    %c2_220 = arith.constant 2 : index
    %c512_221 = arith.constant 512 : index
    %c0_222 = arith.constant 0 : index
    %240 = vector.load %arg8[%c2_220, %c512_221, %c0_222] : memref<4x2048x128xf32, #tpu.memory_space<vmem>>, vector<1x128x128xf32>
    %241 = vector.shape_cast %240 : vector<1x128x128xf32> to vector<128x128xf32>
    %cst_223 = arith.constant dense<0.000000e+00> : vector<2x128xf32>
    %242 = tpu.matmul %239, %241, %cst_223 {dimension_numbers = #tpu.dot_dimension_numbers<[1], [0], [0], [1], [0, 0, 1, 1], [], []>} : vector<2x128xf32>, vector<128x128xf32>, vector<2x128xf32> -> vector<2x128xf32>
    %243 = arith.addf %238, %242 : vector<2x128xf32>
    %c74 = arith.constant 74 : index
    %c0_224 = arith.constant 0 : index
    %244 = vector.load %arg9[%c74, %c0_224] : memref<128x128xf32, #tpu.memory_space<vmem>>, vector<2x128xf32>
    %c2_225 = arith.constant 2 : index
    %c640_226 = arith.constant 640 : index
    %c0_227 = arith.constant 0 : index
    %245 = vector.load %arg8[%c2_225, %c640_226, %c0_227] : memref<4x2048x128xf32, #tpu.memory_space<vmem>>, vector<1x128x128xf32>
    %246 = vector.shape_cast %245 : vector<1x128x128xf32> to vector<128x128xf32>
    %cst_228 = arith.constant dense<0.000000e+00> : vector<2x128xf32>
    %247 = tpu.matmul %244, %246, %cst_228 {dimension_numbers = #tpu.dot_dimension_numbers<[1], [0], [0], [1], [0, 0, 1, 1], [], []>} : vector<2x128xf32>, vector<128x128xf32>, vector<2x128xf32> -> vector<2x128xf32>
    %248 = arith.addf %243, %247 : vector<2x128xf32>
    %c76 = arith.constant 76 : index
    %c0_229 = arith.constant 0 : index
    %249 = vector.load %arg9[%c76, %c0_229] : memref<128x128xf32, #tpu.memory_space<vmem>>, vector<2x128xf32>
    %c2_230 = arith.constant 2 : index
    %c768_231 = arith.constant 768 : index
    %c0_232 = arith.constant 0 : index
    %250 = vector.load %arg8[%c2_230, %c768_231, %c0_232] : memref<4x2048x128xf32, #tpu.memory_space<vmem>>, vector<1x128x128xf32>
    %251 = vector.shape_cast %250 : vector<1x128x128xf32> to vector<128x128xf32>
    %cst_233 = arith.constant dense<0.000000e+00> : vector<2x128xf32>
    %252 = tpu.matmul %249, %251, %cst_233 {dimension_numbers = #tpu.dot_dimension_numbers<[1], [0], [0], [1], [0, 0, 1, 1], [], []>} : vector<2x128xf32>, vector<128x128xf32>, vector<2x128xf32> -> vector<2x128xf32>
    %253 = arith.addf %248, %252 : vector<2x128xf32>
    %c78 = arith.constant 78 : index
    %c0_234 = arith.constant 0 : index
    %254 = vector.load %arg9[%c78, %c0_234] : memref<128x128xf32, #tpu.memory_space<vmem>>, vector<2x128xf32>
    %c2_235 = arith.constant 2 : index
    %c896_236 = arith.constant 896 : index
    %c0_237 = arith.constant 0 : index
    %255 = vector.load %arg8[%c2_235, %c896_236, %c0_237] : memref<4x2048x128xf32, #tpu.memory_space<vmem>>, vector<1x128x128xf32>
    %256 = vector.shape_cast %255 : vector<1x128x128xf32> to vector<128x128xf32>
    %cst_238 = arith.constant dense<0.000000e+00> : vector<2x128xf32>
    %257 = tpu.matmul %254, %256, %cst_238 {dimension_numbers = #tpu.dot_dimension_numbers<[1], [0], [0], [1], [0, 0, 1, 1], [], []>} : vector<2x128xf32>, vector<128x128xf32>, vector<2x128xf32> -> vector<2x128xf32>
    %258 = arith.addf %253, %257 : vector<2x128xf32>
    %c80 = arith.constant 80 : index
    %c0_239 = arith.constant 0 : index
    %259 = vector.load %arg9[%c80, %c0_239] : memref<128x128xf32, #tpu.memory_space<vmem>>, vector<2x128xf32>
    %c2_240 = arith.constant 2 : index
    %c1024_241 = arith.constant 1024 : index
    %c0_242 = arith.constant 0 : index
    %260 = vector.load %arg8[%c2_240, %c1024_241, %c0_242] : memref<4x2048x128xf32, #tpu.memory_space<vmem>>, vector<1x128x128xf32>
    %261 = vector.shape_cast %260 : vector<1x128x128xf32> to vector<128x128xf32>
    %cst_243 = arith.constant dense<0.000000e+00> : vector<2x128xf32>
    %262 = tpu.matmul %259, %261, %cst_243 {dimension_numbers = #tpu.dot_dimension_numbers<[1], [0], [0], [1], [0, 0, 1, 1], [], []>} : vector<2x128xf32>, vector<128x128xf32>, vector<2x128xf32> -> vector<2x128xf32>
    %263 = arith.addf %258, %262 : vector<2x128xf32>
    %c82 = arith.constant 82 : index
    %c0_244 = arith.constant 0 : index
    %264 = vector.load %arg9[%c82, %c0_244] : memref<128x128xf32, #tpu.memory_space<vmem>>, vector<2x128xf32>
    %c2_245 = arith.constant 2 : index
    %c1152_246 = arith.constant 1152 : index
    %c0_247 = arith.constant 0 : index
    %265 = vector.load %arg8[%c2_245, %c1152_246, %c0_247] : memref<4x2048x128xf32, #tpu.memory_space<vmem>>, vector<1x128x128xf32>
    %266 = vector.shape_cast %265 : vector<1x128x128xf32> to vector<128x128xf32>
    %cst_248 = arith.constant dense<0.000000e+00> : vector<2x128xf32>
    %267 = tpu.matmul %264, %266, %cst_248 {dimension_numbers = #tpu.dot_dimension_numbers<[1], [0], [0], [1], [0, 0, 1, 1], [], []>} : vector<2x128xf32>, vector<128x128xf32>, vector<2x128xf32> -> vector<2x128xf32>
    %268 = arith.addf %263, %267 : vector<2x128xf32>
    %c84 = arith.constant 84 : index
    %c0_249 = arith.constant 0 : index
    %269 = vector.load %arg9[%c84, %c0_249] : memref<128x128xf32, #tpu.memory_space<vmem>>, vector<2x128xf32>
    %c2_250 = arith.constant 2 : index
    %c1280_251 = arith.constant 1280 : index
    %c0_252 = arith.constant 0 : index
    %270 = vector.load %arg8[%c2_250, %c1280_251, %c0_252] : memref<4x2048x128xf32, #tpu.memory_space<vmem>>, vector<1x128x128xf32>
    %271 = vector.shape_cast %270 : vector<1x128x128xf32> to vector<128x128xf32>
    %cst_253 = arith.constant dense<0.000000e+00> : vector<2x128xf32>
    %272 = tpu.matmul %269, %271, %cst_253 {dimension_numbers = #tpu.dot_dimension_numbers<[1], [0], [0], [1], [0, 0, 1, 1], [], []>} : vector<2x128xf32>, vector<128x128xf32>, vector<2x128xf32> -> vector<2x128xf32>
    %273 = arith.addf %268, %272 : vector<2x128xf32>
    %c86 = arith.constant 86 : index
    %c0_254 = arith.constant 0 : index
    %274 = vector.load %arg9[%c86, %c0_254] : memref<128x128xf32, #tpu.memory_space<vmem>>, vector<2x128xf32>
    %c2_255 = arith.constant 2 : index
    %c1408_256 = arith.constant 1408 : index
    %c0_257 = arith.constant 0 : index
    %275 = vector.load %arg8[%c2_255, %c1408_256, %c0_257] : memref<4x2048x128xf32, #tpu.memory_space<vmem>>, vector<1x128x128xf32>
    %276 = vector.shape_cast %275 : vector<1x128x128xf32> to vector<128x128xf32>
    %cst_258 = arith.constant dense<0.000000e+00> : vector<2x128xf32>
    %277 = tpu.matmul %274, %276, %cst_258 {dimension_numbers = #tpu.dot_dimension_numbers<[1], [0], [0], [1], [0, 0, 1, 1], [], []>} : vector<2x128xf32>, vector<128x128xf32>, vector<2x128xf32> -> vector<2x128xf32>
    %278 = arith.addf %273, %277 : vector<2x128xf32>
    %c88 = arith.constant 88 : index
    %c0_259 = arith.constant 0 : index
    %279 = vector.load %arg9[%c88, %c0_259] : memref<128x128xf32, #tpu.memory_space<vmem>>, vector<2x128xf32>
    %c2_260 = arith.constant 2 : index
    %c1536_261 = arith.constant 1536 : index
    %c0_262 = arith.constant 0 : index
    %280 = vector.load %arg8[%c2_260, %c1536_261, %c0_262] : memref<4x2048x128xf32, #tpu.memory_space<vmem>>, vector<1x128x128xf32>
    %281 = vector.shape_cast %280 : vector<1x128x128xf32> to vector<128x128xf32>
    %cst_263 = arith.constant dense<0.000000e+00> : vector<2x128xf32>
    %282 = tpu.matmul %279, %281, %cst_263 {dimension_numbers = #tpu.dot_dimension_numbers<[1], [0], [0], [1], [0, 0, 1, 1], [], []>} : vector<2x128xf32>, vector<128x128xf32>, vector<2x128xf32> -> vector<2x128xf32>
    %283 = arith.addf %278, %282 : vector<2x128xf32>
    %c90 = arith.constant 90 : index
    %c0_264 = arith.constant 0 : index
    %284 = vector.load %arg9[%c90, %c0_264] : memref<128x128xf32, #tpu.memory_space<vmem>>, vector<2x128xf32>
    %c2_265 = arith.constant 2 : index
    %c1664_266 = arith.constant 1664 : index
    %c0_267 = arith.constant 0 : index
    %285 = vector.load %arg8[%c2_265, %c1664_266, %c0_267] : memref<4x2048x128xf32, #tpu.memory_space<vmem>>, vector<1x128x128xf32>
    %286 = vector.shape_cast %285 : vector<1x128x128xf32> to vector<128x128xf32>
    %cst_268 = arith.constant dense<0.000000e+00> : vector<2x128xf32>
    %287 = tpu.matmul %284, %286, %cst_268 {dimension_numbers = #tpu.dot_dimension_numbers<[1], [0], [0], [1], [0, 0, 1, 1], [], []>} : vector<2x128xf32>, vector<128x128xf32>, vector<2x128xf32> -> vector<2x128xf32>
    %288 = arith.addf %283, %287 : vector<2x128xf32>
    %c92 = arith.constant 92 : index
    %c0_269 = arith.constant 0 : index
    %289 = vector.load %arg9[%c92, %c0_269] : memref<128x128xf32, #tpu.memory_space<vmem>>, vector<2x128xf32>
    %c2_270 = arith.constant 2 : index
    %c1792_271 = arith.constant 1792 : index
    %c0_272 = arith.constant 0 : index
    %290 = vector.load %arg8[%c2_270, %c1792_271, %c0_272] : memref<4x2048x128xf32, #tpu.memory_space<vmem>>, vector<1x128x128xf32>
    %291 = vector.shape_cast %290 : vector<1x128x128xf32> to vector<128x128xf32>
    %cst_273 = arith.constant dense<0.000000e+00> : vector<2x128xf32>
    %292 = tpu.matmul %289, %291, %cst_273 {dimension_numbers = #tpu.dot_dimension_numbers<[1], [0], [0], [1], [0, 0, 1, 1], [], []>} : vector<2x128xf32>, vector<128x128xf32>, vector<2x128xf32> -> vector<2x128xf32>
    %293 = arith.addf %288, %292 : vector<2x128xf32>
    %c94 = arith.constant 94 : index
    %c0_274 = arith.constant 0 : index
    %294 = vector.load %arg9[%c94, %c0_274] : memref<128x128xf32, #tpu.memory_space<vmem>>, vector<2x128xf32>
    %c2_275 = arith.constant 2 : index
    %c1920_276 = arith.constant 1920 : index
    %c0_277 = arith.constant 0 : index
    %295 = vector.load %arg8[%c2_275, %c1920_276, %c0_277] : memref<4x2048x128xf32, #tpu.memory_space<vmem>>, vector<1x128x128xf32>
    %296 = vector.shape_cast %295 : vector<1x128x128xf32> to vector<128x128xf32>
    %cst_278 = arith.constant dense<0.000000e+00> : vector<2x128xf32>
    %297 = tpu.matmul %294, %296, %cst_278 {dimension_numbers = #tpu.dot_dimension_numbers<[1], [0], [0], [1], [0, 0, 1, 1], [], []>} : vector<2x128xf32>, vector<128x128xf32>, vector<2x128xf32> -> vector<2x128xf32>
    %298 = arith.addf %293, %297 : vector<2x128xf32>
    %c3_i32_279 = arith.constant 3 : i32
    %c3_i32_280 = arith.constant 3 : i32
    %c3_i32_281 = arith.constant 3 : i32
    %c0_i32_282 = arith.constant 0 : i32
    %c0_i32_283 = arith.constant 0 : i32
    %299 = tpu.memref_slice %arg3[%c3_i32_279, %c0_i32_282, %c0_i32_283] : memref<4x2048x128xf32, #tpu.memory_space<any>> -> memref<1x2048x128xf32, #tpu.memory_space<any>>
    %300 = tpu.memref_squeeze %299 : memref<1x2048x128xf32, #tpu.memory_space<any>> -> memref<2048x128xf32, #tpu.memory_space<any>>
    %c0_i32_284 = arith.constant 0 : i32
    %c0_i32_285 = arith.constant 0 : i32
    %301 = tpu.memref_slice %arg8[%c3_i32_280, %c0_i32_284, %c0_i32_285] : memref<4x2048x128xf32, #tpu.memory_space<vmem>> -> memref<1x2048x128xf32, #tpu.memory_space<vmem>>
    %302 = tpu.memref_squeeze %301 : memref<1x2048x128xf32, #tpu.memory_space<vmem>> -> memref<2048x128xf32, #tpu.memory_space<vmem>>
    %303 = tpu.memref_slice %arg10[%c3_i32_281] : memref<4x!tpu.dma_semaphore, #tpu.memory_space<semaphore_mem>> -> memref<1x!tpu.dma_semaphore, #tpu.memory_space<semaphore_mem>>
    %304 = tpu.memref_squeeze %303 : memref<1x!tpu.dma_semaphore, #tpu.memory_space<semaphore_mem>> -> memref<!tpu.dma_semaphore, #tpu.memory_space<semaphore_mem>>
    tpu.wait_dma2 semaphore(%304 : memref<!tpu.dma_semaphore, #tpu.memory_space<semaphore_mem>>) src(%300 : memref<2048x128xf32, #tpu.memory_space<any>>) dst(%302 : memref<2048x128xf32, #tpu.memory_space<vmem>>)
    %c96 = arith.constant 96 : index
    %c0_286 = arith.constant 0 : index
    %305 = vector.load %arg9[%c96, %c0_286] : memref<128x128xf32, #tpu.memory_space<vmem>>, vector<2x128xf32>
    %c3 = arith.constant 3 : index
    %c0_287 = arith.constant 0 : index
    %c0_288 = arith.constant 0 : index
    %306 = vector.load %arg8[%c3, %c0_287, %c0_288] : memref<4x2048x128xf32, #tpu.memory_space<vmem>>, vector<1x128x128xf32>
    %307 = vector.shape_cast %306 : vector<1x128x128xf32> to vector<128x128xf32>
    %cst_289 = arith.constant dense<0.000000e+00> : vector<2x128xf32>
    %308 = tpu.matmul %305, %307, %cst_289 {dimension_numbers = #tpu.dot_dimension_numbers<[1], [0], [0], [1], [0, 0, 1, 1], [], []>} : vector<2x128xf32>, vector<128x128xf32>, vector<2x128xf32> -> vector<2x128xf32>
    %309 = arith.addf %298, %308 : vector<2x128xf32>
    %c98 = arith.constant 98 : index
    %c0_290 = arith.constant 0 : index
    %310 = vector.load %arg9[%c98, %c0_290] : memref<128x128xf32, #tpu.memory_space<vmem>>, vector<2x128xf32>
    %c3_291 = arith.constant 3 : index
    %c128_292 = arith.constant 128 : index
    %c0_293 = arith.constant 0 : index
    %311 = vector.load %arg8[%c3_291, %c128_292, %c0_293] : memref<4x2048x128xf32, #tpu.memory_space<vmem>>, vector<1x128x128xf32>
    %312 = vector.shape_cast %311 : vector<1x128x128xf32> to vector<128x128xf32>
    %cst_294 = arith.constant dense<0.000000e+00> : vector<2x128xf32>
    %313 = tpu.matmul %310, %312, %cst_294 {dimension_numbers = #tpu.dot_dimension_numbers<[1], [0], [0], [1], [0, 0, 1, 1], [], []>} : vector<2x128xf32>, vector<128x128xf32>, vector<2x128xf32> -> vector<2x128xf32>
    %314 = arith.addf %309, %313 : vector<2x128xf32>
    %c100 = arith.constant 100 : index
    %c0_295 = arith.constant 0 : index
    %315 = vector.load %arg9[%c100, %c0_295] : memref<128x128xf32, #tpu.memory_space<vmem>>, vector<2x128xf32>
    %c3_296 = arith.constant 3 : index
    %c256_297 = arith.constant 256 : index
    %c0_298 = arith.constant 0 : index
    %316 = vector.load %arg8[%c3_296, %c256_297, %c0_298] : memref<4x2048x128xf32, #tpu.memory_space<vmem>>, vector<1x128x128xf32>
    %317 = vector.shape_cast %316 : vector<1x128x128xf32> to vector<128x128xf32>
    %cst_299 = arith.constant dense<0.000000e+00> : vector<2x128xf32>
    %318 = tpu.matmul %315, %317, %cst_299 {dimension_numbers = #tpu.dot_dimension_numbers<[1], [0], [0], [1], [0, 0, 1, 1], [], []>} : vector<2x128xf32>, vector<128x128xf32>, vector<2x128xf32> -> vector<2x128xf32>
    %319 = arith.addf %314, %318 : vector<2x128xf32>
    %c102 = arith.constant 102 : index
    %c0_300 = arith.constant 0 : index
    %320 = vector.load %arg9[%c102, %c0_300] : memref<128x128xf32, #tpu.memory_space<vmem>>, vector<2x128xf32>
    %c3_301 = arith.constant 3 : index
    %c384_302 = arith.constant 384 : index
    %c0_303 = arith.constant 0 : index
    %321 = vector.load %arg8[%c3_301, %c384_302, %c0_303] : memref<4x2048x128xf32, #tpu.memory_space<vmem>>, vector<1x128x128xf32>
    %322 = vector.shape_cast %321 : vector<1x128x128xf32> to vector<128x128xf32>
    %cst_304 = arith.constant dense<0.000000e+00> : vector<2x128xf32>
    %323 = tpu.matmul %320, %322, %cst_304 {dimension_numbers = #tpu.dot_dimension_numbers<[1], [0], [0], [1], [0, 0, 1, 1], [], []>} : vector<2x128xf32>, vector<128x128xf32>, vector<2x128xf32> -> vector<2x128xf32>
    %324 = arith.addf %319, %323 : vector<2x128xf32>
    %c104 = arith.constant 104 : index
    %c0_305 = arith.constant 0 : index
    %325 = vector.load %arg9[%c104, %c0_305] : memref<128x128xf32, #tpu.memory_space<vmem>>, vector<2x128xf32>
    %c3_306 = arith.constant 3 : index
    %c512_307 = arith.constant 512 : index
    %c0_308 = arith.constant 0 : index
    %326 = vector.load %arg8[%c3_306, %c512_307, %c0_308] : memref<4x2048x128xf32, #tpu.memory_space<vmem>>, vector<1x128x128xf32>
    %327 = vector.shape_cast %326 : vector<1x128x128xf32> to vector<128x128xf32>
    %cst_309 = arith.constant dense<0.000000e+00> : vector<2x128xf32>
    %328 = tpu.matmul %325, %327, %cst_309 {dimension_numbers = #tpu.dot_dimension_numbers<[1], [0], [0], [1], [0, 0, 1, 1], [], []>} : vector<2x128xf32>, vector<128x128xf32>, vector<2x128xf32> -> vector<2x128xf32>
    %329 = arith.addf %324, %328 : vector<2x128xf32>
    %c106 = arith.constant 106 : index
    %c0_310 = arith.constant 0 : index
    %330 = vector.load %arg9[%c106, %c0_310] : memref<128x128xf32, #tpu.memory_space<vmem>>, vector<2x128xf32>
    %c3_311 = arith.constant 3 : index
    %c640_312 = arith.constant 640 : index
    %c0_313 = arith.constant 0 : index
    %331 = vector.load %arg8[%c3_311, %c640_312, %c0_313] : memref<4x2048x128xf32, #tpu.memory_space<vmem>>, vector<1x128x128xf32>
    %332 = vector.shape_cast %331 : vector<1x128x128xf32> to vector<128x128xf32>
    %cst_314 = arith.constant dense<0.000000e+00> : vector<2x128xf32>
    %333 = tpu.matmul %330, %332, %cst_314 {dimension_numbers = #tpu.dot_dimension_numbers<[1], [0], [0], [1], [0, 0, 1, 1], [], []>} : vector<2x128xf32>, vector<128x128xf32>, vector<2x128xf32> -> vector<2x128xf32>
    %334 = arith.addf %329, %333 : vector<2x128xf32>
    %c108 = arith.constant 108 : index
    %c0_315 = arith.constant 0 : index
    %335 = vector.load %arg9[%c108, %c0_315] : memref<128x128xf32, #tpu.memory_space<vmem>>, vector<2x128xf32>
    %c3_316 = arith.constant 3 : index
    %c768_317 = arith.constant 768 : index
    %c0_318 = arith.constant 0 : index
    %336 = vector.load %arg8[%c3_316, %c768_317, %c0_318] : memref<4x2048x128xf32, #tpu.memory_space<vmem>>, vector<1x128x128xf32>
    %337 = vector.shape_cast %336 : vector<1x128x128xf32> to vector<128x128xf32>
    %cst_319 = arith.constant dense<0.000000e+00> : vector<2x128xf32>
    %338 = tpu.matmul %335, %337, %cst_319 {dimension_numbers = #tpu.dot_dimension_numbers<[1], [0], [0], [1], [0, 0, 1, 1], [], []>} : vector<2x128xf32>, vector<128x128xf32>, vector<2x128xf32> -> vector<2x128xf32>
    %339 = arith.addf %334, %338 : vector<2x128xf32>
    %c110 = arith.constant 110 : index
    %c0_320 = arith.constant 0 : index
    %340 = vector.load %arg9[%c110, %c0_320] : memref<128x128xf32, #tpu.memory_space<vmem>>, vector<2x128xf32>
    %c3_321 = arith.constant 3 : index
    %c896_322 = arith.constant 896 : index
    %c0_323 = arith.constant 0 : index
    %341 = vector.load %arg8[%c3_321, %c896_322, %c0_323] : memref<4x2048x128xf32, #tpu.memory_space<vmem>>, vector<1x128x128xf32>
    %342 = vector.shape_cast %341 : vector<1x128x128xf32> to vector<128x128xf32>
    %cst_324 = arith.constant dense<0.000000e+00> : vector<2x128xf32>
    %343 = tpu.matmul %340, %342, %cst_324 {dimension_numbers = #tpu.dot_dimension_numbers<[1], [0], [0], [1], [0, 0, 1, 1], [], []>} : vector<2x128xf32>, vector<128x128xf32>, vector<2x128xf32> -> vector<2x128xf32>
    %344 = arith.addf %339, %343 : vector<2x128xf32>
    %c112 = arith.constant 112 : index
    %c0_325 = arith.constant 0 : index
    %345 = vector.load %arg9[%c112, %c0_325] : memref<128x128xf32, #tpu.memory_space<vmem>>, vector<2x128xf32>
    %c3_326 = arith.constant 3 : index
    %c1024_327 = arith.constant 1024 : index
    %c0_328 = arith.constant 0 : index
    %346 = vector.load %arg8[%c3_326, %c1024_327, %c0_328] : memref<4x2048x128xf32, #tpu.memory_space<vmem>>, vector<1x128x128xf32>
    %347 = vector.shape_cast %346 : vector<1x128x128xf32> to vector<128x128xf32>
    %cst_329 = arith.constant dense<0.000000e+00> : vector<2x128xf32>
    %348 = tpu.matmul %345, %347, %cst_329 {dimension_numbers = #tpu.dot_dimension_numbers<[1], [0], [0], [1], [0, 0, 1, 1], [], []>} : vector<2x128xf32>, vector<128x128xf32>, vector<2x128xf32> -> vector<2x128xf32>
    %349 = arith.addf %344, %348 : vector<2x128xf32>
    %c114 = arith.constant 114 : index
    %c0_330 = arith.constant 0 : index
    %350 = vector.load %arg9[%c114, %c0_330] : memref<128x128xf32, #tpu.memory_space<vmem>>, vector<2x128xf32>
    %c3_331 = arith.constant 3 : index
    %c1152_332 = arith.constant 1152 : index
    %c0_333 = arith.constant 0 : index
    %351 = vector.load %arg8[%c3_331, %c1152_332, %c0_333] : memref<4x2048x128xf32, #tpu.memory_space<vmem>>, vector<1x128x128xf32>
    %352 = vector.shape_cast %351 : vector<1x128x128xf32> to vector<128x128xf32>
    %cst_334 = arith.constant dense<0.000000e+00> : vector<2x128xf32>
    %353 = tpu.matmul %350, %352, %cst_334 {dimension_numbers = #tpu.dot_dimension_numbers<[1], [0], [0], [1], [0, 0, 1, 1], [], []>} : vector<2x128xf32>, vector<128x128xf32>, vector<2x128xf32> -> vector<2x128xf32>
    %354 = arith.addf %349, %353 : vector<2x128xf32>
    %c116 = arith.constant 116 : index
    %c0_335 = arith.constant 0 : index
    %355 = vector.load %arg9[%c116, %c0_335] : memref<128x128xf32, #tpu.memory_space<vmem>>, vector<2x128xf32>
    %c3_336 = arith.constant 3 : index
    %c1280_337 = arith.constant 1280 : index
    %c0_338 = arith.constant 0 : index
    %356 = vector.load %arg8[%c3_336, %c1280_337, %c0_338] : memref<4x2048x128xf32, #tpu.memory_space<vmem>>, vector<1x128x128xf32>
    %357 = vector.shape_cast %356 : vector<1x128x128xf32> to vector<128x128xf32>
    %cst_339 = arith.constant dense<0.000000e+00> : vector<2x128xf32>
    %358 = tpu.matmul %355, %357, %cst_339 {dimension_numbers = #tpu.dot_dimension_numbers<[1], [0], [0], [1], [0, 0, 1, 1], [], []>} : vector<2x128xf32>, vector<128x128xf32>, vector<2x128xf32> -> vector<2x128xf32>
    %359 = arith.addf %354, %358 : vector<2x128xf32>
    %c118 = arith.constant 118 : index
    %c0_340 = arith.constant 0 : index
    %360 = vector.load %arg9[%c118, %c0_340] : memref<128x128xf32, #tpu.memory_space<vmem>>, vector<2x128xf32>
    %c3_341 = arith.constant 3 : index
    %c1408_342 = arith.constant 1408 : index
    %c0_343 = arith.constant 0 : index
    %361 = vector.load %arg8[%c3_341, %c1408_342, %c0_343] : memref<4x2048x128xf32, #tpu.memory_space<vmem>>, vector<1x128x128xf32>
    %362 = vector.shape_cast %361 : vector<1x128x128xf32> to vector<128x128xf32>
    %cst_344 = arith.constant dense<0.000000e+00> : vector<2x128xf32>
    %363 = tpu.matmul %360, %362, %cst_344 {dimension_numbers = #tpu.dot_dimension_numbers<[1], [0], [0], [1], [0, 0, 1, 1], [], []>} : vector<2x128xf32>, vector<128x128xf32>, vector<2x128xf32> -> vector<2x128xf32>
    %364 = arith.addf %359, %363 : vector<2x128xf32>
    %c120 = arith.constant 120 : index
    %c0_345 = arith.constant 0 : index
    %365 = vector.load %arg9[%c120, %c0_345] : memref<128x128xf32, #tpu.memory_space<vmem>>, vector<2x128xf32>
    %c3_346 = arith.constant 3 : index
    %c1536_347 = arith.constant 1536 : index
    %c0_348 = arith.constant 0 : index
    %366 = vector.load %arg8[%c3_346, %c1536_347, %c0_348] : memref<4x2048x128xf32, #tpu.memory_space<vmem>>, vector<1x128x128xf32>
    %367 = vector.shape_cast %366 : vector<1x128x128xf32> to vector<128x128xf32>
    %cst_349 = arith.constant dense<0.000000e+00> : vector<2x128xf32>
    %368 = tpu.matmul %365, %367, %cst_349 {dimension_numbers = #tpu.dot_dimension_numbers<[1], [0], [0], [1], [0, 0, 1, 1], [], []>} : vector<2x128xf32>, vector<128x128xf32>, vector<2x128xf32> -> vector<2x128xf32>
    %369 = arith.addf %364, %368 : vector<2x128xf32>
    %c122 = arith.constant 122 : index
    %c0_350 = arith.constant 0 : index
    %370 = vector.load %arg9[%c122, %c0_350] : memref<128x128xf32, #tpu.memory_space<vmem>>, vector<2x128xf32>
    %c3_351 = arith.constant 3 : index
    %c1664_352 = arith.constant 1664 : index
    %c0_353 = arith.constant 0 : index
    %371 = vector.load %arg8[%c3_351, %c1664_352, %c0_353] : memref<4x2048x128xf32, #tpu.memory_space<vmem>>, vector<1x128x128xf32>
    %372 = vector.shape_cast %371 : vector<1x128x128xf32> to vector<128x128xf32>
    %cst_354 = arith.constant dense<0.000000e+00> : vector<2x128xf32>
    %373 = tpu.matmul %370, %372, %cst_354 {dimension_numbers = #tpu.dot_dimension_numbers<[1], [0], [0], [1], [0, 0, 1, 1], [], []>} : vector<2x128xf32>, vector<128x128xf32>, vector<2x128xf32> -> vector<2x128xf32>
    %374 = arith.addf %369, %373 : vector<2x128xf32>
    %c124 = arith.constant 124 : index
    %c0_355 = arith.constant 0 : index
    %375 = vector.load %arg9[%c124, %c0_355] : memref<128x128xf32, #tpu.memory_space<vmem>>, vector<2x128xf32>
    %c3_356 = arith.constant 3 : index
    %c1792_357 = arith.constant 1792 : index
    %c0_358 = arith.constant 0 : index
    %376 = vector.load %arg8[%c3_356, %c1792_357, %c0_358] : memref<4x2048x128xf32, #tpu.memory_space<vmem>>, vector<1x128x128xf32>
    %377 = vector.shape_cast %376 : vector<1x128x128xf32> to vector<128x128xf32>
    %cst_359 = arith.constant dense<0.000000e+00> : vector<2x128xf32>
    %378 = tpu.matmul %375, %377, %cst_359 {dimension_numbers = #tpu.dot_dimension_numbers<[1], [0], [0], [1], [0, 0, 1, 1], [], []>} : vector<2x128xf32>, vector<128x128xf32>, vector<2x128xf32> -> vector<2x128xf32>
    %379 = arith.addf %374, %378 : vector<2x128xf32>
    %c126 = arith.constant 126 : index
    %c0_360 = arith.constant 0 : index
    %380 = vector.load %arg9[%c126, %c0_360] : memref<128x128xf32, #tpu.memory_space<vmem>>, vector<2x128xf32>
    %c3_361 = arith.constant 3 : index
    %c1920_362 = arith.constant 1920 : index
    %c0_363 = arith.constant 0 : index
    %381 = vector.load %arg8[%c3_361, %c1920_362, %c0_363] : memref<4x2048x128xf32, #tpu.memory_space<vmem>>, vector<1x128x128xf32>
    %382 = vector.shape_cast %381 : vector<1x128x128xf32> to vector<128x128xf32>
    %cst_364 = arith.constant dense<0.000000e+00> : vector<2x128xf32>
    %383 = tpu.matmul %380, %382, %cst_364 {dimension_numbers = #tpu.dot_dimension_numbers<[1], [0], [0], [1], [0, 0, 1, 1], [], []>} : vector<2x128xf32>, vector<128x128xf32>, vector<2x128xf32> -> vector<2x128xf32>
    %384 = arith.addf %379, %383 : vector<2x128xf32>
    %c0_365 = arith.constant 0 : index
    %c0_366 = arith.constant 0 : index
    %385 = vector.load %arg4[%c0_365, %c0_366] : memref<1x128xf32, #tpu.memory_space<vmem>>, vector<1x128xf32>
    %386 = vector.broadcast %385 : vector<1x128xf32> to vector<2x128xf32>
    %387 = arith.addf %384, %386 : vector<2x128xf32>
    %c0_367 = arith.constant 0 : index
    %c0_368 = arith.constant 0 : index
    %388 = vector.load %arg5[%c0_367, %c0_368] : memref<128x10xf32, #tpu.memory_space<vmem>>, vector<128x10xf32>
    %cst_369 = arith.constant dense<0.000000e+00> : vector<2x10xf32>
    %389 = tpu.matmul %387, %388, %cst_369 {dimension_numbers = #tpu.dot_dimension_numbers<[1], [0], [0], [1], [0, 0, 1, 1], [], []>} : vector<2x128xf32>, vector<128x10xf32>, vector<2x10xf32> -> vector<2x10xf32>
    %c0_370 = arith.constant 0 : index
    %c0_371 = arith.constant 0 : index
    %390 = vector.load %arg6[%c0_370, %c0_371] : memref<1x10xf32, #tpu.memory_space<vmem>>, vector<1x10xf32>
    %391 = vector.broadcast %390 : vector<1x10xf32> to vector<2x10xf32>
    %392 = arith.addf %389, %391 : vector<2x10xf32>
    %c0_372 = arith.constant 0 : index
    %c0_373 = arith.constant 0 : index
    %393 = vector.load %arg7[%c0_372, %c0_373] : memref<2x10xf32, #tpu.memory_space<vmem>>, vector<2x10xf32>
    tpu.vector_store %arg7[%c0_372, %c0_373], %392 {strides = array<i32>} : memref<2x10xf32, #tpu.memory_space<vmem>>, vector<2x10xf32>,
    return
  }
}

</mosaic_0001>

<llo_original>
// kernel: net_forward.1
$region0: #{net_forward.1}
  #allocation0 [shape = 'u32[]', space=smem, size = 0x4, offset = 0x4, fixed_abs, tag = 'smem constant byte address 0x4 - core index']
  #allocation1 [shape = 'u32[72,128]{1,0:T(1,128)}', space=vmem, size = 0x9000, scoped, tag = 'internal scratch']
  #allocation2 [shape = 'f32[4,2048,128]{2,1,0:T(8,128)}', space=vmem, size = 0x400000, scoped, tag = 'scratch operand']
  #allocation3 [shape = 'f32[128,128]{1,0:T(8,128)}', space=vmem, size = 0x10000, scoped, tag = 'scratch operand']
  #allocation4 [shape = 's32[4]{0}', space=sflag, size = 0x10, scoped, tag = 'scratch operand']
  #allocation7 [shape = 's32[]', space=sflag, size = 0x4, offset = 0, fixed_abs, tag = 'sflag constant byte address 0x0 - dummy sync flag']
  #allocation8 [shape = 's32[]', space=sflag, size = 0x4, offset = 0, fixed_abs, tag = 'sflag constant byte address 0x0 - dummy sync flag']
  #allocation9 [shape = 's32[]', space=sflag, size = 0x4, offset = 0, fixed_abs, tag = 'sflag constant byte address 0x0 - dummy sync flag']
  #allocation10 [shape = 's32[]', space=sflag, size = 0x4, offset = 0, fixed_abs, tag = 'sflag constant byte address 0x0 - dummy sync flag']
  %s0 = inlined_call_operand.vmem [shape: f32[512,128], index: 0, kind: input, shape index: {}]
  %s1 = inlined_call_operand.vmem [shape: f32[128,128], index: 1, kind: input, shape index: {}]
  %s2 = inlined_call_operand.vmem [shape: f32[1,128], index: 2, kind: input, shape index: {}]
  %s3 = inlined_call_operand.vmem [shape: f32[4,2048,128], index: 3, kind: input, shape index: {}]
  %s4 = inlined_call_operand.vmem [shape: f32[1,128], index: 4, kind: input, shape index: {}]
  %s5 = inlined_call_operand.vmem [shape: f32[128,10], index: 5, kind: input, shape index: {}]
  %s6 = inlined_call_operand.vmem [shape: f32[1,10], index: 6, kind: input, shape index: {}]
  %s7 = inlined_call_operand.hbm [shape: f32[2,10], index: 7, kind: output, shape index: {}]
  %s8 = sld [smem:[#allocation0]]
  $region110: #{net_forward.1} parent=0
    _
  %s10 = ssub.s32 1, %s8
  %s11 = scalar_select 0, %s10, %s8
  $region1: #{net_forward.1} parent=0
    #allocation5 [shape = 'u8[1024]{0}', space=vmem, size = 0x400, scoped, tag = 'output window, operand 0, single buffered']
    #allocation6 [shape = 's32[1]{0}', space=sflag, size = 0x4, scoped, tag = 'scoped memory for net_forward.1']
    %12 = vsyncpa [#allocation6], 0
    // Predicated region
    $region2: #{net_forward.1} parent=1 // pred_check
      _
    $region3: #{net_forward.1} parent=1 // pred_check_branch
      %14 = sbr.rel (0) target = $region5
    $region4: #{net_forward.1} parent=1 // pred_region
      _
    $region5: #{net_forward.1} parent=1 // pred_fallthru
      _
    // Predicated region
    $region6: #{net_forward.1} parent=1 // pred_check
      _
    $region7: #{net_forward.1} parent=1 // pred_check_branch
      %16 = sbr.rel (0) target = $region9
    $region8: #{net_forward.1} parent=1 // pred_region
      _
    $region9: #{net_forward.1} parent=1 // pred_fallthru
      _
    // Predicated region
    $region10: #{net_forward.1} parent=1 // pred_check
      _
    $region11: #{net_forward.1} parent=1 // pred_check_branch
      %18 = sbr.rel (0) target = $region13
    $region12: #{net_forward.1} parent=1 // pred_region
      _
    $region13: #{net_forward.1} parent=1 // pred_fallthru
      _
    // Predicated region
    $region14: #{net_forward.1} parent=1 // pred_check
      _
    $region15: #{net_forward.1} parent=1 // pred_check_branch
      %20 = sbr.rel (0) target = $region17
    $region16: #{net_forward.1} parent=1 // pred_region
      _
    $region17: #{net_forward.1} parent=1 // pred_fallthru
      _
    // Predicated region
    $region18: #{net_forward.1} parent=1 // pred_check
      _
    $region19: #{net_forward.1} parent=1 // pred_check_branch
      %22 = sbr.rel (0) target = $region21
    $region20: #{net_forward.1} parent=1 // pred_region
      _
    $region21: #{net_forward.1} parent=1 // pred_fallthru
      _
    // Predicated region
    $region22: #{net_forward.1} parent=1 // pred_check
      _
    $region23: #{net_forward.1} parent=1 // pred_check_branch
      %24 = sbr.rel (0) target = $region25
    $region24: #{net_forward.1} parent=1 // pred_region
      _
    $region25: #{net_forward.1} parent=1 // pred_fallthru
      _
    // Predicated region
    $region26: #{net_forward.1} parent=1 // pred_check
      _
    $region27: #{net_forward.1} parent=1 // pred_check_branch
      %26 = sbr.rel (0) target = $region29
    $region28: #{net_forward.1} parent=1 // pred_region
      loop: start=0, step=1, limit=1
      $region30: #{net_forward.1} parent=28 // loop_pre_header
        _
      $region31: #{net_forward.1} parent=28 // loop_header
        %s28 = sphi 0, %s32
        %p29 = scmp.ge.s32.totalorder %s28, 1
        %s33 = sphi %s3, %s3
        %s34 = sphi [#allocation2], [#allocation2]
      $region32: #{net_forward.1} parent=28 // loop_header_branch
        %31 = sbr.rel (%p29) target = $region36
      $region33: #{net_forward.1} parent=28 // loop_body
        %v35 = vld [vmem:[%s33] sm:$0xff]
        %36 = vst [vmem:[%s34] sm:$0xff] %v35
        %v37 = vld [vmem:[%s33 + $0x8] sm:$0xff]
        %38 = vst [vmem:[%s34 + $0x8] sm:$0xff] %v37
        %v39 = vld [vmem:[%s33 + $0x10] sm:$0xff]
        %40 = vst [vmem:[%s34 + $0x10] sm:$0xff] %v39
        %v41 = vld [vmem:[%s33 + $0x18] sm:$0xff]
        %42 = vst [vmem:[%s34 + $0x18] sm:$0xff] %v41
        %v43 = vld [vmem:[%s33 + $0x20] sm:$0xff]
        %44 = vst [vmem:[%s34 + $0x20] sm:$0xff] %v43
        %v45 = vld [vmem:[%s33 + $0x28] sm:$0xff]
        %46 = vst [vmem:[%s34 + $0x28] sm:$0xff] %v45
        %v47 = vld [vmem:[%s33 + $0x30] sm:$0xff]
        %48 = vst [vmem:[%s34 + $0x30] sm:$0xff] %v47
        %v49 = vld [vmem:[%s33 + $0x38] sm:$0xff]
        %50 = vst [vmem:[%s34 + $0x38] sm:$0xff] %v49
        %v51 = vld [vmem:[%s33 + $0x40] sm:$0xff]
        %52 = vst [vmem:[%s34 + $0x40] sm:$0xff] %v51
        %v53 = vld [vmem:[%s33 + $0x48] sm:$0xff]
        %54 = vst [vmem:[%s34 + $0x48] sm:$0xff] %v53
        %v55 = vld [vmem:[%s33 + $0x50] sm:$0xff]
        %56 = vst [vmem:[%s34 + $0x50] sm:$0xff] %v55
        %v57 = vld [vmem:[%s33 + $0x58] sm:$0xff]
        %58 = vst [vmem:[%s34 + $0x58] sm:$0xff] %v57
        %v59 = vld [vmem:[%s33 + $0x60] sm:$0xff]
        %60 = vst [vmem:[%s34 + $0x60] sm:$0xff] %v59
        %v61 = vld [vmem:[%s33 + $0x68] sm:$0xff]
        %62 = vst [vmem:[%s34 + $0x68] sm:$0xff] %v61
        %v63 = vld [vmem:[%s33 + $0x70] sm:$0xff]
        %64 = vst [vmem:[%s34 + $0x70] sm:$0xff] %v63
        %v65 = vld [vmem:[%s33 + $0x78] sm:$0xff]
        %66 = vst [vmem:[%s34 + $0x78] sm:$0xff] %v65
        %v67 = vld [vmem:[%s33 + $0x80] sm:$0xff]
        %68 = vst [vmem:[%s34 + $0x80] sm:$0xff] %v67
        %v69 = vld [vmem:[%s33 + $0x88] sm:$0xff]
        %70 = vst [vmem:[%s34 + $0x88] sm:$0xff] %v69
        %v71 = vld [vmem:[%s33 + $0x90] sm:$0xff]
        %72 = vst [vmem:[%s34 + $0x90] sm:$0xff] %v71
        %v73 = vld [vmem:[%s33 + $0x98] sm:$0xff]
        %74 = vst [vmem:[%s34 + $0x98] sm:$0xff] %v73
        %v75 = vld [vmem:[%s33 + $0xa0] sm:$0xff]
        %76 = vst [vmem:[%s34 + $0xa0] sm:$0xff] %v75
        %v77 = vld [vmem:[%s33 + $0xa8] sm:$0xff]
        %78 = vst [vmem:[%s34 + $0xa8] sm:$0xff] %v77
        %v79 = vld [vmem:[%s33 + $0xb0] sm:$0xff]
        %80 = vst [vmem:[%s34 + $0xb0] sm:$0xff] %v79
        %v81 = vld [vmem:[%s33 + $0xb8] sm:$0xff]
        %82 = vst [vmem:[%s34 + $0xb8] sm:$0xff] %v81
        %v83 = vld [vmem:[%s33 + $0xc0] sm:$0xff]
        %84 = vst [vmem:[%s34 + $0xc0] sm:$0xff] %v83
        %v85 = vld [vmem:[%s33 + $0xc8] sm:$0xff]
        %86 = vst [vmem:[%s34 + $0xc8] sm:$0xff] %v85
        %v87 = vld [vmem:[%s33 + $0xd0] sm:$0xff]
        %88 = vst [vmem:[%s34 + $0xd0] sm:$0xff] %v87
        %v89 = vld [vmem:[%s33 + $0xd8] sm:$0xff]
        %90 = vst [vmem:[%s34 + $0xd8] sm:$0xff] %v89
        %v91 = vld [vmem:[%s33 + $0xe0] sm:$0xff]
        %92 = vst [vmem:[%s34 + $0xe0] sm:$0xff] %v91
        %v93 = vld [vmem:[%s33 + $0xe8] sm:$0xff]
        %94 = vst [vmem:[%s34 + $0xe8] sm:$0xff] %v93
        %v95 = vld [vmem:[%s33 + $0xf0] sm:$0xff]
        %96 = vst [vmem:[%s34 + $0xf0] sm:$0xff] %v95
        %v97 = vld [vmem:[%s33 + $0xf8] sm:$0xff]
        %98 = vst [vmem:[%s34 + $0xf8] sm:$0xff] %v97
        %v99 = vld [vmem:[%s33 + $0x100] sm:$0xff]
        %100 = vst [vmem:[%s34 + $0x100] sm:$0xff] %v99
        %v101 = vld [vmem:[%s33 + $0x108] sm:$0xff]
        %102 = vst [vmem:[%s34 + $0x108] sm:$0xff] %v101
        %v103 = vld [vmem:[%s33 + $0x110] sm:$0xff]
        %104 = vst [vmem:[%s34 + $0x110] sm:$0xff] %v103
        %v105 = vld [vmem:[%s33 + $0x118] sm:$0xff]
        %106 = vst [vmem:[%s34 + $0x118] sm:$0xff] %v105
        %v107 = vld [vmem:[%s33 + $0x120] sm:$0xff]
        %108 = vst [vmem:[%s34 + $0x120] sm:$0xff] %v107
        %v109 = vld [vmem:[%s33 + $0x128] sm:$0xff]
        %110 = vst [vmem:[%s34 + $0x128] sm:$0xff] %v109
        %v111 = vld [vmem:[%s33 + $0x130] sm:$0xff]
        %112 = vst [vmem:[%s34 + $0x130] sm:$0xff] %v111
        %v113 = vld [vmem:[%s33 + $0x138] sm:$0xff]
        %114 = vst [vmem:[%s34 + $0x138] sm:$0xff] %v113
        %v115 = vld [vmem:[%s33 + $0x140] sm:$0xff]
        %116 = vst [vmem:[%s34 + $0x140] sm:$0xff] %v115
        %v117 = vld [vmem:[%s33 + $0x148] sm:$0xff]
        %118 = vst [vmem:[%s34 + $0x148] sm:$0xff] %v117
        %v119 = vld [vmem:[%s33 + $0x150] sm:$0xff]
        %120 = vst [vmem:[%s34 + $0x150] sm:$0xff] %v119
        %v121 = vld [vmem:[%s33 + $0x158] sm:$0xff]
        %122 = vst [vmem:[%s34 + $0x158] sm:$0xff] %v121
        %v123 = vld [vmem:[%s33 + $0x160] sm:$0xff]
        %124 = vst [vmem:[%s34 + $0x160] sm:$0xff] %v123
        %v125 = vld [vmem:[%s33 + $0x168] sm:$0xff]
        %126 = vst [vmem:[%s34 + $0x168] sm:$0xff] %v125
        %v127 = vld [vmem:[%s33 + $0x170] sm:$0xff]
        %128 = vst [vmem:[%s34 + $0x170] sm:$0xff] %v127
        %v129 = vld [vmem:[%s33 + $0x178] sm:$0xff]
        %130 = vst [vmem:[%s34 + $0x178] sm:$0xff] %v129
        %v131 = vld [vmem:[%s33 + $0x180] sm:$0xff]
        %132 = vst [vmem:[%s34 + $0x180] sm:$0xff] %v131
        %v133 = vld [vmem:[%s33 + $0x188] sm:$0xff]
        %134 = vst [vmem:[%s34 + $0x188] sm:$0xff] %v133
        %v135 = vld [vmem:[%s33 + $0x190] sm:$0xff]
        %136 = vst [vmem:[%s34 + $0x190] sm:$0xff] %v135
        %v137 = vld [vmem:[%s33 + $0x198] sm:$0xff]
        %138 = vst [vmem:[%s34 + $0x198] sm:$0xff] %v137
        %v139 = vld [vmem:[%s33 + $0x1a0] sm:$0xff]
        %140 = vst [vmem:[%s34 + $0x1a0] sm:$0xff] %v139
        %v141 = vld [vmem:[%s33 + $0x1a8] sm:$0xff]
        %142 = vst [vmem:[%s34 + $0x1a8] sm:$0xff] %v141
        %v143 = vld [vmem:[%s33 + $0x1b0] sm:$0xff]
        %144 = vst [vmem:[%s34 + $0x1b0] sm:$0xff] %v143
        %v145 = vld [vmem:[%s33 + $0x1b8] sm:$0xff]
        %146 = vst [vmem:[%s34 + $0x1b8] sm:$0xff] %v145
        %v147 = vld [vmem:[%s33 + $0x1c0] sm:$0xff]
        %148 = vst [vmem:[%s34 + $0x1c0] sm:$0xff] %v147
        %v149 = vld [vmem:[%s33 + $0x1c8] sm:$0xff]
        %150 = vst [vmem:[%s34 + $0x1c8] sm:$0xff] %v149
        %v151 = vld [vmem:[%s33 + $0x1d0] sm:$0xff]
        %152 = vst [vmem:[%s34 + $0x1d0] sm:$0xff] %v151
        %v153 = vld [vmem:[%s33 + $0x1d8] sm:$0xff]
        %154 = vst [vmem:[%s34 + $0x1d8] sm:$0xff] %v153
        %v155 = vld [vmem:[%s33 + $0x1e0] sm:$0xff]
        %156 = vst [vmem:[%s34 + $0x1e0] sm:$0xff] %v155
        %v157 = vld [vmem:[%s33 + $0x1e8] sm:$0xff]
        %158 = vst [vmem:[%s34 + $0x1e8] sm:$0xff] %v157
        %v159 = vld [vmem:[%s33 + $0x1f0] sm:$0xff]
        %160 = vst [vmem:[%s34 + $0x1f0] sm:$0xff] %v159
        %v161 = vld [vmem:[%s33 + $0x1f8] sm:$0xff]
        %162 = vst [vmem:[%s34 + $0x1f8] sm:$0xff] %v161
        %v163 = vld [vmem:[%s33 + $0x200] sm:$0xff]
        %164 = vst [vmem:[%s34 + $0x200] sm:$0xff] %v163
        %v165 = vld [vmem:[%s33 + $0x208] sm:$0xff]
        %166 = vst [vmem:[%s34 + $0x208] sm:$0xff] %v165
        %v167 = vld [vmem:[%s33 + $0x210] sm:$0xff]
        %168 = vst [vmem:[%s34 + $0x210] sm:$0xff] %v167
        %v169 = vld [vmem:[%s33 + $0x218] sm:$0xff]
        %170 = vst [vmem:[%s34 + $0x218] sm:$0xff] %v169
        %v171 = vld [vmem:[%s33 + $0x220] sm:$0xff]
        %172 = vst [vmem:[%s34 + $0x220] sm:$0xff] %v171
        %v173 = vld [vmem:[%s33 + $0x228] sm:$0xff]
        %174 = vst [vmem:[%s34 + $0x228] sm:$0xff] %v173
        %v175 = vld [vmem:[%s33 + $0x230] sm:$0xff]
        %176 = vst [vmem:[%s34 + $0x230] sm:$0xff] %v175
        %v177 = vld [vmem:[%s33 + $0x238] sm:$0xff]
        %178 = vst [vmem:[%s34 + $0x238] sm:$0xff] %v177
        %v179 = vld [vmem:[%s33 + $0x240] sm:$0xff]
        %180 = vst [vmem:[%s34 + $0x240] sm:$0xff] %v179
        %v181 = vld [vmem:[%s33 + $0x248] sm:$0xff]
        %182 = vst [vmem:[%s34 + $0x248] sm:$0xff] %v181
        %v183 = vld [vmem:[%s33 + $0x250] sm:$0xff]
        %184 = vst [vmem:[%s34 + $0x250] sm:$0xff] %v183
        %v185 = vld [vmem:[%s33 + $0x258] sm:$0xff]
        %186 = vst [vmem:[%s34 + $0x258] sm:$0xff] %v185
        %v187 = vld [vmem:[%s33 + $0x260] sm:$0xff]
        %188 = vst [vmem:[%s34 + $0x260] sm:$0xff] %v187
        %v189 = vld [vmem:[%s33 + $0x268] sm:$0xff]
        %190 = vst [vmem:[%s34 + $0x268] sm:$0xff] %v189
        %v191 = vld [vmem:[%s33 + $0x270] sm:$0xff]
        %192 = vst [vmem:[%s34 + $0x270] sm:$0xff] %v191
        %v193 = vld [vmem:[%s33 + $0x278] sm:$0xff]
        %194 = vst [vmem:[%s34 + $0x278] sm:$0xff] %v193
        %v195 = vld [vmem:[%s33 + $0x280] sm:$0xff]
        %196 = vst [vmem:[%s34 + $0x280] sm:$0xff] %v195
        %v197 = vld [vmem:[%s33 + $0x288] sm:$0xff]
        %198 = vst [vmem:[%s34 + $0x288] sm:$0xff] %v197
        %v199 = vld [vmem:[%s33 + $0x290] sm:$0xff]
        %200 = vst [vmem:[%s34 + $0x290] sm:$0xff] %v199
        %v201 = vld [vmem:[%s33 + $0x298] sm:$0xff]
        %202 = vst [vmem:[%s34 + $0x298] sm:$0xff] %v201
        %v203 = vld [vmem:[%s33 + $0x2a0] sm:$0xff]
        %204 = vst [vmem:[%s34 + $0x2a0] sm:$0xff] %v203
        %v205 = vld [vmem:[%s33 + $0x2a8] sm:$0xff]
        %206 = vst [vmem:[%s34 + $0x2a8] sm:$0xff] %v205
        %v207 = vld [vmem:[%s33 + $0x2b0] sm:$0xff]
        %208 = vst [vmem:[%s34 + $0x2b0] sm:$0xff] %v207
        %v209 = vld [vmem:[%s33 + $0x2b8] sm:$0xff]
        %210 = vst [vmem:[%s34 + $0x2b8] sm:$0xff] %v209
        %v211 = vld [vmem:[%s33 + $0x2c0] sm:$0xff]
        %212 = vst [vmem:[%s34 + $0x2c0] sm:$0xff] %v211
        %v213 = vld [vmem:[%s33 + $0x2c8] sm:$0xff]
        %214 = vst [vmem:[%s34 + $0x2c8] sm:$0xff] %v213
        %v215 = vld [vmem:[%s33 + $0x2d0] sm:$0xff]
        %216 = vst [vmem:[%s34 + $0x2d0] sm:$0xff] %v215
        %v217 = vld [vmem:[%s33 + $0x2d8] sm:$0xff]
        %218 = vst [vmem:[%s34 + $0x2d8] sm:$0xff] %v217
        %v219 = vld [vmem:[%s33 + $0x2e0] sm:$0xff]
        %220 = vst [vmem:[%s34 + $0x2e0] sm:$0xff] %v219
        %v221 = vld [vmem:[%s33 + $0x2e8] sm:$0xff]
        %222 = vst [vmem:[%s34 + $0x2e8] sm:$0xff] %v221
        %v223 = vld [vmem:[%s33 + $0x2f0] sm:$0xff]
        %224 = vst [vmem:[%s34 + $0x2f0] sm:$0xff] %v223
        %v225 = vld [vmem:[%s33 + $0x2f8] sm:$0xff]
        %226 = vst [vmem:[%s34 + $0x2f8] sm:$0xff] %v225
        %v227 = vld [vmem:[%s33 + $0x300] sm:$0xff]
        %228 = vst [vmem:[%s34 + $0x300] sm:$0xff] %v227
        %v229 = vld [vmem:[%s33 + $0x308] sm:$0xff]
        %230 = vst [vmem:[%s34 + $0x308] sm:$0xff] %v229
        %v231 = vld [vmem:[%s33 + $0x310] sm:$0xff]
        %232 = vst [vmem:[%s34 + $0x310] sm:$0xff] %v231
        %v233 = vld [vmem:[%s33 + $0x318] sm:$0xff]
        %234 = vst [vmem:[%s34 + $0x318] sm:$0xff] %v233
        %v235 = vld [vmem:[%s33 + $0x320] sm:$0xff]
        %236 = vst [vmem:[%s34 + $0x320] sm:$0xff] %v235
        %v237 = vld [vmem:[%s33 + $0x328] sm:$0xff]
        %238 = vst [vmem:[%s34 + $0x328] sm:$0xff] %v237
        %v239 = vld [vmem:[%s33 + $0x330] sm:$0xff]
        %240 = vst [vmem:[%s34 + $0x330] sm:$0xff] %v239
        %v241 = vld [vmem:[%s33 + $0x338] sm:$0xff]
        %242 = vst [vmem:[%s34 + $0x338] sm:$0xff] %v241
        %v243 = vld [vmem:[%s33 + $0x340] sm:$0xff]
        %244 = vst [vmem:[%s34 + $0x340] sm:$0xff] %v243
        %v245 = vld [vmem:[%s33 + $0x348] sm:$0xff]
        %246 = vst [vmem:[%s34 + $0x348] sm:$0xff] %v245
        %v247 = vld [vmem:[%s33 + $0x350] sm:$0xff]
        %248 = vst [vmem:[%s34 + $0x350] sm:$0xff] %v247
        %v249 = vld [vmem:[%s33 + $0x358] sm:$0xff]
        %250 = vst [vmem:[%s34 + $0x358] sm:$0xff] %v249
        %v251 = vld [vmem:[%s33 + $0x360] sm:$0xff]
        %252 = vst [vmem:[%s34 + $0x360] sm:$0xff] %v251
        %v253 = vld [vmem:[%s33 + $0x368] sm:$0xff]
        %254 = vst [vmem:[%s34 + $0x368] sm:$0xff] %v253
        %v255 = vld [vmem:[%s33 + $0x370] sm:$0xff]
        %256 = vst [vmem:[%s34 + $0x370] sm:$0xff] %v255
        %v257 = vld [vmem:[%s33 + $0x378] sm:$0xff]
        %258 = vst [vmem:[%s34 + $0x378] sm:$0xff] %v257
        %v259 = vld [vmem:[%s33 + $0x380] sm:$0xff]
        %260 = vst [vmem:[%s34 + $0x380] sm:$0xff] %v259
        %v261 = vld [vmem:[%s33 + $0x388] sm:$0xff]
        %262 = vst [vmem:[%s34 + $0x388] sm:$0xff] %v261
        %v263 = vld [vmem:[%s33 + $0x390] sm:$0xff]
        %264 = vst [vmem:[%s34 + $0x390] sm:$0xff] %v263
        %v265 = vld [vmem:[%s33 + $0x398] sm:$0xff]
        %266 = vst [vmem:[%s34 + $0x398] sm:$0xff] %v265
        %v267 = vld [vmem:[%s33 + $0x3a0] sm:$0xff]
        %268 = vst [vmem:[%s34 + $0x3a0] sm:$0xff] %v267
        %v269 = vld [vmem:[%s33 + $0x3a8] sm:$0xff]
        %270 = vst [vmem:[%s34 + $0x3a8] sm:$0xff] %v269
        %v271 = vld [vmem:[%s33 + $0x3b0] sm:$0xff]
        %272 = vst [vmem:[%s34 + $0x3b0] sm:$0xff] %v271
        %v273 = vld [vmem:[%s33 + $0x3b8] sm:$0xff]
        %274 = vst [vmem:[%s34 + $0x3b8] sm:$0xff] %v273
        %v275 = vld [vmem:[%s33 + $0x3c0] sm:$0xff]
        %276 = vst [vmem:[%s34 + $0x3c0] sm:$0xff] %v275
        %v277 = vld [vmem:[%s33 + $0x3c8] sm:$0xff]
        %278 = vst [vmem:[%s34 + $0x3c8] sm:$0xff] %v277
        %v279 = vld [vmem:[%s33 + $0x3d0] sm:$0xff]
        %280 = vst [vmem:[%s34 + $0x3d0] sm:$0xff] %v279
        %v281 = vld [vmem:[%s33 + $0x3d8] sm:$0xff]
        %282 = vst [vmem:[%s34 + $0x3d8] sm:$0xff] %v281
        %v283 = vld [vmem:[%s33 + $0x3e0] sm:$0xff]
        %284 = vst [vmem:[%s34 + $0x3e0] sm:$0xff] %v283
        %v285 = vld [vmem:[%s33 + $0x3e8] sm:$0xff]
        %286 = vst [vmem:[%s34 + $0x3e8] sm:$0xff] %v285
        %v287 = vld [vmem:[%s33 + $0x3f0] sm:$0xff]
        %288 = vst [vmem:[%s34 + $0x3f0] sm:$0xff] %v287
        %v289 = vld [vmem:[%s33 + $0x3f8] sm:$0xff]
        %290 = vst [vmem:[%s34 + $0x3f8] sm:$0xff] %v289
        %v291 = vld [vmem:[%s33 + $0x400] sm:$0xff]
        %292 = vst [vmem:[%s34 + $0x400] sm:$0xff] %v291
        %v293 = vld [vmem:[%s33 + $0x408] sm:$0xff]
        %294 = vst [vmem:[%s34 + $0x408] sm:$0xff] %v293
        %v295 = vld [vmem:[%s33 + $0x410] sm:$0xff]
        %296 = vst [vmem:[%s34 + $0x410] sm:$0xff] %v295
        %v297 = vld [vmem:[%s33 + $0x418] sm:$0xff]
        %298 = vst [vmem:[%s34 + $0x418] sm:$0xff] %v297
        %v299 = vld [vmem:[%s33 + $0x420] sm:$0xff]
        %300 = vst [vmem:[%s34 + $0x420] sm:$0xff] %v299
        %v301 = vld [vmem:[%s33 + $0x428] sm:$0xff]
        %302 = vst [vmem:[%s34 + $0x428] sm:$0xff] %v301
        %v303 = vld [vmem:[%s33 + $0x430] sm:$0xff]
        %304 = vst [vmem:[%s34 + $0x430] sm:$0xff] %v303
        %v305 = vld [vmem:[%s33 + $0x438] sm:$0xff]
        %306 = vst [vmem:[%s34 + $0x438] sm:$0xff] %v305
        %v307 = vld [vmem:[%s33 + $0x440] sm:$0xff]
        %308 = vst [vmem:[%s34 + $0x440] sm:$0xff] %v307
        %v309 = vld [vmem:[%s33 + $0x448] sm:$0xff]
        %310 = vst [vmem:[%s34 + $0x448] sm:$0xff] %v309
        %v311 = vld [vmem:[%s33 + $0x450] sm:$0xff]
        %312 = vst [vmem:[%s34 + $0x450] sm:$0xff] %v311
        %v313 = vld [vmem:[%s33 + $0x458] sm:$0xff]
        %314 = vst [vmem:[%s34 + $0x458] sm:$0xff] %v313
        %v315 = vld [vmem:[%s33 + $0x460] sm:$0xff]
        %316 = vst [vmem:[%s34 + $0x460] sm:$0xff] %v315
        %v317 = vld [vmem:[%s33 + $0x468] sm:$0xff]
        %318 = vst [vmem:[%s34 + $0x468] sm:$0xff] %v317
        %v319 = vld [vmem:[%s33 + $0x470] sm:$0xff]
        %320 = vst [vmem:[%s34 + $0x470] sm:$0xff] %v319
        %v321 = vld [vmem:[%s33 + $0x478] sm:$0xff]
        %322 = vst [vmem:[%s34 + $0x478] sm:$0xff] %v321
        %v323 = vld [vmem:[%s33 + $0x480] sm:$0xff]
        %324 = vst [vmem:[%s34 + $0x480] sm:$0xff] %v323
        %v325 = vld [vmem:[%s33 + $0x488] sm:$0xff]
        %326 = vst [vmem:[%s34 + $0x488] sm:$0xff] %v325
        %v327 = vld [vmem:[%s33 + $0x490] sm:$0xff]
        %328 = vst [vmem:[%s34 + $0x490] sm:$0xff] %v327
        %v329 = vld [vmem:[%s33 + $0x498] sm:$0xff]
        %330 = vst [vmem:[%s34 + $0x498] sm:$0xff] %v329
        %v331 = vld [vmem:[%s33 + $0x4a0] sm:$0xff]
        %332 = vst [vmem:[%s34 + $0x4a0] sm:$0xff] %v331
        %v333 = vld [vmem:[%s33 + $0x4a8] sm:$0xff]
        %334 = vst [vmem:[%s34 + $0x4a8] sm:$0xff] %v333
        %v335 = vld [vmem:[%s33 + $0x4b0] sm:$0xff]
        %336 = vst [vmem:[%s34 + $0x4b0] sm:$0xff] %v335
        %v337 = vld [vmem:[%s33 + $0x4b8] sm:$0xff]
        %338 = vst [vmem:[%s34 + $0x4b8] sm:$0xff] %v337
        %v339 = vld [vmem:[%s33 + $0x4c0] sm:$0xff]
        %340 = vst [vmem:[%s34 + $0x4c0] sm:$0xff] %v339
        %v341 = vld [vmem:[%s33 + $0x4c8] sm:$0xff]
        %342 = vst [vmem:[%s34 + $0x4c8] sm:$0xff] %v341
        %v343 = vld [vmem:[%s33 + $0x4d0] sm:$0xff]
        %344 = vst [vmem:[%s34 + $0x4d0] sm:$0xff] %v343
        %v345 = vld [vmem:[%s33 + $0x4d8] sm:$0xff]
        %346 = vst [vmem:[%s34 + $0x4d8] sm:$0xff] %v345
        %v347 = vld [vmem:[%s33 + $0x4e0] sm:$0xff]
        %348 = vst [vmem:[%s34 + $0x4e0] sm:$0xff] %v347
        %v349 = vld [vmem:[%s33 + $0x4e8] sm:$0xff]
        %350 = vst [vmem:[%s34 + $0x4e8] sm:$0xff] %v349
        %v351 = vld [vmem:[%s33 + $0x4f0] sm:$0xff]
        %352 = vst [vmem:[%s34 + $0x4f0] sm:$0xff] %v351
        %v353 = vld [vmem:[%s33 + $0x4f8] sm:$0xff]
        %354 = vst [vmem:[%s34 + $0x4f8] sm:$0xff] %v353
        %v355 = vld [vmem:[%s33 + $0x500] sm:$0xff]
        %356 = vst [vmem:[%s34 + $0x500] sm:$0xff] %v355
        %v357 = vld [vmem:[%s33 + $0x508] sm:$0xff]
        %358 = vst [vmem:[%s34 + $0x508] sm:$0xff] %v357
        %v359 = vld [vmem:[%s33 + $0x510] sm:$0xff]
        %360 = vst [vmem:[%s34 + $0x510] sm:$0xff] %v359
        %v361 = vld [vmem:[%s33 + $0x518] sm:$0xff]
        %362 = vst [vmem:[%s34 + $0x518] sm:$0xff] %v361
        %v363 = vld [vmem:[%s33 + $0x520] sm:$0xff]
        %364 = vst [vmem:[%s34 + $0x520] sm:$0xff] %v363
        %v365 = vld [vmem:[%s33 + $0x528] sm:$0xff]
        %366 = vst [vmem:[%s34 + $0x528] sm:$0xff] %v365
        %v367 = vld [vmem:[%s33 + $0x530] sm:$0xff]
        %368 = vst [vmem:[%s34 + $0x530] sm:$0xff] %v367
        %v369 = vld [vmem:[%s33 + $0x538] sm:$0xff]
        %370 = vst [vmem:[%s34 + $0x538] sm:$0xff] %v369
        %v371 = vld [vmem:[%s33 + $0x540] sm:$0xff]
        %372 = vst [vmem:[%s34 + $0x540] sm:$0xff] %v371
        %v373 = vld [vmem:[%s33 + $0x548] sm:$0xff]
        %374 = vst [vmem:[%s34 + $0x548] sm:$0xff] %v373
        %v375 = vld [vmem:[%s33 + $0x550] sm:$0xff]
        %376 = vst [vmem:[%s34 + $0x550] sm:$0xff] %v375
        %v377 = vld [vmem:[%s33 + $0x558] sm:$0xff]
        %378 = vst [vmem:[%s34 + $0x558] sm:$0xff] %v377
        %v379 = vld [vmem:[%s33 + $0x560] sm:$0xff]
        %380 = vst [vmem:[%s34 + $0x560] sm:$0xff] %v379
        %v381 = vld [vmem:[%s33 + $0x568] sm:$0xff]
        %382 = vst [vmem:[%s34 + $0x568] sm:$0xff] %v381
        %v383 = vld [vmem:[%s33 + $0x570] sm:$0xff]
        %384 = vst [vmem:[%s34 + $0x570] sm:$0xff] %v383
        %v385 = vld [vmem:[%s33 + $0x578] sm:$0xff]
        %386 = vst [vmem:[%s34 + $0x578] sm:$0xff] %v385
        %v387 = vld [vmem:[%s33 + $0x580] sm:$0xff]
        %388 = vst [vmem:[%s34 + $0x580] sm:$0xff] %v387
        %v389 = vld [vmem:[%s33 + $0x588] sm:$0xff]
        %390 = vst [vmem:[%s34 + $0x588] sm:$0xff] %v389
        %v391 = vld [vmem:[%s33 + $0x590] sm:$0xff]
        %392 = vst [vmem:[%s34 + $0x590] sm:$0xff] %v391
        %v393 = vld [vmem:[%s33 + $0x598] sm:$0xff]
        %394 = vst [vmem:[%s34 + $0x598] sm:$0xff] %v393
        %v395 = vld [vmem:[%s33 + $0x5a0] sm:$0xff]
        %396 = vst [vmem:[%s34 + $0x5a0] sm:$0xff] %v395
        %v397 = vld [vmem:[%s33 + $0x5a8] sm:$0xff]
        %398 = vst [vmem:[%s34 + $0x5a8] sm:$0xff] %v397
        %v399 = vld [vmem:[%s33 + $0x5b0] sm:$0xff]
        %400 = vst [vmem:[%s34 + $0x5b0] sm:$0xff] %v399
        %v401 = vld [vmem:[%s33 + $0x5b8] sm:$0xff]
        %402 = vst [vmem:[%s34 + $0x5b8] sm:$0xff] %v401
        %v403 = vld [vmem:[%s33 + $0x5c0] sm:$0xff]
        %404 = vst [vmem:[%s34 + $0x5c0] sm:$0xff] %v403
        %v405 = vld [vmem:[%s33 + $0x5c8] sm:$0xff]
        %406 = vst [vmem:[%s34 + $0x5c8] sm:$0xff] %v405
        %v407 = vld [vmem:[%s33 + $0x5d0] sm:$0xff]
        %408 = vst [vmem:[%s34 + $0x5d0] sm:$0xff] %v407
        %v409 = vld [vmem:[%s33 + $0x5d8] sm:$0xff]
        %410 = vst [vmem:[%s34 + $0x5d8] sm:$0xff] %v409
        %v411 = vld [vmem:[%s33 + $0x5e0] sm:$0xff]
        %412 = vst [vmem:[%s34 + $0x5e0] sm:$0xff] %v411
        %v413 = vld [vmem:[%s33 + $0x5e8] sm:$0xff]
        %414 = vst [vmem:[%s34 + $0x5e8] sm:$0xff] %v413
        %v415 = vld [vmem:[%s33 + $0x5f0] sm:$0xff]
        %416 = vst [vmem:[%s34 + $0x5f0] sm:$0xff] %v415
        %v417 = vld [vmem:[%s33 + $0x5f8] sm:$0xff]
        %418 = vst [vmem:[%s34 + $0x5f8] sm:$0xff] %v417
        %v419 = vld [vmem:[%s33 + $0x600] sm:$0xff]
        %420 = vst [vmem:[%s34 + $0x600] sm:$0xff] %v419
        %v421 = vld [vmem:[%s33 + $0x608] sm:$0xff]
        %422 = vst [vmem:[%s34 + $0x608] sm:$0xff] %v421
        %v423 = vld [vmem:[%s33 + $0x610] sm:$0xff]
        %424 = vst [vmem:[%s34 + $0x610] sm:$0xff] %v423
        %v425 = vld [vmem:[%s33 + $0x618] sm:$0xff]
        %426 = vst [vmem:[%s34 + $0x618] sm:$0xff] %v425
        %v427 = vld [vmem:[%s33 + $0x620] sm:$0xff]
        %428 = vst [vmem:[%s34 + $0x620] sm:$0xff] %v427
        %v429 = vld [vmem:[%s33 + $0x628] sm:$0xff]
        %430 = vst [vmem:[%s34 + $0x628] sm:$0xff] %v429
        %v431 = vld [vmem:[%s33 + $0x630] sm:$0xff]
        %432 = vst [vmem:[%s34 + $0x630] sm:$0xff] %v431
        %v433 = vld [vmem:[%s33 + $0x638] sm:$0xff]
        %434 = vst [vmem:[%s34 + $0x638] sm:$0xff] %v433
        %v435 = vld [vmem:[%s33 + $0x640] sm:$0xff]
        %436 = vst [vmem:[%s34 + $0x640] sm:$0xff] %v435
        %v437 = vld [vmem:[%s33 + $0x648] sm:$0xff]
        %438 = vst [vmem:[%s34 + $0x648] sm:$0xff] %v437
        %v439 = vld [vmem:[%s33 + $0x650] sm:$0xff]
        %440 = vst [vmem:[%s34 + $0x650] sm:$0xff] %v439
        %v441 = vld [vmem:[%s33 + $0x658] sm:$0xff]
        %442 = vst [vmem:[%s34 + $0x658] sm:$0xff] %v441
        %v443 = vld [vmem:[%s33 + $0x660] sm:$0xff]
        %444 = vst [vmem:[%s34 + $0x660] sm:$0xff] %v443
        %v445 = vld [vmem:[%s33 + $0x668] sm:$0xff]
        %446 = vst [vmem:[%s34 + $0x668] sm:$0xff] %v445
        %v447 = vld [vmem:[%s33 + $0x670] sm:$0xff]
        %448 = vst [vmem:[%s34 + $0x670] sm:$0xff] %v447
        %v449 = vld [vmem:[%s33 + $0x678] sm:$0xff]
        %450 = vst [vmem:[%s34 + $0x678] sm:$0xff] %v449
        %v451 = vld [vmem:[%s33 + $0x680] sm:$0xff]
        %452 = vst [vmem:[%s34 + $0x680] sm:$0xff] %v451
        %v453 = vld [vmem:[%s33 + $0x688] sm:$0xff]
        %454 = vst [vmem:[%s34 + $0x688] sm:$0xff] %v453
        %v455 = vld [vmem:[%s33 + $0x690] sm:$0xff]
        %456 = vst [vmem:[%s34 + $0x690] sm:$0xff] %v455
        %v457 = vld [vmem:[%s33 + $0x698] sm:$0xff]
        %458 = vst [vmem:[%s34 + $0x698] sm:$0xff] %v457
        %v459 = vld [vmem:[%s33 + $0x6a0] sm:$0xff]
        %460 = vst [vmem:[%s34 + $0x6a0] sm:$0xff] %v459
        %v461 = vld [vmem:[%s33 + $0x6a8] sm:$0xff]
        %462 = vst [vmem:[%s34 + $0x6a8] sm:$0xff] %v461
        %v463 = vld [vmem:[%s33 + $0x6b0] sm:$0xff]
        %464 = vst [vmem:[%s34 + $0x6b0] sm:$0xff] %v463
        %v465 = vld [vmem:[%s33 + $0x6b8] sm:$0xff]
        %466 = vst [vmem:[%s34 + $0x6b8] sm:$0xff] %v465
        %v467 = vld [vmem:[%s33 + $0x6c0] sm:$0xff]
        %468 = vst [vmem:[%s34 + $0x6c0] sm:$0xff] %v467
        %v469 = vld [vmem:[%s33 + $0x6c8] sm:$0xff]
        %470 = vst [vmem:[%s34 + $0x6c8] sm:$0xff] %v469
        %v471 = vld [vmem:[%s33 + $0x6d0] sm:$0xff]
        %472 = vst [vmem:[%s34 + $0x6d0] sm:$0xff] %v471
        %v473 = vld [vmem:[%s33 + $0x6d8] sm:$0xff]
        %474 = vst [vmem:[%s34 + $0x6d8] sm:$0xff] %v473
        %v475 = vld [vmem:[%s33 + $0x6e0] sm:$0xff]
        %476 = vst [vmem:[%s34 + $0x6e0] sm:$0xff] %v475
        %v477 = vld [vmem:[%s33 + $0x6e8] sm:$0xff]
        %478 = vst [vmem:[%s34 + $0x6e8] sm:$0xff] %v477
        %v479 = vld [vmem:[%s33 + $0x6f0] sm:$0xff]
        %480 = vst [vmem:[%s34 + $0x6f0] sm:$0xff] %v479
        %v481 = vld [vmem:[%s33 + $0x6f8] sm:$0xff]
        %482 = vst [vmem:[%s34 + $0x6f8] sm:$0xff] %v481
        %v483 = vld [vmem:[%s33 + $0x700] sm:$0xff]
        %484 = vst [vmem:[%s34 + $0x700] sm:$0xff] %v483
        %v485 = vld [vmem:[%s33 + $0x708] sm:$0xff]
        %486 = vst [vmem:[%s34 + $0x708] sm:$0xff] %v485
        %v487 = vld [vmem:[%s33 + $0x710] sm:$0xff]
        %488 = vst [vmem:[%s34 + $0x710] sm:$0xff] %v487
        %v489 = vld [vmem:[%s33 + $0x718] sm:$0xff]
        %490 = vst [vmem:[%s34 + $0x718] sm:$0xff] %v489
        %v491 = vld [vmem:[%s33 + $0x720] sm:$0xff]
        %492 = vst [vmem:[%s34 + $0x720] sm:$0xff] %v491
        %v493 = vld [vmem:[%s33 + $0x728] sm:$0xff]
        %494 = vst [vmem:[%s34 + $0x728] sm:$0xff] %v493
        %v495 = vld [vmem:[%s33 + $0x730] sm:$0xff]
        %496 = vst [vmem:[%s34 + $0x730] sm:$0xff] %v495
        %v497 = vld [vmem:[%s33 + $0x738] sm:$0xff]
        %498 = vst [vmem:[%s34 + $0x738] sm:$0xff] %v497
        %v499 = vld [vmem:[%s33 + $0x740] sm:$0xff]
        %500 = vst [vmem:[%s34 + $0x740] sm:$0xff] %v499
        %v501 = vld [vmem:[%s33 + $0x748] sm:$0xff]
        %502 = vst [vmem:[%s34 + $0x748] sm:$0xff] %v501
        %v503 = vld [vmem:[%s33 + $0x750] sm:$0xff]
        %504 = vst [vmem:[%s34 + $0x750] sm:$0xff] %v503
        %v505 = vld [vmem:[%s33 + $0x758] sm:$0xff]
        %506 = vst [vmem:[%s34 + $0x758] sm:$0xff] %v505
        %v507 = vld [vmem:[%s33 + $0x760] sm:$0xff]
        %508 = vst [vmem:[%s34 + $0x760] sm:$0xff] %v507
        %v509 = vld [vmem:[%s33 + $0x768] sm:$0xff]
        %510 = vst [vmem:[%s34 + $0x768] sm:$0xff] %v509
        %v511 = vld [vmem:[%s33 + $0x770] sm:$0xff]
        %512 = vst [vmem:[%s34 + $0x770] sm:$0xff] %v511
        %v513 = vld [vmem:[%s33 + $0x778] sm:$0xff]
        %514 = vst [vmem:[%s34 + $0x778] sm:$0xff] %v513
        %v515 = vld [vmem:[%s33 + $0x780] sm:$0xff]
        %516 = vst [vmem:[%s34 + $0x780] sm:$0xff] %v515
        %v517 = vld [vmem:[%s33 + $0x788] sm:$0xff]
        %518 = vst [vmem:[%s34 + $0x788] sm:$0xff] %v517
        %v519 = vld [vmem:[%s33 + $0x790] sm:$0xff]
        %520 = vst [vmem:[%s34 + $0x790] sm:$0xff] %v519
        %v521 = vld [vmem:[%s33 + $0x798] sm:$0xff]
        %522 = vst [vmem:[%s34 + $0x798] sm:$0xff] %v521
        %v523 = vld [vmem:[%s33 + $0x7a0] sm:$0xff]
        %524 = vst [vmem:[%s34 + $0x7a0] sm:$0xff] %v523
        %v525 = vld [vmem:[%s33 + $0x7a8] sm:$0xff]
        %526 = vst [vmem:[%s34 + $0x7a8] sm:$0xff] %v525
        %v527 = vld [vmem:[%s33 + $0x7b0] sm:$0xff]
        %528 = vst [vmem:[%s34 + $0x7b0] sm:$0xff] %v527
        %v529 = vld [vmem:[%s33 + $0x7b8] sm:$0xff]
        %530 = vst [vmem:[%s34 + $0x7b8] sm:$0xff] %v529
        %v531 = vld [vmem:[%s33 + $0x7c0] sm:$0xff]
        %532 = vst [vmem:[%s34 + $0x7c0] sm:$0xff] %v531
        %v533 = vld [vmem:[%s33 + $0x7c8] sm:$0xff]
        %534 = vst [vmem:[%s34 + $0x7c8] sm:$0xff] %v533
        %v535 = vld [vmem:[%s33 + $0x7d0] sm:$0xff]
        %536 = vst [vmem:[%s34 + $0x7d0] sm:$0xff] %v535
        %v537 = vld [vmem:[%s33 + $0x7d8] sm:$0xff]
        %538 = vst [vmem:[%s34 + $0x7d8] sm:$0xff] %v537
        %v539 = vld [vmem:[%s33 + $0x7e0] sm:$0xff]
        %540 = vst [vmem:[%s34 + $0x7e0] sm:$0xff] %v539
        %v541 = vld [vmem:[%s33 + $0x7e8] sm:$0xff]
        %542 = vst [vmem:[%s34 + $0x7e8] sm:$0xff] %v541
        %v543 = vld [vmem:[%s33 + $0x7f0] sm:$0xff]
        %544 = vst [vmem:[%s34 + $0x7f0] sm:$0xff] %v543
        %v545 = vld [vmem:[%s33 + $0x7f8] sm:$0xff]
        %546 = vst [vmem:[%s34 + $0x7f8] sm:$0xff] %v545
      $region34: #{net_forward.1} parent=28 // loop_footer
        %s32 = sadd.s32 1, %s28
      $region35: #{net_forward.1} parent=28 // loop_footer_branch
        %27 = sbr.rel target = $region31
      $region36: #{net_forward.1} parent=28 // loop_exit
        _
    $region29: #{net_forward.1} parent=1 // pred_fallthru
      _
    // Predicated region
    $region37: #{net_forward.1} parent=1 // pred_check
      _
    $region38: #{net_forward.1} parent=1 // pred_check_branch
      %548 = sbr.rel target = $region40
    $region39: #{net_forward.1} parent=1 // pred_region
      _
    $region40: #{net_forward.1} parent=1 // pred_fallthru
      _
    // Predicated region
    $region41: #{net_forward.1} parent=1 // pred_check
      _
    $region42: #{net_forward.1} parent=1 // pred_check_branch
      %551 = sbr.rel (0) target = $region44
    $region43: #{net_forward.1} parent=1 // pred_region
      %552 = vsyncadd [#allocation4], 32768
    $region44: #{net_forward.1} parent=1 // pred_fallthru
      _
    %s553 = scalar_lea.vmem %s3, 2048
    %s554 = scalar_lea.vmem [#allocation2], 2048
    %s555 = scalar_lea.sflag [#allocation4], 1
    // Predicated region
    $region45: #{net_forward.1} parent=1 // pred_check
      _
    $region46: #{net_forward.1} parent=1 // pred_check_branch
      %557 = sbr.rel (0) target = $region48
    $region47: #{net_forward.1} parent=1 // pred_region
      loop: start=0, step=1, limit=1
      $region49: #{net_forward.1} parent=47 // loop_pre_header
        _
      $region50: #{net_forward.1} parent=47 // loop_header
        %s559 = sphi 0, %s563
        %p560 = scmp.ge.s32.totalorder %s559, 1
        %s564 = sphi %s553, %s553
        %s565 = sphi %s554, %s554
      $region51: #{net_forward.1} parent=47 // loop_header_branch
        %562 = sbr.rel (%p560) target = $region55
      $region52: #{net_forward.1} parent=47 // loop_body
        %v566 = vld [vmem:[%s564] sm:$0xff]
        %567 = vst [vmem:[%s565] sm:$0xff] %v566
        %v568 = vld [vmem:[%s564 + $0x8] sm:$0xff]
        %569 = vst [vmem:[%s565 + $0x8] sm:$0xff] %v568
        %v570 = vld [vmem:[%s564 + $0x10] sm:$0xff]
        %571 = vst [vmem:[%s565 + $0x10] sm:$0xff] %v570
        %v572 = vld [vmem:[%s564 + $0x18] sm:$0xff]
        %573 = vst [vmem:[%s565 + $0x18] sm:$0xff] %v572
        %v574 = vld [vmem:[%s564 + $0x20] sm:$0xff]
        %575 = vst [vmem:[%s565 + $0x20] sm:$0xff] %v574
        %v576 = vld [vmem:[%s564 + $0x28] sm:$0xff]
        %577 = vst [vmem:[%s565 + $0x28] sm:$0xff] %v576
        %v578 = vld [vmem:[%s564 + $0x30] sm:$0xff]
        %579 = vst [vmem:[%s565 + $0x30] sm:$0xff] %v578
        %v580 = vld [vmem:[%s564 + $0x38] sm:$0xff]
        %581 = vst [vmem:[%s565 + $0x38] sm:$0xff] %v580
        %v582 = vld [vmem:[%s564 + $0x40] sm:$0xff]
        %583 = vst [vmem:[%s565 + $0x40] sm:$0xff] %v582
        %v584 = vld [vmem:[%s564 + $0x48] sm:$0xff]
        %585 = vst [vmem:[%s565 + $0x48] sm:$0xff] %v584
        %v586 = vld [vmem:[%s564 + $0x50] sm:$0xff]
        %587 = vst [vmem:[%s565 + $0x50] sm:$0xff] %v586
        %v588 = vld [vmem:[%s564 + $0x58] sm:$0xff]
        %589 = vst [vmem:[%s565 + $0x58] sm:$0xff] %v588
        %v590 = vld [vmem:[%s564 + $0x60] sm:$0xff]
        %591 = vst [vmem:[%s565 + $0x60] sm:$0xff] %v590
        %v592 = vld [vmem:[%s564 + $0x68] sm:$0xff]
        %593 = vst [vmem:[%s565 + $0x68] sm:$0xff] %v592
        %v594 = vld [vmem:[%s564 + $0x70] sm:$0xff]
        %595 = vst [vmem:[%s565 + $0x70] sm:$0xff] %v594
        %v596 = vld [vmem:[%s564 + $0x78] sm:$0xff]
        %597 = vst [vmem:[%s565 + $0x78] sm:$0xff] %v596
        %v598 = vld [vmem:[%s564 + $0x80] sm:$0xff]
        %599 = vst [vmem:[%s565 + $0x80] sm:$0xff] %v598
        %v600 = vld [vmem:[%s564 + $0x88] sm:$0xff]
        %601 = vst [vmem:[%s565 + $0x88] sm:$0xff] %v600
        %v602 = vld [vmem:[%s564 + $0x90] sm:$0xff]
        %603 = vst [vmem:[%s565 + $0x90] sm:$0xff] %v602
        %v604 = vld [vmem:[%s564 + $0x98] sm:$0xff]
        %605 = vst [vmem:[%s565 + $0x98] sm:$0xff] %v604
        %v606 = vld [vmem:[%s564 + $0xa0] sm:$0xff]
        %607 = vst [vmem:[%s565 + $0xa0] sm:$0xff] %v606
        %v608 = vld [vmem:[%s564 + $0xa8] sm:$0xff]
        %609 = vst [vmem:[%s565 + $0xa8] sm:$0xff] %v608
        %v610 = vld [vmem:[%s564 + $0xb0] sm:$0xff]
        %611 = vst [vmem:[%s565 + $0xb0] sm:$0xff] %v610
        %v612 = vld [vmem:[%s564 + $0xb8] sm:$0xff]
        %613 = vst [vmem:[%s565 + $0xb8] sm:$0xff] %v612
        %v614 = vld [vmem:[%s564 + $0xc0] sm:$0xff]
        %615 = vst [vmem:[%s565 + $0xc0] sm:$0xff] %v614
        %v616 = vld [vmem:[%s564 + $0xc8] sm:$0xff]
        %617 = vst [vmem:[%s565 + $0xc8] sm:$0xff] %v616
        %v618 = vld [vmem:[%s564 + $0xd0] sm:$0xff]
        %619 = vst [vmem:[%s565 + $0xd0] sm:$0xff] %v618
        %v620 = vld [vmem:[%s564 + $0xd8] sm:$0xff]
        %621 = vst [vmem:[%s565 + $0xd8] sm:$0xff] %v620
        %v622 = vld [vmem:[%s564 + $0xe0] sm:$0xff]
        %623 = vst [vmem:[%s565 + $0xe0] sm:$0xff] %v622
        %v624 = vld [vmem:[%s564 + $0xe8] sm:$0xff]
        %625 = vst [vmem:[%s565 + $0xe8] sm:$0xff] %v624
        %v626 = vld [vmem:[%s564 + $0xf0] sm:$0xff]
        %627 = vst [vmem:[%s565 + $0xf0] sm:$0xff] %v626
        %v628 = vld [vmem:[%s564 + $0xf8] sm:$0xff]
        %629 = vst [vmem:[%s565 + $0xf8] sm:$0xff] %v628
        %v630 = vld [vmem:[%s564 + $0x100] sm:$0xff]
        %631 = vst [vmem:[%s565 + $0x100] sm:$0xff] %v630
        %v632 = vld [vmem:[%s564 + $0x108] sm:$0xff]
        %633 = vst [vmem:[%s565 + $0x108] sm:$0xff] %v632
        %v634 = vld [vmem:[%s564 + $0x110] sm:$0xff]
        %635 = vst [vmem:[%s565 + $0x110] sm:$0xff] %v634
        %v636 = vld [vmem:[%s564 + $0x118] sm:$0xff]
        %637 = vst [vmem:[%s565 + $0x118] sm:$0xff] %v636
        %v638 = vld [vmem:[%s564 + $0x120] sm:$0xff]
        %639 = vst [vmem:[%s565 + $0x120] sm:$0xff] %v638
        %v640 = vld [vmem:[%s564 + $0x128] sm:$0xff]
        %641 = vst [vmem:[%s565 + $0x128] sm:$0xff] %v640
        %v642 = vld [vmem:[%s564 + $0x130] sm:$0xff]
        %643 = vst [vmem:[%s565 + $0x130] sm:$0xff] %v642
        %v644 = vld [vmem:[%s564 + $0x138] sm:$0xff]
        %645 = vst [vmem:[%s565 + $0x138] sm:$0xff] %v644
        %v646 = vld [vmem:[%s564 + $0x140] sm:$0xff]
        %647 = vst [vmem:[%s565 + $0x140] sm:$0xff] %v646
        %v648 = vld [vmem:[%s564 + $0x148] sm:$0xff]
        %649 = vst [vmem:[%s565 + $0x148] sm:$0xff] %v648
        %v650 = vld [vmem:[%s564 + $0x150] sm:$0xff]
        %651 = vst [vmem:[%s565 + $0x150] sm:$0xff] %v650
        %v652 = vld [vmem:[%s564 + $0x158] sm:$0xff]
        %653 = vst [vmem:[%s565 + $0x158] sm:$0xff] %v652
        %v654 = vld [vmem:[%s564 + $0x160] sm:$0xff]
        %655 = vst [vmem:[%s565 + $0x160] sm:$0xff] %v654
        %v656 = vld [vmem:[%s564 + $0x168] sm:$0xff]
        %657 = vst [vmem:[%s565 + $0x168] sm:$0xff] %v656
        %v658 = vld [vmem:[%s564 + $0x170] sm:$0xff]
        %659 = vst [vmem:[%s565 + $0x170] sm:$0xff] %v658
        %v660 = vld [vmem:[%s564 + $0x178] sm:$0xff]
        %661 = vst [vmem:[%s565 + $0x178] sm:$0xff] %v660
        %v662 = vld [vmem:[%s564 + $0x180] sm:$0xff]
        %663 = vst [vmem:[%s565 + $0x180] sm:$0xff] %v662
        %v664 = vld [vmem:[%s564 + $0x188] sm:$0xff]
        %665 = vst [vmem:[%s565 + $0x188] sm:$0xff] %v664
        %v666 = vld [vmem:[%s564 + $0x190] sm:$0xff]
        %667 = vst [vmem:[%s565 + $0x190] sm:$0xff] %v666
        %v668 = vld [vmem:[%s564 + $0x198] sm:$0xff]
        %669 = vst [vmem:[%s565 + $0x198] sm:$0xff] %v668
        %v670 = vld [vmem:[%s564 + $0x1a0] sm:$0xff]
        %671 = vst [vmem:[%s565 + $0x1a0] sm:$0xff] %v670
        %v672 = vld [vmem:[%s564 + $0x1a8] sm:$0xff]
        %673 = vst [vmem:[%s565 + $0x1a8] sm:$0xff] %v672
        %v674 = vld [vmem:[%s564 + $0x1b0] sm:$0xff]
        %675 = vst [vmem:[%s565 + $0x1b0] sm:$0xff] %v674
        %v676 = vld [vmem:[%s564 + $0x1b8] sm:$0xff]
        %677 = vst [vmem:[%s565 + $0x1b8] sm:$0xff] %v676
        %v678 = vld [vmem:[%s564 + $0x1c0] sm:$0xff]
        %679 = vst [vmem:[%s565 + $0x1c0] sm:$0xff] %v678
        %v680 = vld [vmem:[%s564 + $0x1c8] sm:$0xff]
        %681 = vst [vmem:[%s565 + $0x1c8] sm:$0xff] %v680
        %v682 = vld [vmem:[%s564 + $0x1d0] sm:$0xff]
        %683 = vst [vmem:[%s565 + $0x1d0] sm:$0xff] %v682
        %v684 = vld [vmem:[%s564 + $0x1d8] sm:$0xff]
        %685 = vst [vmem:[%s565 + $0x1d8] sm:$0xff] %v684
        %v686 = vld [vmem:[%s564 + $0x1e0] sm:$0xff]
        %687 = vst [vmem:[%s565 + $0x1e0] sm:$0xff] %v686
        %v688 = vld [vmem:[%s564 + $0x1e8] sm:$0xff]
        %689 = vst [vmem:[%s565 + $0x1e8] sm:$0xff] %v688
        %v690 = vld [vmem:[%s564 + $0x1f0] sm:$0xff]
        %691 = vst [vmem:[%s565 + $0x1f0] sm:$0xff] %v690
        %v692 = vld [vmem:[%s564 + $0x1f8] sm:$0xff]
        %693 = vst [vmem:[%s565 + $0x1f8] sm:$0xff] %v692
        %v694 = vld [vmem:[%s564 + $0x200] sm:$0xff]
        %695 = vst [vmem:[%s565 + $0x200] sm:$0xff] %v694
        %v696 = vld [vmem:[%s564 + $0x208] sm:$0xff]
        %697 = vst [vmem:[%s565 + $0x208] sm:$0xff] %v696
        %v698 = vld [vmem:[%s564 + $0x210] sm:$0xff]
        %699 = vst [vmem:[%s565 + $0x210] sm:$0xff] %v698
        %v700 = vld [vmem:[%s564 + $0x218] sm:$0xff]
        %701 = vst [vmem:[%s565 + $0x218] sm:$0xff] %v700
        %v702 = vld [vmem:[%s564 + $0x220] sm:$0xff]
        %703 = vst [vmem:[%s565 + $0x220] sm:$0xff] %v702
        %v704 = vld [vmem:[%s564 + $0x228] sm:$0xff]
        %705 = vst [vmem:[%s565 + $0x228] sm:$0xff] %v704
        %v706 = vld [vmem:[%s564 + $0x230] sm:$0xff]
        %707 = vst [vmem:[%s565 + $0x230] sm:$0xff] %v706
        %v708 = vld [vmem:[%s564 + $0x238] sm:$0xff]
        %709 = vst [vmem:[%s565 + $0x238] sm:$0xff] %v708
        %v710 = vld [vmem:[%s564 + $0x240] sm:$0xff]
        %711 = vst [vmem:[%s565 + $0x240] sm:$0xff] %v710
        %v712 = vld [vmem:[%s564 + $0x248] sm:$0xff]
        %713 = vst [vmem:[%s565 + $0x248] sm:$0xff] %v712
        %v714 = vld [vmem:[%s564 + $0x250] sm:$0xff]
        %715 = vst [vmem:[%s565 + $0x250] sm:$0xff] %v714
        %v716 = vld [vmem:[%s564 + $0x258] sm:$0xff]
        %717 = vst [vmem:[%s565 + $0x258] sm:$0xff] %v716
        %v718 = vld [vmem:[%s564 + $0x260] sm:$0xff]
        %719 = vst [vmem:[%s565 + $0x260] sm:$0xff] %v718
        %v720 = vld [vmem:[%s564 + $0x268] sm:$0xff]
        %721 = vst [vmem:[%s565 + $0x268] sm:$0xff] %v720
        %v722 = vld [vmem:[%s564 + $0x270] sm:$0xff]
        %723 = vst [vmem:[%s565 + $0x270] sm:$0xff] %v722
        %v724 = vld [vmem:[%s564 + $0x278] sm:$0xff]
        %725 = vst [vmem:[%s565 + $0x278] sm:$0xff] %v724
        %v726 = vld [vmem:[%s564 + $0x280] sm:$0xff]
        %727 = vst [vmem:[%s565 + $0x280] sm:$0xff] %v726
        %v728 = vld [vmem:[%s564 + $0x288] sm:$0xff]
        %729 = vst [vmem:[%s565 + $0x288] sm:$0xff] %v728
        %v730 = vld [vmem:[%s564 + $0x290] sm:$0xff]
        %731 = vst [vmem:[%s565 + $0x290] sm:$0xff] %v730
        %v732 = vld [vmem:[%s564 + $0x298] sm:$0xff]
        %733 = vst [vmem:[%s565 + $0x298] sm:$0xff] %v732
        %v734 = vld [vmem:[%s564 + $0x2a0] sm:$0xff]
        %735 = vst [vmem:[%s565 + $0x2a0] sm:$0xff] %v734
        %v736 = vld [vmem:[%s564 + $0x2a8] sm:$0xff]
        %737 = vst [vmem:[%s565 + $0x2a8] sm:$0xff] %v736
        %v738 = vld [vmem:[%s564 + $0x2b0] sm:$0xff]
        %739 = vst [vmem:[%s565 + $0x2b0] sm:$0xff] %v738
        %v740 = vld [vmem:[%s564 + $0x2b8] sm:$0xff]
        %741 = vst [vmem:[%s565 + $0x2b8] sm:$0xff] %v740
        %v742 = vld [vmem:[%s564 + $0x2c0] sm:$0xff]
        %743 = vst [vmem:[%s565 + $0x2c0] sm:$0xff] %v742
        %v744 = vld [vmem:[%s564 + $0x2c8] sm:$0xff]
        %745 = vst [vmem:[%s565 + $0x2c8] sm:$0xff] %v744
        %v746 = vld [vmem:[%s564 + $0x2d0] sm:$0xff]
        %747 = vst [vmem:[%s565 + $0x2d0] sm:$0xff] %v746
        %v748 = vld [vmem:[%s564 + $0x2d8] sm:$0xff]
        %749 = vst [vmem:[%s565 + $0x2d8] sm:$0xff] %v748
        %v750 = vld [vmem:[%s564 + $0x2e0] sm:$0xff]
        %751 = vst [vmem:[%s565 + $0x2e0] sm:$0xff] %v750
        %v752 = vld [vmem:[%s564 + $0x2e8] sm:$0xff]
        %753 = vst [vmem:[%s565 + $0x2e8] sm:$0xff] %v752
        %v754 = vld [vmem:[%s564 + $0x2f0] sm:$0xff]
        %755 = vst [vmem:[%s565 + $0x2f0] sm:$0xff] %v754
        %v756 = vld [vmem:[%s564 + $0x2f8] sm:$0xff]
        %757 = vst [vmem:[%s565 + $0x2f8] sm:$0xff] %v756
        %v758 = vld [vmem:[%s564 + $0x300] sm:$0xff]
        %759 = vst [vmem:[%s565 + $0x300] sm:$0xff] %v758
        %v760 = vld [vmem:[%s564 + $0x308] sm:$0xff]
        %761 = vst [vmem:[%s565 + $0x308] sm:$0xff] %v760
        %v762 = vld [vmem:[%s564 + $0x310] sm:$0xff]
        %763 = vst [vmem:[%s565 + $0x310] sm:$0xff] %v762
        %v764 = vld [vmem:[%s564 + $0x318] sm:$0xff]
        %765 = vst [vmem:[%s565 + $0x318] sm:$0xff] %v764
        %v766 = vld [vmem:[%s564 + $0x320] sm:$0xff]
        %767 = vst [vmem:[%s565 + $0x320] sm:$0xff] %v766
        %v768 = vld [vmem:[%s564 + $0x328] sm:$0xff]
        %769 = vst [vmem:[%s565 + $0x328] sm:$0xff] %v768
        %v770 = vld [vmem:[%s564 + $0x330] sm:$0xff]
        %771 = vst [vmem:[%s565 + $0x330] sm:$0xff] %v770
        %v772 = vld [vmem:[%s564 + $0x338] sm:$0xff]
        %773 = vst [vmem:[%s565 + $0x338] sm:$0xff] %v772
        %v774 = vld [vmem:[%s564 + $0x340] sm:$0xff]
        %775 = vst [vmem:[%s565 + $0x340] sm:$0xff] %v774
        %v776 = vld [vmem:[%s564 + $0x348] sm:$0xff]
        %777 = vst [vmem:[%s565 + $0x348] sm:$0xff] %v776
        %v778 = vld [vmem:[%s564 + $0x350] sm:$0xff]
        %779 = vst [vmem:[%s565 + $0x350] sm:$0xff] %v778
        %v780 = vld [vmem:[%s564 + $0x358] sm:$0xff]
        %781 = vst [vmem:[%s565 + $0x358] sm:$0xff] %v780
        %v782 = vld [vmem:[%s564 + $0x360] sm:$0xff]
        %783 = vst [vmem:[%s565 + $0x360] sm:$0xff] %v782
        %v784 = vld [vmem:[%s564 + $0x368] sm:$0xff]
        %785 = vst [vmem:[%s565 + $0x368] sm:$0xff] %v784
        %v786 = vld [vmem:[%s564 + $0x370] sm:$0xff]
        %787 = vst [vmem:[%s565 + $0x370] sm:$0xff] %v786
        %v788 = vld [vmem:[%s564 + $0x378] sm:$0xff]
        %789 = vst [vmem:[%s565 + $0x378] sm:$0xff] %v788
        %v790 = vld [vmem:[%s564 + $0x380] sm:$0xff]
        %791 = vst [vmem:[%s565 + $0x380] sm:$0xff] %v790
        %v792 = vld [vmem:[%s564 + $0x388] sm:$0xff]
        %793 = vst [vmem:[%s565 + $0x388] sm:$0xff] %v792
        %v794 = vld [vmem:[%s564 + $0x390] sm:$0xff]
        %795 = vst [vmem:[%s565 + $0x390] sm:$0xff] %v794
        %v796 = vld [vmem:[%s564 + $0x398] sm:$0xff]
        %797 = vst [vmem:[%s565 + $0x398] sm:$0xff] %v796
        %v798 = vld [vmem:[%s564 + $0x3a0] sm:$0xff]
        %799 = vst [vmem:[%s565 + $0x3a0] sm:$0xff] %v798
        %v800 = vld [vmem:[%s564 + $0x3a8] sm:$0xff]
        %801 = vst [vmem:[%s565 + $0x3a8] sm:$0xff] %v800
        %v802 = vld [vmem:[%s564 + $0x3b0] sm:$0xff]
        %803 = vst [vmem:[%s565 + $0x3b0] sm:$0xff] %v802
        %v804 = vld [vmem:[%s564 + $0x3b8] sm:$0xff]
        %805 = vst [vmem:[%s565 + $0x3b8] sm:$0xff] %v804
        %v806 = vld [vmem:[%s564 + $0x3c0] sm:$0xff]
        %807 = vst [vmem:[%s565 + $0x3c0] sm:$0xff] %v806
        %v808 = vld [vmem:[%s564 + $0x3c8] sm:$0xff]
        %809 = vst [vmem:[%s565 + $0x3c8] sm:$0xff] %v808
        %v810 = vld [vmem:[%s564 + $0x3d0] sm:$0xff]
        %811 = vst [vmem:[%s565 + $0x3d0] sm:$0xff] %v810
        %v812 = vld [vmem:[%s564 + $0x3d8] sm:$0xff]
        %813 = vst [vmem:[%s565 + $0x3d8] sm:$0xff] %v812
        %v814 = vld [vmem:[%s564 + $0x3e0] sm:$0xff]
        %815 = vst [vmem:[%s565 + $0x3e0] sm:$0xff] %v814
        %v816 = vld [vmem:[%s564 + $0x3e8] sm:$0xff]
        %817 = vst [vmem:[%s565 + $0x3e8] sm:$0xff] %v816
        %v818 = vld [vmem:[%s564 + $0x3f0] sm:$0xff]
        %819 = vst [vmem:[%s565 + $0x3f0] sm:$0xff] %v818
        %v820 = vld [vmem:[%s564 + $0x3f8] sm:$0xff]
        %821 = vst [vmem:[%s565 + $0x3f8] sm:$0xff] %v820
        %v822 = vld [vmem:[%s564 + $0x400] sm:$0xff]
        %823 = vst [vmem:[%s565 + $0x400] sm:$0xff] %v822
        %v824 = vld [vmem:[%s564 + $0x408] sm:$0xff]
        %825 = vst [vmem:[%s565 + $0x408] sm:$0xff] %v824
        %v826 = vld [vmem:[%s564 + $0x410] sm:$0xff]
        %827 = vst [vmem:[%s565 + $0x410] sm:$0xff] %v826
        %v828 = vld [vmem:[%s564 + $0x418] sm:$0xff]
        %829 = vst [vmem:[%s565 + $0x418] sm:$0xff] %v828
        %v830 = vld [vmem:[%s564 + $0x420] sm:$0xff]
        %831 = vst [vmem:[%s565 + $0x420] sm:$0xff] %v830
        %v832 = vld [vmem:[%s564 + $0x428] sm:$0xff]
        %833 = vst [vmem:[%s565 + $0x428] sm:$0xff] %v832
        %v834 = vld [vmem:[%s564 + $0x430] sm:$0xff]
        %835 = vst [vmem:[%s565 + $0x430] sm:$0xff] %v834
        %v836 = vld [vmem:[%s564 + $0x438] sm:$0xff]
        %837 = vst [vmem:[%s565 + $0x438] sm:$0xff] %v836
        %v838 = vld [vmem:[%s564 + $0x440] sm:$0xff]
        %839 = vst [vmem:[%s565 + $0x440] sm:$0xff] %v838
        %v840 = vld [vmem:[%s564 + $0x448] sm:$0xff]
        %841 = vst [vmem:[%s565 + $0x448] sm:$0xff] %v840
        %v842 = vld [vmem:[%s564 + $0x450] sm:$0xff]
        %843 = vst [vmem:[%s565 + $0x450] sm:$0xff] %v842
        %v844 = vld [vmem:[%s564 + $0x458] sm:$0xff]
        %845 = vst [vmem:[%s565 + $0x458] sm:$0xff] %v844
        %v846 = vld [vmem:[%s564 + $0x460] sm:$0xff]
        %847 = vst [vmem:[%s565 + $0x460] sm:$0xff] %v846
        %v848 = vld [vmem:[%s564 + $0x468] sm:$0xff]
        %849 = vst [vmem:[%s565 + $0x468] sm:$0xff] %v848
        %v850 = vld [vmem:[%s564 + $0x470] sm:$0xff]
        %851 = vst [vmem:[%s565 + $0x470] sm:$0xff] %v850
        %v852 = vld [vmem:[%s564 + $0x478] sm:$0xff]
        %853 = vst [vmem:[%s565 + $0x478] sm:$0xff] %v852
        %v854 = vld [vmem:[%s564 + $0x480] sm:$0xff]
        %855 = vst [vmem:[%s565 + $0x480] sm:$0xff] %v854
        %v856 = vld [vmem:[%s564 + $0x488] sm:$0xff]
        %857 = vst [vmem:[%s565 + $0x488] sm:$0xff] %v856
        %v858 = vld [vmem:[%s564 + $0x490] sm:$0xff]
        %859 = vst [vmem:[%s565 + $0x490] sm:$0xff] %v858
        %v860 = vld [vmem:[%s564 + $0x498] sm:$0xff]
        %861 = vst [vmem:[%s565 + $0x498] sm:$0xff] %v860
        %v862 = vld [vmem:[%s564 + $0x4a0] sm:$0xff]
        %863 = vst [vmem:[%s565 + $0x4a0] sm:$0xff] %v862
        %v864 = vld [vmem:[%s564 + $0x4a8] sm:$0xff]
        %865 = vst [vmem:[%s565 + $0x4a8] sm:$0xff] %v864
        %v866 = vld [vmem:[%s564 + $0x4b0] sm:$0xff]
        %867 = vst [vmem:[%s565 + $0x4b0] sm:$0xff] %v866
        %v868 = vld [vmem:[%s564 + $0x4b8] sm:$0xff]
        %869 = vst [vmem:[%s565 + $0x4b8] sm:$0xff] %v868
        %v870 = vld [vmem:[%s564 + $0x4c0] sm:$0xff]
        %871 = vst [vmem:[%s565 + $0x4c0] sm:$0xff] %v870
        %v872 = vld [vmem:[%s564 + $0x4c8] sm:$0xff]
        %873 = vst [vmem:[%s565 + $0x4c8] sm:$0xff] %v872
        %v874 = vld [vmem:[%s564 + $0x4d0] sm:$0xff]
        %875 = vst [vmem:[%s565 + $0x4d0] sm:$0xff] %v874
        %v876 = vld [vmem:[%s564 + $0x4d8] sm:$0xff]
        %877 = vst [vmem:[%s565 + $0x4d8] sm:$0xff] %v876
        %v878 = vld [vmem:[%s564 + $0x4e0] sm:$0xff]
        %879 = vst [vmem:[%s565 + $0x4e0] sm:$0xff] %v878
        %v880 = vld [vmem:[%s564 + $0x4e8] sm:$0xff]
        %881 = vst [vmem:[%s565 + $0x4e8] sm:$0xff] %v880
        %v882 = vld [vmem:[%s564 + $0x4f0] sm:$0xff]
        %883 = vst [vmem:[%s565 + $0x4f0] sm:$0xff] %v882
        %v884 = vld [vmem:[%s564 + $0x4f8] sm:$0xff]
        %885 = vst [vmem:[%s565 + $0x4f8] sm:$0xff] %v884
        %v886 = vld [vmem:[%s564 + $0x500] sm:$0xff]
        %887 = vst [vmem:[%s565 + $0x500] sm:$0xff] %v886
        %v888 = vld [vmem:[%s564 + $0x508] sm:$0xff]
        %889 = vst [vmem:[%s565 + $0x508] sm:$0xff] %v888
        %v890 = vld [vmem:[%s564 + $0x510] sm:$0xff]
        %891 = vst [vmem:[%s565 + $0x510] sm:$0xff] %v890
        %v892 = vld [vmem:[%s564 + $0x518] sm:$0xff]
        %893 = vst [vmem:[%s565 + $0x518] sm:$0xff] %v892
        %v894 = vld [vmem:[%s564 + $0x520] sm:$0xff]
        %895 = vst [vmem:[%s565 + $0x520] sm:$0xff] %v894
        %v896 = vld [vmem:[%s564 + $0x528] sm:$0xff]
        %897 = vst [vmem:[%s565 + $0x528] sm:$0xff] %v896
        %v898 = vld [vmem:[%s564 + $0x530] sm:$0xff]
        %899 = vst [vmem:[%s565 + $0x530] sm:$0xff] %v898
        %v900 = vld [vmem:[%s564 + $0x538] sm:$0xff]
        %901 = vst [vmem:[%s565 + $0x538] sm:$0xff] %v900
        %v902 = vld [vmem:[%s564 + $0x540] sm:$0xff]
        %903 = vst [vmem:[%s565 + $0x540] sm:$0xff] %v902
        %v904 = vld [vmem:[%s564 + $0x548] sm:$0xff]
        %905 = vst [vmem:[%s565 + $0x548] sm:$0xff] %v904
        %v906 = vld [vmem:[%s564 + $0x550] sm:$0xff]
        %907 = vst [vmem:[%s565 + $0x550] sm:$0xff] %v906
        %v908 = vld [vmem:[%s564 + $0x558] sm:$0xff]
        %909 = vst [vmem:[%s565 + $0x558] sm:$0xff] %v908
        %v910 = vld [vmem:[%s564 + $0x560] sm:$0xff]
        %911 = vst [vmem:[%s565 + $0x560] sm:$0xff] %v910
        %v912 = vld [vmem:[%s564 + $0x568] sm:$0xff]
        %913 = vst [vmem:[%s565 + $0x568] sm:$0xff] %v912
        %v914 = vld [vmem:[%s564 + $0x570] sm:$0xff]
        %915 = vst [vmem:[%s565 + $0x570] sm:$0xff] %v914
        %v916 = vld [vmem:[%s564 + $0x578] sm:$0xff]
        %917 = vst [vmem:[%s565 + $0x578] sm:$0xff] %v916
        %v918 = vld [vmem:[%s564 + $0x580] sm:$0xff]
        %919 = vst [vmem:[%s565 + $0x580] sm:$0xff] %v918
        %v920 = vld [vmem:[%s564 + $0x588] sm:$0xff]
        %921 = vst [vmem:[%s565 + $0x588] sm:$0xff] %v920
        %v922 = vld [vmem:[%s564 + $0x590] sm:$0xff]
        %923 = vst [vmem:[%s565 + $0x590] sm:$0xff] %v922
        %v924 = vld [vmem:[%s564 + $0x598] sm:$0xff]
        %925 = vst [vmem:[%s565 + $0x598] sm:$0xff] %v924
        %v926 = vld [vmem:[%s564 + $0x5a0] sm:$0xff]
        %927 = vst [vmem:[%s565 + $0x5a0] sm:$0xff] %v926
        %v928 = vld [vmem:[%s564 + $0x5a8] sm:$0xff]
        %929 = vst [vmem:[%s565 + $0x5a8] sm:$0xff] %v928
        %v930 = vld [vmem:[%s564 + $0x5b0] sm:$0xff]
        %931 = vst [vmem:[%s565 + $0x5b0] sm:$0xff] %v930
        %v932 = vld [vmem:[%s564 + $0x5b8] sm:$0xff]
        %933 = vst [vmem:[%s565 + $0x5b8] sm:$0xff] %v932
        %v934 = vld [vmem:[%s564 + $0x5c0] sm:$0xff]
        %935 = vst [vmem:[%s565 + $0x5c0] sm:$0xff] %v934
        %v936 = vld [vmem:[%s564 + $0x5c8] sm:$0xff]
        %937 = vst [vmem:[%s565 + $0x5c8] sm:$0xff] %v936
        %v938 = vld [vmem:[%s564 + $0x5d0] sm:$0xff]
        %939 = vst [vmem:[%s565 + $0x5d0] sm:$0xff] %v938
        %v940 = vld [vmem:[%s564 + $0x5d8] sm:$0xff]
        %941 = vst [vmem:[%s565 + $0x5d8] sm:$0xff] %v940
        %v942 = vld [vmem:[%s564 + $0x5e0] sm:$0xff]
        %943 = vst [vmem:[%s565 + $0x5e0] sm:$0xff] %v942
        %v944 = vld [vmem:[%s564 + $0x5e8] sm:$0xff]
        %945 = vst [vmem:[%s565 + $0x5e8] sm:$0xff] %v944
        %v946 = vld [vmem:[%s564 + $0x5f0] sm:$0xff]
        %947 = vst [vmem:[%s565 + $0x5f0] sm:$0xff] %v946
        %v948 = vld [vmem:[%s564 + $0x5f8] sm:$0xff]
        %949 = vst [vmem:[%s565 + $0x5f8] sm:$0xff] %v948
        %v950 = vld [vmem:[%s564 + $0x600] sm:$0xff]
        %951 = vst [vmem:[%s565 + $0x600] sm:$0xff] %v950
        %v952 = vld [vmem:[%s564 + $0x608] sm:$0xff]
        %953 = vst [vmem:[%s565 + $0x608] sm:$0xff] %v952
        %v954 = vld [vmem:[%s564 + $0x610] sm:$0xff]
        %955 = vst [vmem:[%s565 + $0x610] sm:$0xff] %v954
        %v956 = vld [vmem:[%s564 + $0x618] sm:$0xff]
        %957 = vst [vmem:[%s565 + $0x618] sm:$0xff] %v956
        %v958 = vld [vmem:[%s564 + $0x620] sm:$0xff]
        %959 = vst [vmem:[%s565 + $0x620] sm:$0xff] %v958
        %v960 = vld [vmem:[%s564 + $0x628] sm:$0xff]
        %961 = vst [vmem:[%s565 + $0x628] sm:$0xff] %v960
        %v962 = vld [vmem:[%s564 + $0x630] sm:$0xff]
        %963 = vst [vmem:[%s565 + $0x630] sm:$0xff] %v962
        %v964 = vld [vmem:[%s564 + $0x638] sm:$0xff]
        %965 = vst [vmem:[%s565 + $0x638] sm:$0xff] %v964
        %v966 = vld [vmem:[%s564 + $0x640] sm:$0xff]
        %967 = vst [vmem:[%s565 + $0x640] sm:$0xff] %v966
        %v968 = vld [vmem:[%s564 + $0x648] sm:$0xff]
        %969 = vst [vmem:[%s565 + $0x648] sm:$0xff] %v968
        %v970 = vld [vmem:[%s564 + $0x650] sm:$0xff]
        %971 = vst [vmem:[%s565 + $0x650] sm:$0xff] %v970
        %v972 = vld [vmem:[%s564 + $0x658] sm:$0xff]
        %973 = vst [vmem:[%s565 + $0x658] sm:$0xff] %v972
        %v974 = vld [vmem:[%s564 + $0x660] sm:$0xff]
        %975 = vst [vmem:[%s565 + $0x660] sm:$0xff] %v974
        %v976 = vld [vmem:[%s564 + $0x668] sm:$0xff]
        %977 = vst [vmem:[%s565 + $0x668] sm:$0xff] %v976
        %v978 = vld [vmem:[%s564 + $0x670] sm:$0xff]
        %979 = vst [vmem:[%s565 + $0x670] sm:$0xff] %v978
        %v980 = vld [vmem:[%s564 + $0x678] sm:$0xff]
        %981 = vst [vmem:[%s565 + $0x678] sm:$0xff] %v980
        %v982 = vld [vmem:[%s564 + $0x680] sm:$0xff]
        %983 = vst [vmem:[%s565 + $0x680] sm:$0xff] %v982
        %v984 = vld [vmem:[%s564 + $0x688] sm:$0xff]
        %985 = vst [vmem:[%s565 + $0x688] sm:$0xff] %v984
        %v986 = vld [vmem:[%s564 + $0x690] sm:$0xff]
        %987 = vst [vmem:[%s565 + $0x690] sm:$0xff] %v986
        %v988 = vld [vmem:[%s564 + $0x698] sm:$0xff]
        %989 = vst [vmem:[%s565 + $0x698] sm:$0xff] %v988
        %v990 = vld [vmem:[%s564 + $0x6a0] sm:$0xff]
        %991 = vst [vmem:[%s565 + $0x6a0] sm:$0xff] %v990
        %v992 = vld [vmem:[%s564 + $0x6a8] sm:$0xff]
        %993 = vst [vmem:[%s565 + $0x6a8] sm:$0xff] %v992
        %v994 = vld [vmem:[%s564 + $0x6b0] sm:$0xff]
        %995 = vst [vmem:[%s565 + $0x6b0] sm:$0xff] %v994
        %v996 = vld [vmem:[%s564 + $0x6b8] sm:$0xff]
        %997 = vst [vmem:[%s565 + $0x6b8] sm:$0xff] %v996
        %v998 = vld [vmem:[%s564 + $0x6c0] sm:$0xff]
        %999 = vst [vmem:[%s565 + $0x6c0] sm:$0xff] %v998
        %v1000 = vld [vmem:[%s564 + $0x6c8] sm:$0xff]
        %1001 = vst [vmem:[%s565 + $0x6c8] sm:$0xff] %v1000
        %v1002 = vld [vmem:[%s564 + $0x6d0] sm:$0xff]
        %1003 = vst [vmem:[%s565 + $0x6d0] sm:$0xff] %v1002
        %v1004 = vld [vmem:[%s564 + $0x6d8] sm:$0xff]
        %1005 = vst [vmem:[%s565 + $0x6d8] sm:$0xff] %v1004
        %v1006 = vld [vmem:[%s564 + $0x6e0] sm:$0xff]
        %1007 = vst [vmem:[%s565 + $0x6e0] sm:$0xff] %v1006
        %v1008 = vld [vmem:[%s564 + $0x6e8] sm:$0xff]
        %1009 = vst [vmem:[%s565 + $0x6e8] sm:$0xff] %v1008
        %v1010 = vld [vmem:[%s564 + $0x6f0] sm:$0xff]
        %1011 = vst [vmem:[%s565 + $0x6f0] sm:$0xff] %v1010
        %v1012 = vld [vmem:[%s564 + $0x6f8] sm:$0xff]
        %1013 = vst [vmem:[%s565 + $0x6f8] sm:$0xff] %v1012
        %v1014 = vld [vmem:[%s564 + $0x700] sm:$0xff]
        %1015 = vst [vmem:[%s565 + $0x700] sm:$0xff] %v1014
        %v1016 = vld [vmem:[%s564 + $0x708] sm:$0xff]
        %1017 = vst [vmem:[%s565 + $0x708] sm:$0xff] %v1016
        %v1018 = vld [vmem:[%s564 + $0x710] sm:$0xff]
        %1019 = vst [vmem:[%s565 + $0x710] sm:$0xff] %v1018
        %v1020 = vld [vmem:[%s564 + $0x718] sm:$0xff]
        %1021 = vst [vmem:[%s565 + $0x718] sm:$0xff] %v1020
        %v1022 = vld [vmem:[%s564 + $0x720] sm:$0xff]
        %1023 = vst [vmem:[%s565 + $0x720] sm:$0xff] %v1022
        %v1024 = vld [vmem:[%s564 + $0x728] sm:$0xff]
        %1025 = vst [vmem:[%s565 + $0x728] sm:$0xff] %v1024
        %v1026 = vld [vmem:[%s564 + $0x730] sm:$0xff]
        %1027 = vst [vmem:[%s565 + $0x730] sm:$0xff] %v1026
        %v1028 = vld [vmem:[%s564 + $0x738] sm:$0xff]
        %1029 = vst [vmem:[%s565 + $0x738] sm:$0xff] %v1028
        %v1030 = vld [vmem:[%s564 + $0x740] sm:$0xff]
        %1031 = vst [vmem:[%s565 + $0x740] sm:$0xff] %v1030
        %v1032 = vld [vmem:[%s564 + $0x748] sm:$0xff]
        %1033 = vst [vmem:[%s565 + $0x748] sm:$0xff] %v1032
        %v1034 = vld [vmem:[%s564 + $0x750] sm:$0xff]
        %1035 = vst [vmem:[%s565 + $0x750] sm:$0xff] %v1034
        %v1036 = vld [vmem:[%s564 + $0x758] sm:$0xff]
        %1037 = vst [vmem:[%s565 + $0x758] sm:$0xff] %v1036
        %v1038 = vld [vmem:[%s564 + $0x760] sm:$0xff]
        %1039 = vst [vmem:[%s565 + $0x760] sm:$0xff] %v1038
        %v1040 = vld [vmem:[%s564 + $0x768] sm:$0xff]
        %1041 = vst [vmem:[%s565 + $0x768] sm:$0xff] %v1040
        %v1042 = vld [vmem:[%s564 + $0x770] sm:$0xff]
        %1043 = vst [vmem:[%s565 + $0x770] sm:$0xff] %v1042
        %v1044 = vld [vmem:[%s564 + $0x778] sm:$0xff]
        %1045 = vst [vmem:[%s565 + $0x778] sm:$0xff] %v1044
        %v1046 = vld [vmem:[%s564 + $0x780] sm:$0xff]
        %1047 = vst [vmem:[%s565 + $0x780] sm:$0xff] %v1046
        %v1048 = vld [vmem:[%s564 + $0x788] sm:$0xff]
        %1049 = vst [vmem:[%s565 + $0x788] sm:$0xff] %v1048
        %v1050 = vld [vmem:[%s564 + $0x790] sm:$0xff]
        %1051 = vst [vmem:[%s565 + $0x790] sm:$0xff] %v1050
        %v1052 = vld [vmem:[%s564 + $0x798] sm:$0xff]
        %1053 = vst [vmem:[%s565 + $0x798] sm:$0xff] %v1052
        %v1054 = vld [vmem:[%s564 + $0x7a0] sm:$0xff]
        %1055 = vst [vmem:[%s565 + $0x7a0] sm:$0xff] %v1054
        %v1056 = vld [vmem:[%s564 + $0x7a8] sm:$0xff]
        %1057 = vst [vmem:[%s565 + $0x7a8] sm:$0xff] %v1056
        %v1058 = vld [vmem:[%s564 + $0x7b0] sm:$0xff]
        %1059 = vst [vmem:[%s565 + $0x7b0] sm:$0xff] %v1058
        %v1060 = vld [vmem:[%s564 + $0x7b8] sm:$0xff]
        %1061 = vst [vmem:[%s565 + $0x7b8] sm:$0xff] %v1060
        %v1062 = vld [vmem:[%s564 + $0x7c0] sm:$0xff]
        %1063 = vst [vmem:[%s565 + $0x7c0] sm:$0xff] %v1062
        %v1064 = vld [vmem:[%s564 + $0x7c8] sm:$0xff]
        %1065 = vst [vmem:[%s565 + $0x7c8] sm:$0xff] %v1064
        %v1066 = vld [vmem:[%s564 + $0x7d0] sm:$0xff]
        %1067 = vst [vmem:[%s565 + $0x7d0] sm:$0xff] %v1066
        %v1068 = vld [vmem:[%s564 + $0x7d8] sm:$0xff]
        %1069 = vst [vmem:[%s565 + $0x7d8] sm:$0xff] %v1068
        %v1070 = vld [vmem:[%s564 + $0x7e0] sm:$0xff]
        %1071 = vst [vmem:[%s565 + $0x7e0] sm:$0xff] %v1070
        %v1072 = vld [vmem:[%s564 + $0x7e8] sm:$0xff]
        %1073 = vst [vmem:[%s565 + $0x7e8] sm:$0xff] %v1072
        %v1074 = vld [vmem:[%s564 + $0x7f0] sm:$0xff]
        %1075 = vst [vmem:[%s565 + $0x7f0] sm:$0xff] %v1074
        %v1076 = vld [vmem:[%s564 + $0x7f8] sm:$0xff]
        %1077 = vst [vmem:[%s565 + $0x7f8] sm:$0xff] %v1076
      $region53: #{net_forward.1} parent=47 // loop_footer
        %s563 = sadd.s32 1, %s559
      $region54: #{net_forward.1} parent=47 // loop_footer_branch
        %558 = sbr.rel target = $region50
      $region55: #{net_forward.1} parent=47 // loop_exit
        _
    $region48: #{net_forward.1} parent=1 // pred_fallthru
      _
    // Predicated region
    $region56: #{net_forward.1} parent=1 // pred_check
      _
    $region57: #{net_forward.1} parent=1 // pred_check_branch
      %1079 = sbr.rel target = $region59
    $region58: #{net_forward.1} parent=1 // pred_region
      _
    $region59: #{net_forward.1} parent=1 // pred_fallthru
      _
    // Predicated region
    $region60: #{net_forward.1} parent=1 // pred_check
      _
    $region61: #{net_forward.1} parent=1 // pred_check_branch
      %1082 = sbr.rel (0) target = $region63
    $region62: #{net_forward.1} parent=1 // pred_region
      %1083 = vsyncadd %s555, 32768
    $region63: #{net_forward.1} parent=1 // pred_fallthru
      _
    %s1084 = scalar_lea.vmem %s3, 4096
    %s1085 = scalar_lea.vmem [#allocation2], 4096
    %s1086 = scalar_lea.sflag [#allocation4], 2
    // Predicated region
    $region64: #{net_forward.1} parent=1 // pred_check
      _
    $region65: #{net_forward.1} parent=1 // pred_check_branch
      %1088 = sbr.rel (0) target = $region67
    $region66: #{net_forward.1} parent=1 // pred_region
      loop: start=0, step=1, limit=1
      $region68: #{net_forward.1} parent=66 // loop_pre_header
        _
      $region69: #{net_forward.1} parent=66 // loop_header
        %s1090 = sphi 0, %s1094
        %p1091 = scmp.ge.s32.totalorder %s1090, 1
        %s1095 = sphi %s1084, %s1084
        %s1096 = sphi %s1085, %s1085
      $region70: #{net_forward.1} parent=66 // loop_header_branch
        %1093 = sbr.rel (%p1091) target = $region74
      $region71: #{net_forward.1} parent=66 // loop_body
        %v1097 = vld [vmem:[%s1095] sm:$0xff]
        %1098 = vst [vmem:[%s1096] sm:$0xff] %v1097
        %v1099 = vld [vmem:[%s1095 + $0x8] sm:$0xff]
        %1100 = vst [vmem:[%s1096 + $0x8] sm:$0xff] %v1099
        %v1101 = vld [vmem:[%s1095 + $0x10] sm:$0xff]
        %1102 = vst [vmem:[%s1096 + $0x10] sm:$0xff] %v1101
        %v1103 = vld [vmem:[%s1095 + $0x18] sm:$0xff]
        %1104 = vst [vmem:[%s1096 + $0x18] sm:$0xff] %v1103
        %v1105 = vld [vmem:[%s1095 + $0x20] sm:$0xff]
        %1106 = vst [vmem:[%s1096 + $0x20] sm:$0xff] %v1105
        %v1107 = vld [vmem:[%s1095 + $0x28] sm:$0xff]
        %1108 = vst [vmem:[%s1096 + $0x28] sm:$0xff] %v1107
        %v1109 = vld [vmem:[%s1095 + $0x30] sm:$0xff]
        %1110 = vst [vmem:[%s1096 + $0x30] sm:$0xff] %v1109
        %v1111 = vld [vmem:[%s1095 + $0x38] sm:$0xff]
        %1112 = vst [vmem:[%s1096 + $0x38] sm:$0xff] %v1111
        %v1113 = vld [vmem:[%s1095 + $0x40] sm:$0xff]
        %1114 = vst [vmem:[%s1096 + $0x40] sm:$0xff] %v1113
        %v1115 = vld [vmem:[%s1095 + $0x48] sm:$0xff]
        %1116 = vst [vmem:[%s1096 + $0x48] sm:$0xff] %v1115
        %v1117 = vld [vmem:[%s1095 + $0x50] sm:$0xff]
        %1118 = vst [vmem:[%s1096 + $0x50] sm:$0xff] %v1117
        %v1119 = vld [vmem:[%s1095 + $0x58] sm:$0xff]
        %1120 = vst [vmem:[%s1096 + $0x58] sm:$0xff] %v1119
        %v1121 = vld [vmem:[%s1095 + $0x60] sm:$0xff]
        %1122 = vst [vmem:[%s1096 + $0x60] sm:$0xff] %v1121
        %v1123 = vld [vmem:[%s1095 + $0x68] sm:$0xff]
        %1124 = vst [vmem:[%s1096 + $0x68] sm:$0xff] %v1123
        %v1125 = vld [vmem:[%s1095 + $0x70] sm:$0xff]
        %1126 = vst [vmem:[%s1096 + $0x70] sm:$0xff] %v1125
        %v1127 = vld [vmem:[%s1095 + $0x78] sm:$0xff]
        %1128 = vst [vmem:[%s1096 + $0x78] sm:$0xff] %v1127
        %v1129 = vld [vmem:[%s1095 + $0x80] sm:$0xff]
        %1130 = vst [vmem:[%s1096 + $0x80] sm:$0xff] %v1129
        %v1131 = vld [vmem:[%s1095 + $0x88] sm:$0xff]
        %1132 = vst [vmem:[%s1096 + $0x88] sm:$0xff] %v1131
        %v1133 = vld [vmem:[%s1095 + $0x90] sm:$0xff]
        %1134 = vst [vmem:[%s1096 + $0x90] sm:$0xff] %v1133
        %v1135 = vld [vmem:[%s1095 + $0x98] sm:$0xff]
        %1136 = vst [vmem:[%s1096 + $0x98] sm:$0xff] %v1135
        %v1137 = vld [vmem:[%s1095 + $0xa0] sm:$0xff]
        %1138 = vst [vmem:[%s1096 + $0xa0] sm:$0xff] %v1137
        %v1139 = vld [vmem:[%s1095 + $0xa8] sm:$0xff]
        %1140 = vst [vmem:[%s1096 + $0xa8] sm:$0xff] %v1139
        %v1141 = vld [vmem:[%s1095 + $0xb0] sm:$0xff]
        %1142 = vst [vmem:[%s1096 + $0xb0] sm:$0xff] %v1141
        %v1143 = vld [vmem:[%s1095 + $0xb8] sm:$0xff]
        %1144 = vst [vmem:[%s1096 + $0xb8] sm:$0xff] %v1143
        %v1145 = vld [vmem:[%s1095 + $0xc0] sm:$0xff]
        %1146 = vst [vmem:[%s1096 + $0xc0] sm:$0xff] %v1145
        %v1147 = vld [vmem:[%s1095 + $0xc8] sm:$0xff]
        %1148 = vst [vmem:[%s1096 + $0xc8] sm:$0xff] %v1147
        %v1149 = vld [vmem:[%s1095 + $0xd0] sm:$0xff]
        %1150 = vst [vmem:[%s1096 + $0xd0] sm:$0xff] %v1149
        %v1151 = vld [vmem:[%s1095 + $0xd8] sm:$0xff]
        %1152 = vst [vmem:[%s1096 + $0xd8] sm:$0xff] %v1151
        %v1153 = vld [vmem:[%s1095 + $0xe0] sm:$0xff]
        %1154 = vst [vmem:[%s1096 + $0xe0] sm:$0xff] %v1153
        %v1155 = vld [vmem:[%s1095 + $0xe8] sm:$0xff]
        %1156 = vst [vmem:[%s1096 + $0xe8] sm:$0xff] %v1155
        %v1157 = vld [vmem:[%s1095 + $0xf0] sm:$0xff]
        %1158 = vst [vmem:[%s1096 + $0xf0] sm:$0xff] %v1157
        %v1159 = vld [vmem:[%s1095 + $0xf8] sm:$0xff]
        %1160 = vst [vmem:[%s1096 + $0xf8] sm:$0xff] %v1159
        %v1161 = vld [vmem:[%s1095 + $0x100] sm:$0xff]
        %1162 = vst [vmem:[%s1096 + $0x100] sm:$0xff] %v1161
        %v1163 = vld [vmem:[%s1095 + $0x108] sm:$0xff]
        %1164 = vst [vmem:[%s1096 + $0x108] sm:$0xff] %v1163
        %v1165 = vld [vmem:[%s1095 + $0x110] sm:$0xff]
        %1166 = vst [vmem:[%s1096 + $0x110] sm:$0xff] %v1165
        %v1167 = vld [vmem:[%s1095 + $0x118] sm:$0xff]
        %1168 = vst [vmem:[%s1096 + $0x118] sm:$0xff] %v1167
        %v1169 = vld [vmem:[%s1095 + $0x120] sm:$0xff]
        %1170 = vst [vmem:[%s1096 + $0x120] sm:$0xff] %v1169
        %v1171 = vld [vmem:[%s1095 + $0x128] sm:$0xff]
        %1172 = vst [vmem:[%s1096 + $0x128] sm:$0xff] %v1171
        %v1173 = vld [vmem:[%s1095 + $0x130] sm:$0xff]
        %1174 = vst [vmem:[%s1096 + $0x130] sm:$0xff] %v1173
        %v1175 = vld [vmem:[%s1095 + $0x138] sm:$0xff]
        %1176 = vst [vmem:[%s1096 + $0x138] sm:$0xff] %v1175
        %v1177 = vld [vmem:[%s1095 + $0x140] sm:$0xff]
        %1178 = vst [vmem:[%s1096 + $0x140] sm:$0xff] %v1177
        %v1179 = vld [vmem:[%s1095 + $0x148] sm:$0xff]
        %1180 = vst [vmem:[%s1096 + $0x148] sm:$0xff] %v1179
        %v1181 = vld [vmem:[%s1095 + $0x150] sm:$0xff]
        %1182 = vst [vmem:[%s1096 + $0x150] sm:$0xff] %v1181
        %v1183 = vld [vmem:[%s1095 + $0x158] sm:$0xff]
        %1184 = vst [vmem:[%s1096 + $0x158] sm:$0xff] %v1183
        %v1185 = vld [vmem:[%s1095 + $0x160] sm:$0xff]
        %1186 = vst [vmem:[%s1096 + $0x160] sm:$0xff] %v1185
        %v1187 = vld [vmem:[%s1095 + $0x168] sm:$0xff]
        %1188 = vst [vmem:[%s1096 + $0x168] sm:$0xff] %v1187
        %v1189 = vld [vmem:[%s1095 + $0x170] sm:$0xff]
        %1190 = vst [vmem:[%s1096 + $0x170] sm:$0xff] %v1189
        %v1191 = vld [vmem:[%s1095 + $0x178] sm:$0xff]
        %1192 = vst [vmem:[%s1096 + $0x178] sm:$0xff] %v1191
        %v1193 = vld [vmem:[%s1095 + $0x180] sm:$0xff]
        %1194 = vst [vmem:[%s1096 + $0x180] sm:$0xff] %v1193
        %v1195 = vld [vmem:[%s1095 + $0x188] sm:$0xff]
        %1196 = vst [vmem:[%s1096 + $0x188] sm:$0xff] %v1195
        %v1197 = vld [vmem:[%s1095 + $0x190] sm:$0xff]
        %1198 = vst [vmem:[%s1096 + $0x190] sm:$0xff] %v1197
        %v1199 = vld [vmem:[%s1095 + $0x198] sm:$0xff]
        %1200 = vst [vmem:[%s1096 + $0x198] sm:$0xff] %v1199
        %v1201 = vld [vmem:[%s1095 + $0x1a0] sm:$0xff]
        %1202 = vst [vmem:[%s1096 + $0x1a0] sm:$0xff] %v1201
        %v1203 = vld [vmem:[%s1095 + $0x1a8] sm:$0xff]
        %1204 = vst [vmem:[%s1096 + $0x1a8] sm:$0xff] %v1203
        %v1205 = vld [vmem:[%s1095 + $0x1b0] sm:$0xff]
        %1206 = vst [vmem:[%s1096 + $0x1b0] sm:$0xff] %v1205
        %v1207 = vld [vmem:[%s1095 + $0x1b8] sm:$0xff]
        %1208 = vst [vmem:[%s1096 + $0x1b8] sm:$0xff] %v1207
        %v1209 = vld [vmem:[%s1095 + $0x1c0] sm:$0xff]
        %1210 = vst [vmem:[%s1096 + $0x1c0] sm:$0xff] %v1209
        %v1211 = vld [vmem:[%s1095 + $0x1c8] sm:$0xff]
        %1212 = vst [vmem:[%s1096 + $0x1c8] sm:$0xff] %v1211
        %v1213 = vld [vmem:[%s1095 + $0x1d0] sm:$0xff]
        %1214 = vst [vmem:[%s1096 + $0x1d0] sm:$0xff] %v1213
        %v1215 = vld [vmem:[%s1095 + $0x1d8] sm:$0xff]
        %1216 = vst [vmem:[%s1096 + $0x1d8] sm:$0xff] %v1215
        %v1217 = vld [vmem:[%s1095 + $0x1e0] sm:$0xff]
        %1218 = vst [vmem:[%s1096 + $0x1e0] sm:$0xff] %v1217
        %v1219 = vld [vmem:[%s1095 + $0x1e8] sm:$0xff]
        %1220 = vst [vmem:[%s1096 + $0x1e8] sm:$0xff] %v1219
        %v1221 = vld [vmem:[%s1095 + $0x1f0] sm:$0xff]
        %1222 = vst [vmem:[%s1096 + $0x1f0] sm:$0xff] %v1221
        %v1223 = vld [vmem:[%s1095 + $0x1f8] sm:$0xff]
        %1224 = vst [vmem:[%s1096 + $0x1f8] sm:$0xff] %v1223
        %v1225 = vld [vmem:[%s1095 + $0x200] sm:$0xff]
        %1226 = vst [vmem:[%s1096 + $0x200] sm:$0xff] %v1225
        %v1227 = vld [vmem:[%s1095 + $0x208] sm:$0xff]
        %1228 = vst [vmem:[%s1096 + $0x208] sm:$0xff] %v1227
        %v1229 = vld [vmem:[%s1095 + $0x210] sm:$0xff]
        %1230 = vst [vmem:[%s1096 + $0x210] sm:$0xff] %v1229
        %v1231 = vld [vmem:[%s1095 + $0x218] sm:$0xff]
        %1232 = vst [vmem:[%s1096 + $0x218] sm:$0xff] %v1231
        %v1233 = vld [vmem:[%s1095 + $0x220] sm:$0xff]
        %1234 = vst [vmem:[%s1096 + $0x220] sm:$0xff] %v1233
        %v1235 = vld [vmem:[%s1095 + $0x228] sm:$0xff]
        %1236 = vst [vmem:[%s1096 + $0x228] sm:$0xff] %v1235
        %v1237 = vld [vmem:[%s1095 + $0x230] sm:$0xff]
        %1238 = vst [vmem:[%s1096 + $0x230] sm:$0xff] %v1237
        %v1239 = vld [vmem:[%s1095 + $0x238] sm:$0xff]
        %1240 = vst [vmem:[%s1096 + $0x238] sm:$0xff] %v1239
        %v1241 = vld [vmem:[%s1095 + $0x240] sm:$0xff]
        %1242 = vst [vmem:[%s1096 + $0x240] sm:$0xff] %v1241
        %v1243 = vld [vmem:[%s1095 + $0x248] sm:$0xff]
        %1244 = vst [vmem:[%s1096 + $0x248] sm:$0xff] %v1243
        %v1245 = vld [vmem:[%s1095 + $0x250] sm:$0xff]
        %1246 = vst [vmem:[%s1096 + $0x250] sm:$0xff] %v1245
        %v1247 = vld [vmem:[%s1095 + $0x258] sm:$0xff]
        %1248 = vst [vmem:[%s1096 + $0x258] sm:$0xff] %v1247
        %v1249 = vld [vmem:[%s1095 + $0x260] sm:$0xff]
        %1250 = vst [vmem:[%s1096 + $0x260] sm:$0xff] %v1249
        %v1251 = vld [vmem:[%s1095 + $0x268] sm:$0xff]
        %1252 = vst [vmem:[%s1096 + $0x268] sm:$0xff] %v1251
        %v1253 = vld [vmem:[%s1095 + $0x270] sm:$0xff]
        %1254 = vst [vmem:[%s1096 + $0x270] sm:$0xff] %v1253
        %v1255 = vld [vmem:[%s1095 + $0x278] sm:$0xff]
        %1256 = vst [vmem:[%s1096 + $0x278] sm:$0xff] %v1255
        %v1257 = vld [vmem:[%s1095 + $0x280] sm:$0xff]
        %1258 = vst [vmem:[%s1096 + $0x280] sm:$0xff] %v1257
        %v1259 = vld [vmem:[%s1095 + $0x288] sm:$0xff]
        %1260 = vst [vmem:[%s1096 + $0x288] sm:$0xff] %v1259
        %v1261 = vld [vmem:[%s1095 + $0x290] sm:$0xff]
        %1262 = vst [vmem:[%s1096 + $0x290] sm:$0xff] %v1261
        %v1263 = vld [vmem:[%s1095 + $0x298] sm:$0xff]
        %1264 = vst [vmem:[%s1096 + $0x298] sm:$0xff] %v1263
        %v1265 = vld [vmem:[%s1095 + $0x2a0] sm:$0xff]
        %1266 = vst [vmem:[%s1096 + $0x2a0] sm:$0xff] %v1265
        %v1267 = vld [vmem:[%s1095 + $0x2a8] sm:$0xff]
        %1268 = vst [vmem:[%s1096 + $0x2a8] sm:$0xff] %v1267
        %v1269 = vld [vmem:[%s1095 + $0x2b0] sm:$0xff]
        %1270 = vst [vmem:[%s1096 + $0x2b0] sm:$0xff] %v1269
        %v1271 = vld [vmem:[%s1095 + $0x2b8] sm:$0xff]
        %1272 = vst [vmem:[%s1096 + $0x2b8] sm:$0xff] %v1271
        %v1273 = vld [vmem:[%s1095 + $0x2c0] sm:$0xff]
        %1274 = vst [vmem:[%s1096 + $0x2c0] sm:$0xff] %v1273
        %v1275 = vld [vmem:[%s1095 + $0x2c8] sm:$0xff]
        %1276 = vst [vmem:[%s1096 + $0x2c8] sm:$0xff] %v1275
        %v1277 = vld [vmem:[%s1095 + $0x2d0] sm:$0xff]
        %1278 = vst [vmem:[%s1096 + $0x2d0] sm:$0xff] %v1277
        %v1279 = vld [vmem:[%s1095 + $0x2d8] sm:$0xff]
        %1280 = vst [vmem:[%s1096 + $0x2d8] sm:$0xff] %v1279
        %v1281 = vld [vmem:[%s1095 + $0x2e0] sm:$0xff]
        %1282 = vst [vmem:[%s1096 + $0x2e0] sm:$0xff] %v1281
        %v1283 = vld [vmem:[%s1095 + $0x2e8] sm:$0xff]
        %1284 = vst [vmem:[%s1096 + $0x2e8] sm:$0xff] %v1283
        %v1285 = vld [vmem:[%s1095 + $0x2f0] sm:$0xff]
        %1286 = vst [vmem:[%s1096 + $0x2f0] sm:$0xff] %v1285
        %v1287 = vld [vmem:[%s1095 + $0x2f8] sm:$0xff]
        %1288 = vst [vmem:[%s1096 + $0x2f8] sm:$0xff] %v1287
        %v1289 = vld [vmem:[%s1095 + $0x300] sm:$0xff]
        %1290 = vst [vmem:[%s1096 + $0x300] sm:$0xff] %v1289
        %v1291 = vld [vmem:[%s1095 + $0x308] sm:$0xff]
        %1292 = vst [vmem:[%s1096 + $0x308] sm:$0xff] %v1291
        %v1293 = vld [vmem:[%s1095 + $0x310] sm:$0xff]
        %1294 = vst [vmem:[%s1096 + $0x310] sm:$0xff] %v1293
        %v1295 = vld [vmem:[%s1095 + $0x318] sm:$0xff]
        %1296 = vst [vmem:[%s1096 + $0x318] sm:$0xff] %v1295
        %v1297 = vld [vmem:[%s1095 + $0x320] sm:$0xff]
        %1298 = vst [vmem:[%s1096 + $0x320] sm:$0xff] %v1297
        %v1299 = vld [vmem:[%s1095 + $0x328] sm:$0xff]
        %1300 = vst [vmem:[%s1096 + $0x328] sm:$0xff] %v1299
        %v1301 = vld [vmem:[%s1095 + $0x330] sm:$0xff]
        %1302 = vst [vmem:[%s1096 + $0x330] sm:$0xff] %v1301
        %v1303 = vld [vmem:[%s1095 + $0x338] sm:$0xff]
        %1304 = vst [vmem:[%s1096 + $0x338] sm:$0xff] %v1303
        %v1305 = vld [vmem:[%s1095 + $0x340] sm:$0xff]
        %1306 = vst [vmem:[%s1096 + $0x340] sm:$0xff] %v1305
        %v1307 = vld [vmem:[%s1095 + $0x348] sm:$0xff]
        %1308 = vst [vmem:[%s1096 + $0x348] sm:$0xff] %v1307
        %v1309 = vld [vmem:[%s1095 + $0x350] sm:$0xff]
        %1310 = vst [vmem:[%s1096 + $0x350] sm:$0xff] %v1309
        %v1311 = vld [vmem:[%s1095 + $0x358] sm:$0xff]
        %1312 = vst [vmem:[%s1096 + $0x358] sm:$0xff] %v1311
        %v1313 = vld [vmem:[%s1095 + $0x360] sm:$0xff]
        %1314 = vst [vmem:[%s1096 + $0x360] sm:$0xff] %v1313
        %v1315 = vld [vmem:[%s1095 + $0x368] sm:$0xff]
        %1316 = vst [vmem:[%s1096 + $0x368] sm:$0xff] %v1315
        %v1317 = vld [vmem:[%s1095 + $0x370] sm:$0xff]
        %1318 = vst [vmem:[%s1096 + $0x370] sm:$0xff] %v1317
        %v1319 = vld [vmem:[%s1095 + $0x378] sm:$0xff]
        %1320 = vst [vmem:[%s1096 + $0x378] sm:$0xff] %v1319
        %v1321 = vld [vmem:[%s1095 + $0x380] sm:$0xff]
        %1322 = vst [vmem:[%s1096 + $0x380] sm:$0xff] %v1321
        %v1323 = vld [vmem:[%s1095 + $0x388] sm:$0xff]
        %1324 = vst [vmem:[%s1096 + $0x388] sm:$0xff] %v1323
        %v1325 = vld [vmem:[%s1095 + $0x390] sm:$0xff]
        %1326 = vst [vmem:[%s1096 + $0x390] sm:$0xff] %v1325
        %v1327 = vld [vmem:[%s1095 + $0x398] sm:$0xff]
        %1328 = vst [vmem:[%s1096 + $0x398] sm:$0xff] %v1327
        %v1329 = vld [vmem:[%s1095 + $0x3a0] sm:$0xff]
        %1330 = vst [vmem:[%s1096 + $0x3a0] sm:$0xff] %v1329
        %v1331 = vld [vmem:[%s1095 + $0x3a8] sm:$0xff]
        %1332 = vst [vmem:[%s1096 + $0x3a8] sm:$0xff] %v1331
        %v1333 = vld [vmem:[%s1095 + $0x3b0] sm:$0xff]
        %1334 = vst [vmem:[%s1096 + $0x3b0] sm:$0xff] %v1333
        %v1335 = vld [vmem:[%s1095 + $0x3b8] sm:$0xff]
        %1336 = vst [vmem:[%s1096 + $0x3b8] sm:$0xff] %v1335
        %v1337 = vld [vmem:[%s1095 + $0x3c0] sm:$0xff]
        %1338 = vst [vmem:[%s1096 + $0x3c0] sm:$0xff] %v1337
        %v1339 = vld [vmem:[%s1095 + $0x3c8] sm:$0xff]
        %1340 = vst [vmem:[%s1096 + $0x3c8] sm:$0xff] %v1339
        %v1341 = vld [vmem:[%s1095 + $0x3d0] sm:$0xff]
        %1342 = vst [vmem:[%s1096 + $0x3d0] sm:$0xff] %v1341
        %v1343 = vld [vmem:[%s1095 + $0x3d8] sm:$0xff]
        %1344 = vst [vmem:[%s1096 + $0x3d8] sm:$0xff] %v1343
        %v1345 = vld [vmem:[%s1095 + $0x3e0] sm:$0xff]
        %1346 = vst [vmem:[%s1096 + $0x3e0] sm:$0xff] %v1345
        %v1347 = vld [vmem:[%s1095 + $0x3e8] sm:$0xff]
        %1348 = vst [vmem:[%s1096 + $0x3e8] sm:$0xff] %v1347
        %v1349 = vld [vmem:[%s1095 + $0x3f0] sm:$0xff]
        %1350 = vst [vmem:[%s1096 + $0x3f0] sm:$0xff] %v1349
        %v1351 = vld [vmem:[%s1095 + $0x3f8] sm:$0xff]
        %1352 = vst [vmem:[%s1096 + $0x3f8] sm:$0xff] %v1351
        %v1353 = vld [vmem:[%s1095 + $0x400] sm:$0xff]
        %1354 = vst [vmem:[%s1096 + $0x400] sm:$0xff] %v1353
        %v1355 = vld [vmem:[%s1095 + $0x408] sm:$0xff]
        %1356 = vst [vmem:[%s1096 + $0x408] sm:$0xff] %v1355
        %v1357 = vld [vmem:[%s1095 + $0x410] sm:$0xff]
        %1358 = vst [vmem:[%s1096 + $0x410] sm:$0xff] %v1357
        %v1359 = vld [vmem:[%s1095 + $0x418] sm:$0xff]
        %1360 = vst [vmem:[%s1096 + $0x418] sm:$0xff] %v1359
        %v1361 = vld [vmem:[%s1095 + $0x420] sm:$0xff]
        %1362 = vst [vmem:[%s1096 + $0x420] sm:$0xff] %v1361
        %v1363 = vld [vmem:[%s1095 + $0x428] sm:$0xff]
        %1364 = vst [vmem:[%s1096 + $0x428] sm:$0xff] %v1363
        %v1365 = vld [vmem:[%s1095 + $0x430] sm:$0xff]
        %1366 = vst [vmem:[%s1096 + $0x430] sm:$0xff] %v1365
        %v1367 = vld [vmem:[%s1095 + $0x438] sm:$0xff]
        %1368 = vst [vmem:[%s1096 + $0x438] sm:$0xff] %v1367
        %v1369 = vld [vmem:[%s1095 + $0x440] sm:$0xff]
        %1370 = vst [vmem:[%s1096 + $0x440] sm:$0xff] %v1369
        %v1371 = vld [vmem:[%s1095 + $0x448] sm:$0xff]
        %1372 = vst [vmem:[%s1096 + $0x448] sm:$0xff] %v1371
        %v1373 = vld [vmem:[%s1095 + $0x450] sm:$0xff]
        %1374 = vst [vmem:[%s1096 + $0x450] sm:$0xff] %v1373
        %v1375 = vld [vmem:[%s1095 + $0x458] sm:$0xff]
        %1376 = vst [vmem:[%s1096 + $0x458] sm:$0xff] %v1375
        %v1377 = vld [vmem:[%s1095 + $0x460] sm:$0xff]
        %1378 = vst [vmem:[%s1096 + $0x460] sm:$0xff] %v1377
        %v1379 = vld [vmem:[%s1095 + $0x468] sm:$0xff]
        %1380 = vst [vmem:[%s1096 + $0x468] sm:$0xff] %v1379
        %v1381 = vld [vmem:[%s1095 + $0x470] sm:$0xff]
        %1382 = vst [vmem:[%s1096 + $0x470] sm:$0xff] %v1381
        %v1383 = vld [vmem:[%s1095 + $0x478] sm:$0xff]
        %1384 = vst [vmem:[%s1096 + $0x478] sm:$0xff] %v1383
        %v1385 = vld [vmem:[%s1095 + $0x480] sm:$0xff]
        %1386 = vst [vmem:[%s1096 + $0x480] sm:$0xff] %v1385
        %v1387 = vld [vmem:[%s1095 + $0x488] sm:$0xff]
        %1388 = vst [vmem:[%s1096 + $0x488] sm:$0xff] %v1387
        %v1389 = vld [vmem:[%s1095 + $0x490] sm:$0xff]
        %1390 = vst [vmem:[%s1096 + $0x490] sm:$0xff] %v1389
        %v1391 = vld [vmem:[%s1095 + $0x498] sm:$0xff]
        %1392 = vst [vmem:[%s1096 + $0x498] sm:$0xff] %v1391
        %v1393 = vld [vmem:[%s1095 + $0x4a0] sm:$0xff]
        %1394 = vst [vmem:[%s1096 + $0x4a0] sm:$0xff] %v1393
        %v1395 = vld [vmem:[%s1095 + $0x4a8] sm:$0xff]
        %1396 = vst [vmem:[%s1096 + $0x4a8] sm:$0xff] %v1395
        %v1397 = vld [vmem:[%s1095 + $0x4b0] sm:$0xff]
        %1398 = vst [vmem:[%s1096 + $0x4b0] sm:$0xff] %v1397
        %v1399 = vld [vmem:[%s1095 + $0x4b8] sm:$0xff]
        %1400 = vst [vmem:[%s1096 + $0x4b8] sm:$0xff] %v1399
        %v1401 = vld [vmem:[%s1095 + $0x4c0] sm:$0xff]
        %1402 = vst [vmem:[%s1096 + $0x4c0] sm:$0xff] %v1401
        %v1403 = vld [vmem:[%s1095 + $0x4c8] sm:$0xff]
        %1404 = vst [vmem:[%s1096 + $0x4c8] sm:$0xff] %v1403
        %v1405 = vld [vmem:[%s1095 + $0x4d0] sm:$0xff]
        %1406 = vst [vmem:[%s1096 + $0x4d0] sm:$0xff] %v1405
        %v1407 = vld [vmem:[%s1095 + $0x4d8] sm:$0xff]
        %1408 = vst [vmem:[%s1096 + $0x4d8] sm:$0xff] %v1407
        %v1409 = vld [vmem:[%s1095 + $0x4e0] sm:$0xff]
        %1410 = vst [vmem:[%s1096 + $0x4e0] sm:$0xff] %v1409
        %v1411 = vld [vmem:[%s1095 + $0x4e8] sm:$0xff]
        %1412 = vst [vmem:[%s1096 + $0x4e8] sm:$0xff] %v1411
        %v1413 = vld [vmem:[%s1095 + $0x4f0] sm:$0xff]
        %1414 = vst [vmem:[%s1096 + $0x4f0] sm:$0xff] %v1413
        %v1415 = vld [vmem:[%s1095 + $0x4f8] sm:$0xff]
        %1416 = vst [vmem:[%s1096 + $0x4f8] sm:$0xff] %v1415
        %v1417 = vld [vmem:[%s1095 + $0x500] sm:$0xff]
        %1418 = vst [vmem:[%s1096 + $0x500] sm:$0xff] %v1417
        %v1419 = vld [vmem:[%s1095 + $0x508] sm:$0xff]
        %1420 = vst [vmem:[%s1096 + $0x508] sm:$0xff] %v1419
        %v1421 = vld [vmem:[%s1095 + $0x510] sm:$0xff]
        %1422 = vst [vmem:[%s1096 + $0x510] sm:$0xff] %v1421
        %v1423 = vld [vmem:[%s1095 + $0x518] sm:$0xff]
        %1424 = vst [vmem:[%s1096 + $0x518] sm:$0xff] %v1423
        %v1425 = vld [vmem:[%s1095 + $0x520] sm:$0xff]
        %1426 = vst [vmem:[%s1096 + $0x520] sm:$0xff] %v1425
        %v1427 = vld [vmem:[%s1095 + $0x528] sm:$0xff]
        %1428 = vst [vmem:[%s1096 + $0x528] sm:$0xff] %v1427
        %v1429 = vld [vmem:[%s1095 + $0x530] sm:$0xff]
        %1430 = vst [vmem:[%s1096 + $0x530] sm:$0xff] %v1429
        %v1431 = vld [vmem:[%s1095 + $0x538] sm:$0xff]
        %1432 = vst [vmem:[%s1096 + $0x538] sm:$0xff] %v1431
        %v1433 = vld [vmem:[%s1095 + $0x540] sm:$0xff]
        %1434 = vst [vmem:[%s1096 + $0x540] sm:$0xff] %v1433
        %v1435 = vld [vmem:[%s1095 + $0x548] sm:$0xff]
        %1436 = vst [vmem:[%s1096 + $0x548] sm:$0xff] %v1435
        %v1437 = vld [vmem:[%s1095 + $0x550] sm:$0xff]
        %1438 = vst [vmem:[%s1096 + $0x550] sm:$0xff] %v1437
        %v1439 = vld [vmem:[%s1095 + $0x558] sm:$0xff]
        %1440 = vst [vmem:[%s1096 + $0x558] sm:$0xff] %v1439
        %v1441 = vld [vmem:[%s1095 + $0x560] sm:$0xff]
        %1442 = vst [vmem:[%s1096 + $0x560] sm:$0xff] %v1441
        %v1443 = vld [vmem:[%s1095 + $0x568] sm:$0xff]
        %1444 = vst [vmem:[%s1096 + $0x568] sm:$0xff] %v1443
        %v1445 = vld [vmem:[%s1095 + $0x570] sm:$0xff]
        %1446 = vst [vmem:[%s1096 + $0x570] sm:$0xff] %v1445
        %v1447 = vld [vmem:[%s1095 + $0x578] sm:$0xff]
        %1448 = vst [vmem:[%s1096 + $0x578] sm:$0xff] %v1447
        %v1449 = vld [vmem:[%s1095 + $0x580] sm:$0xff]
        %1450 = vst [vmem:[%s1096 + $0x580] sm:$0xff] %v1449
        %v1451 = vld [vmem:[%s1095 + $0x588] sm:$0xff]
        %1452 = vst [vmem:[%s1096 + $0x588] sm:$0xff] %v1451
        %v1453 = vld [vmem:[%s1095 + $0x590] sm:$0xff]
        %1454 = vst [vmem:[%s1096 + $0x590] sm:$0xff] %v1453
        %v1455 = vld [vmem:[%s1095 + $0x598] sm:$0xff]
        %1456 = vst [vmem:[%s1096 + $0x598] sm:$0xff] %v1455
        %v1457 = vld [vmem:[%s1095 + $0x5a0] sm:$0xff]
        %1458 = vst [vmem:[%s1096 + $0x5a0] sm:$0xff] %v1457
        %v1459 = vld [vmem:[%s1095 + $0x5a8] sm:$0xff]
        %1460 = vst [vmem:[%s1096 + $0x5a8] sm:$0xff] %v1459
        %v1461 = vld [vmem:[%s1095 + $0x5b0] sm:$0xff]
        %1462 = vst [vmem:[%s1096 + $0x5b0] sm:$0xff] %v1461
        %v1463 = vld [vmem:[%s1095 + $0x5b8] sm:$0xff]
        %1464 = vst [vmem:[%s1096 + $0x5b8] sm:$0xff] %v1463
        %v1465 = vld [vmem:[%s1095 + $0x5c0] sm:$0xff]
        %1466 = vst [vmem:[%s1096 + $0x5c0] sm:$0xff] %v1465
        %v1467 = vld [vmem:[%s1095 + $0x5c8] sm:$0xff]
        %1468 = vst [vmem:[%s1096 + $0x5c8] sm:$0xff] %v1467
        %v1469 = vld [vmem:[%s1095 + $0x5d0] sm:$0xff]
        %1470 = vst [vmem:[%s1096 + $0x5d0] sm:$0xff] %v1469
        %v1471 = vld [vmem:[%s1095 + $0x5d8] sm:$0xff]
        %1472 = vst [vmem:[%s1096 + $0x5d8] sm:$0xff] %v1471
        %v1473 = vld [vmem:[%s1095 + $0x5e0] sm:$0xff]
        %1474 = vst [vmem:[%s1096 + $0x5e0] sm:$0xff] %v1473
        %v1475 = vld [vmem:[%s1095 + $0x5e8] sm:$0xff]
        %1476 = vst [vmem:[%s1096 + $0x5e8] sm:$0xff] %v1475
        %v1477 = vld [vmem:[%s1095 + $0x5f0] sm:$0xff]
        %1478 = vst [vmem:[%s1096 + $0x5f0] sm:$0xff] %v1477
        %v1479 = vld [vmem:[%s1095 + $0x5f8] sm:$0xff]
        %1480 = vst [vmem:[%s1096 + $0x5f8] sm:$0xff] %v1479
        %v1481 = vld [vmem:[%s1095 + $0x600] sm:$0xff]
        %1482 = vst [vmem:[%s1096 + $0x600] sm:$0xff] %v1481
        %v1483 = vld [vmem:[%s1095 + $0x608] sm:$0xff]
        %1484 = vst [vmem:[%s1096 + $0x608] sm:$0xff] %v1483
        %v1485 = vld [vmem:[%s1095 + $0x610] sm:$0xff]
        %1486 = vst [vmem:[%s1096 + $0x610] sm:$0xff] %v1485
        %v1487 = vld [vmem:[%s1095 + $0x618] sm:$0xff]
        %1488 = vst [vmem:[%s1096 + $0x618] sm:$0xff] %v1487
        %v1489 = vld [vmem:[%s1095 + $0x620] sm:$0xff]
        %1490 = vst [vmem:[%s1096 + $0x620] sm:$0xff] %v1489
        %v1491 = vld [vmem:[%s1095 + $0x628] sm:$0xff]
        %1492 = vst [vmem:[%s1096 + $0x628] sm:$0xff] %v1491
        %v1493 = vld [vmem:[%s1095 + $0x630] sm:$0xff]
        %1494 = vst [vmem:[%s1096 + $0x630] sm:$0xff] %v1493
        %v1495 = vld [vmem:[%s1095 + $0x638] sm:$0xff]
        %1496 = vst [vmem:[%s1096 + $0x638] sm:$0xff] %v1495
        %v1497 = vld [vmem:[%s1095 + $0x640] sm:$0xff]
        %1498 = vst [vmem:[%s1096 + $0x640] sm:$0xff] %v1497
        %v1499 = vld [vmem:[%s1095 + $0x648] sm:$0xff]
        %1500 = vst [vmem:[%s1096 + $0x648] sm:$0xff] %v1499
        %v1501 = vld [vmem:[%s1095 + $0x650] sm:$0xff]
        %1502 = vst [vmem:[%s1096 + $0x650] sm:$0xff] %v1501
        %v1503 = vld [vmem:[%s1095 + $0x658] sm:$0xff]
        %1504 = vst [vmem:[%s1096 + $0x658] sm:$0xff] %v1503
        %v1505 = vld [vmem:[%s1095 + $0x660] sm:$0xff]
        %1506 = vst [vmem:[%s1096 + $0x660] sm:$0xff] %v1505
        %v1507 = vld [vmem:[%s1095 + $0x668] sm:$0xff]
        %1508 = vst [vmem:[%s1096 + $0x668] sm:$0xff] %v1507
        %v1509 = vld [vmem:[%s1095 + $0x670] sm:$0xff]
        %1510 = vst [vmem:[%s1096 + $0x670] sm:$0xff] %v1509
        %v1511 = vld [vmem:[%s1095 + $0x678] sm:$0xff]
        %1512 = vst [vmem:[%s1096 + $0x678] sm:$0xff] %v1511
        %v1513 = vld [vmem:[%s1095 + $0x680] sm:$0xff]
        %1514 = vst [vmem:[%s1096 + $0x680] sm:$0xff] %v1513
        %v1515 = vld [vmem:[%s1095 + $0x688] sm:$0xff]
        %1516 = vst [vmem:[%s1096 + $0x688] sm:$0xff] %v1515
        %v1517 = vld [vmem:[%s1095 + $0x690] sm:$0xff]
        %1518 = vst [vmem:[%s1096 + $0x690] sm:$0xff] %v1517
        %v1519 = vld [vmem:[%s1095 + $0x698] sm:$0xff]
        %1520 = vst [vmem:[%s1096 + $0x698] sm:$0xff] %v1519
        %v1521 = vld [vmem:[%s1095 + $0x6a0] sm:$0xff]
        %1522 = vst [vmem:[%s1096 + $0x6a0] sm:$0xff] %v1521
        %v1523 = vld [vmem:[%s1095 + $0x6a8] sm:$0xff]
        %1524 = vst [vmem:[%s1096 + $0x6a8] sm:$0xff] %v1523
        %v1525 = vld [vmem:[%s1095 + $0x6b0] sm:$0xff]
        %1526 = vst [vmem:[%s1096 + $0x6b0] sm:$0xff] %v1525
        %v1527 = vld [vmem:[%s1095 + $0x6b8] sm:$0xff]
        %1528 = vst [vmem:[%s1096 + $0x6b8] sm:$0xff] %v1527
        %v1529 = vld [vmem:[%s1095 + $0x6c0] sm:$0xff]
        %1530 = vst [vmem:[%s1096 + $0x6c0] sm:$0xff] %v1529
        %v1531 = vld [vmem:[%s1095 + $0x6c8] sm:$0xff]
        %1532 = vst [vmem:[%s1096 + $0x6c8] sm:$0xff] %v1531
        %v1533 = vld [vmem:[%s1095 + $0x6d0] sm:$0xff]
        %1534 = vst [vmem:[%s1096 + $0x6d0] sm:$0xff] %v1533
        %v1535 = vld [vmem:[%s1095 + $0x6d8] sm:$0xff]
        %1536 = vst [vmem:[%s1096 + $0x6d8] sm:$0xff] %v1535
        %v1537 = vld [vmem:[%s1095 + $0x6e0] sm:$0xff]
        %1538 = vst [vmem:[%s1096 + $0x6e0] sm:$0xff] %v1537
        %v1539 = vld [vmem:[%s1095 + $0x6e8] sm:$0xff]
        %1540 = vst [vmem:[%s1096 + $0x6e8] sm:$0xff] %v1539
        %v1541 = vld [vmem:[%s1095 + $0x6f0] sm:$0xff]
        %1542 = vst [vmem:[%s1096 + $0x6f0] sm:$0xff] %v1541
        %v1543 = vld [vmem:[%s1095 + $0x6f8] sm:$0xff]
        %1544 = vst [vmem:[%s1096 + $0x6f8] sm:$0xff] %v1543
        %v1545 = vld [vmem:[%s1095 + $0x700] sm:$0xff]
        %1546 = vst [vmem:[%s1096 + $0x700] sm:$0xff] %v1545
        %v1547 = vld [vmem:[%s1095 + $0x708] sm:$0xff]
        %1548 = vst [vmem:[%s1096 + $0x708] sm:$0xff] %v1547
        %v1549 = vld [vmem:[%s1095 + $0x710] sm:$0xff]
        %1550 = vst [vmem:[%s1096 + $0x710] sm:$0xff] %v1549
        %v1551 = vld [vmem:[%s1095 + $0x718] sm:$0xff]
        %1552 = vst [vmem:[%s1096 + $0x718] sm:$0xff] %v1551
        %v1553 = vld [vmem:[%s1095 + $0x720] sm:$0xff]
        %1554 = vst [vmem:[%s1096 + $0x720] sm:$0xff] %v1553
        %v1555 = vld [vmem:[%s1095 + $0x728] sm:$0xff]
        %1556 = vst [vmem:[%s1096 + $0x728] sm:$0xff] %v1555
        %v1557 = vld [vmem:[%s1095 + $0x730] sm:$0xff]
        %1558 = vst [vmem:[%s1096 + $0x730] sm:$0xff] %v1557
        %v1559 = vld [vmem:[%s1095 + $0x738] sm:$0xff]
        %1560 = vst [vmem:[%s1096 + $0x738] sm:$0xff] %v1559
        %v1561 = vld [vmem:[%s1095 + $0x740] sm:$0xff]
        %1562 = vst [vmem:[%s1096 + $0x740] sm:$0xff] %v1561
        %v1563 = vld [vmem:[%s1095 + $0x748] sm:$0xff]
        %1564 = vst [vmem:[%s1096 + $0x748] sm:$0xff] %v1563
        %v1565 = vld [vmem:[%s1095 + $0x750] sm:$0xff]
        %1566 = vst [vmem:[%s1096 + $0x750] sm:$0xff] %v1565
        %v1567 = vld [vmem:[%s1095 + $0x758] sm:$0xff]
        %1568 = vst [vmem:[%s1096 + $0x758] sm:$0xff] %v1567
        %v1569 = vld [vmem:[%s1095 + $0x760] sm:$0xff]
        %1570 = vst [vmem:[%s1096 + $0x760] sm:$0xff] %v1569
        %v1571 = vld [vmem:[%s1095 + $0x768] sm:$0xff]
        %1572 = vst [vmem:[%s1096 + $0x768] sm:$0xff] %v1571
        %v1573 = vld [vmem:[%s1095 + $0x770] sm:$0xff]
        %1574 = vst [vmem:[%s1096 + $0x770] sm:$0xff] %v1573
        %v1575 = vld [vmem:[%s1095 + $0x778] sm:$0xff]
        %1576 = vst [vmem:[%s1096 + $0x778] sm:$0xff] %v1575
        %v1577 = vld [vmem:[%s1095 + $0x780] sm:$0xff]
        %1578 = vst [vmem:[%s1096 + $0x780] sm:$0xff] %v1577
        %v1579 = vld [vmem:[%s1095 + $0x788] sm:$0xff]
        %1580 = vst [vmem:[%s1096 + $0x788] sm:$0xff] %v1579
        %v1581 = vld [vmem:[%s1095 + $0x790] sm:$0xff]
        %1582 = vst [vmem:[%s1096 + $0x790] sm:$0xff] %v1581
        %v1583 = vld [vmem:[%s1095 + $0x798] sm:$0xff]
        %1584 = vst [vmem:[%s1096 + $0x798] sm:$0xff] %v1583
        %v1585 = vld [vmem:[%s1095 + $0x7a0] sm:$0xff]
        %1586 = vst [vmem:[%s1096 + $0x7a0] sm:$0xff] %v1585
        %v1587 = vld [vmem:[%s1095 + $0x7a8] sm:$0xff]
        %1588 = vst [vmem:[%s1096 + $0x7a8] sm:$0xff] %v1587
        %v1589 = vld [vmem:[%s1095 + $0x7b0] sm:$0xff]
        %1590 = vst [vmem:[%s1096 + $0x7b0] sm:$0xff] %v1589
        %v1591 = vld [vmem:[%s1095 + $0x7b8] sm:$0xff]
        %1592 = vst [vmem:[%s1096 + $0x7b8] sm:$0xff] %v1591
        %v1593 = vld [vmem:[%s1095 + $0x7c0] sm:$0xff]
        %1594 = vst [vmem:[%s1096 + $0x7c0] sm:$0xff] %v1593
        %v1595 = vld [vmem:[%s1095 + $0x7c8] sm:$0xff]
        %1596 = vst [vmem:[%s1096 + $0x7c8] sm:$0xff] %v1595
        %v1597 = vld [vmem:[%s1095 + $0x7d0] sm:$0xff]
        %1598 = vst [vmem:[%s1096 + $0x7d0] sm:$0xff] %v1597
        %v1599 = vld [vmem:[%s1095 + $0x7d8] sm:$0xff]
        %1600 = vst [vmem:[%s1096 + $0x7d8] sm:$0xff] %v1599
        %v1601 = vld [vmem:[%s1095 + $0x7e0] sm:$0xff]
        %1602 = vst [vmem:[%s1096 + $0x7e0] sm:$0xff] %v1601
        %v1603 = vld [vmem:[%s1095 + $0x7e8] sm:$0xff]
        %1604 = vst [vmem:[%s1096 + $0x7e8] sm:$0xff] %v1603
        %v1605 = vld [vmem:[%s1095 + $0x7f0] sm:$0xff]
        %1606 = vst [vmem:[%s1096 + $0x7f0] sm:$0xff] %v1605
        %v1607 = vld [vmem:[%s1095 + $0x7f8] sm:$0xff]
        %1608 = vst [vmem:[%s1096 + $0x7f8] sm:$0xff] %v1607
      $region72: #{net_forward.1} parent=66 // loop_footer
        %s1094 = sadd.s32 1, %s1090
      $region73: #{net_forward.1} parent=66 // loop_footer_branch
        %1089 = sbr.rel target = $region69
      $region74: #{net_forward.1} parent=66 // loop_exit
        _
    $region67: #{net_forward.1} parent=1 // pred_fallthru
      _
    // Predicated region
    $region75: #{net_forward.1} parent=1 // pred_check
      _
    $region76: #{net_forward.1} parent=1 // pred_check_branch
      %1610 = sbr.rel target = $region78
    $region77: #{net_forward.1} parent=1 // pred_region
      _
    $region78: #{net_forward.1} parent=1 // pred_fallthru
      _
    // Predicated region
    $region79: #{net_forward.1} parent=1 // pred_check
      _
    $region80: #{net_forward.1} parent=1 // pred_check_branch
      %1613 = sbr.rel (0) target = $region82
    $region81: #{net_forward.1} parent=1 // pred_region
      %1614 = vsyncadd %s1086, 32768
    $region82: #{net_forward.1} parent=1 // pred_fallthru
      _
    %s1615 = scalar_lea.vmem %s3, 6144
    %s1616 = scalar_lea.vmem [#allocation2], 6144
    %s1617 = scalar_lea.sflag [#allocation4], 3
    // Predicated region
    $region83: #{net_forward.1} parent=1 // pred_check
      _
    $region84: #{net_forward.1} parent=1 // pred_check_branch
      %1619 = sbr.rel (0) target = $region86
    $region85: #{net_forward.1} parent=1 // pred_region
      loop: start=0, step=1, limit=1
      $region87: #{net_forward.1} parent=85 // loop_pre_header
        _
      $region88: #{net_forward.1} parent=85 // loop_header
        %s1621 = sphi 0, %s1625
        %p1622 = scmp.ge.s32.totalorder %s1621, 1
        %s1626 = sphi %s1615, %s1615
        %s1627 = sphi %s1616, %s1616
      $region89: #{net_forward.1} parent=85 // loop_header_branch
        %1624 = sbr.rel (%p1622) target = $region93
      $region90: #{net_forward.1} parent=85 // loop_body
        %v1628 = vld [vmem:[%s1626] sm:$0xff]
        %1629 = vst [vmem:[%s1627] sm:$0xff] %v1628
        %v1630 = vld [vmem:[%s1626 + $0x8] sm:$0xff]
        %1631 = vst [vmem:[%s1627 + $0x8] sm:$0xff] %v1630
        %v1632 = vld [vmem:[%s1626 + $0x10] sm:$0xff]
        %1633 = vst [vmem:[%s1627 + $0x10] sm:$0xff] %v1632
        %v1634 = vld [vmem:[%s1626 + $0x18] sm:$0xff]
        %1635 = vst [vmem:[%s1627 + $0x18] sm:$0xff] %v1634
        %v1636 = vld [vmem:[%s1626 + $0x20] sm:$0xff]
        %1637 = vst [vmem:[%s1627 + $0x20] sm:$0xff] %v1636
        %v1638 = vld [vmem:[%s1626 + $0x28] sm:$0xff]
        %1639 = vst [vmem:[%s1627 + $0x28] sm:$0xff] %v1638
        %v1640 = vld [vmem:[%s1626 + $0x30] sm:$0xff]
        %1641 = vst [vmem:[%s1627 + $0x30] sm:$0xff] %v1640
        %v1642 = vld [vmem:[%s1626 + $0x38] sm:$0xff]
        %1643 = vst [vmem:[%s1627 + $0x38] sm:$0xff] %v1642
        %v1644 = vld [vmem:[%s1626 + $0x40] sm:$0xff]
        %1645 = vst [vmem:[%s1627 + $0x40] sm:$0xff] %v1644
        %v1646 = vld [vmem:[%s1626 + $0x48] sm:$0xff]
        %1647 = vst [vmem:[%s1627 + $0x48] sm:$0xff] %v1646
        %v1648 = vld [vmem:[%s1626 + $0x50] sm:$0xff]
        %1649 = vst [vmem:[%s1627 + $0x50] sm:$0xff] %v1648
        %v1650 = vld [vmem:[%s1626 + $0x58] sm:$0xff]
        %1651 = vst [vmem:[%s1627 + $0x58] sm:$0xff] %v1650
        %v1652 = vld [vmem:[%s1626 + $0x60] sm:$0xff]
        %1653 = vst [vmem:[%s1627 + $0x60] sm:$0xff] %v1652
        %v1654 = vld [vmem:[%s1626 + $0x68] sm:$0xff]
        %1655 = vst [vmem:[%s1627 + $0x68] sm:$0xff] %v1654
        %v1656 = vld [vmem:[%s1626 + $0x70] sm:$0xff]
        %1657 = vst [vmem:[%s1627 + $0x70] sm:$0xff] %v1656
        %v1658 = vld [vmem:[%s1626 + $0x78] sm:$0xff]
        %1659 = vst [vmem:[%s1627 + $0x78] sm:$0xff] %v1658
        %v1660 = vld [vmem:[%s1626 + $0x80] sm:$0xff]
        %1661 = vst [vmem:[%s1627 + $0x80] sm:$0xff] %v1660
        %v1662 = vld [vmem:[%s1626 + $0x88] sm:$0xff]
        %1663 = vst [vmem:[%s1627 + $0x88] sm:$0xff] %v1662
        %v1664 = vld [vmem:[%s1626 + $0x90] sm:$0xff]
        %1665 = vst [vmem:[%s1627 + $0x90] sm:$0xff] %v1664
        %v1666 = vld [vmem:[%s1626 + $0x98] sm:$0xff]
        %1667 = vst [vmem:[%s1627 + $0x98] sm:$0xff] %v1666
        %v1668 = vld [vmem:[%s1626 + $0xa0] sm:$0xff]
        %1669 = vst [vmem:[%s1627 + $0xa0] sm:$0xff] %v1668
        %v1670 = vld [vmem:[%s1626 + $0xa8] sm:$0xff]
        %1671 = vst [vmem:[%s1627 + $0xa8] sm:$0xff] %v1670
        %v1672 = vld [vmem:[%s1626 + $0xb0] sm:$0xff]
        %1673 = vst [vmem:[%s1627 + $0xb0] sm:$0xff] %v1672
        %v1674 = vld [vmem:[%s1626 + $0xb8] sm:$0xff]
        %1675 = vst [vmem:[%s1627 + $0xb8] sm:$0xff] %v1674
        %v1676 = vld [vmem:[%s1626 + $0xc0] sm:$0xff]
        %1677 = vst [vmem:[%s1627 + $0xc0] sm:$0xff] %v1676
        %v1678 = vld [vmem:[%s1626 + $0xc8] sm:$0xff]
        %1679 = vst [vmem:[%s1627 + $0xc8] sm:$0xff] %v1678
        %v1680 = vld [vmem:[%s1626 + $0xd0] sm:$0xff]
        %1681 = vst [vmem:[%s1627 + $0xd0] sm:$0xff] %v1680
        %v1682 = vld [vmem:[%s1626 + $0xd8] sm:$0xff]
        %1683 = vst [vmem:[%s1627 + $0xd8] sm:$0xff] %v1682
        %v1684 = vld [vmem:[%s1626 + $0xe0] sm:$0xff]
        %1685 = vst [vmem:[%s1627 + $0xe0] sm:$0xff] %v1684
        %v1686 = vld [vmem:[%s1626 + $0xe8] sm:$0xff]
        %1687 = vst [vmem:[%s1627 + $0xe8] sm:$0xff] %v1686
        %v1688 = vld [vmem:[%s1626 + $0xf0] sm:$0xff]
        %1689 = vst [vmem:[%s1627 + $0xf0] sm:$0xff] %v1688
        %v1690 = vld [vmem:[%s1626 + $0xf8] sm:$0xff]
        %1691 = vst [vmem:[%s1627 + $0xf8] sm:$0xff] %v1690
        %v1692 = vld [vmem:[%s1626 + $0x100] sm:$0xff]
        %1693 = vst [vmem:[%s1627 + $0x100] sm:$0xff] %v1692
        %v1694 = vld [vmem:[%s1626 + $0x108] sm:$0xff]
        %1695 = vst [vmem:[%s1627 + $0x108] sm:$0xff] %v1694
        %v1696 = vld [vmem:[%s1626 + $0x110] sm:$0xff]
        %1697 = vst [vmem:[%s1627 + $0x110] sm:$0xff] %v1696
        %v1698 = vld [vmem:[%s1626 + $0x118] sm:$0xff]
        %1699 = vst [vmem:[%s1627 + $0x118] sm:$0xff] %v1698
        %v1700 = vld [vmem:[%s1626 + $0x120] sm:$0xff]
        %1701 = vst [vmem:[%s1627 + $0x120] sm:$0xff] %v1700
        %v1702 = vld [vmem:[%s1626 + $0x128] sm:$0xff]
        %1703 = vst [vmem:[%s1627 + $0x128] sm:$0xff] %v1702
        %v1704 = vld [vmem:[%s1626 + $0x130] sm:$0xff]
        %1705 = vst [vmem:[%s1627 + $0x130] sm:$0xff] %v1704
        %v1706 = vld [vmem:[%s1626 + $0x138] sm:$0xff]
        %1707 = vst [vmem:[%s1627 + $0x138] sm:$0xff] %v1706
        %v1708 = vld [vmem:[%s1626 + $0x140] sm:$0xff]
        %1709 = vst [vmem:[%s1627 + $0x140] sm:$0xff] %v1708
        %v1710 = vld [vmem:[%s1626 + $0x148] sm:$0xff]
        %1711 = vst [vmem:[%s1627 + $0x148] sm:$0xff] %v1710
        %v1712 = vld [vmem:[%s1626 + $0x150] sm:$0xff]
        %1713 = vst [vmem:[%s1627 + $0x150] sm:$0xff] %v1712
        %v1714 = vld [vmem:[%s1626 + $0x158] sm:$0xff]
        %1715 = vst [vmem:[%s1627 + $0x158] sm:$0xff] %v1714
        %v1716 = vld [vmem:[%s1626 + $0x160] sm:$0xff]
        %1717 = vst [vmem:[%s1627 + $0x160] sm:$0xff] %v1716
        %v1718 = vld [vmem:[%s1626 + $0x168] sm:$0xff]
        %1719 = vst [vmem:[%s1627 + $0x168] sm:$0xff] %v1718
        %v1720 = vld [vmem:[%s1626 + $0x170] sm:$0xff]
        %1721 = vst [vmem:[%s1627 + $0x170] sm:$0xff] %v1720
        %v1722 = vld [vmem:[%s1626 + $0x178] sm:$0xff]
        %1723 = vst [vmem:[%s1627 + $0x178] sm:$0xff] %v1722
        %v1724 = vld [vmem:[%s1626 + $0x180] sm:$0xff]
        %1725 = vst [vmem:[%s1627 + $0x180] sm:$0xff] %v1724
        %v1726 = vld [vmem:[%s1626 + $0x188] sm:$0xff]
        %1727 = vst [vmem:[%s1627 + $0x188] sm:$0xff] %v1726
        %v1728 = vld [vmem:[%s1626 + $0x190] sm:$0xff]
        %1729 = vst [vmem:[%s1627 + $0x190] sm:$0xff] %v1728
        %v1730 = vld [vmem:[%s1626 + $0x198] sm:$0xff]
        %1731 = vst [vmem:[%s1627 + $0x198] sm:$0xff] %v1730
        %v1732 = vld [vmem:[%s1626 + $0x1a0] sm:$0xff]
        %1733 = vst [vmem:[%s1627 + $0x1a0] sm:$0xff] %v1732
        %v1734 = vld [vmem:[%s1626 + $0x1a8] sm:$0xff]
        %1735 = vst [vmem:[%s1627 + $0x1a8] sm:$0xff] %v1734
        %v1736 = vld [vmem:[%s1626 + $0x1b0] sm:$0xff]
        %1737 = vst [vmem:[%s1627 + $0x1b0] sm:$0xff] %v1736
        %v1738 = vld [vmem:[%s1626 + $0x1b8] sm:$0xff]
        %1739 = vst [vmem:[%s1627 + $0x1b8] sm:$0xff] %v1738
        %v1740 = vld [vmem:[%s1626 + $0x1c0] sm:$0xff]
        %1741 = vst [vmem:[%s1627 + $0x1c0] sm:$0xff] %v1740
        %v1742 = vld [vmem:[%s1626 + $0x1c8] sm:$0xff]
        %1743 = vst [vmem:[%s1627 + $0x1c8] sm:$0xff] %v1742
        %v1744 = vld [vmem:[%s1626 + $0x1d0] sm:$0xff]
        %1745 = vst [vmem:[%s1627 + $0x1d0] sm:$0xff] %v1744
        %v1746 = vld [vmem:[%s1626 + $0x1d8] sm:$0xff]
        %1747 = vst [vmem:[%s1627 + $0x1d8] sm:$0xff] %v1746
        %v1748 = vld [vmem:[%s1626 + $0x1e0] sm:$0xff]
        %1749 = vst [vmem:[%s1627 + $0x1e0] sm:$0xff] %v1748
        %v1750 = vld [vmem:[%s1626 + $0x1e8] sm:$0xff]
        %1751 = vst [vmem:[%s1627 + $0x1e8] sm:$0xff] %v1750
        %v1752 = vld [vmem:[%s1626 + $0x1f0] sm:$0xff]
        %1753 = vst [vmem:[%s1627 + $0x1f0] sm:$0xff] %v1752
        %v1754 = vld [vmem:[%s1626 + $0x1f8] sm:$0xff]
        %1755 = vst [vmem:[%s1627 + $0x1f8] sm:$0xff] %v1754
        %v1756 = vld [vmem:[%s1626 + $0x200] sm:$0xff]
        %1757 = vst [vmem:[%s1627 + $0x200] sm:$0xff] %v1756
        %v1758 = vld [vmem:[%s1626 + $0x208] sm:$0xff]
        %1759 = vst [vmem:[%s1627 + $0x208] sm:$0xff] %v1758
        %v1760 = vld [vmem:[%s1626 + $0x210] sm:$0xff]
        %1761 = vst [vmem:[%s1627 + $0x210] sm:$0xff] %v1760
        %v1762 = vld [vmem:[%s1626 + $0x218] sm:$0xff]
        %1763 = vst [vmem:[%s1627 + $0x218] sm:$0xff] %v1762
        %v1764 = vld [vmem:[%s1626 + $0x220] sm:$0xff]
        %1765 = vst [vmem:[%s1627 + $0x220] sm:$0xff] %v1764
        %v1766 = vld [vmem:[%s1626 + $0x228] sm:$0xff]
        %1767 = vst [vmem:[%s1627 + $0x228] sm:$0xff] %v1766
        %v1768 = vld [vmem:[%s1626 + $0x230] sm:$0xff]
        %1769 = vst [vmem:[%s1627 + $0x230] sm:$0xff] %v1768
        %v1770 = vld [vmem:[%s1626 + $0x238] sm:$0xff]
        %1771 = vst [vmem:[%s1627 + $0x238] sm:$0xff] %v1770
        %v1772 = vld [vmem:[%s1626 + $0x240] sm:$0xff]
        %1773 = vst [vmem:[%s1627 + $0x240] sm:$0xff] %v1772
        %v1774 = vld [vmem:[%s1626 + $0x248] sm:$0xff]
        %1775 = vst [vmem:[%s1627 + $0x248] sm:$0xff] %v1774
        %v1776 = vld [vmem:[%s1626 + $0x250] sm:$0xff]
        %1777 = vst [vmem:[%s1627 + $0x250] sm:$0xff] %v1776
        %v1778 = vld [vmem:[%s1626 + $0x258] sm:$0xff]
        %1779 = vst [vmem:[%s1627 + $0x258] sm:$0xff] %v1778
        %v1780 = vld [vmem:[%s1626 + $0x260] sm:$0xff]
        %1781 = vst [vmem:[%s1627 + $0x260] sm:$0xff] %v1780
        %v1782 = vld [vmem:[%s1626 + $0x268] sm:$0xff]
        %1783 = vst [vmem:[%s1627 + $0x268] sm:$0xff] %v1782
        %v1784 = vld [vmem:[%s1626 + $0x270] sm:$0xff]
        %1785 = vst [vmem:[%s1627 + $0x270] sm:$0xff] %v1784
        %v1786 = vld [vmem:[%s1626 + $0x278] sm:$0xff]
        %1787 = vst [vmem:[%s1627 + $0x278] sm:$0xff] %v1786
        %v1788 = vld [vmem:[%s1626 + $0x280] sm:$0xff]
        %1789 = vst [vmem:[%s1627 + $0x280] sm:$0xff] %v1788
        %v1790 = vld [vmem:[%s1626 + $0x288] sm:$0xff]
        %1791 = vst [vmem:[%s1627 + $0x288] sm:$0xff] %v1790
        %v1792 = vld [vmem:[%s1626 + $0x290] sm:$0xff]
        %1793 = vst [vmem:[%s1627 + $0x290] sm:$0xff] %v1792
        %v1794 = vld [vmem:[%s1626 + $0x298] sm:$0xff]
        %1795 = vst [vmem:[%s1627 + $0x298] sm:$0xff] %v1794
        %v1796 = vld [vmem:[%s1626 + $0x2a0] sm:$0xff]
        %1797 = vst [vmem:[%s1627 + $0x2a0] sm:$0xff] %v1796
        %v1798 = vld [vmem:[%s1626 + $0x2a8] sm:$0xff]
        %1799 = vst [vmem:[%s1627 + $0x2a8] sm:$0xff] %v1798
        %v1800 = vld [vmem:[%s1626 + $0x2b0] sm:$0xff]
        %1801 = vst [vmem:[%s1627 + $0x2b0] sm:$0xff] %v1800
        %v1802 = vld [vmem:[%s1626 + $0x2b8] sm:$0xff]
        %1803 = vst [vmem:[%s1627 + $0x2b8] sm:$0xff] %v1802
        %v1804 = vld [vmem:[%s1626 + $0x2c0] sm:$0xff]
        %1805 = vst [vmem:[%s1627 + $0x2c0] sm:$0xff] %v1804
        %v1806 = vld [vmem:[%s1626 + $0x2c8] sm:$0xff]
        %1807 = vst [vmem:[%s1627 + $0x2c8] sm:$0xff] %v1806
        %v1808 = vld [vmem:[%s1626 + $0x2d0] sm:$0xff]
        %1809 = vst [vmem:[%s1627 + $0x2d0] sm:$0xff] %v1808
        %v1810 = vld [vmem:[%s1626 + $0x2d8] sm:$0xff]
        %1811 = vst [vmem:[%s1627 + $0x2d8] sm:$0xff] %v1810
        %v1812 = vld [vmem:[%s1626 + $0x2e0] sm:$0xff]
        %1813 = vst [vmem:[%s1627 + $0x2e0] sm:$0xff] %v1812
        %v1814 = vld [vmem:[%s1626 + $0x2e8] sm:$0xff]
        %1815 = vst [vmem:[%s1627 + $0x2e8] sm:$0xff] %v1814
        %v1816 = vld [vmem:[%s1626 + $0x2f0] sm:$0xff]
        %1817 = vst [vmem:[%s1627 + $0x2f0] sm:$0xff] %v1816
        %v1818 = vld [vmem:[%s1626 + $0x2f8] sm:$0xff]
        %1819 = vst [vmem:[%s1627 + $0x2f8] sm:$0xff] %v1818
        %v1820 = vld [vmem:[%s1626 + $0x300] sm:$0xff]
        %1821 = vst [vmem:[%s1627 + $0x300] sm:$0xff] %v1820
        %v1822 = vld [vmem:[%s1626 + $0x308] sm:$0xff]
        %1823 = vst [vmem:[%s1627 + $0x308] sm:$0xff] %v1822
        %v1824 = vld [vmem:[%s1626 + $0x310] sm:$0xff]
        %1825 = vst [vmem:[%s1627 + $0x310] sm:$0xff] %v1824
        %v1826 = vld [vmem:[%s1626 + $0x318] sm:$0xff]
        %1827 = vst [vmem:[%s1627 + $0x318] sm:$0xff] %v1826
        %v1828 = vld [vmem:[%s1626 + $0x320] sm:$0xff]
        %1829 = vst [vmem:[%s1627 + $0x320] sm:$0xff] %v1828
        %v1830 = vld [vmem:[%s1626 + $0x328] sm:$0xff]
        %1831 = vst [vmem:[%s1627 + $0x328] sm:$0xff] %v1830
        %v1832 = vld [vmem:[%s1626 + $0x330] sm:$0xff]
        %1833 = vst [vmem:[%s1627 + $0x330] sm:$0xff] %v1832
        %v1834 = vld [vmem:[%s1626 + $0x338] sm:$0xff]
        %1835 = vst [vmem:[%s1627 + $0x338] sm:$0xff] %v1834
        %v1836 = vld [vmem:[%s1626 + $0x340] sm:$0xff]
        %1837 = vst [vmem:[%s1627 + $0x340] sm:$0xff] %v1836
        %v1838 = vld [vmem:[%s1626 + $0x348] sm:$0xff]
        %1839 = vst [vmem:[%s1627 + $0x348] sm:$0xff] %v1838
        %v1840 = vld [vmem:[%s1626 + $0x350] sm:$0xff]
        %1841 = vst [vmem:[%s1627 + $0x350] sm:$0xff] %v1840
        %v1842 = vld [vmem:[%s1626 + $0x358] sm:$0xff]
        %1843 = vst [vmem:[%s1627 + $0x358] sm:$0xff] %v1842
        %v1844 = vld [vmem:[%s1626 + $0x360] sm:$0xff]
        %1845 = vst [vmem:[%s1627 + $0x360] sm:$0xff] %v1844
        %v1846 = vld [vmem:[%s1626 + $0x368] sm:$0xff]
        %1847 = vst [vmem:[%s1627 + $0x368] sm:$0xff] %v1846
        %v1848 = vld [vmem:[%s1626 + $0x370] sm:$0xff]
        %1849 = vst [vmem:[%s1627 + $0x370] sm:$0xff] %v1848
        %v1850 = vld [vmem:[%s1626 + $0x378] sm:$0xff]
        %1851 = vst [vmem:[%s1627 + $0x378] sm:$0xff] %v1850
        %v1852 = vld [vmem:[%s1626 + $0x380] sm:$0xff]
        %1853 = vst [vmem:[%s1627 + $0x380] sm:$0xff] %v1852
        %v1854 = vld [vmem:[%s1626 + $0x388] sm:$0xff]
        %1855 = vst [vmem:[%s1627 + $0x388] sm:$0xff] %v1854
        %v1856 = vld [vmem:[%s1626 + $0x390] sm:$0xff]
        %1857 = vst [vmem:[%s1627 + $0x390] sm:$0xff] %v1856
        %v1858 = vld [vmem:[%s1626 + $0x398] sm:$0xff]
        %1859 = vst [vmem:[%s1627 + $0x398] sm:$0xff] %v1858
        %v1860 = vld [vmem:[%s1626 + $0x3a0] sm:$0xff]
        %1861 = vst [vmem:[%s1627 + $0x3a0] sm:$0xff] %v1860
        %v1862 = vld [vmem:[%s1626 + $0x3a8] sm:$0xff]
        %1863 = vst [vmem:[%s1627 + $0x3a8] sm:$0xff] %v1862
        %v1864 = vld [vmem:[%s1626 + $0x3b0] sm:$0xff]
        %1865 = vst [vmem:[%s1627 + $0x3b0] sm:$0xff] %v1864
        %v1866 = vld [vmem:[%s1626 + $0x3b8] sm:$0xff]
        %1867 = vst [vmem:[%s1627 + $0x3b8] sm:$0xff] %v1866
        %v1868 = vld [vmem:[%s1626 + $0x3c0] sm:$0xff]
        %1869 = vst [vmem:[%s1627 + $0x3c0] sm:$0xff] %v1868
        %v1870 = vld [vmem:[%s1626 + $0x3c8] sm:$0xff]
        %1871 = vst [vmem:[%s1627 + $0x3c8] sm:$0xff] %v1870
        %v1872 = vld [vmem:[%s1626 + $0x3d0] sm:$0xff]
        %1873 = vst [vmem:[%s1627 + $0x3d0] sm:$0xff] %v1872
        %v1874 = vld [vmem:[%s1626 + $0x3d8] sm:$0xff]
        %1875 = vst [vmem:[%s1627 + $0x3d8] sm:$0xff] %v1874
        %v1876 = vld [vmem:[%s1626 + $0x3e0] sm:$0xff]
        %1877 = vst [vmem:[%s1627 + $0x3e0] sm:$0xff] %v1876
        %v1878 = vld [vmem:[%s1626 + $0x3e8] sm:$0xff]
        %1879 = vst [vmem:[%s1627 + $0x3e8] sm:$0xff] %v1878
        %v1880 = vld [vmem:[%s1626 + $0x3f0] sm:$0xff]
        %1881 = vst [vmem:[%s1627 + $0x3f0] sm:$0xff] %v1880
        %v1882 = vld [vmem:[%s1626 + $0x3f8] sm:$0xff]
        %1883 = vst [vmem:[%s1627 + $0x3f8] sm:$0xff] %v1882
        %v1884 = vld [vmem:[%s1626 + $0x400] sm:$0xff]
        %1885 = vst [vmem:[%s1627 + $0x400] sm:$0xff] %v1884
        %v1886 = vld [vmem:[%s1626 + $0x408] sm:$0xff]
        %1887 = vst [vmem:[%s1627 + $0x408] sm:$0xff] %v1886
        %v1888 = vld [vmem:[%s1626 + $0x410] sm:$0xff]
        %1889 = vst [vmem:[%s1627 + $0x410] sm:$0xff] %v1888
        %v1890 = vld [vmem:[%s1626 + $0x418] sm:$0xff]
        %1891 = vst [vmem:[%s1627 + $0x418] sm:$0xff] %v1890
        %v1892 = vld [vmem:[%s1626 + $0x420] sm:$0xff]
        %1893 = vst [vmem:[%s1627 + $0x420] sm:$0xff] %v1892
        %v1894 = vld [vmem:[%s1626 + $0x428] sm:$0xff]
        %1895 = vst [vmem:[%s1627 + $0x428] sm:$0xff] %v1894
        %v1896 = vld [vmem:[%s1626 + $0x430] sm:$0xff]
        %1897 = vst [vmem:[%s1627 + $0x430] sm:$0xff] %v1896
        %v1898 = vld [vmem:[%s1626 + $0x438] sm:$0xff]
        %1899 = vst [vmem:[%s1627 + $0x438] sm:$0xff] %v1898
        %v1900 = vld [vmem:[%s1626 + $0x440] sm:$0xff]
        %1901 = vst [vmem:[%s1627 + $0x440] sm:$0xff] %v1900
        %v1902 = vld [vmem:[%s1626 + $0x448] sm:$0xff]
        %1903 = vst [vmem:[%s1627 + $0x448] sm:$0xff] %v1902
        %v1904 = vld [vmem:[%s1626 + $0x450] sm:$0xff]
        %1905 = vst [vmem:[%s1627 + $0x450] sm:$0xff] %v1904
        %v1906 = vld [vmem:[%s1626 + $0x458] sm:$0xff]
        %1907 = vst [vmem:[%s1627 + $0x458] sm:$0xff] %v1906
        %v1908 = vld [vmem:[%s1626 + $0x460] sm:$0xff]
        %1909 = vst [vmem:[%s1627 + $0x460] sm:$0xff] %v1908
        %v1910 = vld [vmem:[%s1626 + $0x468] sm:$0xff]
        %1911 = vst [vmem:[%s1627 + $0x468] sm:$0xff] %v1910
        %v1912 = vld [vmem:[%s1626 + $0x470] sm:$0xff]
        %1913 = vst [vmem:[%s1627 + $0x470] sm:$0xff] %v1912
        %v1914 = vld [vmem:[%s1626 + $0x478] sm:$0xff]
        %1915 = vst [vmem:[%s1627 + $0x478] sm:$0xff] %v1914
        %v1916 = vld [vmem:[%s1626 + $0x480] sm:$0xff]
        %1917 = vst [vmem:[%s1627 + $0x480] sm:$0xff] %v1916
        %v1918 = vld [vmem:[%s1626 + $0x488] sm:$0xff]
        %1919 = vst [vmem:[%s1627 + $0x488] sm:$0xff] %v1918
        %v1920 = vld [vmem:[%s1626 + $0x490] sm:$0xff]
        %1921 = vst [vmem:[%s1627 + $0x490] sm:$0xff] %v1920
        %v1922 = vld [vmem:[%s1626 + $0x498] sm:$0xff]
        %1923 = vst [vmem:[%s1627 + $0x498] sm:$0xff] %v1922
        %v1924 = vld [vmem:[%s1626 + $0x4a0] sm:$0xff]
        %1925 = vst [vmem:[%s1627 + $0x4a0] sm:$0xff] %v1924
        %v1926 = vld [vmem:[%s1626 + $0x4a8] sm:$0xff]
        %1927 = vst [vmem:[%s1627 + $0x4a8] sm:$0xff] %v1926
        %v1928 = vld [vmem:[%s1626 + $0x4b0] sm:$0xff]
        %1929 = vst [vmem:[%s1627 + $0x4b0] sm:$0xff] %v1928
        %v1930 = vld [vmem:[%s1626 + $0x4b8] sm:$0xff]
        %1931 = vst [vmem:[%s1627 + $0x4b8] sm:$0xff] %v1930
        %v1932 = vld [vmem:[%s1626 + $0x4c0] sm:$0xff]
        %1933 = vst [vmem:[%s1627 + $0x4c0] sm:$0xff] %v1932
        %v1934 = vld [vmem:[%s1626 + $0x4c8] sm:$0xff]
        %1935 = vst [vmem:[%s1627 + $0x4c8] sm:$0xff] %v1934
        %v1936 = vld [vmem:[%s1626 + $0x4d0] sm:$0xff]
        %1937 = vst [vmem:[%s1627 + $0x4d0] sm:$0xff] %v1936
        %v1938 = vld [vmem:[%s1626 + $0x4d8] sm:$0xff]
        %1939 = vst [vmem:[%s1627 + $0x4d8] sm:$0xff] %v1938
        %v1940 = vld [vmem:[%s1626 + $0x4e0] sm:$0xff]
        %1941 = vst [vmem:[%s1627 + $0x4e0] sm:$0xff] %v1940
        %v1942 = vld [vmem:[%s1626 + $0x4e8] sm:$0xff]
        %1943 = vst [vmem:[%s1627 + $0x4e8] sm:$0xff] %v1942
        %v1944 = vld [vmem:[%s1626 + $0x4f0] sm:$0xff]
        %1945 = vst [vmem:[%s1627 + $0x4f0] sm:$0xff] %v1944
        %v1946 = vld [vmem:[%s1626 + $0x4f8] sm:$0xff]
        %1947 = vst [vmem:[%s1627 + $0x4f8] sm:$0xff] %v1946
        %v1948 = vld [vmem:[%s1626 + $0x500] sm:$0xff]
        %1949 = vst [vmem:[%s1627 + $0x500] sm:$0xff] %v1948
        %v1950 = vld [vmem:[%s1626 + $0x508] sm:$0xff]
        %1951 = vst [vmem:[%s1627 + $0x508] sm:$0xff] %v1950
        %v1952 = vld [vmem:[%s1626 + $0x510] sm:$0xff]
        %1953 = vst [vmem:[%s1627 + $0x510] sm:$0xff] %v1952
        %v1954 = vld [vmem:[%s1626 + $0x518] sm:$0xff]
        %1955 = vst [vmem:[%s1627 + $0x518] sm:$0xff] %v1954
        %v1956 = vld [vmem:[%s1626 + $0x520] sm:$0xff]
        %1957 = vst [vmem:[%s1627 + $0x520] sm:$0xff] %v1956
        %v1958 = vld [vmem:[%s1626 + $0x528] sm:$0xff]
        %1959 = vst [vmem:[%s1627 + $0x528] sm:$0xff] %v1958
        %v1960 = vld [vmem:[%s1626 + $0x530] sm:$0xff]
        %1961 = vst [vmem:[%s1627 + $0x530] sm:$0xff] %v1960
        %v1962 = vld [vmem:[%s1626 + $0x538] sm:$0xff]
        %1963 = vst [vmem:[%s1627 + $0x538] sm:$0xff] %v1962
        %v1964 = vld [vmem:[%s1626 + $0x540] sm:$0xff]
        %1965 = vst [vmem:[%s1627 + $0x540] sm:$0xff] %v1964
        %v1966 = vld [vmem:[%s1626 + $0x548] sm:$0xff]
        %1967 = vst [vmem:[%s1627 + $0x548] sm:$0xff] %v1966
        %v1968 = vld [vmem:[%s1626 + $0x550] sm:$0xff]
        %1969 = vst [vmem:[%s1627 + $0x550] sm:$0xff] %v1968
        %v1970 = vld [vmem:[%s1626 + $0x558] sm:$0xff]
        %1971 = vst [vmem:[%s1627 + $0x558] sm:$0xff] %v1970
        %v1972 = vld [vmem:[%s1626 + $0x560] sm:$0xff]
        %1973 = vst [vmem:[%s1627 + $0x560] sm:$0xff] %v1972
        %v1974 = vld [vmem:[%s1626 + $0x568] sm:$0xff]
        %1975 = vst [vmem:[%s1627 + $0x568] sm:$0xff] %v1974
        %v1976 = vld [vmem:[%s1626 + $0x570] sm:$0xff]
        %1977 = vst [vmem:[%s1627 + $0x570] sm:$0xff] %v1976
        %v1978 = vld [vmem:[%s1626 + $0x578] sm:$0xff]
        %1979 = vst [vmem:[%s1627 + $0x578] sm:$0xff] %v1978
        %v1980 = vld [vmem:[%s1626 + $0x580] sm:$0xff]
        %1981 = vst [vmem:[%s1627 + $0x580] sm:$0xff] %v1980
        %v1982 = vld [vmem:[%s1626 + $0x588] sm:$0xff]
        %1983 = vst [vmem:[%s1627 + $0x588] sm:$0xff] %v1982
        %v1984 = vld [vmem:[%s1626 + $0x590] sm:$0xff]
        %1985 = vst [vmem:[%s1627 + $0x590] sm:$0xff] %v1984
        %v1986 = vld [vmem:[%s1626 + $0x598] sm:$0xff]
        %1987 = vst [vmem:[%s1627 + $0x598] sm:$0xff] %v1986
        %v1988 = vld [vmem:[%s1626 + $0x5a0] sm:$0xff]
        %1989 = vst [vmem:[%s1627 + $0x5a0] sm:$0xff] %v1988
        %v1990 = vld [vmem:[%s1626 + $0x5a8] sm:$0xff]
        %1991 = vst [vmem:[%s1627 + $0x5a8] sm:$0xff] %v1990
        %v1992 = vld [vmem:[%s1626 + $0x5b0] sm:$0xff]
        %1993 = vst [vmem:[%s1627 + $0x5b0] sm:$0xff] %v1992
        %v1994 = vld [vmem:[%s1626 + $0x5b8] sm:$0xff]
        %1995 = vst [vmem:[%s1627 + $0x5b8] sm:$0xff] %v1994
        %v1996 = vld [vmem:[%s1626 + $0x5c0] sm:$0xff]
        %1997 = vst [vmem:[%s1627 + $0x5c0] sm:$0xff] %v1996
        %v1998 = vld [vmem:[%s1626 + $0x5c8] sm:$0xff]
        %1999 = vst [vmem:[%s1627 + $0x5c8] sm:$0xff] %v1998
        %v2000 = vld [vmem:[%s1626 + $0x5d0] sm:$0xff]
        %2001 = vst [vmem:[%s1627 + $0x5d0] sm:$0xff] %v2000
        %v2002 = vld [vmem:[%s1626 + $0x5d8] sm:$0xff]
        %2003 = vst [vmem:[%s1627 + $0x5d8] sm:$0xff] %v2002
        %v2004 = vld [vmem:[%s1626 + $0x5e0] sm:$0xff]
        %2005 = vst [vmem:[%s1627 + $0x5e0] sm:$0xff] %v2004
        %v2006 = vld [vmem:[%s1626 + $0x5e8] sm:$0xff]
        %2007 = vst [vmem:[%s1627 + $0x5e8] sm:$0xff] %v2006
        %v2008 = vld [vmem:[%s1626 + $0x5f0] sm:$0xff]
        %2009 = vst [vmem:[%s1627 + $0x5f0] sm:$0xff] %v2008
        %v2010 = vld [vmem:[%s1626 + $0x5f8] sm:$0xff]
        %2011 = vst [vmem:[%s1627 + $0x5f8] sm:$0xff] %v2010
        %v2012 = vld [vmem:[%s1626 + $0x600] sm:$0xff]
        %2013 = vst [vmem:[%s1627 + $0x600] sm:$0xff] %v2012
        %v2014 = vld [vmem:[%s1626 + $0x608] sm:$0xff]
        %2015 = vst [vmem:[%s1627 + $0x608] sm:$0xff] %v2014
        %v2016 = vld [vmem:[%s1626 + $0x610] sm:$0xff]
        %2017 = vst [vmem:[%s1627 + $0x610] sm:$0xff] %v2016
        %v2018 = vld [vmem:[%s1626 + $0x618] sm:$0xff]
        %2019 = vst [vmem:[%s1627 + $0x618] sm:$0xff] %v2018
        %v2020 = vld [vmem:[%s1626 + $0x620] sm:$0xff]
        %2021 = vst [vmem:[%s1627 + $0x620] sm:$0xff] %v2020
        %v2022 = vld [vmem:[%s1626 + $0x628] sm:$0xff]
        %2023 = vst [vmem:[%s1627 + $0x628] sm:$0xff] %v2022
        %v2024 = vld [vmem:[%s1626 + $0x630] sm:$0xff]
        %2025 = vst [vmem:[%s1627 + $0x630] sm:$0xff] %v2024
        %v2026 = vld [vmem:[%s1626 + $0x638] sm:$0xff]
        %2027 = vst [vmem:[%s1627 + $0x638] sm:$0xff] %v2026
        %v2028 = vld [vmem:[%s1626 + $0x640] sm:$0xff]
        %2029 = vst [vmem:[%s1627 + $0x640] sm:$0xff] %v2028
        %v2030 = vld [vmem:[%s1626 + $0x648] sm:$0xff]
        %2031 = vst [vmem:[%s1627 + $0x648] sm:$0xff] %v2030
        %v2032 = vld [vmem:[%s1626 + $0x650] sm:$0xff]
        %2033 = vst [vmem:[%s1627 + $0x650] sm:$0xff] %v2032
        %v2034 = vld [vmem:[%s1626 + $0x658] sm:$0xff]
        %2035 = vst [vmem:[%s1627 + $0x658] sm:$0xff] %v2034
        %v2036 = vld [vmem:[%s1626 + $0x660] sm:$0xff]
        %2037 = vst [vmem:[%s1627 + $0x660] sm:$0xff] %v2036
        %v2038 = vld [vmem:[%s1626 + $0x668] sm:$0xff]
        %2039 = vst [vmem:[%s1627 + $0x668] sm:$0xff] %v2038
        %v2040 = vld [vmem:[%s1626 + $0x670] sm:$0xff]
        %2041 = vst [vmem:[%s1627 + $0x670] sm:$0xff] %v2040
        %v2042 = vld [vmem:[%s1626 + $0x678] sm:$0xff]
        %2043 = vst [vmem:[%s1627 + $0x678] sm:$0xff] %v2042
        %v2044 = vld [vmem:[%s1626 + $0x680] sm:$0xff]
        %2045 = vst [vmem:[%s1627 + $0x680] sm:$0xff] %v2044
        %v2046 = vld [vmem:[%s1626 + $0x688] sm:$0xff]
        %2047 = vst [vmem:[%s1627 + $0x688] sm:$0xff] %v2046
        %v2048 = vld [vmem:[%s1626 + $0x690] sm:$0xff]
        %2049 = vst [vmem:[%s1627 + $0x690] sm:$0xff] %v2048
        %v2050 = vld [vmem:[%s1626 + $0x698] sm:$0xff]
        %2051 = vst [vmem:[%s1627 + $0x698] sm:$0xff] %v2050
        %v2052 = vld [vmem:[%s1626 + $0x6a0] sm:$0xff]
        %2053 = vst [vmem:[%s1627 + $0x6a0] sm:$0xff] %v2052
        %v2054 = vld [vmem:[%s1626 + $0x6a8] sm:$0xff]
        %2055 = vst [vmem:[%s1627 + $0x6a8] sm:$0xff] %v2054
        %v2056 = vld [vmem:[%s1626 + $0x6b0] sm:$0xff]
        %2057 = vst [vmem:[%s1627 + $0x6b0] sm:$0xff] %v2056
        %v2058 = vld [vmem:[%s1626 + $0x6b8] sm:$0xff]
        %2059 = vst [vmem:[%s1627 + $0x6b8] sm:$0xff] %v2058
        %v2060 = vld [vmem:[%s1626 + $0x6c0] sm:$0xff]
        %2061 = vst [vmem:[%s1627 + $0x6c0] sm:$0xff] %v2060
        %v2062 = vld [vmem:[%s1626 + $0x6c8] sm:$0xff]
        %2063 = vst [vmem:[%s1627 + $0x6c8] sm:$0xff] %v2062
        %v2064 = vld [vmem:[%s1626 + $0x6d0] sm:$0xff]
        %2065 = vst [vmem:[%s1627 + $0x6d0] sm:$0xff] %v2064
        %v2066 = vld [vmem:[%s1626 + $0x6d8] sm:$0xff]
        %2067 = vst [vmem:[%s1627 + $0x6d8] sm:$0xff] %v2066
        %v2068 = vld [vmem:[%s1626 + $0x6e0] sm:$0xff]
        %2069 = vst [vmem:[%s1627 + $0x6e0] sm:$0xff] %v2068
        %v2070 = vld [vmem:[%s1626 + $0x6e8] sm:$0xff]
        %2071 = vst [vmem:[%s1627 + $0x6e8] sm:$0xff] %v2070
        %v2072 = vld [vmem:[%s1626 + $0x6f0] sm:$0xff]
        %2073 = vst [vmem:[%s1627 + $0x6f0] sm:$0xff] %v2072
        %v2074 = vld [vmem:[%s1626 + $0x6f8] sm:$0xff]
        %2075 = vst [vmem:[%s1627 + $0x6f8] sm:$0xff] %v2074
        %v2076 = vld [vmem:[%s1626 + $0x700] sm:$0xff]
        %2077 = vst [vmem:[%s1627 + $0x700] sm:$0xff] %v2076
        %v2078 = vld [vmem:[%s1626 + $0x708] sm:$0xff]
        %2079 = vst [vmem:[%s1627 + $0x708] sm:$0xff] %v2078
        %v2080 = vld [vmem:[%s1626 + $0x710] sm:$0xff]
        %2081 = vst [vmem:[%s1627 + $0x710] sm:$0xff] %v2080
        %v2082 = vld [vmem:[%s1626 + $0x718] sm:$0xff]
        %2083 = vst [vmem:[%s1627 + $0x718] sm:$0xff] %v2082
        %v2084 = vld [vmem:[%s1626 + $0x720] sm:$0xff]
        %2085 = vst [vmem:[%s1627 + $0x720] sm:$0xff] %v2084
        %v2086 = vld [vmem:[%s1626 + $0x728] sm:$0xff]
        %2087 = vst [vmem:[%s1627 + $0x728] sm:$0xff] %v2086
        %v2088 = vld [vmem:[%s1626 + $0x730] sm:$0xff]
        %2089 = vst [vmem:[%s1627 + $0x730] sm:$0xff] %v2088
        %v2090 = vld [vmem:[%s1626 + $0x738] sm:$0xff]
        %2091 = vst [vmem:[%s1627 + $0x738] sm:$0xff] %v2090
        %v2092 = vld [vmem:[%s1626 + $0x740] sm:$0xff]
        %2093 = vst [vmem:[%s1627 + $0x740] sm:$0xff] %v2092
        %v2094 = vld [vmem:[%s1626 + $0x748] sm:$0xff]
        %2095 = vst [vmem:[%s1627 + $0x748] sm:$0xff] %v2094
        %v2096 = vld [vmem:[%s1626 + $0x750] sm:$0xff]
        %2097 = vst [vmem:[%s1627 + $0x750] sm:$0xff] %v2096
        %v2098 = vld [vmem:[%s1626 + $0x758] sm:$0xff]
        %2099 = vst [vmem:[%s1627 + $0x758] sm:$0xff] %v2098
        %v2100 = vld [vmem:[%s1626 + $0x760] sm:$0xff]
        %2101 = vst [vmem:[%s1627 + $0x760] sm:$0xff] %v2100
        %v2102 = vld [vmem:[%s1626 + $0x768] sm:$0xff]
        %2103 = vst [vmem:[%s1627 + $0x768] sm:$0xff] %v2102
        %v2104 = vld [vmem:[%s1626 + $0x770] sm:$0xff]
        %2105 = vst [vmem:[%s1627 + $0x770] sm:$0xff] %v2104
        %v2106 = vld [vmem:[%s1626 + $0x778] sm:$0xff]
        %2107 = vst [vmem:[%s1627 + $0x778] sm:$0xff] %v2106
        %v2108 = vld [vmem:[%s1626 + $0x780] sm:$0xff]
        %2109 = vst [vmem:[%s1627 + $0x780] sm:$0xff] %v2108
        %v2110 = vld [vmem:[%s1626 + $0x788] sm:$0xff]
        %2111 = vst [vmem:[%s1627 + $0x788] sm:$0xff] %v2110
        %v2112 = vld [vmem:[%s1626 + $0x790] sm:$0xff]
        %2113 = vst [vmem:[%s1627 + $0x790] sm:$0xff] %v2112
        %v2114 = vld [vmem:[%s1626 + $0x798] sm:$0xff]
        %2115 = vst [vmem:[%s1627 + $0x798] sm:$0xff] %v2114
        %v2116 = vld [vmem:[%s1626 + $0x7a0] sm:$0xff]
        %2117 = vst [vmem:[%s1627 + $0x7a0] sm:$0xff] %v2116
        %v2118 = vld [vmem:[%s1626 + $0x7a8] sm:$0xff]
        %2119 = vst [vmem:[%s1627 + $0x7a8] sm:$0xff] %v2118
        %v2120 = vld [vmem:[%s1626 + $0x7b0] sm:$0xff]
        %2121 = vst [vmem:[%s1627 + $0x7b0] sm:$0xff] %v2120
        %v2122 = vld [vmem:[%s1626 + $0x7b8] sm:$0xff]
        %2123 = vst [vmem:[%s1627 + $0x7b8] sm:$0xff] %v2122
        %v2124 = vld [vmem:[%s1626 + $0x7c0] sm:$0xff]
        %2125 = vst [vmem:[%s1627 + $0x7c0] sm:$0xff] %v2124
        %v2126 = vld [vmem:[%s1626 + $0x7c8] sm:$0xff]
        %2127 = vst [vmem:[%s1627 + $0x7c8] sm:$0xff] %v2126
        %v2128 = vld [vmem:[%s1626 + $0x7d0] sm:$0xff]
        %2129 = vst [vmem:[%s1627 + $0x7d0] sm:$0xff] %v2128
        %v2130 = vld [vmem:[%s1626 + $0x7d8] sm:$0xff]
        %2131 = vst [vmem:[%s1627 + $0x7d8] sm:$0xff] %v2130
        %v2132 = vld [vmem:[%s1626 + $0x7e0] sm:$0xff]
        %2133 = vst [vmem:[%s1627 + $0x7e0] sm:$0xff] %v2132
        %v2134 = vld [vmem:[%s1626 + $0x7e8] sm:$0xff]
        %2135 = vst [vmem:[%s1627 + $0x7e8] sm:$0xff] %v2134
        %v2136 = vld [vmem:[%s1626 + $0x7f0] sm:$0xff]
        %2137 = vst [vmem:[%s1627 + $0x7f0] sm:$0xff] %v2136
        %v2138 = vld [vmem:[%s1626 + $0x7f8] sm:$0xff]
        %2139 = vst [vmem:[%s1627 + $0x7f8] sm:$0xff] %v2138
      $region91: #{net_forward.1} parent=85 // loop_footer
        %s1625 = sadd.s32 1, %s1621
      $region92: #{net_forward.1} parent=85 // loop_footer_branch
        %1620 = sbr.rel target = $region88
      $region93: #{net_forward.1} parent=85 // loop_exit
        _
    $region86: #{net_forward.1} parent=1 // pred_fallthru
      _
    // Predicated region
    $region94: #{net_forward.1} parent=1 // pred_check
      _
    $region95: #{net_forward.1} parent=1 // pred_check_branch
      %2141 = sbr.rel target = $region97
    $region96: #{net_forward.1} parent=1 // pred_region
      _
    $region97: #{net_forward.1} parent=1 // pred_fallthru
      _
    // Predicated region
    $region98: #{net_forward.1} parent=1 // pred_check
      _
    $region99: #{net_forward.1} parent=1 // pred_check_branch
      %2144 = sbr.rel (0) target = $region101
    $region100: #{net_forward.1} parent=1 // pred_region
      %2145 = vsyncadd %s1617, 32768
    $region101: #{net_forward.1} parent=1 // pred_fallthru
      _
    %v2146 = vld [vmem:[%s0] sm:$0xff]
    %v2147 = vld [vmem:[%s0 + $0x8] sm:$0xff]
    %v2148 = vld [vmem:[%s0 + $0x10] sm:$0xff]
    %v2149 = vld [vmem:[%s0 + $0x18] sm:$0xff]
    %v2150 = vld [vmem:[%s0 + $0x20] sm:$0xff]
    %v2151 = vld [vmem:[%s0 + $0x28] sm:$0xff]
    %v2152 = vld [vmem:[%s0 + $0x30] sm:$0xff]
    %v2153 = vld [vmem:[%s0 + $0x38] sm:$0xff]
    %v2154 = vld [vmem:[%s0 + $0x40] sm:$0xff]
    %v2155 = vld [vmem:[%s0 + $0x48] sm:$0xff]
    %v2156 = vld [vmem:[%s0 + $0x50] sm:$0xff]
    %v2157 = vld [vmem:[%s0 + $0x58] sm:$0xff]
    %v2158 = vld [vmem:[%s0 + $0x60] sm:$0xff]
    %v2159 = vld [vmem:[%s0 + $0x68] sm:$0xff]
    %v2160 = vld [vmem:[%s0 + $0x70] sm:$0xff]
    %v2161 = vld [vmem:[%s0 + $0x78] sm:$0xff]
    %v2162 = vld [vmem:[%s0 + $0x80] sm:$0xff]
    %v2163 = vld [vmem:[%s0 + $0x88] sm:$0xff]
    %v2164 = vld [vmem:[%s0 + $0x90] sm:$0xff]
    %v2165 = vld [vmem:[%s0 + $0x98] sm:$0xff]
    %v2166 = vld [vmem:[%s0 + $0xa0] sm:$0xff]
    %v2167 = vld [vmem:[%s0 + $0xa8] sm:$0xff]
    %v2168 = vld [vmem:[%s0 + $0xb0] sm:$0xff]
    %v2169 = vld [vmem:[%s0 + $0xb8] sm:$0xff]
    %v2170 = vld [vmem:[%s0 + $0xc0] sm:$0xff]
    %v2171 = vld [vmem:[%s0 + $0xc8] sm:$0xff]
    %v2172 = vld [vmem:[%s0 + $0xd0] sm:$0xff]
    %v2173 = vld [vmem:[%s0 + $0xd8] sm:$0xff]
    %v2174 = vld [vmem:[%s0 + $0xe0] sm:$0xff]
    %v2175 = vld [vmem:[%s0 + $0xe8] sm:$0xff]
    %v2176 = vld [vmem:[%s0 + $0xf0] sm:$0xff]
    %v2177 = vld [vmem:[%s0 + $0xf8] sm:$0xff]
    %v2178 = vld [vmem:[%s0 + $0x100] sm:$0xff]
    %v2179 = vld [vmem:[%s0 + $0x108] sm:$0xff]
    %v2180 = vld [vmem:[%s0 + $0x110] sm:$0xff]
    %v2181 = vld [vmem:[%s0 + $0x118] sm:$0xff]
    %v2182 = vld [vmem:[%s0 + $0x120] sm:$0xff]
    %v2183 = vld [vmem:[%s0 + $0x128] sm:$0xff]
    %v2184 = vld [vmem:[%s0 + $0x130] sm:$0xff]
    %v2185 = vld [vmem:[%s0 + $0x138] sm:$0xff]
    %v2186 = vld [vmem:[%s0 + $0x140] sm:$0xff]
    %v2187 = vld [vmem:[%s0 + $0x148] sm:$0xff]
    %v2188 = vld [vmem:[%s0 + $0x150] sm:$0xff]
    %v2189 = vld [vmem:[%s0 + $0x158] sm:$0xff]
    %v2190 = vld [vmem:[%s0 + $0x160] sm:$0xff]
    %v2191 = vld [vmem:[%s0 + $0x168] sm:$0xff]
    %v2192 = vld [vmem:[%s0 + $0x170] sm:$0xff]
    %v2193 = vld [vmem:[%s0 + $0x178] sm:$0xff]
    %v2194 = vld [vmem:[%s0 + $0x180] sm:$0xff]
    %v2195 = vld [vmem:[%s0 + $0x188] sm:$0xff]
    %v2196 = vld [vmem:[%s0 + $0x190] sm:$0xff]
    %v2197 = vld [vmem:[%s0 + $0x198] sm:$0xff]
    %v2198 = vld [vmem:[%s0 + $0x1a0] sm:$0xff]
    %v2199 = vld [vmem:[%s0 + $0x1a8] sm:$0xff]
    %v2200 = vld [vmem:[%s0 + $0x1b0] sm:$0xff]
    %v2201 = vld [vmem:[%s0 + $0x1b8] sm:$0xff]
    %v2202 = vld [vmem:[%s0 + $0x1c0] sm:$0xff]
    %v2203 = vld [vmem:[%s0 + $0x1c8] sm:$0xff]
    %v2204 = vld [vmem:[%s0 + $0x1d0] sm:$0xff]
    %v2205 = vld [vmem:[%s0 + $0x1d8] sm:$0xff]
    %v2206 = vld [vmem:[%s0 + $0x1e0] sm:$0xff]
    %v2207 = vld [vmem:[%s0 + $0x1e8] sm:$0xff]
    %v2208 = vld [vmem:[%s0 + $0x1f0] sm:$0xff]
    %v2209 = vld [vmem:[%s0 + $0x1f8] sm:$0xff]
    %v2210 = vld [vmem:[%s1] sm:$0xff]
    %v2211 = vld [vmem:[%s1 + $0x8] sm:$0xff]
    %v2212 = vld [vmem:[%s1 + $0x10] sm:$0xff]
    %v2213 = vld [vmem:[%s1 + $0x18] sm:$0xff]
    %v2214 = vld [vmem:[%s1 + $0x20] sm:$0xff]
    %v2215 = vld [vmem:[%s1 + $0x28] sm:$0xff]
    %v2216 = vld [vmem:[%s1 + $0x30] sm:$0xff]
    %v2217 = vld [vmem:[%s1 + $0x38] sm:$0xff]
    %v2218 = vld [vmem:[%s1 + $0x40] sm:$0xff]
    %v2219 = vld [vmem:[%s1 + $0x48] sm:$0xff]
    %v2220 = vld [vmem:[%s1 + $0x50] sm:$0xff]
    %v2221 = vld [vmem:[%s1 + $0x58] sm:$0xff]
    %v2222 = vld [vmem:[%s1 + $0x60] sm:$0xff]
    %v2223 = vld [vmem:[%s1 + $0x68] sm:$0xff]
    %v2224 = vld [vmem:[%s1 + $0x70] sm:$0xff]
    %v2225 = vld [vmem:[%s1 + $0x78] sm:$0xff]
    %v2226 = vld [vmem:[%s2] sm:$0x1]
    %v2228 = vperm.slane %v2226, 0
    %2230 = vmatpush.msra.mxu0 %v2225
    %2231 = vmatpush.msra.mxu0 %v2224
    %2232 = vmatpush.msra.mxu0 %v2223
    %2233 = vmatpush.msra.mxu0 %v2222
    %2234 = vmatpush.msra.mxu0 %v2221
    %2235 = vmatpush.msra.mxu0 %v2220
    %2236 = vmatpush.msra.mxu0 %v2219
    %2237 = vmatpush.msra.mxu0 %v2218
    %2238 = vmatpush.msra.mxu0 %v2217
    %2239 = vmatpush.msra.mxu0 %v2216
    %2240 = vmatpush.msra.mxu0 %v2215
    %2241 = vmatpush.msra.mxu0 %v2214
    %2242 = vmatpush.msra.mxu0 %v2213
    %2243 = vmatpush.msra.mxu0 %v2212
    %2244 = vmatpush.msra.mxu0 %v2211
    %2245 = vmatpush.msra.mxu0 %v2210
    %2246 = vmatmul.f32.gmra.mxu0 %v2146
    %v2247 = vpop.f32.mrf.mxu0
    %v2248 = vadd.f32 %v2228, %v2247
    %2249 = vmatmul.f32.gmra.mxu0 %v2147
    %v2250 = vpop.f32.mrf.mxu0
    %v2251 = vadd.f32 %v2228, %v2250
    %2252 = vmatmul.f32.gmra.mxu0 %v2148
    %v2253 = vpop.f32.mrf.mxu0
    %v2254 = vadd.f32 %v2228, %v2253
    %2255 = vmatmul.f32.gmra.mxu0 %v2149
    %v2256 = vpop.f32.mrf.mxu0
    %v2257 = vadd.f32 %v2228, %v2256
    %2258 = vmatmul.f32.gmra.mxu0 %v2150
    %v2259 = vpop.f32.mrf.mxu0
    %v2260 = vadd.f32 %v2228, %v2259
    %2261 = vmatmul.f32.gmra.mxu0 %v2151
    %v2262 = vpop.f32.mrf.mxu0
    %v2263 = vadd.f32 %v2228, %v2262
    %2264 = vmatmul.f32.gmra.mxu0 %v2152
    %v2265 = vpop.f32.mrf.mxu0
    %v2266 = vadd.f32 %v2228, %v2265
    %2267 = vmatmul.f32.gmra.mxu0 %v2153
    %v2268 = vpop.f32.mrf.mxu0
    %v2269 = vadd.f32 %v2228, %v2268
    %2270 = vmatmul.f32.gmra.mxu0 %v2154
    %v2271 = vpop.f32.mrf.mxu0
    %v2272 = vadd.f32 %v2228, %v2271
    %2273 = vmatmul.f32.gmra.mxu0 %v2155
    %v2274 = vpop.f32.mrf.mxu0
    %v2275 = vadd.f32 %v2228, %v2274
    %2276 = vmatmul.f32.gmra.mxu0 %v2156
    %v2277 = vpop.f32.mrf.mxu0
    %v2278 = vadd.f32 %v2228, %v2277
    %2279 = vmatmul.f32.gmra.mxu0 %v2157
    %v2280 = vpop.f32.mrf.mxu0
    %v2281 = vadd.f32 %v2228, %v2280
    %2282 = vmatmul.f32.gmra.mxu0 %v2158
    %v2283 = vpop.f32.mrf.mxu0
    %v2284 = vadd.f32 %v2228, %v2283
    %2285 = vmatmul.f32.gmra.mxu0 %v2159
    %v2286 = vpop.f32.mrf.mxu0
    %v2287 = vadd.f32 %v2228, %v2286
    %2288 = vmatmul.f32.gmra.mxu0 %v2160
    %v2289 = vpop.f32.mrf.mxu0
    %v2290 = vadd.f32 %v2228, %v2289
    %2291 = vmatmul.f32.gmra.mxu0 %v2161
    %v2292 = vpop.f32.mrf.mxu0
    %v2293 = vadd.f32 %v2228, %v2292
    %2294 = vmatmul.f32.gmra.mxu0 %v2162
    %v2295 = vpop.f32.mrf.mxu0
    %v2296 = vadd.f32 %v2228, %v2295
    %2297 = vmatmul.f32.gmra.mxu0 %v2163
    %v2298 = vpop.f32.mrf.mxu0
    %v2299 = vadd.f32 %v2228, %v2298
    %2300 = vmatmul.f32.gmra.mxu0 %v2164
    %v2301 = vpop.f32.mrf.mxu0
    %v2302 = vadd.f32 %v2228, %v2301
    %2303 = vmatmul.f32.gmra.mxu0 %v2165
    %v2304 = vpop.f32.mrf.mxu0
    %v2305 = vadd.f32 %v2228, %v2304
    %2306 = vmatmul.f32.gmra.mxu0 %v2166
    %v2307 = vpop.f32.mrf.mxu0
    %v2308 = vadd.f32 %v2228, %v2307
    %2309 = vmatmul.f32.gmra.mxu0 %v2167
    %v2310 = vpop.f32.mrf.mxu0
    %v2311 = vadd.f32 %v2228, %v2310
    %2312 = vmatmul.f32.gmra.mxu0 %v2168
    %v2313 = vpop.f32.mrf.mxu0
    %v2314 = vadd.f32 %v2228, %v2313
    %2315 = vmatmul.f32.gmra.mxu0 %v2169
    %v2316 = vpop.f32.mrf.mxu0
    %v2317 = vadd.f32 %v2228, %v2316
    %2318 = vmatmul.f32.gmra.mxu0 %v2170
    %v2319 = vpop.f32.mrf.mxu0
    %v2320 = vadd.f32 %v2228, %v2319
    %2321 = vmatmul.f32.gmra.mxu0 %v2171
    %v2322 = vpop.f32.mrf.mxu0
    %v2323 = vadd.f32 %v2228, %v2322
    %2324 = vmatmul.f32.gmra.mxu0 %v2172
    %v2325 = vpop.f32.mrf.mxu0
    %v2326 = vadd.f32 %v2228, %v2325
    %2327 = vmatmul.f32.gmra.mxu0 %v2173
    %v2328 = vpop.f32.mrf.mxu0
    %v2329 = vadd.f32 %v2228, %v2328
    %2330 = vmatmul.f32.gmra.mxu0 %v2174
    %v2331 = vpop.f32.mrf.mxu0
    %v2332 = vadd.f32 %v2228, %v2331
    %2333 = vmatmul.f32.gmra.mxu0 %v2175
    %v2334 = vpop.f32.mrf.mxu0
    %v2335 = vadd.f32 %v2228, %v2334
    %2336 = vmatmul.f32.gmra.mxu0 %v2176
    %v2337 = vpop.f32.mrf.mxu0
    %v2338 = vadd.f32 %v2228, %v2337
    %2339 = vmatmul.f32.gmra.mxu0 %v2177
    %v2340 = vpop.f32.mrf.mxu0
    %v2341 = vadd.f32 %v2228, %v2340
    %2342 = vmatmul.f32.gmra.mxu0 %v2178
    %v2343 = vpop.f32.mrf.mxu0
    %v2344 = vadd.f32 %v2228, %v2343
    %2345 = vmatmul.f32.gmra.mxu0 %v2179
    %v2346 = vpop.f32.mrf.mxu0
    %v2347 = vadd.f32 %v2228, %v2346
    %2348 = vmatmul.f32.gmra.mxu0 %v2180
    %v2349 = vpop.f32.mrf.mxu0
    %v2350 = vadd.f32 %v2228, %v2349
    %2351 = vmatmul.f32.gmra.mxu0 %v2181
    %v2352 = vpop.f32.mrf.mxu0
    %v2353 = vadd.f32 %v2228, %v2352
    %2354 = vmatmul.f32.gmra.mxu0 %v2182
    %v2355 = vpop.f32.mrf.mxu0
    %v2356 = vadd.f32 %v2228, %v2355
    %2357 = vmatmul.f32.gmra.mxu0 %v2183
    %v2358 = vpop.f32.mrf.mxu0
    %v2359 = vadd.f32 %v2228, %v2358
    %2360 = vmatmul.f32.gmra.mxu0 %v2184
    %v2361 = vpop.f32.mrf.mxu0
    %v2362 = vadd.f32 %v2228, %v2361
    %2363 = vmatmul.f32.gmra.mxu0 %v2185
    %v2364 = vpop.f32.mrf.mxu0
    %v2365 = vadd.f32 %v2228, %v2364
    %2366 = vmatmul.f32.gmra.mxu0 %v2186
    %v2367 = vpop.f32.mrf.mxu0
    %v2368 = vadd.f32 %v2228, %v2367
    %2369 = vmatmul.f32.gmra.mxu0 %v2187
    %v2370 = vpop.f32.mrf.mxu0
    %v2371 = vadd.f32 %v2228, %v2370
    %2372 = vmatmul.f32.gmra.mxu0 %v2188
    %v2373 = vpop.f32.mrf.mxu0
    %v2374 = vadd.f32 %v2228, %v2373
    %2375 = vmatmul.f32.gmra.mxu0 %v2189
    %v2376 = vpop.f32.mrf.mxu0
    %v2377 = vadd.f32 %v2228, %v2376
    %2378 = vmatmul.f32.gmra.mxu0 %v2190
    %v2379 = vpop.f32.mrf.mxu0
    %v2380 = vadd.f32 %v2228, %v2379
    %2381 = vmatmul.f32.gmra.mxu0 %v2191
    %v2382 = vpop.f32.mrf.mxu0
    %v2383 = vadd.f32 %v2228, %v2382
    %2384 = vmatmul.f32.gmra.mxu0 %v2192
    %v2385 = vpop.f32.mrf.mxu0
    %v2386 = vadd.f32 %v2228, %v2385
    %2387 = vmatmul.f32.gmra.mxu0 %v2193
    %v2388 = vpop.f32.mrf.mxu0
    %v2389 = vadd.f32 %v2228, %v2388
    %2390 = vmatmul.f32.gmra.mxu0 %v2194
    %v2391 = vpop.f32.mrf.mxu0
    %v2392 = vadd.f32 %v2228, %v2391
    %2393 = vmatmul.f32.gmra.mxu0 %v2195
    %v2394 = vpop.f32.mrf.mxu0
    %v2395 = vadd.f32 %v2228, %v2394
    %2396 = vmatmul.f32.gmra.mxu0 %v2196
    %v2397 = vpop.f32.mrf.mxu0
    %v2398 = vadd.f32 %v2228, %v2397
    %2399 = vmatmul.f32.gmra.mxu0 %v2197
    %v2400 = vpop.f32.mrf.mxu0
    %v2401 = vadd.f32 %v2228, %v2400
    %2402 = vmatmul.f32.gmra.mxu0 %v2198
    %v2403 = vpop.f32.mrf.mxu0
    %v2404 = vadd.f32 %v2228, %v2403
    %2405 = vmatmul.f32.gmra.mxu0 %v2199
    %v2406 = vpop.f32.mrf.mxu0
    %v2407 = vadd.f32 %v2228, %v2406
    %2408 = vmatmul.f32.gmra.mxu0 %v2200
    %v2409 = vpop.f32.mrf.mxu0
    %v2410 = vadd.f32 %v2228, %v2409
    %2411 = vmatmul.f32.gmra.mxu0 %v2201
    %v2412 = vpop.f32.mrf.mxu0
    %v2413 = vadd.f32 %v2228, %v2412
    %2414 = vmatmul.f32.gmra.mxu0 %v2202
    %v2415 = vpop.f32.mrf.mxu0
    %v2416 = vadd.f32 %v2228, %v2415
    %2417 = vmatmul.f32.gmra.mxu0 %v2203
    %v2418 = vpop.f32.mrf.mxu0
    %v2419 = vadd.f32 %v2228, %v2418
    %2420 = vmatmul.f32.gmra.mxu0 %v2204
    %v2421 = vpop.f32.mrf.mxu0
    %v2422 = vadd.f32 %v2228, %v2421
    %2423 = vmatmul.f32.gmra.mxu0 %v2205
    %v2424 = vpop.f32.mrf.mxu0
    %v2425 = vadd.f32 %v2228, %v2424
    %2426 = vmatmul.f32.gmra.mxu0 %v2206
    %v2427 = vpop.f32.mrf.mxu0
    %v2428 = vadd.f32 %v2228, %v2427
    %2429 = vmatmul.f32.gmra.mxu0 %v2207
    %v2430 = vpop.f32.mrf.mxu0
    %v2431 = vadd.f32 %v2228, %v2430
    %2432 = vmatmul.f32.gmra.mxu0 %v2208
    %v2433 = vpop.f32.mrf.mxu0
    %v2434 = vadd.f32 %v2228, %v2433
    %2435 = vmatmul.f32.gmra.mxu0 %v2209
    %v2436 = vpop.f32.mrf.mxu0
    %v2437 = vadd.f32 %v2228, %v2436
    %2438 = vdwg.mxu0
    %v2439 = vmax.f32 %v2248, 0.0
    %v2440 = vmax.f32 %v2251, 0.0
    %v2441 = vmax.f32 %v2254, 0.0
    %v2442 = vmax.f32 %v2257, 0.0
    %v2443 = vmax.f32 %v2260, 0.0
    %v2444 = vmax.f32 %v2263, 0.0
    %v2445 = vmax.f32 %v2266, 0.0
    %v2446 = vmax.f32 %v2269, 0.0
    %v2447 = vmax.f32 %v2272, 0.0
    %v2448 = vmax.f32 %v2275, 0.0
    %v2449 = vmax.f32 %v2278, 0.0
    %v2450 = vmax.f32 %v2281, 0.0
    %v2451 = vmax.f32 %v2284, 0.0
    %v2452 = vmax.f32 %v2287, 0.0
    %v2453 = vmax.f32 %v2290, 0.0
    %v2454 = vmax.f32 %v2293, 0.0
    %v2455 = vmax.f32 %v2296, 0.0
    %v2456 = vmax.f32 %v2299, 0.0
    %v2457 = vmax.f32 %v2302, 0.0
    %v2458 = vmax.f32 %v2305, 0.0
    %v2459 = vmax.f32 %v2308, 0.0
    %v2460 = vmax.f32 %v2311, 0.0
    %v2461 = vmax.f32 %v2314, 0.0
    %v2462 = vmax.f32 %v2317, 0.0
    %v2463 = vmax.f32 %v2320, 0.0
    %v2464 = vmax.f32 %v2323, 0.0
    %v2465 = vmax.f32 %v2326, 0.0
    %v2466 = vmax.f32 %v2329, 0.0
    %v2467 = vmax.f32 %v2332, 0.0
    %v2468 = vmax.f32 %v2335, 0.0
    %v2469 = vmax.f32 %v2338, 0.0
    %v2470 = vmax.f32 %v2341, 0.0
    %v2471 = vmax.f32 %v2344, 0.0
    %v2472 = vmax.f32 %v2347, 0.0
    %v2473 = vmax.f32 %v2350, 0.0
    %v2474 = vmax.f32 %v2353, 0.0
    %v2475 = vmax.f32 %v2356, 0.0
    %v2476 = vmax.f32 %v2359, 0.0
    %v2477 = vmax.f32 %v2362, 0.0
    %v2478 = vmax.f32 %v2365, 0.0
    %v2479 = vmax.f32 %v2368, 0.0
    %v2480 = vmax.f32 %v2371, 0.0
    %v2481 = vmax.f32 %v2374, 0.0
    %v2482 = vmax.f32 %v2377, 0.0
    %v2483 = vmax.f32 %v2380, 0.0
    %v2484 = vmax.f32 %v2383, 0.0
    %v2485 = vmax.f32 %v2386, 0.0
    %v2486 = vmax.f32 %v2389, 0.0
    %v2487 = vmax.f32 %v2392, 0.0
    %v2488 = vmax.f32 %v2395, 0.0
    %v2489 = vmax.f32 %v2398, 0.0
    %v2490 = vmax.f32 %v2401, 0.0
    %v2491 = vmax.f32 %v2404, 0.0
    %v2492 = vmax.f32 %v2407, 0.0
    %v2493 = vmax.f32 %v2410, 0.0
    %v2494 = vmax.f32 %v2413, 0.0
    %v2495 = vmax.f32 %v2416, 0.0
    %v2496 = vmax.f32 %v2419, 0.0
    %v2497 = vmax.f32 %v2422, 0.0
    %v2498 = vmax.f32 %v2425, 0.0
    %v2499 = vmax.f32 %v2428, 0.0
    %v2500 = vmax.f32 %v2431, 0.0
    %v2501 = vmax.f32 %v2434, 0.0
    %v2502 = vmax.f32 %v2437, 0.0
    %v2503 = vmax.f32 %v2439, %v2455
    %v2504 = vmax.f32 %v2440, %v2456
    %v2505 = vmax.f32 %v2441, %v2457
    %v2506 = vmax.f32 %v2442, %v2458
    %v2507 = vmax.f32 %v2443, %v2459
    %v2508 = vmax.f32 %v2444, %v2460
    %v2509 = vmax.f32 %v2445, %v2461
    %v2510 = vmax.f32 %v2446, %v2462
    %v2511 = vmax.f32 %v2447, %v2463
    %v2512 = vmax.f32 %v2448, %v2464
    %v2513 = vmax.f32 %v2449, %v2465
    %v2514 = vmax.f32 %v2450, %v2466
    %v2515 = vmax.f32 %v2451, %v2467
    %v2516 = vmax.f32 %v2452, %v2468
    %v2517 = vmax.f32 %v2453, %v2469
    %v2518 = vmax.f32 %v2454, %v2470
    %v2519 = vmax.f32 %v2471, %v2487
    %v2520 = vmax.f32 %v2472, %v2488
    %v2521 = vmax.f32 %v2473, %v2489
    %v2522 = vmax.f32 %v2474, %v2490
    %v2523 = vmax.f32 %v2475, %v2491
    %v2524 = vmax.f32 %v2476, %v2492
    %v2525 = vmax.f32 %v2477, %v2493
    %v2526 = vmax.f32 %v2478, %v2494
    %v2527 = vmax.f32 %v2479, %v2495
    %v2528 = vmax.f32 %v2480, %v2496
    %v2529 = vmax.f32 %v2481, %v2497
    %v2530 = vmax.f32 %v2482, %v2498
    %v2531 = vmax.f32 %v2483, %v2499
    %v2532 = vmax.f32 %v2484, %v2500
    %v2533 = vmax.f32 %v2485, %v2501
    %v2534 = vmax.f32 %v2486, %v2502
    %v2535 = vmax.f32 %v2503, %v2519
    %v2536 = vmax.f32 %v2504, %v2520
    %v2537 = vmax.f32 %v2505, %v2521
    %v2538 = vmax.f32 %v2506, %v2522
    %v2539 = vmax.f32 %v2507, %v2523
    %v2540 = vmax.f32 %v2508, %v2524
    %v2541 = vmax.f32 %v2509, %v2525
    %v2542 = vmax.f32 %v2510, %v2526
    %v2543 = vmax.f32 %v2511, %v2527
    %v2544 = vmax.f32 %v2512, %v2528
    %v2545 = vmax.f32 %v2513, %v2529
    %v2546 = vmax.f32 %v2514, %v2530
    %v2547 = vmax.f32 %v2515, %v2531
    %v2548 = vmax.f32 %v2516, %v2532
    %v2549 = vmax.f32 %v2517, %v2533
    %v2550 = vmax.f32 %v2518, %v2534
    %2551 = vst [vmem:[#allocation3] sm:$0xff] %v2535
    %2552 = vst [vmem:[#allocation3 + $0x8] sm:$0xff] %v2536
    %2553 = vst [vmem:[#allocation3 + $0x10] sm:$0xff] %v2537
    %2554 = vst [vmem:[#allocation3 + $0x18] sm:$0xff] %v2538
    %2555 = vst [vmem:[#allocation3 + $0x20] sm:$0xff] %v2539
    %2556 = vst [vmem:[#allocation3 + $0x28] sm:$0xff] %v2540
    %2557 = vst [vmem:[#allocation3 + $0x30] sm:$0xff] %v2541
    %2558 = vst [vmem:[#allocation3 + $0x38] sm:$0xff] %v2542
    %2559 = vst [vmem:[#allocation3 + $0x40] sm:$0xff] %v2543
    %2560 = vst [vmem:[#allocation3 + $0x48] sm:$0xff] %v2544
    %2561 = vst [vmem:[#allocation3 + $0x50] sm:$0xff] %v2545
    %2562 = vst [vmem:[#allocation3 + $0x58] sm:$0xff] %v2546
    %2563 = vst [vmem:[#allocation3 + $0x60] sm:$0xff] %v2547
    %2564 = vst [vmem:[#allocation3 + $0x68] sm:$0xff] %v2548
    %2565 = vst [vmem:[#allocation3 + $0x70] sm:$0xff] %v2549
    %2566 = vst [vmem:[#allocation3 + $0x78] sm:$0xff] %v2550
    %s2567 = smul.u32 2048, 1
    %s2568 = sshll.u32 %s2567, 4
    %2569 = dma.done [#allocation4], %s2568
    %v2570 = vld [vmem:[#allocation3] sm:$0x3]
    %v2571 = vld [vmem:[#allocation2] sm:$0xff]
    %v2572 = vld [vmem:[#allocation2 + $0x8] sm:$0xff]
    %v2573 = vld [vmem:[#allocation2 + $0x10] sm:$0xff]
    %v2574 = vld [vmem:[#allocation2 + $0x18] sm:$0xff]
    %v2575 = vld [vmem:[#allocation2 + $0x20] sm:$0xff]
    %v2576 = vld [vmem:[#allocation2 + $0x28] sm:$0xff]
    %v2577 = vld [vmem:[#allocation2 + $0x30] sm:$0xff]
    %v2578 = vld [vmem:[#allocation2 + $0x38] sm:$0xff]
    %v2579 = vld [vmem:[#allocation2 + $0x40] sm:$0xff]
    %v2580 = vld [vmem:[#allocation2 + $0x48] sm:$0xff]
    %v2581 = vld [vmem:[#allocation2 + $0x50] sm:$0xff]
    %v2582 = vld [vmem:[#allocation2 + $0x58] sm:$0xff]
    %v2583 = vld [vmem:[#allocation2 + $0x60] sm:$0xff]
    %v2584 = vld [vmem:[#allocation2 + $0x68] sm:$0xff]
    %v2585 = vld [vmem:[#allocation2 + $0x70] sm:$0xff]
    %v2586 = vld [vmem:[#allocation2 + $0x78] sm:$0xff]
    %v2587 = vld [vmem:[#allocation3 + $0x2] sm:$0x3]
    %v2588 = vld [vmem:[#allocation2 + $0x80] sm:$0xff]
    %v2589 = vld [vmem:[#allocation2 + $0x88] sm:$0xff]
    %v2590 = vld [vmem:[#allocation2 + $0x90] sm:$0xff]
    %v2591 = vld [vmem:[#allocation2 + $0x98] sm:$0xff]
    %v2592 = vld [vmem:[#allocation2 + $0xa0] sm:$0xff]
    %v2593 = vld [vmem:[#allocation2 + $0xa8] sm:$0xff]
    %v2594 = vld [vmem:[#allocation2 + $0xb0] sm:$0xff]
    %v2595 = vld [vmem:[#allocation2 + $0xb8] sm:$0xff]
    %v2596 = vld [vmem:[#allocation2 + $0xc0] sm:$0xff]
    %v2597 = vld [vmem:[#allocation2 + $0xc8] sm:$0xff]
    %v2598 = vld [vmem:[#allocation2 + $0xd0] sm:$0xff]
    %v2599 = vld [vmem:[#allocation2 + $0xd8] sm:$0xff]
    %v2600 = vld [vmem:[#allocation2 + $0xe0] sm:$0xff]
    %v2601 = vld [vmem:[#allocation2 + $0xe8] sm:$0xff]
    %v2602 = vld [vmem:[#allocation2 + $0xf0] sm:$0xff]
    %v2603 = vld [vmem:[#allocation2 + $0xf8] sm:$0xff]
    %2604 = vmatpush.msra.mxu0 %v2603
    %2605 = vmatpush.msra.mxu0 %v2602
    %2606 = vmatpush.msra.mxu0 %v2601
    %2607 = vmatpush.msra.mxu0 %v2600
    %2608 = vmatpush.msra.mxu0 %v2599
    %2609 = vmatpush.msra.mxu0 %v2598
    %2610 = vmatpush.msra.mxu0 %v2597
    %2611 = vmatpush.msra.mxu0 %v2596
    %2612 = vmatpush.msra.mxu0 %v2595
    %2613 = vmatpush.msra.mxu0 %v2594
    %2614 = vmatpush.msra.mxu0 %v2593
    %2615 = vmatpush.msra.mxu0 %v2592
    %2616 = vmatpush.msra.mxu0 %v2591
    %2617 = vmatpush.msra.mxu0 %v2590
    %2618 = vmatpush.msra.mxu0 %v2589
    %2619 = vmatpush.msra.mxu0 %v2588
    %2620 = vmatmul.f32.gmra.mxu0 %v2587
    %v2621 = vpop.f32.mrf.mxu0
    %v2622 = vadd.f32 0.0, %v2621
    %2623 = vdwg.mxu0
    %2624 = vmatpush.msra.mxu0 %v2586
    %2625 = vmatpush.msra.mxu0 %v2585
    %2626 = vmatpush.msra.mxu0 %v2584
    %2627 = vmatpush.msra.mxu0 %v2583
    %2628 = vmatpush.msra.mxu0 %v2582
    %2629 = vmatpush.msra.mxu0 %v2581
    %2630 = vmatpush.msra.mxu0 %v2580
    %2631 = vmatpush.msra.mxu0 %v2579
    %2632 = vmatpush.msra.mxu0 %v2578
    %2633 = vmatpush.msra.mxu0 %v2577
    %2634 = vmatpush.msra.mxu0 %v2576
    %2635 = vmatpush.msra.mxu0 %v2575
    %2636 = vmatpush.msra.mxu0 %v2574
    %2637 = vmatpush.msra.mxu0 %v2573
    %2638 = vmatpush.msra.mxu0 %v2572
    %2639 = vmatpush.msra.mxu0 %v2571
    %2640 = vmatmul.f32.gmra.mxu0 %v2570
    %v2641 = vpop.f32.mrf.mxu0
    %v2642 = vadd.f32 %v2622, %v2641
    %2643 = vdwg.mxu0
    %v2644 = vld [vmem:[#allocation3 + $0x4] sm:$0x3]
    %v2645 = vld [vmem:[#allocation2 + $0x100] sm:$0xff]
    %v2646 = vld [vmem:[#allocation2 + $0x108] sm:$0xff]
    %v2647 = vld [vmem:[#allocation2 + $0x110] sm:$0xff]
    %v2648 = vld [vmem:[#allocation2 + $0x118] sm:$0xff]
    %v2649 = vld [vmem:[#allocation2 + $0x120] sm:$0xff]
    %v2650 = vld [vmem:[#allocation2 + $0x128] sm:$0xff]
    %v2651 = vld [vmem:[#allocation2 + $0x130] sm:$0xff]
    %v2652 = vld [vmem:[#allocation2 + $0x138] sm:$0xff]
    %v2653 = vld [vmem:[#allocation2 + $0x140] sm:$0xff]
    %v2654 = vld [vmem:[#allocation2 + $0x148] sm:$0xff]
    %v2655 = vld [vmem:[#allocation2 + $0x150] sm:$0xff]
    %v2656 = vld [vmem:[#allocation2 + $0x158] sm:$0xff]
    %v2657 = vld [vmem:[#allocation2 + $0x160] sm:$0xff]
    %v2658 = vld [vmem:[#allocation2 + $0x168] sm:$0xff]
    %v2659 = vld [vmem:[#allocation2 + $0x170] sm:$0xff]
    %v2660 = vld [vmem:[#allocation2 + $0x178] sm:$0xff]
    %2661 = vmatpush.msra.mxu0 %v2660
    %2662 = vmatpush.msra.mxu0 %v2659
    %2663 = vmatpush.msra.mxu0 %v2658
    %2664 = vmatpush.msra.mxu0 %v2657
    %2665 = vmatpush.msra.mxu0 %v2656
    %2666 = vmatpush.msra.mxu0 %v2655
    %2667 = vmatpush.msra.mxu0 %v2654
    %2668 = vmatpush.msra.mxu0 %v2653
    %2669 = vmatpush.msra.mxu0 %v2652
    %2670 = vmatpush.msra.mxu0 %v2651
    %2671 = vmatpush.msra.mxu0 %v2650
    %2672 = vmatpush.msra.mxu0 %v2649
    %2673 = vmatpush.msra.mxu0 %v2648
    %2674 = vmatpush.msra.mxu0 %v2647
    %2675 = vmatpush.msra.mxu0 %v2646
    %2676 = vmatpush.msra.mxu0 %v2645
    %2677 = vmatmul.f32.gmra.mxu0 %v2644
    %v2678 = vpop.f32.mrf.mxu0
    %v2679 = vadd.f32 0.0, %v2678
    %2680 = vdwg.mxu0
    %v2681 = vadd.f32 %v2642, %v2679
    %v2682 = vld [vmem:[#allocation3 + $0x6] sm:$0x3]
    %v2683 = vld [vmem:[#allocation2 + $0x180] sm:$0xff]
    %v2684 = vld [vmem:[#allocation2 + $0x188] sm:$0xff]
    %v2685 = vld [vmem:[#allocation2 + $0x190] sm:$0xff]
    %v2686 = vld [vmem:[#allocation2 + $0x198] sm:$0xff]
    %v2687 = vld [vmem:[#allocation2 + $0x1a0] sm:$0xff]
    %v2688 = vld [vmem:[#allocation2 + $0x1a8] sm:$0xff]
    %v2689 = vld [vmem:[#allocation2 + $0x1b0] sm:$0xff]
    %v2690 = vld [vmem:[#allocation2 + $0x1b8] sm:$0xff]
    %v2691 = vld [vmem:[#allocation2 + $0x1c0] sm:$0xff]
    %v2692 = vld [vmem:[#allocation2 + $0x1c8] sm:$0xff]
    %v2693 = vld [vmem:[#allocation2 + $0x1d0] sm:$0xff]
    %v2694 = vld [vmem:[#allocation2 + $0x1d8] sm:$0xff]
    %v2695 = vld [vmem:[#allocation2 + $0x1e0] sm:$0xff]
    %v2696 = vld [vmem:[#allocation2 + $0x1e8] sm:$0xff]
    %v2697 = vld [vmem:[#allocation2 + $0x1f0] sm:$0xff]
    %v2698 = vld [vmem:[#allocation2 + $0x1f8] sm:$0xff]
    %2699 = vmatpush.msra.mxu0 %v2698
    %2700 = vmatpush.msra.mxu0 %v2697
    %2701 = vmatpush.msra.mxu0 %v2696
    %2702 = vmatpush.msra.mxu0 %v2695
    %2703 = vmatpush.msra.mxu0 %v2694
    %2704 = vmatpush.msra.mxu0 %v2693
    %2705 = vmatpush.msra.mxu0 %v2692
    %2706 = vmatpush.msra.mxu0 %v2691
    %2707 = vmatpush.msra.mxu0 %v2690
    %2708 = vmatpush.msra.mxu0 %v2689
    %2709 = vmatpush.msra.mxu0 %v2688
    %2710 = vmatpush.msra.mxu0 %v2687
    %2711 = vmatpush.msra.mxu0 %v2686
    %2712 = vmatpush.msra.mxu0 %v2685
    %2713 = vmatpush.msra.mxu0 %v2684
    %2714 = vmatpush.msra.mxu0 %v2683
    %2715 = vmatmul.f32.gmra.mxu0 %v2682
    %v2716 = vpop.f32.mrf.mxu0
    %v2717 = vadd.f32 0.0, %v2716
    %2718 = vdwg.mxu0
    %v2719 = vadd.f32 %v2681, %v2717
    %v2720 = vld [vmem:[#allocation3 + $0x8] sm:$0x3]
    %v2721 = vld [vmem:[#allocation2 + $0x200] sm:$0xff]
    %v2722 = vld [vmem:[#allocation2 + $0x208] sm:$0xff]
    %v2723 = vld [vmem:[#allocation2 + $0x210] sm:$0xff]
    %v2724 = vld [vmem:[#allocation2 + $0x218] sm:$0xff]
    %v2725 = vld [vmem:[#allocation2 + $0x220] sm:$0xff]
    %v2726 = vld [vmem:[#allocation2 + $0x228] sm:$0xff]
    %v2727 = vld [vmem:[#allocation2 + $0x230] sm:$0xff]
    %v2728 = vld [vmem:[#allocation2 + $0x238] sm:$0xff]
    %v2729 = vld [vmem:[#allocation2 + $0x240] sm:$0xff]
    %v2730 = vld [vmem:[#allocation2 + $0x248] sm:$0xff]
    %v2731 = vld [vmem:[#allocation2 + $0x250] sm:$0xff]
    %v2732 = vld [vmem:[#allocation2 + $0x258] sm:$0xff]
    %v2733 = vld [vmem:[#allocation2 + $0x260] sm:$0xff]
    %v2734 = vld [vmem:[#allocation2 + $0x268] sm:$0xff]
    %v2735 = vld [vmem:[#allocation2 + $0x270] sm:$0xff]
    %v2736 = vld [vmem:[#allocation2 + $0x278] sm:$0xff]
    %2737 = vmatpush.msra.mxu0 %v2736
    %2738 = vmatpush.msra.mxu0 %v2735
    %2739 = vmatpush.msra.mxu0 %v2734
    %2740 = vmatpush.msra.mxu0 %v2733
    %2741 = vmatpush.msra.mxu0 %v2732
    %2742 = vmatpush.msra.mxu0 %v2731
    %2743 = vmatpush.msra.mxu0 %v2730
    %2744 = vmatpush.msra.mxu0 %v2729
    %2745 = vmatpush.msra.mxu0 %v2728
    %2746 = vmatpush.msra.mxu0 %v2727
    %2747 = vmatpush.msra.mxu0 %v2726
    %2748 = vmatpush.msra.mxu0 %v2725
    %2749 = vmatpush.msra.mxu0 %v2724
    %2750 = vmatpush.msra.mxu0 %v2723
    %2751 = vmatpush.msra.mxu0 %v2722
    %2752 = vmatpush.msra.mxu0 %v2721
    %2753 = vmatmul.f32.gmra.mxu0 %v2720
    %v2754 = vpop.f32.mrf.mxu0
    %v2755 = vadd.f32 0.0, %v2754
    %2756 = vdwg.mxu0
    %v2757 = vadd.f32 %v2719, %v2755
    %v2758 = vld [vmem:[#allocation3 + $0xa] sm:$0x3]
    %v2759 = vld [vmem:[#allocation2 + $0x280] sm:$0xff]
    %v2760 = vld [vmem:[#allocation2 + $0x288] sm:$0xff]
    %v2761 = vld [vmem:[#allocation2 + $0x290] sm:$0xff]
    %v2762 = vld [vmem:[#allocation2 + $0x298] sm:$0xff]
    %v2763 = vld [vmem:[#allocation2 + $0x2a0] sm:$0xff]
    %v2764 = vld [vmem:[#allocation2 + $0x2a8] sm:$0xff]
    %v2765 = vld [vmem:[#allocation2 + $0x2b0] sm:$0xff]
    %v2766 = vld [vmem:[#allocation2 + $0x2b8] sm:$0xff]
    %v2767 = vld [vmem:[#allocation2 + $0x2c0] sm:$0xff]
    %v2768 = vld [vmem:[#allocation2 + $0x2c8] sm:$0xff]
    %v2769 = vld [vmem:[#allocation2 + $0x2d0] sm:$0xff]
    %v2770 = vld [vmem:[#allocation2 + $0x2d8] sm:$0xff]
    %v2771 = vld [vmem:[#allocation2 + $0x2e0] sm:$0xff]
    %v2772 = vld [vmem:[#allocation2 + $0x2e8] sm:$0xff]
    %v2773 = vld [vmem:[#allocation2 + $0x2f0] sm:$0xff]
    %v2774 = vld [vmem:[#allocation2 + $0x2f8] sm:$0xff]
    %2775 = vmatpush.msra.mxu0 %v2774
    %2776 = vmatpush.msra.mxu0 %v2773
    %2777 = vmatpush.msra.mxu0 %v2772
    %2778 = vmatpush.msra.mxu0 %v2771
    %2779 = vmatpush.msra.mxu0 %v2770
    %2780 = vmatpush.msra.mxu0 %v2769
    %2781 = vmatpush.msra.mxu0 %v2768
    %2782 = vmatpush.msra.mxu0 %v2767
    %2783 = vmatpush.msra.mxu0 %v2766
    %2784 = vmatpush.msra.mxu0 %v2765
    %2785 = vmatpush.msra.mxu0 %v2764
    %2786 = vmatpush.msra.mxu0 %v2763
    %2787 = vmatpush.msra.mxu0 %v2762
    %2788 = vmatpush.msra.mxu0 %v2761
    %2789 = vmatpush.msra.mxu0 %v2760
    %2790 = vmatpush.msra.mxu0 %v2759
    %2791 = vmatmul.f32.gmra.mxu0 %v2758
    %v2792 = vpop.f32.mrf.mxu0
    %v2793 = vadd.f32 0.0, %v2792
    %2794 = vdwg.mxu0
    %v2795 = vadd.f32 %v2757, %v2793
    %v2796 = vld [vmem:[#allocation3 + $0xc] sm:$0x3]
    %v2797 = vld [vmem:[#allocation2 + $0x300] sm:$0xff]
    %v2798 = vld [vmem:[#allocation2 + $0x308] sm:$0xff]
    %v2799 = vld [vmem:[#allocation2 + $0x310] sm:$0xff]
    %v2800 = vld [vmem:[#allocation2 + $0x318] sm:$0xff]
    %v2801 = vld [vmem:[#allocation2 + $0x320] sm:$0xff]
    %v2802 = vld [vmem:[#allocation2 + $0x328] sm:$0xff]
    %v2803 = vld [vmem:[#allocation2 + $0x330] sm:$0xff]
    %v2804 = vld [vmem:[#allocation2 + $0x338] sm:$0xff]
    %v2805 = vld [vmem:[#allocation2 + $0x340] sm:$0xff]
    %v2806 = vld [vmem:[#allocation2 + $0x348] sm:$0xff]
    %v2807 = vld [vmem:[#allocation2 + $0x350] sm:$0xff]
    %v2808 = vld [vmem:[#allocation2 + $0x358] sm:$0xff]
    %v2809 = vld [vmem:[#allocation2 + $0x360] sm:$0xff]
    %v2810 = vld [vmem:[#allocation2 + $0x368] sm:$0xff]
    %v2811 = vld [vmem:[#allocation2 + $0x370] sm:$0xff]
    %v2812 = vld [vmem:[#allocation2 + $0x378] sm:$0xff]
    %2813 = vmatpush.msra.mxu0 %v2812
    %2814 = vmatpush.msra.mxu0 %v2811
    %2815 = vmatpush.msra.mxu0 %v2810
    %2816 = vmatpush.msra.mxu0 %v2809
    %2817 = vmatpush.msra.mxu0 %v2808
    %2818 = vmatpush.msra.mxu0 %v2807
    %2819 = vmatpush.msra.mxu0 %v2806
    %2820 = vmatpush.msra.mxu0 %v2805
    %2821 = vmatpush.msra.mxu0 %v2804
    %2822 = vmatpush.msra.mxu0 %v2803
    %2823 = vmatpush.msra.mxu0 %v2802
    %2824 = vmatpush.msra.mxu0 %v2801
    %2825 = vmatpush.msra.mxu0 %v2800
    %2826 = vmatpush.msra.mxu0 %v2799
    %2827 = vmatpush.msra.mxu0 %v2798
    %2828 = vmatpush.msra.mxu0 %v2797
    %2829 = vmatmul.f32.gmra.mxu0 %v2796
    %v2830 = vpop.f32.mrf.mxu0
    %v2831 = vadd.f32 0.0, %v2830
    %2832 = vdwg.mxu0
    %v2833 = vadd.f32 %v2795, %v2831
    %v2834 = vld [vmem:[#allocation3 + $0xe] sm:$0x3]
    %v2835 = vld [vmem:[#allocation2 + $0x380] sm:$0xff]
    %v2836 = vld [vmem:[#allocation2 + $0x388] sm:$0xff]
    %v2837 = vld [vmem:[#allocation2 + $0x390] sm:$0xff]
    %v2838 = vld [vmem:[#allocation2 + $0x398] sm:$0xff]
    %v2839 = vld [vmem:[#allocation2 + $0x3a0] sm:$0xff]
    %v2840 = vld [vmem:[#allocation2 + $0x3a8] sm:$0xff]
    %v2841 = vld [vmem:[#allocation2 + $0x3b0] sm:$0xff]
    %v2842 = vld [vmem:[#allocation2 + $0x3b8] sm:$0xff]
    %v2843 = vld [vmem:[#allocation2 + $0x3c0] sm:$0xff]
    %v2844 = vld [vmem:[#allocation2 + $0x3c8] sm:$0xff]
    %v2845 = vld [vmem:[#allocation2 + $0x3d0] sm:$0xff]
    %v2846 = vld [vmem:[#allocation2 + $0x3d8] sm:$0xff]
    %v2847 = vld [vmem:[#allocation2 + $0x3e0] sm:$0xff]
    %v2848 = vld [vmem:[#allocation2 + $0x3e8] sm:$0xff]
    %v2849 = vld [vmem:[#allocation2 + $0x3f0] sm:$0xff]
    %v2850 = vld [vmem:[#allocation2 + $0x3f8] sm:$0xff]
    %2851 = vmatpush.msra.mxu0 %v2850
    %2852 = vmatpush.msra.mxu0 %v2849
    %2853 = vmatpush.msra.mxu0 %v2848
    %2854 = vmatpush.msra.mxu0 %v2847
    %2855 = vmatpush.msra.mxu0 %v2846
    %2856 = vmatpush.msra.mxu0 %v2845
    %2857 = vmatpush.msra.mxu0 %v2844
    %2858 = vmatpush.msra.mxu0 %v2843
    %2859 = vmatpush.msra.mxu0 %v2842
    %2860 = vmatpush.msra.mxu0 %v2841
    %2861 = vmatpush.msra.mxu0 %v2840
    %2862 = vmatpush.msra.mxu0 %v2839
    %2863 = vmatpush.msra.mxu0 %v2838
    %2864 = vmatpush.msra.mxu0 %v2837
    %2865 = vmatpush.msra.mxu0 %v2836
    %2866 = vmatpush.msra.mxu0 %v2835
    %2867 = vmatmul.f32.gmra.mxu0 %v2834
    %v2868 = vpop.f32.mrf.mxu0
    %v2869 = vadd.f32 0.0, %v2868
    %2870 = vdwg.mxu0
    %v2871 = vadd.f32 %v2833, %v2869
    %v2872 = vld [vmem:[#allocation3 + $0x10] sm:$0x3]
    %v2873 = vld [vmem:[#allocation2 + $0x400] sm:$0xff]
    %v2874 = vld [vmem:[#allocation2 + $0x408] sm:$0xff]
    %v2875 = vld [vmem:[#allocation2 + $0x410] sm:$0xff]
    %v2876 = vld [vmem:[#allocation2 + $0x418] sm:$0xff]
    %v2877 = vld [vmem:[#allocation2 + $0x420] sm:$0xff]
    %v2878 = vld [vmem:[#allocation2 + $0x428] sm:$0xff]
    %v2879 = vld [vmem:[#allocation2 + $0x430] sm:$0xff]
    %v2880 = vld [vmem:[#allocation2 + $0x438] sm:$0xff]
    %v2881 = vld [vmem:[#allocation2 + $0x440] sm:$0xff]
    %v2882 = vld [vmem:[#allocation2 + $0x448] sm:$0xff]
    %v2883 = vld [vmem:[#allocation2 + $0x450] sm:$0xff]
    %v2884 = vld [vmem:[#allocation2 + $0x458] sm:$0xff]
    %v2885 = vld [vmem:[#allocation2 + $0x460] sm:$0xff]
    %v2886 = vld [vmem:[#allocation2 + $0x468] sm:$0xff]
    %v2887 = vld [vmem:[#allocation2 + $0x470] sm:$0xff]
    %v2888 = vld [vmem:[#allocation2 + $0x478] sm:$0xff]
    %2889 = vmatpush.msra.mxu0 %v2888
    %2890 = vmatpush.msra.mxu0 %v2887
    %2891 = vmatpush.msra.mxu0 %v2886
    %2892 = vmatpush.msra.mxu0 %v2885
    %2893 = vmatpush.msra.mxu0 %v2884
    %2894 = vmatpush.msra.mxu0 %v2883
    %2895 = vmatpush.msra.mxu0 %v2882
    %2896 = vmatpush.msra.mxu0 %v2881
    %2897 = vmatpush.msra.mxu0 %v2880
    %2898 = vmatpush.msra.mxu0 %v2879
    %2899 = vmatpush.msra.mxu0 %v2878
    %2900 = vmatpush.msra.mxu0 %v2877
    %2901 = vmatpush.msra.mxu0 %v2876
    %2902 = vmatpush.msra.mxu0 %v2875
    %2903 = vmatpush.msra.mxu0 %v2874
    %2904 = vmatpush.msra.mxu0 %v2873
    %2905 = vmatmul.f32.gmra.mxu0 %v2872
    %v2906 = vpop.f32.mrf.mxu0
    %v2907 = vadd.f32 0.0, %v2906
    %2908 = vdwg.mxu0
    %v2909 = vadd.f32 %v2871, %v2907
    %v2910 = vld [vmem:[#allocation3 + $0x12] sm:$0x3]
    %v2911 = vld [vmem:[#allocation2 + $0x480] sm:$0xff]
    %v2912 = vld [vmem:[#allocation2 + $0x488] sm:$0xff]
    %v2913 = vld [vmem:[#allocation2 + $0x490] sm:$0xff]
    %v2914 = vld [vmem:[#allocation2 + $0x498] sm:$0xff]
    %v2915 = vld [vmem:[#allocation2 + $0x4a0] sm:$0xff]
    %v2916 = vld [vmem:[#allocation2 + $0x4a8] sm:$0xff]
    %v2917 = vld [vmem:[#allocation2 + $0x4b0] sm:$0xff]
    %v2918 = vld [vmem:[#allocation2 + $0x4b8] sm:$0xff]
    %v2919 = vld [vmem:[#allocation2 + $0x4c0] sm:$0xff]
    %v2920 = vld [vmem:[#allocation2 + $0x4c8] sm:$0xff]
    %v2921 = vld [vmem:[#allocation2 + $0x4d0] sm:$0xff]
    %v2922 = vld [vmem:[#allocation2 + $0x4d8] sm:$0xff]
    %v2923 = vld [vmem:[#allocation2 + $0x4e0] sm:$0xff]
    %v2924 = vld [vmem:[#allocation2 + $0x4e8] sm:$0xff]
    %v2925 = vld [vmem:[#allocation2 + $0x4f0] sm:$0xff]
    %v2926 = vld [vmem:[#allocation2 + $0x4f8] sm:$0xff]
    %2927 = vmatpush.msra.mxu0 %v2926
    %2928 = vmatpush.msra.mxu0 %v2925
    %2929 = vmatpush.msra.mxu0 %v2924
    %2930 = vmatpush.msra.mxu0 %v2923
    %2931 = vmatpush.msra.mxu0 %v2922
    %2932 = vmatpush.msra.mxu0 %v2921
    %2933 = vmatpush.msra.mxu0 %v2920
    %2934 = vmatpush.msra.mxu0 %v2919
    %2935 = vmatpush.msra.mxu0 %v2918
    %2936 = vmatpush.msra.mxu0 %v2917
    %2937 = vmatpush.msra.mxu0 %v2916
    %2938 = vmatpush.msra.mxu0 %v2915
    %2939 = vmatpush.msra.mxu0 %v2914
    %2940 = vmatpush.msra.mxu0 %v2913
    %2941 = vmatpush.msra.mxu0 %v2912
    %2942 = vmatpush.msra.mxu0 %v2911
    %2943 = vmatmul.f32.gmra.mxu0 %v2910
    %v2944 = vpop.f32.mrf.mxu0
    %v2945 = vadd.f32 0.0, %v2944
    %2946 = vdwg.mxu0
    %v2947 = vadd.f32 %v2909, %v2945
    %v2948 = vld [vmem:[#allocation3 + $0x14] sm:$0x3]
    %v2949 = vld [vmem:[#allocation2 + $0x500] sm:$0xff]
    %v2950 = vld [vmem:[#allocation2 + $0x508] sm:$0xff]
    %v2951 = vld [vmem:[#allocation2 + $0x510] sm:$0xff]
    %v2952 = vld [vmem:[#allocation2 + $0x518] sm:$0xff]
    %v2953 = vld [vmem:[#allocation2 + $0x520] sm:$0xff]
    %v2954 = vld [vmem:[#allocation2 + $0x528] sm:$0xff]
    %v2955 = vld [vmem:[#allocation2 + $0x530] sm:$0xff]
    %v2956 = vld [vmem:[#allocation2 + $0x538] sm:$0xff]
    %v2957 = vld [vmem:[#allocation2 + $0x540] sm:$0xff]
    %v2958 = vld [vmem:[#allocation2 + $0x548] sm:$0xff]
    %v2959 = vld [vmem:[#allocation2 + $0x550] sm:$0xff]
    %v2960 = vld [vmem:[#allocation2 + $0x558] sm:$0xff]
    %v2961 = vld [vmem:[#allocation2 + $0x560] sm:$0xff]
    %v2962 = vld [vmem:[#allocation2 + $0x568] sm:$0xff]
    %v2963 = vld [vmem:[#allocation2 + $0x570] sm:$0xff]
    %v2964 = vld [vmem:[#allocation2 + $0x578] sm:$0xff]
    %2965 = vmatpush.msra.mxu0 %v2964
    %2966 = vmatpush.msra.mxu0 %v2963
    %2967 = vmatpush.msra.mxu0 %v2962
    %2968 = vmatpush.msra.mxu0 %v2961
    %2969 = vmatpush.msra.mxu0 %v2960
    %2970 = vmatpush.msra.mxu0 %v2959
    %2971 = vmatpush.msra.mxu0 %v2958
    %2972 = vmatpush.msra.mxu0 %v2957
    %2973 = vmatpush.msra.mxu0 %v2956
    %2974 = vmatpush.msra.mxu0 %v2955
    %2975 = vmatpush.msra.mxu0 %v2954
    %2976 = vmatpush.msra.mxu0 %v2953
    %2977 = vmatpush.msra.mxu0 %v2952
    %2978 = vmatpush.msra.mxu0 %v2951
    %2979 = vmatpush.msra.mxu0 %v2950
    %2980 = vmatpush.msra.mxu0 %v2949
    %2981 = vmatmul.f32.gmra.mxu0 %v2948
    %v2982 = vpop.f32.mrf.mxu0
    %v2983 = vadd.f32 0.0, %v2982
    %2984 = vdwg.mxu0
    %v2985 = vadd.f32 %v2947, %v2983
    %v2986 = vld [vmem:[#allocation3 + $0x16] sm:$0x3]
    %v2987 = vld [vmem:[#allocation2 + $0x580] sm:$0xff]
    %v2988 = vld [vmem:[#allocation2 + $0x588] sm:$0xff]
    %v2989 = vld [vmem:[#allocation2 + $0x590] sm:$0xff]
    %v2990 = vld [vmem:[#allocation2 + $0x598] sm:$0xff]
    %v2991 = vld [vmem:[#allocation2 + $0x5a0] sm:$0xff]
    %v2992 = vld [vmem:[#allocation2 + $0x5a8] sm:$0xff]
    %v2993 = vld [vmem:[#allocation2 + $0x5b0] sm:$0xff]
    %v2994 = vld [vmem:[#allocation2 + $0x5b8] sm:$0xff]
    %v2995 = vld [vmem:[#allocation2 + $0x5c0] sm:$0xff]
    %v2996 = vld [vmem:[#allocation2 + $0x5c8] sm:$0xff]
    %v2997 = vld [vmem:[#allocation2 + $0x5d0] sm:$0xff]
    %v2998 = vld [vmem:[#allocation2 + $0x5d8] sm:$0xff]
    %v2999 = vld [vmem:[#allocation2 + $0x5e0] sm:$0xff]
    %v3000 = vld [vmem:[#allocation2 + $0x5e8] sm:$0xff]
    %v3001 = vld [vmem:[#allocation2 + $0x5f0] sm:$0xff]
    %v3002 = vld [vmem:[#allocation2 + $0x5f8] sm:$0xff]
    %3003 = vmatpush.msra.mxu0 %v3002
    %3004 = vmatpush.msra.mxu0 %v3001
    %3005 = vmatpush.msra.mxu0 %v3000
    %3006 = vmatpush.msra.mxu0 %v2999
    %3007 = vmatpush.msra.mxu0 %v2998
    %3008 = vmatpush.msra.mxu0 %v2997
    %3009 = vmatpush.msra.mxu0 %v2996
    %3010 = vmatpush.msra.mxu0 %v2995
    %3011 = vmatpush.msra.mxu0 %v2994
    %3012 = vmatpush.msra.mxu0 %v2993
    %3013 = vmatpush.msra.mxu0 %v2992
    %3014 = vmatpush.msra.mxu0 %v2991
    %3015 = vmatpush.msra.mxu0 %v2990
    %3016 = vmatpush.msra.mxu0 %v2989
    %3017 = vmatpush.msra.mxu0 %v2988
    %3018 = vmatpush.msra.mxu0 %v2987
    %3019 = vmatmul.f32.gmra.mxu0 %v2986
    %v3020 = vpop.f32.mrf.mxu0
    %v3021 = vadd.f32 0.0, %v3020
    %3022 = vdwg.mxu0
    %v3023 = vadd.f32 %v2985, %v3021
    %v3024 = vld [vmem:[#allocation3 + $0x18] sm:$0x3]
    %v3025 = vld [vmem:[#allocation2 + $0x600] sm:$0xff]
    %v3026 = vld [vmem:[#allocation2 + $0x608] sm:$0xff]
    %v3027 = vld [vmem:[#allocation2 + $0x610] sm:$0xff]
    %v3028 = vld [vmem:[#allocation2 + $0x618] sm:$0xff]
    %v3029 = vld [vmem:[#allocation2 + $0x620] sm:$0xff]
    %v3030 = vld [vmem:[#allocation2 + $0x628] sm:$0xff]
    %v3031 = vld [vmem:[#allocation2 + $0x630] sm:$0xff]
    %v3032 = vld [vmem:[#allocation2 + $0x638] sm:$0xff]
    %v3033 = vld [vmem:[#allocation2 + $0x640] sm:$0xff]
    %v3034 = vld [vmem:[#allocation2 + $0x648] sm:$0xff]
    %v3035 = vld [vmem:[#allocation2 + $0x650] sm:$0xff]
    %v3036 = vld [vmem:[#allocation2 + $0x658] sm:$0xff]
    %v3037 = vld [vmem:[#allocation2 + $0x660] sm:$0xff]
    %v3038 = vld [vmem:[#allocation2 + $0x668] sm:$0xff]
    %v3039 = vld [vmem:[#allocation2 + $0x670] sm:$0xff]
    %v3040 = vld [vmem:[#allocation2 + $0x678] sm:$0xff]
    %3041 = vmatpush.msra.mxu0 %v3040
    %3042 = vmatpush.msra.mxu0 %v3039
    %3043 = vmatpush.msra.mxu0 %v3038
    %3044 = vmatpush.msra.mxu0 %v3037
    %3045 = vmatpush.msra.mxu0 %v3036
    %3046 = vmatpush.msra.mxu0 %v3035
    %3047 = vmatpush.msra.mxu0 %v3034
    %3048 = vmatpush.msra.mxu0 %v3033
    %3049 = vmatpush.msra.mxu0 %v3032
    %3050 = vmatpush.msra.mxu0 %v3031
    %3051 = vmatpush.msra.mxu0 %v3030
    %3052 = vmatpush.msra.mxu0 %v3029
    %3053 = vmatpush.msra.mxu0 %v3028
    %3054 = vmatpush.msra.mxu0 %v3027
    %3055 = vmatpush.msra.mxu0 %v3026
    %3056 = vmatpush.msra.mxu0 %v3025
    %3057 = vmatmul.f32.gmra.mxu0 %v3024
    %v3058 = vpop.f32.mrf.mxu0
    %v3059 = vadd.f32 0.0, %v3058
    %3060 = vdwg.mxu0
    %v3061 = vadd.f32 %v3023, %v3059
    %v3062 = vld [vmem:[#allocation3 + $0x1a] sm:$0x3]
    %v3063 = vld [vmem:[#allocation2 + $0x680] sm:$0xff]
    %v3064 = vld [vmem:[#allocation2 + $0x688] sm:$0xff]
    %v3065 = vld [vmem:[#allocation2 + $0x690] sm:$0xff]
    %v3066 = vld [vmem:[#allocation2 + $0x698] sm:$0xff]
    %v3067 = vld [vmem:[#allocation2 + $0x6a0] sm:$0xff]
    %v3068 = vld [vmem:[#allocation2 + $0x6a8] sm:$0xff]
    %v3069 = vld [vmem:[#allocation2 + $0x6b0] sm:$0xff]
    %v3070 = vld [vmem:[#allocation2 + $0x6b8] sm:$0xff]
    %v3071 = vld [vmem:[#allocation2 + $0x6c0] sm:$0xff]
    %v3072 = vld [vmem:[#allocation2 + $0x6c8] sm:$0xff]
    %v3073 = vld [vmem:[#allocation2 + $0x6d0] sm:$0xff]
    %v3074 = vld [vmem:[#allocation2 + $0x6d8] sm:$0xff]
    %v3075 = vld [vmem:[#allocation2 + $0x6e0] sm:$0xff]
    %v3076 = vld [vmem:[#allocation2 + $0x6e8] sm:$0xff]
    %v3077 = vld [vmem:[#allocation2 + $0x6f0] sm:$0xff]
    %v3078 = vld [vmem:[#allocation2 + $0x6f8] sm:$0xff]
    %3079 = vmatpush.msra.mxu0 %v3078
    %3080 = vmatpush.msra.mxu0 %v3077
    %3081 = vmatpush.msra.mxu0 %v3076
    %3082 = vmatpush.msra.mxu0 %v3075
    %3083 = vmatpush.msra.mxu0 %v3074
    %3084 = vmatpush.msra.mxu0 %v3073
    %3085 = vmatpush.msra.mxu0 %v3072
    %3086 = vmatpush.msra.mxu0 %v3071
    %3087 = vmatpush.msra.mxu0 %v3070
    %3088 = vmatpush.msra.mxu0 %v3069
    %3089 = vmatpush.msra.mxu0 %v3068
    %3090 = vmatpush.msra.mxu0 %v3067
    %3091 = vmatpush.msra.mxu0 %v3066
    %3092 = vmatpush.msra.mxu0 %v3065
    %3093 = vmatpush.msra.mxu0 %v3064
    %3094 = vmatpush.msra.mxu0 %v3063
    %3095 = vmatmul.f32.gmra.mxu0 %v3062
    %v3096 = vpop.f32.mrf.mxu0
    %v3097 = vadd.f32 0.0, %v3096
    %3098 = vdwg.mxu0
    %v3099 = vadd.f32 %v3061, %v3097
    %v3100 = vld [vmem:[#allocation3 + $0x1c] sm:$0x3]
    %v3101 = vld [vmem:[#allocation2 + $0x700] sm:$0xff]
    %v3102 = vld [vmem:[#allocation2 + $0x708] sm:$0xff]
    %v3103 = vld [vmem:[#allocation2 + $0x710] sm:$0xff]
    %v3104 = vld [vmem:[#allocation2 + $0x718] sm:$0xff]
    %v3105 = vld [vmem:[#allocation2 + $0x720] sm:$0xff]
    %v3106 = vld [vmem:[#allocation2 + $0x728] sm:$0xff]
    %v3107 = vld [vmem:[#allocation2 + $0x730] sm:$0xff]
    %v3108 = vld [vmem:[#allocation2 + $0x738] sm:$0xff]
    %v3109 = vld [vmem:[#allocation2 + $0x740] sm:$0xff]
    %v3110 = vld [vmem:[#allocation2 + $0x748] sm:$0xff]
    %v3111 = vld [vmem:[#allocation2 + $0x750] sm:$0xff]
    %v3112 = vld [vmem:[#allocation2 + $0x758] sm:$0xff]
    %v3113 = vld [vmem:[#allocation2 + $0x760] sm:$0xff]
    %v3114 = vld [vmem:[#allocation2 + $0x768] sm:$0xff]
    %v3115 = vld [vmem:[#allocation2 + $0x770] sm:$0xff]
    %v3116 = vld [vmem:[#allocation2 + $0x778] sm:$0xff]
    %3117 = vmatpush.msra.mxu0 %v3116
    %3118 = vmatpush.msra.mxu0 %v3115
    %3119 = vmatpush.msra.mxu0 %v3114
    %3120 = vmatpush.msra.mxu0 %v3113
    %3121 = vmatpush.msra.mxu0 %v3112
    %3122 = vmatpush.msra.mxu0 %v3111
    %3123 = vmatpush.msra.mxu0 %v3110
    %3124 = vmatpush.msra.mxu0 %v3109
    %3125 = vmatpush.msra.mxu0 %v3108
    %3126 = vmatpush.msra.mxu0 %v3107
    %3127 = vmatpush.msra.mxu0 %v3106
    %3128 = vmatpush.msra.mxu0 %v3105
    %3129 = vmatpush.msra.mxu0 %v3104
    %3130 = vmatpush.msra.mxu0 %v3103
    %3131 = vmatpush.msra.mxu0 %v3102
    %3132 = vmatpush.msra.mxu0 %v3101
    %3133 = vmatmul.f32.gmra.mxu0 %v3100
    %v3134 = vpop.f32.mrf.mxu0
    %v3135 = vadd.f32 0.0, %v3134
    %3136 = vdwg.mxu0
    %v3137 = vadd.f32 %v3099, %v3135
    %v3138 = vld [vmem:[#allocation3 + $0x1e] sm:$0x3]
    %v3139 = vld [vmem:[#allocation2 + $0x780] sm:$0xff]
    %v3140 = vld [vmem:[#allocation2 + $0x788] sm:$0xff]
    %v3141 = vld [vmem:[#allocation2 + $0x790] sm:$0xff]
    %v3142 = vld [vmem:[#allocation2 + $0x798] sm:$0xff]
    %v3143 = vld [vmem:[#allocation2 + $0x7a0] sm:$0xff]
    %v3144 = vld [vmem:[#allocation2 + $0x7a8] sm:$0xff]
    %v3145 = vld [vmem:[#allocation2 + $0x7b0] sm:$0xff]
    %v3146 = vld [vmem:[#allocation2 + $0x7b8] sm:$0xff]
    %v3147 = vld [vmem:[#allocation2 + $0x7c0] sm:$0xff]
    %v3148 = vld [vmem:[#allocation2 + $0x7c8] sm:$0xff]
    %v3149 = vld [vmem:[#allocation2 + $0x7d0] sm:$0xff]
    %v3150 = vld [vmem:[#allocation2 + $0x7d8] sm:$0xff]
    %v3151 = vld [vmem:[#allocation2 + $0x7e0] sm:$0xff]
    %v3152 = vld [vmem:[#allocation2 + $0x7e8] sm:$0xff]
    %v3153 = vld [vmem:[#allocation2 + $0x7f0] sm:$0xff]
    %v3154 = vld [vmem:[#allocation2 + $0x7f8] sm:$0xff]
    %3155 = vmatpush.msra.mxu0 %v3154
    %3156 = vmatpush.msra.mxu0 %v3153
    %3157 = vmatpush.msra.mxu0 %v3152
    %3158 = vmatpush.msra.mxu0 %v3151
    %3159 = vmatpush.msra.mxu0 %v3150
    %3160 = vmatpush.msra.mxu0 %v3149
    %3161 = vmatpush.msra.mxu0 %v3148
    %3162 = vmatpush.msra.mxu0 %v3147
    %3163 = vmatpush.msra.mxu0 %v3146
    %3164 = vmatpush.msra.mxu0 %v3145
    %3165 = vmatpush.msra.mxu0 %v3144
    %3166 = vmatpush.msra.mxu0 %v3143
    %3167 = vmatpush.msra.mxu0 %v3142
    %3168 = vmatpush.msra.mxu0 %v3141
    %3169 = vmatpush.msra.mxu0 %v3140
    %3170 = vmatpush.msra.mxu0 %v3139
    %3171 = vmatmul.f32.gmra.mxu0 %v3138
    %v3172 = vpop.f32.mrf.mxu0
    %v3173 = vadd.f32 0.0, %v3172
    %3174 = vdwg.mxu0
    %v3175 = vadd.f32 %v3137, %v3173
    %s3176 = sshll.u32 %s2567, 4
    %3177 = dma.done %s555, %s3176
    %v3178 = vld [vmem:[#allocation3 + $0x20] sm:$0x3]
    %v3179 = vld [vmem:[%s554] sm:$0xff]
    %v3180 = vld [vmem:[%s554 + $0x8] sm:$0xff]
    %v3181 = vld [vmem:[%s554 + $0x10] sm:$0xff]
    %v3182 = vld [vmem:[%s554 + $0x18] sm:$0xff]
    %v3183 = vld [vmem:[%s554 + $0x20] sm:$0xff]
    %v3184 = vld [vmem:[%s554 + $0x28] sm:$0xff]
    %v3185 = vld [vmem:[%s554 + $0x30] sm:$0xff]
    %v3186 = vld [vmem:[%s554 + $0x38] sm:$0xff]
    %v3187 = vld [vmem:[%s554 + $0x40] sm:$0xff]
    %v3188 = vld [vmem:[%s554 + $0x48] sm:$0xff]
    %v3189 = vld [vmem:[%s554 + $0x50] sm:$0xff]
    %v3190 = vld [vmem:[%s554 + $0x58] sm:$0xff]
    %v3191 = vld [vmem:[%s554 + $0x60] sm:$0xff]
    %v3192 = vld [vmem:[%s554 + $0x68] sm:$0xff]
    %v3193 = vld [vmem:[%s554 + $0x70] sm:$0xff]
    %v3194 = vld [vmem:[%s554 + $0x78] sm:$0xff]
    %3195 = vmatpush.msra.mxu0 %v3194
    %3196 = vmatpush.msra.mxu0 %v3193
    %3197 = vmatpush.msra.mxu0 %v3192
    %3198 = vmatpush.msra.mxu0 %v3191
    %3199 = vmatpush.msra.mxu0 %v3190
    %3200 = vmatpush.msra.mxu0 %v3189
    %3201 = vmatpush.msra.mxu0 %v3188
    %3202 = vmatpush.msra.mxu0 %v3187
    %3203 = vmatpush.msra.mxu0 %v3186
    %3204 = vmatpush.msra.mxu0 %v3185
    %3205 = vmatpush.msra.mxu0 %v3184
    %3206 = vmatpush.msra.mxu0 %v3183
    %3207 = vmatpush.msra.mxu0 %v3182
    %3208 = vmatpush.msra.mxu0 %v3181
    %3209 = vmatpush.msra.mxu0 %v3180
    %3210 = vmatpush.msra.mxu0 %v3179
    %3211 = vmatmul.f32.gmra.mxu0 %v3178
    %v3212 = vpop.f32.mrf.mxu0
    %v3213 = vadd.f32 0.0, %v3212
    %3214 = vdwg.mxu0
    %v3215 = vadd.f32 %v3175, %v3213
    %v3216 = vld [vmem:[#allocation3 + $0x22] sm:$0x3]
    %v3217 = vld [vmem:[%s554 + $0x80] sm:$0xff]
    %v3218 = vld [vmem:[%s554 + $0x88] sm:$0xff]
    %v3219 = vld [vmem:[%s554 + $0x90] sm:$0xff]
    %v3220 = vld [vmem:[%s554 + $0x98] sm:$0xff]
    %v3221 = vld [vmem:[%s554 + $0xa0] sm:$0xff]
    %v3222 = vld [vmem:[%s554 + $0xa8] sm:$0xff]
    %v3223 = vld [vmem:[%s554 + $0xb0] sm:$0xff]
    %v3224 = vld [vmem:[%s554 + $0xb8] sm:$0xff]
    %v3225 = vld [vmem:[%s554 + $0xc0] sm:$0xff]
    %v3226 = vld [vmem:[%s554 + $0xc8] sm:$0xff]
    %v3227 = vld [vmem:[%s554 + $0xd0] sm:$0xff]
    %v3228 = vld [vmem:[%s554 + $0xd8] sm:$0xff]
    %v3229 = vld [vmem:[%s554 + $0xe0] sm:$0xff]
    %v3230 = vld [vmem:[%s554 + $0xe8] sm:$0xff]
    %v3231 = vld [vmem:[%s554 + $0xf0] sm:$0xff]
    %v3232 = vld [vmem:[%s554 + $0xf8] sm:$0xff]
    %3233 = vmatpush.msra.mxu0 %v3232
    %3234 = vmatpush.msra.mxu0 %v3231
    %3235 = vmatpush.msra.mxu0 %v3230
    %3236 = vmatpush.msra.mxu0 %v3229
    %3237 = vmatpush.msra.mxu0 %v3228
    %3238 = vmatpush.msra.mxu0 %v3227
    %3239 = vmatpush.msra.mxu0 %v3226
    %3240 = vmatpush.msra.mxu0 %v3225
    %3241 = vmatpush.msra.mxu0 %v3224
    %3242 = vmatpush.msra.mxu0 %v3223
    %3243 = vmatpush.msra.mxu0 %v3222
    %3244 = vmatpush.msra.mxu0 %v3221
    %3245 = vmatpush.msra.mxu0 %v3220
    %3246 = vmatpush.msra.mxu0 %v3219
    %3247 = vmatpush.msra.mxu0 %v3218
    %3248 = vmatpush.msra.mxu0 %v3217
    %3249 = vmatmul.f32.gmra.mxu0 %v3216
    %v3250 = vpop.f32.mrf.mxu0
    %v3251 = vadd.f32 0.0, %v3250
    %3252 = vdwg.mxu0
    %v3253 = vadd.f32 %v3215, %v3251
    %v3254 = vld [vmem:[#allocation3 + $0x24] sm:$0x3]
    %v3255 = vld [vmem:[%s554 + $0x100] sm:$0xff]
    %v3256 = vld [vmem:[%s554 + $0x108] sm:$0xff]
    %v3257 = vld [vmem:[%s554 + $0x110] sm:$0xff]
    %v3258 = vld [vmem:[%s554 + $0x118] sm:$0xff]
    %v3259 = vld [vmem:[%s554 + $0x120] sm:$0xff]
    %v3260 = vld [vmem:[%s554 + $0x128] sm:$0xff]
    %v3261 = vld [vmem:[%s554 + $0x130] sm:$0xff]
    %v3262 = vld [vmem:[%s554 + $0x138] sm:$0xff]
    %v3263 = vld [vmem:[%s554 + $0x140] sm:$0xff]
    %v3264 = vld [vmem:[%s554 + $0x148] sm:$0xff]
    %v3265 = vld [vmem:[%s554 + $0x150] sm:$0xff]
    %v3266 = vld [vmem:[%s554 + $0x158] sm:$0xff]
    %v3267 = vld [vmem:[%s554 + $0x160] sm:$0xff]
    %v3268 = vld [vmem:[%s554 + $0x168] sm:$0xff]
    %v3269 = vld [vmem:[%s554 + $0x170] sm:$0xff]
    %v3270 = vld [vmem:[%s554 + $0x178] sm:$0xff]
    %3271 = vmatpush.msra.mxu0 %v3270
    %3272 = vmatpush.msra.mxu0 %v3269
    %3273 = vmatpush.msra.mxu0 %v3268
    %3274 = vmatpush.msra.mxu0 %v3267
    %3275 = vmatpush.msra.mxu0 %v3266
    %3276 = vmatpush.msra.mxu0 %v3265
    %3277 = vmatpush.msra.mxu0 %v3264
    %3278 = vmatpush.msra.mxu0 %v3263
    %3279 = vmatpush.msra.mxu0 %v3262
    %3280 = vmatpush.msra.mxu0 %v3261
    %3281 = vmatpush.msra.mxu0 %v3260
    %3282 = vmatpush.msra.mxu0 %v3259
    %3283 = vmatpush.msra.mxu0 %v3258
    %3284 = vmatpush.msra.mxu0 %v3257
    %3285 = vmatpush.msra.mxu0 %v3256
    %3286 = vmatpush.msra.mxu0 %v3255
    %3287 = vmatmul.f32.gmra.mxu0 %v3254
    %v3288 = vpop.f32.mrf.mxu0
    %v3289 = vadd.f32 0.0, %v3288
    %3290 = vdwg.mxu0
    %v3291 = vadd.f32 %v3253, %v3289
    %v3292 = vld [vmem:[#allocation3 + $0x26] sm:$0x3]
    %v3293 = vld [vmem:[%s554 + $0x180] sm:$0xff]
    %v3294 = vld [vmem:[%s554 + $0x188] sm:$0xff]
    %v3295 = vld [vmem:[%s554 + $0x190] sm:$0xff]
    %v3296 = vld [vmem:[%s554 + $0x198] sm:$0xff]
    %v3297 = vld [vmem:[%s554 + $0x1a0] sm:$0xff]
    %v3298 = vld [vmem:[%s554 + $0x1a8] sm:$0xff]
    %v3299 = vld [vmem:[%s554 + $0x1b0] sm:$0xff]
    %v3300 = vld [vmem:[%s554 + $0x1b8] sm:$0xff]
    %v3301 = vld [vmem:[%s554 + $0x1c0] sm:$0xff]
    %v3302 = vld [vmem:[%s554 + $0x1c8] sm:$0xff]
    %v3303 = vld [vmem:[%s554 + $0x1d0] sm:$0xff]
    %v3304 = vld [vmem:[%s554 + $0x1d8] sm:$0xff]
    %v3305 = vld [vmem:[%s554 + $0x1e0] sm:$0xff]
    %v3306 = vld [vmem:[%s554 + $0x1e8] sm:$0xff]
    %v3307 = vld [vmem:[%s554 + $0x1f0] sm:$0xff]
    %v3308 = vld [vmem:[%s554 + $0x1f8] sm:$0xff]
    %3309 = vmatpush.msra.mxu0 %v3308
    %3310 = vmatpush.msra.mxu0 %v3307
    %3311 = vmatpush.msra.mxu0 %v3306
    %3312 = vmatpush.msra.mxu0 %v3305
    %3313 = vmatpush.msra.mxu0 %v3304
    %3314 = vmatpush.msra.mxu0 %v3303
    %3315 = vmatpush.msra.mxu0 %v3302
    %3316 = vmatpush.msra.mxu0 %v3301
    %3317 = vmatpush.msra.mxu0 %v3300
    %3318 = vmatpush.msra.mxu0 %v3299
    %3319 = vmatpush.msra.mxu0 %v3298
    %3320 = vmatpush.msra.mxu0 %v3297
    %3321 = vmatpush.msra.mxu0 %v3296
    %3322 = vmatpush.msra.mxu0 %v3295
    %3323 = vmatpush.msra.mxu0 %v3294
    %3324 = vmatpush.msra.mxu0 %v3293
    %3325 = vmatmul.f32.gmra.mxu0 %v3292
    %v3326 = vpop.f32.mrf.mxu0
    %v3327 = vadd.f32 0.0, %v3326
    %3328 = vdwg.mxu0
    %v3329 = vadd.f32 %v3291, %v3327
    %v3330 = vld [vmem:[#allocation3 + $0x28] sm:$0x3]
    %v3331 = vld [vmem:[%s554 + $0x200] sm:$0xff]
    %v3332 = vld [vmem:[%s554 + $0x208] sm:$0xff]
    %v3333 = vld [vmem:[%s554 + $0x210] sm:$0xff]
    %v3334 = vld [vmem:[%s554 + $0x218] sm:$0xff]
    %v3335 = vld [vmem:[%s554 + $0x220] sm:$0xff]
    %v3336 = vld [vmem:[%s554 + $0x228] sm:$0xff]
    %v3337 = vld [vmem:[%s554 + $0x230] sm:$0xff]
    %v3338 = vld [vmem:[%s554 + $0x238] sm:$0xff]
    %v3339 = vld [vmem:[%s554 + $0x240] sm:$0xff]
    %v3340 = vld [vmem:[%s554 + $0x248] sm:$0xff]
    %v3341 = vld [vmem:[%s554 + $0x250] sm:$0xff]
    %v3342 = vld [vmem:[%s554 + $0x258] sm:$0xff]
    %v3343 = vld [vmem:[%s554 + $0x260] sm:$0xff]
    %v3344 = vld [vmem:[%s554 + $0x268] sm:$0xff]
    %v3345 = vld [vmem:[%s554 + $0x270] sm:$0xff]
    %v3346 = vld [vmem:[%s554 + $0x278] sm:$0xff]
    %3347 = vmatpush.msra.mxu0 %v3346
    %3348 = vmatpush.msra.mxu0 %v3345
    %3349 = vmatpush.msra.mxu0 %v3344
    %3350 = vmatpush.msra.mxu0 %v3343
    %3351 = vmatpush.msra.mxu0 %v3342
    %3352 = vmatpush.msra.mxu0 %v3341
    %3353 = vmatpush.msra.mxu0 %v3340
    %3354 = vmatpush.msra.mxu0 %v3339
    %3355 = vmatpush.msra.mxu0 %v3338
    %3356 = vmatpush.msra.mxu0 %v3337
    %3357 = vmatpush.msra.mxu0 %v3336
    %3358 = vmatpush.msra.mxu0 %v3335
    %3359 = vmatpush.msra.mxu0 %v3334
    %3360 = vmatpush.msra.mxu0 %v3333
    %3361 = vmatpush.msra.mxu0 %v3332
    %3362 = vmatpush.msra.mxu0 %v3331
    %3363 = vmatmul.f32.gmra.mxu0 %v3330
    %v3364 = vpop.f32.mrf.mxu0
    %v3365 = vadd.f32 0.0, %v3364
    %3366 = vdwg.mxu0
    %v3367 = vadd.f32 %v3329, %v3365
    %v3368 = vld [vmem:[#allocation3 + $0x2a] sm:$0x3]
    %v3369 = vld [vmem:[%s554 + $0x280] sm:$0xff]
    %v3370 = vld [vmem:[%s554 + $0x288] sm:$0xff]
    %v3371 = vld [vmem:[%s554 + $0x290] sm:$0xff]
    %v3372 = vld [vmem:[%s554 + $0x298] sm:$0xff]
    %v3373 = vld [vmem:[%s554 + $0x2a0] sm:$0xff]
    %v3374 = vld [vmem:[%s554 + $0x2a8] sm:$0xff]
    %v3375 = vld [vmem:[%s554 + $0x2b0] sm:$0xff]
    %v3376 = vld [vmem:[%s554 + $0x2b8] sm:$0xff]
    %v3377 = vld [vmem:[%s554 + $0x2c0] sm:$0xff]
    %v3378 = vld [vmem:[%s554 + $0x2c8] sm:$0xff]
    %v3379 = vld [vmem:[%s554 + $0x2d0] sm:$0xff]
    %v3380 = vld [vmem:[%s554 + $0x2d8] sm:$0xff]
    %v3381 = vld [vmem:[%s554 + $0x2e0] sm:$0xff]
    %v3382 = vld [vmem:[%s554 + $0x2e8] sm:$0xff]
    %v3383 = vld [vmem:[%s554 + $0x2f0] sm:$0xff]
    %v3384 = vld [vmem:[%s554 + $0x2f8] sm:$0xff]
    %3385 = vmatpush.msra.mxu0 %v3384
    %3386 = vmatpush.msra.mxu0 %v3383
    %3387 = vmatpush.msra.mxu0 %v3382
    %3388 = vmatpush.msra.mxu0 %v3381
    %3389 = vmatpush.msra.mxu0 %v3380
    %3390 = vmatpush.msra.mxu0 %v3379
    %3391 = vmatpush.msra.mxu0 %v3378
    %3392 = vmatpush.msra.mxu0 %v3377
    %3393 = vmatpush.msra.mxu0 %v3376
    %3394 = vmatpush.msra.mxu0 %v3375
    %3395 = vmatpush.msra.mxu0 %v3374
    %3396 = vmatpush.msra.mxu0 %v3373
    %3397 = vmatpush.msra.mxu0 %v3372
    %3398 = vmatpush.msra.mxu0 %v3371
    %3399 = vmatpush.msra.mxu0 %v3370
    %3400 = vmatpush.msra.mxu0 %v3369
    %3401 = vmatmul.f32.gmra.mxu0 %v3368
    %v3402 = vpop.f32.mrf.mxu0
    %v3403 = vadd.f32 0.0, %v3402
    %3404 = vdwg.mxu0
    %v3405 = vadd.f32 %v3367, %v3403
    %v3406 = vld [vmem:[#allocation3 + $0x2c] sm:$0x3]
    %v3407 = vld [vmem:[%s554 + $0x300] sm:$0xff]
    %v3408 = vld [vmem:[%s554 + $0x308] sm:$0xff]
    %v3409 = vld [vmem:[%s554 + $0x310] sm:$0xff]
    %v3410 = vld [vmem:[%s554 + $0x318] sm:$0xff]
    %v3411 = vld [vmem:[%s554 + $0x320] sm:$0xff]
    %v3412 = vld [vmem:[%s554 + $0x328] sm:$0xff]
    %v3413 = vld [vmem:[%s554 + $0x330] sm:$0xff]
    %v3414 = vld [vmem:[%s554 + $0x338] sm:$0xff]
    %v3415 = vld [vmem:[%s554 + $0x340] sm:$0xff]
    %v3416 = vld [vmem:[%s554 + $0x348] sm:$0xff]
    %v3417 = vld [vmem:[%s554 + $0x350] sm:$0xff]
    %v3418 = vld [vmem:[%s554 + $0x358] sm:$0xff]
    %v3419 = vld [vmem:[%s554 + $0x360] sm:$0xff]
    %v3420 = vld [vmem:[%s554 + $0x368] sm:$0xff]
    %v3421 = vld [vmem:[%s554 + $0x370] sm:$0xff]
    %v3422 = vld [vmem:[%s554 + $0x378] sm:$0xff]
    %3423 = vmatpush.msra.mxu0 %v3422
    %3424 = vmatpush.msra.mxu0 %v3421
    %3425 = vmatpush.msra.mxu0 %v3420
    %3426 = vmatpush.msra.mxu0 %v3419
    %3427 = vmatpush.msra.mxu0 %v3418
    %3428 = vmatpush.msra.mxu0 %v3417
    %3429 = vmatpush.msra.mxu0 %v3416
    %3430 = vmatpush.msra.mxu0 %v3415
    %3431 = vmatpush.msra.mxu0 %v3414
    %3432 = vmatpush.msra.mxu0 %v3413
    %3433 = vmatpush.msra.mxu0 %v3412
    %3434 = vmatpush.msra.mxu0 %v3411
    %3435 = vmatpush.msra.mxu0 %v3410
    %3436 = vmatpush.msra.mxu0 %v3409
    %3437 = vmatpush.msra.mxu0 %v3408
    %3438 = vmatpush.msra.mxu0 %v3407
    %3439 = vmatmul.f32.gmra.mxu0 %v3406
    %v3440 = vpop.f32.mrf.mxu0
    %v3441 = vadd.f32 0.0, %v3440
    %3442 = vdwg.mxu0
    %v3443 = vadd.f32 %v3405, %v3441
    %v3444 = vld [vmem:[#allocation3 + $0x2e] sm:$0x3]
    %v3445 = vld [vmem:[%s554 + $0x380] sm:$0xff]
    %v3446 = vld [vmem:[%s554 + $0x388] sm:$0xff]
    %v3447 = vld [vmem:[%s554 + $0x390] sm:$0xff]
    %v3448 = vld [vmem:[%s554 + $0x398] sm:$0xff]
    %v3449 = vld [vmem:[%s554 + $0x3a0] sm:$0xff]
    %v3450 = vld [vmem:[%s554 + $0x3a8] sm:$0xff]
    %v3451 = vld [vmem:[%s554 + $0x3b0] sm:$0xff]
    %v3452 = vld [vmem:[%s554 + $0x3b8] sm:$0xff]
    %v3453 = vld [vmem:[%s554 + $0x3c0] sm:$0xff]
    %v3454 = vld [vmem:[%s554 + $0x3c8] sm:$0xff]
    %v3455 = vld [vmem:[%s554 + $0x3d0] sm:$0xff]
    %v3456 = vld [vmem:[%s554 + $0x3d8] sm:$0xff]
    %v3457 = vld [vmem:[%s554 + $0x3e0] sm:$0xff]
    %v3458 = vld [vmem:[%s554 + $0x3e8] sm:$0xff]
    %v3459 = vld [vmem:[%s554 + $0x3f0] sm:$0xff]
    %v3460 = vld [vmem:[%s554 + $0x3f8] sm:$0xff]
    %3461 = vmatpush.msra.mxu0 %v3460
    %3462 = vmatpush.msra.mxu0 %v3459
    %3463 = vmatpush.msra.mxu0 %v3458
    %3464 = vmatpush.msra.mxu0 %v3457
    %3465 = vmatpush.msra.mxu0 %v3456
    %3466 = vmatpush.msra.mxu0 %v3455
    %3467 = vmatpush.msra.mxu0 %v3454
    %3468 = vmatpush.msra.mxu0 %v3453
    %3469 = vmatpush.msra.mxu0 %v3452
    %3470 = vmatpush.msra.mxu0 %v3451
    %3471 = vmatpush.msra.mxu0 %v3450
    %3472 = vmatpush.msra.mxu0 %v3449
    %3473 = vmatpush.msra.mxu0 %v3448
    %3474 = vmatpush.msra.mxu0 %v3447
    %3475 = vmatpush.msra.mxu0 %v3446
    %3476 = vmatpush.msra.mxu0 %v3445
    %3477 = vmatmul.f32.gmra.mxu0 %v3444
    %v3478 = vpop.f32.mrf.mxu0
    %v3479 = vadd.f32 0.0, %v3478
    %3480 = vdwg.mxu0
    %v3481 = vadd.f32 %v3443, %v3479
    %v3482 = vld [vmem:[#allocation3 + $0x30] sm:$0x3]
    %v3483 = vld [vmem:[%s554 + $0x400] sm:$0xff]
    %v3484 = vld [vmem:[%s554 + $0x408] sm:$0xff]
    %v3485 = vld [vmem:[%s554 + $0x410] sm:$0xff]
    %v3486 = vld [vmem:[%s554 + $0x418] sm:$0xff]
    %v3487 = vld [vmem:[%s554 + $0x420] sm:$0xff]
    %v3488 = vld [vmem:[%s554 + $0x428] sm:$0xff]
    %v3489 = vld [vmem:[%s554 + $0x430] sm:$0xff]
    %v3490 = vld [vmem:[%s554 + $0x438] sm:$0xff]
    %v3491 = vld [vmem:[%s554 + $0x440] sm:$0xff]
    %v3492 = vld [vmem:[%s554 + $0x448] sm:$0xff]
    %v3493 = vld [vmem:[%s554 + $0x450] sm:$0xff]
    %v3494 = vld [vmem:[%s554 + $0x458] sm:$0xff]
    %v3495 = vld [vmem:[%s554 + $0x460] sm:$0xff]
    %v3496 = vld [vmem:[%s554 + $0x468] sm:$0xff]
    %v3497 = vld [vmem:[%s554 + $0x470] sm:$0xff]
    %v3498 = vld [vmem:[%s554 + $0x478] sm:$0xff]
    %3499 = vmatpush.msra.mxu0 %v3498
    %3500 = vmatpush.msra.mxu0 %v3497
    %3501 = vmatpush.msra.mxu0 %v3496
    %3502 = vmatpush.msra.mxu0 %v3495
    %3503 = vmatpush.msra.mxu0 %v3494
    %3504 = vmatpush.msra.mxu0 %v3493
    %3505 = vmatpush.msra.mxu0 %v3492
    %3506 = vmatpush.msra.mxu0 %v3491
    %3507 = vmatpush.msra.mxu0 %v3490
    %3508 = vmatpush.msra.mxu0 %v3489
    %3509 = vmatpush.msra.mxu0 %v3488
    %3510 = vmatpush.msra.mxu0 %v3487
    %3511 = vmatpush.msra.mxu0 %v3486
    %3512 = vmatpush.msra.mxu0 %v3485
    %3513 = vmatpush.msra.mxu0 %v3484
    %3514 = vmatpush.msra.mxu0 %v3483
    %3515 = vmatmul.f32.gmra.mxu0 %v3482
    %v3516 = vpop.f32.mrf.mxu0
    %v3517 = vadd.f32 0.0, %v3516
    %3518 = vdwg.mxu0
    %v3519 = vadd.f32 %v3481, %v3517
    %v3520 = vld [vmem:[#allocation3 + $0x32] sm:$0x3]
    %v3521 = vld [vmem:[%s554 + $0x480] sm:$0xff]
    %v3522 = vld [vmem:[%s554 + $0x488] sm:$0xff]
    %v3523 = vld [vmem:[%s554 + $0x490] sm:$0xff]
    %v3524 = vld [vmem:[%s554 + $0x498] sm:$0xff]
    %v3525 = vld [vmem:[%s554 + $0x4a0] sm:$0xff]
    %v3526 = vld [vmem:[%s554 + $0x4a8] sm:$0xff]
    %v3527 = vld [vmem:[%s554 + $0x4b0] sm:$0xff]
    %v3528 = vld [vmem:[%s554 + $0x4b8] sm:$0xff]
    %v3529 = vld [vmem:[%s554 + $0x4c0] sm:$0xff]
    %v3530 = vld [vmem:[%s554 + $0x4c8] sm:$0xff]
    %v3531 = vld [vmem:[%s554 + $0x4d0] sm:$0xff]
    %v3532 = vld [vmem:[%s554 + $0x4d8] sm:$0xff]
    %v3533 = vld [vmem:[%s554 + $0x4e0] sm:$0xff]
    %v3534 = vld [vmem:[%s554 + $0x4e8] sm:$0xff]
    %v3535 = vld [vmem:[%s554 + $0x4f0] sm:$0xff]
    %v3536 = vld [vmem:[%s554 + $0x4f8] sm:$0xff]
    %3537 = vmatpush.msra.mxu0 %v3536
    %3538 = vmatpush.msra.mxu0 %v3535
    %3539 = vmatpush.msra.mxu0 %v3534
    %3540 = vmatpush.msra.mxu0 %v3533
    %3541 = vmatpush.msra.mxu0 %v3532
    %3542 = vmatpush.msra.mxu0 %v3531
    %3543 = vmatpush.msra.mxu0 %v3530
    %3544 = vmatpush.msra.mxu0 %v3529
    %3545 = vmatpush.msra.mxu0 %v3528
    %3546 = vmatpush.msra.mxu0 %v3527
    %3547 = vmatpush.msra.mxu0 %v3526
    %3548 = vmatpush.msra.mxu0 %v3525
    %3549 = vmatpush.msra.mxu0 %v3524
    %3550 = vmatpush.msra.mxu0 %v3523
    %3551 = vmatpush.msra.mxu0 %v3522
    %3552 = vmatpush.msra.mxu0 %v3521
    %3553 = vmatmul.f32.gmra.mxu0 %v3520
    %v3554 = vpop.f32.mrf.mxu0
    %v3555 = vadd.f32 0.0, %v3554
    %3556 = vdwg.mxu0
    %v3557 = vadd.f32 %v3519, %v3555
    %v3558 = vld [vmem:[#allocation3 + $0x34] sm:$0x3]
    %v3559 = vld [vmem:[%s554 + $0x500] sm:$0xff]
    %v3560 = vld [vmem:[%s554 + $0x508] sm:$0xff]
    %v3561 = vld [vmem:[%s554 + $0x510] sm:$0xff]
    %v3562 = vld [vmem:[%s554 + $0x518] sm:$0xff]
    %v3563 = vld [vmem:[%s554 + $0x520] sm:$0xff]
    %v3564 = vld [vmem:[%s554 + $0x528] sm:$0xff]
    %v3565 = vld [vmem:[%s554 + $0x530] sm:$0xff]
    %v3566 = vld [vmem:[%s554 + $0x538] sm:$0xff]
    %v3567 = vld [vmem:[%s554 + $0x540] sm:$0xff]
    %v3568 = vld [vmem:[%s554 + $0x548] sm:$0xff]
    %v3569 = vld [vmem:[%s554 + $0x550] sm:$0xff]
    %v3570 = vld [vmem:[%s554 + $0x558] sm:$0xff]
    %v3571 = vld [vmem:[%s554 + $0x560] sm:$0xff]
    %v3572 = vld [vmem:[%s554 + $0x568] sm:$0xff]
    %v3573 = vld [vmem:[%s554 + $0x570] sm:$0xff]
    %v3574 = vld [vmem:[%s554 + $0x578] sm:$0xff]
    %3575 = vmatpush.msra.mxu0 %v3574
    %3576 = vmatpush.msra.mxu0 %v3573
    %3577 = vmatpush.msra.mxu0 %v3572
    %3578 = vmatpush.msra.mxu0 %v3571
    %3579 = vmatpush.msra.mxu0 %v3570
    %3580 = vmatpush.msra.mxu0 %v3569
    %3581 = vmatpush.msra.mxu0 %v3568
    %3582 = vmatpush.msra.mxu0 %v3567
    %3583 = vmatpush.msra.mxu0 %v3566
    %3584 = vmatpush.msra.mxu0 %v3565
    %3585 = vmatpush.msra.mxu0 %v3564
    %3586 = vmatpush.msra.mxu0 %v3563
    %3587 = vmatpush.msra.mxu0 %v3562
    %3588 = vmatpush.msra.mxu0 %v3561
    %3589 = vmatpush.msra.mxu0 %v3560
    %3590 = vmatpush.msra.mxu0 %v3559
    %3591 = vmatmul.f32.gmra.mxu0 %v3558
    %v3592 = vpop.f32.mrf.mxu0
    %v3593 = vadd.f32 0.0, %v3592
    %3594 = vdwg.mxu0
    %v3595 = vadd.f32 %v3557, %v3593
    %v3596 = vld [vmem:[#allocation3 + $0x36] sm:$0x3]
    %v3597 = vld [vmem:[%s554 + $0x580] sm:$0xff]
    %v3598 = vld [vmem:[%s554 + $0x588] sm:$0xff]
    %v3599 = vld [vmem:[%s554 + $0x590] sm:$0xff]
    %v3600 = vld [vmem:[%s554 + $0x598] sm:$0xff]
    %v3601 = vld [vmem:[%s554 + $0x5a0] sm:$0xff]
    %v3602 = vld [vmem:[%s554 + $0x5a8] sm:$0xff]
    %v3603 = vld [vmem:[%s554 + $0x5b0] sm:$0xff]
    %v3604 = vld [vmem:[%s554 + $0x5b8] sm:$0xff]
    %v3605 = vld [vmem:[%s554 + $0x5c0] sm:$0xff]
    %v3606 = vld [vmem:[%s554 + $0x5c8] sm:$0xff]
    %v3607 = vld [vmem:[%s554 + $0x5d0] sm:$0xff]
    %v3608 = vld [vmem:[%s554 + $0x5d8] sm:$0xff]
    %v3609 = vld [vmem:[%s554 + $0x5e0] sm:$0xff]
    %v3610 = vld [vmem:[%s554 + $0x5e8] sm:$0xff]
    %v3611 = vld [vmem:[%s554 + $0x5f0] sm:$0xff]
    %v3612 = vld [vmem:[%s554 + $0x5f8] sm:$0xff]
    %3613 = vmatpush.msra.mxu0 %v3612
    %3614 = vmatpush.msra.mxu0 %v3611
    %3615 = vmatpush.msra.mxu0 %v3610
    %3616 = vmatpush.msra.mxu0 %v3609
    %3617 = vmatpush.msra.mxu0 %v3608
    %3618 = vmatpush.msra.mxu0 %v3607
    %3619 = vmatpush.msra.mxu0 %v3606
    %3620 = vmatpush.msra.mxu0 %v3605
    %3621 = vmatpush.msra.mxu0 %v3604
    %3622 = vmatpush.msra.mxu0 %v3603
    %3623 = vmatpush.msra.mxu0 %v3602
    %3624 = vmatpush.msra.mxu0 %v3601
    %3625 = vmatpush.msra.mxu0 %v3600
    %3626 = vmatpush.msra.mxu0 %v3599
    %3627 = vmatpush.msra.mxu0 %v3598
    %3628 = vmatpush.msra.mxu0 %v3597
    %3629 = vmatmul.f32.gmra.mxu0 %v3596
    %v3630 = vpop.f32.mrf.mxu0
    %v3631 = vadd.f32 0.0, %v3630
    %3632 = vdwg.mxu0
    %v3633 = vadd.f32 %v3595, %v3631
    %v3634 = vld [vmem:[#allocation3 + $0x38] sm:$0x3]
    %v3635 = vld [vmem:[%s554 + $0x600] sm:$0xff]
    %v3636 = vld [vmem:[%s554 + $0x608] sm:$0xff]
    %v3637 = vld [vmem:[%s554 + $0x610] sm:$0xff]
    %v3638 = vld [vmem:[%s554 + $0x618] sm:$0xff]
    %v3639 = vld [vmem:[%s554 + $0x620] sm:$0xff]
    %v3640 = vld [vmem:[%s554 + $0x628] sm:$0xff]
    %v3641 = vld [vmem:[%s554 + $0x630] sm:$0xff]
    %v3642 = vld [vmem:[%s554 + $0x638] sm:$0xff]
    %v3643 = vld [vmem:[%s554 + $0x640] sm:$0xff]
    %v3644 = vld [vmem:[%s554 + $0x648] sm:$0xff]
    %v3645 = vld [vmem:[%s554 + $0x650] sm:$0xff]
    %v3646 = vld [vmem:[%s554 + $0x658] sm:$0xff]
    %v3647 = vld [vmem:[%s554 + $0x660] sm:$0xff]
    %v3648 = vld [vmem:[%s554 + $0x668] sm:$0xff]
    %v3649 = vld [vmem:[%s554 + $0x670] sm:$0xff]
    %v3650 = vld [vmem:[%s554 + $0x678] sm:$0xff]
    %3651 = vmatpush.msra.mxu0 %v3650
    %3652 = vmatpush.msra.mxu0 %v3649
    %3653 = vmatpush.msra.mxu0 %v3648
    %3654 = vmatpush.msra.mxu0 %v3647
    %3655 = vmatpush.msra.mxu0 %v3646
    %3656 = vmatpush.msra.mxu0 %v3645
    %3657 = vmatpush.msra.mxu0 %v3644
    %3658 = vmatpush.msra.mxu0 %v3643
    %3659 = vmatpush.msra.mxu0 %v3642
    %3660 = vmatpush.msra.mxu0 %v3641
    %3661 = vmatpush.msra.mxu0 %v3640
    %3662 = vmatpush.msra.mxu0 %v3639
    %3663 = vmatpush.msra.mxu0 %v3638
    %3664 = vmatpush.msra.mxu0 %v3637
    %3665 = vmatpush.msra.mxu0 %v3636
    %3666 = vmatpush.msra.mxu0 %v3635
    %3667 = vmatmul.f32.gmra.mxu0 %v3634
    %v3668 = vpop.f32.mrf.mxu0
    %v3669 = vadd.f32 0.0, %v3668
    %3670 = vdwg.mxu0
    %v3671 = vadd.f32 %v3633, %v3669
    %v3672 = vld [vmem:[#allocation3 + $0x3a] sm:$0x3]
    %v3673 = vld [vmem:[%s554 + $0x680] sm:$0xff]
    %v3674 = vld [vmem:[%s554 + $0x688] sm:$0xff]
    %v3675 = vld [vmem:[%s554 + $0x690] sm:$0xff]
    %v3676 = vld [vmem:[%s554 + $0x698] sm:$0xff]
    %v3677 = vld [vmem:[%s554 + $0x6a0] sm:$0xff]
    %v3678 = vld [vmem:[%s554 + $0x6a8] sm:$0xff]
    %v3679 = vld [vmem:[%s554 + $0x6b0] sm:$0xff]
    %v3680 = vld [vmem:[%s554 + $0x6b8] sm:$0xff]
    %v3681 = vld [vmem:[%s554 + $0x6c0] sm:$0xff]
    %v3682 = vld [vmem:[%s554 + $0x6c8] sm:$0xff]
    %v3683 = vld [vmem:[%s554 + $0x6d0] sm:$0xff]
    %v3684 = vld [vmem:[%s554 + $0x6d8] sm:$0xff]
    %v3685 = vld [vmem:[%s554 + $0x6e0] sm:$0xff]
    %v3686 = vld [vmem:[%s554 + $0x6e8] sm:$0xff]
    %v3687 = vld [vmem:[%s554 + $0x6f0] sm:$0xff]
    %v3688 = vld [vmem:[%s554 + $0x6f8] sm:$0xff]
    %3689 = vmatpush.msra.mxu0 %v3688
    %3690 = vmatpush.msra.mxu0 %v3687
    %3691 = vmatpush.msra.mxu0 %v3686
    %3692 = vmatpush.msra.mxu0 %v3685
    %3693 = vmatpush.msra.mxu0 %v3684
    %3694 = vmatpush.msra.mxu0 %v3683
    %3695 = vmatpush.msra.mxu0 %v3682
    %3696 = vmatpush.msra.mxu0 %v3681
    %3697 = vmatpush.msra.mxu0 %v3680
    %3698 = vmatpush.msra.mxu0 %v3679
    %3699 = vmatpush.msra.mxu0 %v3678
    %3700 = vmatpush.msra.mxu0 %v3677
    %3701 = vmatpush.msra.mxu0 %v3676
    %3702 = vmatpush.msra.mxu0 %v3675
    %3703 = vmatpush.msra.mxu0 %v3674
    %3704 = vmatpush.msra.mxu0 %v3673
    %3705 = vmatmul.f32.gmra.mxu0 %v3672
    %v3706 = vpop.f32.mrf.mxu0
    %v3707 = vadd.f32 0.0, %v3706
    %3708 = vdwg.mxu0
    %v3709 = vadd.f32 %v3671, %v3707
    %v3710 = vld [vmem:[#allocation3 + $0x3c] sm:$0x3]
    %v3711 = vld [vmem:[%s554 + $0x700] sm:$0xff]
    %v3712 = vld [vmem:[%s554 + $0x708] sm:$0xff]
    %v3713 = vld [vmem:[%s554 + $0x710] sm:$0xff]
    %v3714 = vld [vmem:[%s554 + $0x718] sm:$0xff]
    %v3715 = vld [vmem:[%s554 + $0x720] sm:$0xff]
    %v3716 = vld [vmem:[%s554 + $0x728] sm:$0xff]
    %v3717 = vld [vmem:[%s554 + $0x730] sm:$0xff]
    %v3718 = vld [vmem:[%s554 + $0x738] sm:$0xff]
    %v3719 = vld [vmem:[%s554 + $0x740] sm:$0xff]
    %v3720 = vld [vmem:[%s554 + $0x748] sm:$0xff]
    %v3721 = vld [vmem:[%s554 + $0x750] sm:$0xff]
    %v3722 = vld [vmem:[%s554 + $0x758] sm:$0xff]
    %v3723 = vld [vmem:[%s554 + $0x760] sm:$0xff]
    %v3724 = vld [vmem:[%s554 + $0x768] sm:$0xff]
    %v3725 = vld [vmem:[%s554 + $0x770] sm:$0xff]
    %v3726 = vld [vmem:[%s554 + $0x778] sm:$0xff]
    %3727 = vmatpush.msra.mxu0 %v3726
    %3728 = vmatpush.msra.mxu0 %v3725
    %3729 = vmatpush.msra.mxu0 %v3724
    %3730 = vmatpush.msra.mxu0 %v3723
    %3731 = vmatpush.msra.mxu0 %v3722
    %3732 = vmatpush.msra.mxu0 %v3721
    %3733 = vmatpush.msra.mxu0 %v3720
    %3734 = vmatpush.msra.mxu0 %v3719
    %3735 = vmatpush.msra.mxu0 %v3718
    %3736 = vmatpush.msra.mxu0 %v3717
    %3737 = vmatpush.msra.mxu0 %v3716
    %3738 = vmatpush.msra.mxu0 %v3715
    %3739 = vmatpush.msra.mxu0 %v3714
    %3740 = vmatpush.msra.mxu0 %v3713
    %3741 = vmatpush.msra.mxu0 %v3712
    %3742 = vmatpush.msra.mxu0 %v3711
    %3743 = vmatmul.f32.gmra.mxu0 %v3710
    %v3744 = vpop.f32.mrf.mxu0
    %v3745 = vadd.f32 0.0, %v3744
    %3746 = vdwg.mxu0
    %v3747 = vadd.f32 %v3709, %v3745
    %v3748 = vld [vmem:[#allocation3 + $0x3e] sm:$0x3]
    %v3749 = vld [vmem:[%s554 + $0x780] sm:$0xff]
    %v3750 = vld [vmem:[%s554 + $0x788] sm:$0xff]
    %v3751 = vld [vmem:[%s554 + $0x790] sm:$0xff]
    %v3752 = vld [vmem:[%s554 + $0x798] sm:$0xff]
    %v3753 = vld [vmem:[%s554 + $0x7a0] sm:$0xff]
    %v3754 = vld [vmem:[%s554 + $0x7a8] sm:$0xff]
    %v3755 = vld [vmem:[%s554 + $0x7b0] sm:$0xff]
    %v3756 = vld [vmem:[%s554 + $0x7b8] sm:$0xff]
    %v3757 = vld [vmem:[%s554 + $0x7c0] sm:$0xff]
    %v3758 = vld [vmem:[%s554 + $0x7c8] sm:$0xff]
    %v3759 = vld [vmem:[%s554 + $0x7d0] sm:$0xff]
    %v3760 = vld [vmem:[%s554 + $0x7d8] sm:$0xff]
    %v3761 = vld [vmem:[%s554 + $0x7e0] sm:$0xff]
    %v3762 = vld [vmem:[%s554 + $0x7e8] sm:$0xff]
    %v3763 = vld [vmem:[%s554 + $0x7f0] sm:$0xff]
    %v3764 = vld [vmem:[%s554 + $0x7f8] sm:$0xff]
    %3765 = vmatpush.msra.mxu0 %v3764
    %3766 = vmatpush.msra.mxu0 %v3763
    %3767 = vmatpush.msra.mxu0 %v3762
    %3768 = vmatpush.msra.mxu0 %v3761
    %3769 = vmatpush.msra.mxu0 %v3760
    %3770 = vmatpush.msra.mxu0 %v3759
    %3771 = vmatpush.msra.mxu0 %v3758
    %3772 = vmatpush.msra.mxu0 %v3757
    %3773 = vmatpush.msra.mxu0 %v3756
    %3774 = vmatpush.msra.mxu0 %v3755
    %3775 = vmatpush.msra.mxu0 %v3754
    %3776 = vmatpush.msra.mxu0 %v3753
    %3777 = vmatpush.msra.mxu0 %v3752
    %3778 = vmatpush.msra.mxu0 %v3751
    %3779 = vmatpush.msra.mxu0 %v3750
    %3780 = vmatpush.msra.mxu0 %v3749
    %3781 = vmatmul.f32.gmra.mxu0 %v3748
    %v3782 = vpop.f32.mrf.mxu0
    %v3783 = vadd.f32 0.0, %v3782
    %3784 = vdwg.mxu0
    %v3785 = vadd.f32 %v3747, %v3783
    %s3786 = sshll.u32 %s2567, 4
    %3787 = dma.done %s1086, %s3786
    %v3788 = vld [vmem:[#allocation3 + $0x40] sm:$0x3]
    %v3789 = vld [vmem:[%s1085] sm:$0xff]
    %v3790 = vld [vmem:[%s1085 + $0x8] sm:$0xff]
    %v3791 = vld [vmem:[%s1085 + $0x10] sm:$0xff]
    %v3792 = vld [vmem:[%s1085 + $0x18] sm:$0xff]
    %v3793 = vld [vmem:[%s1085 + $0x20] sm:$0xff]
    %v3794 = vld [vmem:[%s1085 + $0x28] sm:$0xff]
    %v3795 = vld [vmem:[%s1085 + $0x30] sm:$0xff]
    %v3796 = vld [vmem:[%s1085 + $0x38] sm:$0xff]
    %v3797 = vld [vmem:[%s1085 + $0x40] sm:$0xff]
    %v3798 = vld [vmem:[%s1085 + $0x48] sm:$0xff]
    %v3799 = vld [vmem:[%s1085 + $0x50] sm:$0xff]
    %v3800 = vld [vmem:[%s1085 + $0x58] sm:$0xff]
    %v3801 = vld [vmem:[%s1085 + $0x60] sm:$0xff]
    %v3802 = vld [vmem:[%s1085 + $0x68] sm:$0xff]
    %v3803 = vld [vmem:[%s1085 + $0x70] sm:$0xff]
    %v3804 = vld [vmem:[%s1085 + $0x78] sm:$0xff]
    %3805 = vmatpush.msra.mxu0 %v3804
    %3806 = vmatpush.msra.mxu0 %v3803
    %3807 = vmatpush.msra.mxu0 %v3802
    %3808 = vmatpush.msra.mxu0 %v3801
    %3809 = vmatpush.msra.mxu0 %v3800
    %3810 = vmatpush.msra.mxu0 %v3799
    %3811 = vmatpush.msra.mxu0 %v3798
    %3812 = vmatpush.msra.mxu0 %v3797
    %3813 = vmatpush.msra.mxu0 %v3796
    %3814 = vmatpush.msra.mxu0 %v3795
    %3815 = vmatpush.msra.mxu0 %v3794
    %3816 = vmatpush.msra.mxu0 %v3793
    %3817 = vmatpush.msra.mxu0 %v3792
    %3818 = vmatpush.msra.mxu0 %v3791
    %3819 = vmatpush.msra.mxu0 %v3790
    %3820 = vmatpush.msra.mxu0 %v3789
    %3821 = vmatmul.f32.gmra.mxu0 %v3788
    %v3822 = vpop.f32.mrf.mxu0
    %v3823 = vadd.f32 0.0, %v3822
    %3824 = vdwg.mxu0
    %v3825 = vadd.f32 %v3785, %v3823
    %v3826 = vld [vmem:[#allocation3 + $0x42] sm:$0x3]
    %v3827 = vld [vmem:[%s1085 + $0x80] sm:$0xff]
    %v3828 = vld [vmem:[%s1085 + $0x88] sm:$0xff]
    %v3829 = vld [vmem:[%s1085 + $0x90] sm:$0xff]
    %v3830 = vld [vmem:[%s1085 + $0x98] sm:$0xff]
    %v3831 = vld [vmem:[%s1085 + $0xa0] sm:$0xff]
    %v3832 = vld [vmem:[%s1085 + $0xa8] sm:$0xff]
    %v3833 = vld [vmem:[%s1085 + $0xb0] sm:$0xff]
    %v3834 = vld [vmem:[%s1085 + $0xb8] sm:$0xff]
    %v3835 = vld [vmem:[%s1085 + $0xc0] sm:$0xff]
    %v3836 = vld [vmem:[%s1085 + $0xc8] sm:$0xff]
    %v3837 = vld [vmem:[%s1085 + $0xd0] sm:$0xff]
    %v3838 = vld [vmem:[%s1085 + $0xd8] sm:$0xff]
    %v3839 = vld [vmem:[%s1085 + $0xe0] sm:$0xff]
    %v3840 = vld [vmem:[%s1085 + $0xe8] sm:$0xff]
    %v3841 = vld [vmem:[%s1085 + $0xf0] sm:$0xff]
    %v3842 = vld [vmem:[%s1085 + $0xf8] sm:$0xff]
    %3843 = vmatpush.msra.mxu0 %v3842
    %3844 = vmatpush.msra.mxu0 %v3841
    %3845 = vmatpush.msra.mxu0 %v3840
    %3846 = vmatpush.msra.mxu0 %v3839
    %3847 = vmatpush.msra.mxu0 %v3838
    %3848 = vmatpush.msra.mxu0 %v3837
    %3849 = vmatpush.msra.mxu0 %v3836
    %3850 = vmatpush.msra.mxu0 %v3835
    %3851 = vmatpush.msra.mxu0 %v3834
    %3852 = vmatpush.msra.mxu0 %v3833
    %3853 = vmatpush.msra.mxu0 %v3832
    %3854 = vmatpush.msra.mxu0 %v3831
    %3855 = vmatpush.msra.mxu0 %v3830
    %3856 = vmatpush.msra.mxu0 %v3829
    %3857 = vmatpush.msra.mxu0 %v3828
    %3858 = vmatpush.msra.mxu0 %v3827
    %3859 = vmatmul.f32.gmra.mxu0 %v3826
    %v3860 = vpop.f32.mrf.mxu0
    %v3861 = vadd.f32 0.0, %v3860
    %3862 = vdwg.mxu0
    %v3863 = vadd.f32 %v3825, %v3861
    %v3864 = vld [vmem:[#allocation3 + $0x44] sm:$0x3]
    %v3865 = vld [vmem:[%s1085 + $0x100] sm:$0xff]
    %v3866 = vld [vmem:[%s1085 + $0x108] sm:$0xff]
    %v3867 = vld [vmem:[%s1085 + $0x110] sm:$0xff]
    %v3868 = vld [vmem:[%s1085 + $0x118] sm:$0xff]
    %v3869 = vld [vmem:[%s1085 + $0x120] sm:$0xff]
    %v3870 = vld [vmem:[%s1085 + $0x128] sm:$0xff]
    %v3871 = vld [vmem:[%s1085 + $0x130] sm:$0xff]
    %v3872 = vld [vmem:[%s1085 + $0x138] sm:$0xff]
    %v3873 = vld [vmem:[%s1085 + $0x140] sm:$0xff]
    %v3874 = vld [vmem:[%s1085 + $0x148] sm:$0xff]
    %v3875 = vld [vmem:[%s1085 + $0x150] sm:$0xff]
    %v3876 = vld [vmem:[%s1085 + $0x158] sm:$0xff]
    %v3877 = vld [vmem:[%s1085 + $0x160] sm:$0xff]
    %v3878 = vld [vmem:[%s1085 + $0x168] sm:$0xff]
    %v3879 = vld [vmem:[%s1085 + $0x170] sm:$0xff]
    %v3880 = vld [vmem:[%s1085 + $0x178] sm:$0xff]
    %3881 = vmatpush.msra.mxu0 %v3880
    %3882 = vmatpush.msra.mxu0 %v3879
    %3883 = vmatpush.msra.mxu0 %v3878
    %3884 = vmatpush.msra.mxu0 %v3877
    %3885 = vmatpush.msra.mxu0 %v3876
    %3886 = vmatpush.msra.mxu0 %v3875
    %3887 = vmatpush.msra.mxu0 %v3874
    %3888 = vmatpush.msra.mxu0 %v3873
    %3889 = vmatpush.msra.mxu0 %v3872
    %3890 = vmatpush.msra.mxu0 %v3871
    %3891 = vmatpush.msra.mxu0 %v3870
    %3892 = vmatpush.msra.mxu0 %v3869
    %3893 = vmatpush.msra.mxu0 %v3868
    %3894 = vmatpush.msra.mxu0 %v3867
    %3895 = vmatpush.msra.mxu0 %v3866
    %3896 = vmatpush.msra.mxu0 %v3865
    %3897 = vmatmul.f32.gmra.mxu0 %v3864
    %v3898 = vpop.f32.mrf.mxu0
    %v3899 = vadd.f32 0.0, %v3898
    %3900 = vdwg.mxu0
    %v3901 = vadd.f32 %v3863, %v3899
    %v3902 = vld [vmem:[#allocation3 + $0x46] sm:$0x3]
    %v3903 = vld [vmem:[%s1085 + $0x180] sm:$0xff]
    %v3904 = vld [vmem:[%s1085 + $0x188] sm:$0xff]
    %v3905 = vld [vmem:[%s1085 + $0x190] sm:$0xff]
    %v3906 = vld [vmem:[%s1085 + $0x198] sm:$0xff]
    %v3907 = vld [vmem:[%s1085 + $0x1a0] sm:$0xff]
    %v3908 = vld [vmem:[%s1085 + $0x1a8] sm:$0xff]
    %v3909 = vld [vmem:[%s1085 + $0x1b0] sm:$0xff]
    %v3910 = vld [vmem:[%s1085 + $0x1b8] sm:$0xff]
    %v3911 = vld [vmem:[%s1085 + $0x1c0] sm:$0xff]
    %v3912 = vld [vmem:[%s1085 + $0x1c8] sm:$0xff]
    %v3913 = vld [vmem:[%s1085 + $0x1d0] sm:$0xff]
    %v3914 = vld [vmem:[%s1085 + $0x1d8] sm:$0xff]
    %v3915 = vld [vmem:[%s1085 + $0x1e0] sm:$0xff]
    %v3916 = vld [vmem:[%s1085 + $0x1e8] sm:$0xff]
    %v3917 = vld [vmem:[%s1085 + $0x1f0] sm:$0xff]
    %v3918 = vld [vmem:[%s1085 + $0x1f8] sm:$0xff]
    %3919 = vmatpush.msra.mxu0 %v3918
    %3920 = vmatpush.msra.mxu0 %v3917
    %3921 = vmatpush.msra.mxu0 %v3916
    %3922 = vmatpush.msra.mxu0 %v3915
    %3923 = vmatpush.msra.mxu0 %v3914
    %3924 = vmatpush.msra.mxu0 %v3913
    %3925 = vmatpush.msra.mxu0 %v3912
    %3926 = vmatpush.msra.mxu0 %v3911
    %3927 = vmatpush.msra.mxu0 %v3910
    %3928 = vmatpush.msra.mxu0 %v3909
    %3929 = vmatpush.msra.mxu0 %v3908
    %3930 = vmatpush.msra.mxu0 %v3907
    %3931 = vmatpush.msra.mxu0 %v3906
    %3932 = vmatpush.msra.mxu0 %v3905
    %3933 = vmatpush.msra.mxu0 %v3904
    %3934 = vmatpush.msra.mxu0 %v3903
    %3935 = vmatmul.f32.gmra.mxu0 %v3902
    %v3936 = vpop.f32.mrf.mxu0
    %v3937 = vadd.f32 0.0, %v3936
    %3938 = vdwg.mxu0
    %v3939 = vadd.f32 %v3901, %v3937
    %v3940 = vld [vmem:[#allocation3 + $0x48] sm:$0x3]
    %v3941 = vld [vmem:[%s1085 + $0x200] sm:$0xff]
    %v3942 = vld [vmem:[%s1085 + $0x208] sm:$0xff]
    %v3943 = vld [vmem:[%s1085 + $0x210] sm:$0xff]
    %v3944 = vld [vmem:[%s1085 + $0x218] sm:$0xff]
    %v3945 = vld [vmem:[%s1085 + $0x220] sm:$0xff]
    %v3946 = vld [vmem:[%s1085 + $0x228] sm:$0xff]
    %v3947 = vld [vmem:[%s1085 + $0x230] sm:$0xff]
    %v3948 = vld [vmem:[%s1085 + $0x238] sm:$0xff]
    %v3949 = vld [vmem:[%s1085 + $0x240] sm:$0xff]
    %v3950 = vld [vmem:[%s1085 + $0x248] sm:$0xff]
    %v3951 = vld [vmem:[%s1085 + $0x250] sm:$0xff]
    %v3952 = vld [vmem:[%s1085 + $0x258] sm:$0xff]
    %v3953 = vld [vmem:[%s1085 + $0x260] sm:$0xff]
    %v3954 = vld [vmem:[%s1085 + $0x268] sm:$0xff]
    %v3955 = vld [vmem:[%s1085 + $0x270] sm:$0xff]
    %v3956 = vld [vmem:[%s1085 + $0x278] sm:$0xff]
    %3957 = vmatpush.msra.mxu0 %v3956
    %3958 = vmatpush.msra.mxu0 %v3955
    %3959 = vmatpush.msra.mxu0 %v3954
    %3960 = vmatpush.msra.mxu0 %v3953
    %3961 = vmatpush.msra.mxu0 %v3952
    %3962 = vmatpush.msra.mxu0 %v3951
    %3963 = vmatpush.msra.mxu0 %v3950
    %3964 = vmatpush.msra.mxu0 %v3949
    %3965 = vmatpush.msra.mxu0 %v3948
    %3966 = vmatpush.msra.mxu0 %v3947
    %3967 = vmatpush.msra.mxu0 %v3946
    %3968 = vmatpush.msra.mxu0 %v3945
    %3969 = vmatpush.msra.mxu0 %v3944
    %3970 = vmatpush.msra.mxu0 %v3943
    %3971 = vmatpush.msra.mxu0 %v3942
    %3972 = vmatpush.msra.mxu0 %v3941
    %3973 = vmatmul.f32.gmra.mxu0 %v3940
    %v3974 = vpop.f32.mrf.mxu0
    %v3975 = vadd.f32 0.0, %v3974
    %3976 = vdwg.mxu0
    %v3977 = vadd.f32 %v3939, %v3975
    %v3978 = vld [vmem:[#allocation3 + $0x4a] sm:$0x3]
    %v3979 = vld [vmem:[%s1085 + $0x280] sm:$0xff]
    %v3980 = vld [vmem:[%s1085 + $0x288] sm:$0xff]
    %v3981 = vld [vmem:[%s1085 + $0x290] sm:$0xff]
    %v3982 = vld [vmem:[%s1085 + $0x298] sm:$0xff]
    %v3983 = vld [vmem:[%s1085 + $0x2a0] sm:$0xff]
    %v3984 = vld [vmem:[%s1085 + $0x2a8] sm:$0xff]
    %v3985 = vld [vmem:[%s1085 + $0x2b0] sm:$0xff]
    %v3986 = vld [vmem:[%s1085 + $0x2b8] sm:$0xff]
    %v3987 = vld [vmem:[%s1085 + $0x2c0] sm:$0xff]
    %v3988 = vld [vmem:[%s1085 + $0x2c8] sm:$0xff]
    %v3989 = vld [vmem:[%s1085 + $0x2d0] sm:$0xff]
    %v3990 = vld [vmem:[%s1085 + $0x2d8] sm:$0xff]
    %v3991 = vld [vmem:[%s1085 + $0x2e0] sm:$0xff]
    %v3992 = vld [vmem:[%s1085 + $0x2e8] sm:$0xff]
    %v3993 = vld [vmem:[%s1085 + $0x2f0] sm:$0xff]
    %v3994 = vld [vmem:[%s1085 + $0x2f8] sm:$0xff]
    %3995 = vmatpush.msra.mxu0 %v3994
    %3996 = vmatpush.msra.mxu0 %v3993
    %3997 = vmatpush.msra.mxu0 %v3992
    %3998 = vmatpush.msra.mxu0 %v3991
    %3999 = vmatpush.msra.mxu0 %v3990
    %4000 = vmatpush.msra.mxu0 %v3989
    %4001 = vmatpush.msra.mxu0 %v3988
    %4002 = vmatpush.msra.mxu0 %v3987
    %4003 = vmatpush.msra.mxu0 %v3986
    %4004 = vmatpush.msra.mxu0 %v3985
    %4005 = vmatpush.msra.mxu0 %v3984
    %4006 = vmatpush.msra.mxu0 %v3983
    %4007 = vmatpush.msra.mxu0 %v3982
    %4008 = vmatpush.msra.mxu0 %v3981
    %4009 = vmatpush.msra.mxu0 %v3980
    %4010 = vmatpush.msra.mxu0 %v3979
    %4011 = vmatmul.f32.gmra.mxu0 %v3978
    %v4012 = vpop.f32.mrf.mxu0
    %v4013 = vadd.f32 0.0, %v4012
    %4014 = vdwg.mxu0
    %v4015 = vadd.f32 %v3977, %v4013
    %v4016 = vld [vmem:[#allocation3 + $0x4c] sm:$0x3]
    %v4017 = vld [vmem:[%s1085 + $0x300] sm:$0xff]
    %v4018 = vld [vmem:[%s1085 + $0x308] sm:$0xff]
    %v4019 = vld [vmem:[%s1085 + $0x310] sm:$0xff]
    %v4020 = vld [vmem:[%s1085 + $0x318] sm:$0xff]
    %v4021 = vld [vmem:[%s1085 + $0x320] sm:$0xff]
    %v4022 = vld [vmem:[%s1085 + $0x328] sm:$0xff]
    %v4023 = vld [vmem:[%s1085 + $0x330] sm:$0xff]
    %v4024 = vld [vmem:[%s1085 + $0x338] sm:$0xff]
    %v4025 = vld [vmem:[%s1085 + $0x340] sm:$0xff]
    %v4026 = vld [vmem:[%s1085 + $0x348] sm:$0xff]
    %v4027 = vld [vmem:[%s1085 + $0x350] sm:$0xff]
    %v4028 = vld [vmem:[%s1085 + $0x358] sm:$0xff]
    %v4029 = vld [vmem:[%s1085 + $0x360] sm:$0xff]
    %v4030 = vld [vmem:[%s1085 + $0x368] sm:$0xff]
    %v4031 = vld [vmem:[%s1085 + $0x370] sm:$0xff]
    %v4032 = vld [vmem:[%s1085 + $0x378] sm:$0xff]
    %4033 = vmatpush.msra.mxu0 %v4032
    %4034 = vmatpush.msra.mxu0 %v4031
    %4035 = vmatpush.msra.mxu0 %v4030
    %4036 = vmatpush.msra.mxu0 %v4029
    %4037 = vmatpush.msra.mxu0 %v4028
    %4038 = vmatpush.msra.mxu0 %v4027
    %4039 = vmatpush.msra.mxu0 %v4026
    %4040 = vmatpush.msra.mxu0 %v4025
    %4041 = vmatpush.msra.mxu0 %v4024
    %4042 = vmatpush.msra.mxu0 %v4023
    %4043 = vmatpush.msra.mxu0 %v4022
    %4044 = vmatpush.msra.mxu0 %v4021
    %4045 = vmatpush.msra.mxu0 %v4020
    %4046 = vmatpush.msra.mxu0 %v4019
    %4047 = vmatpush.msra.mxu0 %v4018
    %4048 = vmatpush.msra.mxu0 %v4017
    %4049 = vmatmul.f32.gmra.mxu0 %v4016
    %v4050 = vpop.f32.mrf.mxu0
    %v4051 = vadd.f32 0.0, %v4050
    %4052 = vdwg.mxu0
    %v4053 = vadd.f32 %v4015, %v4051
    %v4054 = vld [vmem:[#allocation3 + $0x4e] sm:$0x3]
    %v4055 = vld [vmem:[%s1085 + $0x380] sm:$0xff]
    %v4056 = vld [vmem:[%s1085 + $0x388] sm:$0xff]
    %v4057 = vld [vmem:[%s1085 + $0x390] sm:$0xff]
    %v4058 = vld [vmem:[%s1085 + $0x398] sm:$0xff]
    %v4059 = vld [vmem:[%s1085 + $0x3a0] sm:$0xff]
    %v4060 = vld [vmem:[%s1085 + $0x3a8] sm:$0xff]
    %v4061 = vld [vmem:[%s1085 + $0x3b0] sm:$0xff]
    %v4062 = vld [vmem:[%s1085 + $0x3b8] sm:$0xff]
    %v4063 = vld [vmem:[%s1085 + $0x3c0] sm:$0xff]
    %v4064 = vld [vmem:[%s1085 + $0x3c8] sm:$0xff]
    %v4065 = vld [vmem:[%s1085 + $0x3d0] sm:$0xff]
    %v4066 = vld [vmem:[%s1085 + $0x3d8] sm:$0xff]
    %v4067 = vld [vmem:[%s1085 + $0x3e0] sm:$0xff]
    %v4068 = vld [vmem:[%s1085 + $0x3e8] sm:$0xff]
    %v4069 = vld [vmem:[%s1085 + $0x3f0] sm:$0xff]
    %v4070 = vld [vmem:[%s1085 + $0x3f8] sm:$0xff]
    %4071 = vmatpush.msra.mxu0 %v4070
    %4072 = vmatpush.msra.mxu0 %v4069
    %4073 = vmatpush.msra.mxu0 %v4068
    %4074 = vmatpush.msra.mxu0 %v4067
    %4075 = vmatpush.msra.mxu0 %v4066
    %4076 = vmatpush.msra.mxu0 %v4065
    %4077 = vmatpush.msra.mxu0 %v4064
    %4078 = vmatpush.msra.mxu0 %v4063
    %4079 = vmatpush.msra.mxu0 %v4062
    %4080 = vmatpush.msra.mxu0 %v4061
    %4081 = vmatpush.msra.mxu0 %v4060
    %4082 = vmatpush.msra.mxu0 %v4059
    %4083 = vmatpush.msra.mxu0 %v4058
    %4084 = vmatpush.msra.mxu0 %v4057
    %4085 = vmatpush.msra.mxu0 %v4056
    %4086 = vmatpush.msra.mxu0 %v4055
    %4087 = vmatmul.f32.gmra.mxu0 %v4054
    %v4088 = vpop.f32.mrf.mxu0
    %v4089 = vadd.f32 0.0, %v4088
    %4090 = vdwg.mxu0
    %v4091 = vadd.f32 %v4053, %v4089
    %v4092 = vld [vmem:[#allocation3 + $0x50] sm:$0x3]
    %v4093 = vld [vmem:[%s1085 + $0x400] sm:$0xff]
    %v4094 = vld [vmem:[%s1085 + $0x408] sm:$0xff]
    %v4095 = vld [vmem:[%s1085 + $0x410] sm:$0xff]
    %v4096 = vld [vmem:[%s1085 + $0x418] sm:$0xff]
    %v4097 = vld [vmem:[%s1085 + $0x420] sm:$0xff]
    %v4098 = vld [vmem:[%s1085 + $0x428] sm:$0xff]
    %v4099 = vld [vmem:[%s1085 + $0x430] sm:$0xff]
    %v4100 = vld [vmem:[%s1085 + $0x438] sm:$0xff]
    %v4101 = vld [vmem:[%s1085 + $0x440] sm:$0xff]
    %v4102 = vld [vmem:[%s1085 + $0x448] sm:$0xff]
    %v4103 = vld [vmem:[%s1085 + $0x450] sm:$0xff]
    %v4104 = vld [vmem:[%s1085 + $0x458] sm:$0xff]
    %v4105 = vld [vmem:[%s1085 + $0x460] sm:$0xff]
    %v4106 = vld [vmem:[%s1085 + $0x468] sm:$0xff]
    %v4107 = vld [vmem:[%s1085 + $0x470] sm:$0xff]
    %v4108 = vld [vmem:[%s1085 + $0x478] sm:$0xff]
    %4109 = vmatpush.msra.mxu0 %v4108
    %4110 = vmatpush.msra.mxu0 %v4107
    %4111 = vmatpush.msra.mxu0 %v4106
    %4112 = vmatpush.msra.mxu0 %v4105
    %4113 = vmatpush.msra.mxu0 %v4104
    %4114 = vmatpush.msra.mxu0 %v4103
    %4115 = vmatpush.msra.mxu0 %v4102
    %4116 = vmatpush.msra.mxu0 %v4101
    %4117 = vmatpush.msra.mxu0 %v4100
    %4118 = vmatpush.msra.mxu0 %v4099
    %4119 = vmatpush.msra.mxu0 %v4098
    %4120 = vmatpush.msra.mxu0 %v4097
    %4121 = vmatpush.msra.mxu0 %v4096
    %4122 = vmatpush.msra.mxu0 %v4095
    %4123 = vmatpush.msra.mxu0 %v4094
    %4124 = vmatpush.msra.mxu0 %v4093
    %4125 = vmatmul.f32.gmra.mxu0 %v4092
    %v4126 = vpop.f32.mrf.mxu0
    %v4127 = vadd.f32 0.0, %v4126
    %4128 = vdwg.mxu0
    %v4129 = vadd.f32 %v4091, %v4127
    %v4130 = vld [vmem:[#allocation3 + $0x52] sm:$0x3]
    %v4131 = vld [vmem:[%s1085 + $0x480] sm:$0xff]
    %v4132 = vld [vmem:[%s1085 + $0x488] sm:$0xff]
    %v4133 = vld [vmem:[%s1085 + $0x490] sm:$0xff]
    %v4134 = vld [vmem:[%s1085 + $0x498] sm:$0xff]
    %v4135 = vld [vmem:[%s1085 + $0x4a0] sm:$0xff]
    %v4136 = vld [vmem:[%s1085 + $0x4a8] sm:$0xff]
    %v4137 = vld [vmem:[%s1085 + $0x4b0] sm:$0xff]
    %v4138 = vld [vmem:[%s1085 + $0x4b8] sm:$0xff]
    %v4139 = vld [vmem:[%s1085 + $0x4c0] sm:$0xff]
    %v4140 = vld [vmem:[%s1085 + $0x4c8] sm:$0xff]
    %v4141 = vld [vmem:[%s1085 + $0x4d0] sm:$0xff]
    %v4142 = vld [vmem:[%s1085 + $0x4d8] sm:$0xff]
    %v4143 = vld [vmem:[%s1085 + $0x4e0] sm:$0xff]
    %v4144 = vld [vmem:[%s1085 + $0x4e8] sm:$0xff]
    %v4145 = vld [vmem:[%s1085 + $0x4f0] sm:$0xff]
    %v4146 = vld [vmem:[%s1085 + $0x4f8] sm:$0xff]
    %4147 = vmatpush.msra.mxu0 %v4146
    %4148 = vmatpush.msra.mxu0 %v4145
    %4149 = vmatpush.msra.mxu0 %v4144
    %4150 = vmatpush.msra.mxu0 %v4143
    %4151 = vmatpush.msra.mxu0 %v4142
    %4152 = vmatpush.msra.mxu0 %v4141
    %4153 = vmatpush.msra.mxu0 %v4140
    %4154 = vmatpush.msra.mxu0 %v4139
    %4155 = vmatpush.msra.mxu0 %v4138
    %4156 = vmatpush.msra.mxu0 %v4137
    %4157 = vmatpush.msra.mxu0 %v4136
    %4158 = vmatpush.msra.mxu0 %v4135
    %4159 = vmatpush.msra.mxu0 %v4134
    %4160 = vmatpush.msra.mxu0 %v4133
    %4161 = vmatpush.msra.mxu0 %v4132
    %4162 = vmatpush.msra.mxu0 %v4131
    %4163 = vmatmul.f32.gmra.mxu0 %v4130
    %v4164 = vpop.f32.mrf.mxu0
    %v4165 = vadd.f32 0.0, %v4164
    %4166 = vdwg.mxu0
    %v4167 = vadd.f32 %v4129, %v4165
    %v4168 = vld [vmem:[#allocation3 + $0x54] sm:$0x3]
    %v4169 = vld [vmem:[%s1085 + $0x500] sm:$0xff]
    %v4170 = vld [vmem:[%s1085 + $0x508] sm:$0xff]
    %v4171 = vld [vmem:[%s1085 + $0x510] sm:$0xff]
    %v4172 = vld [vmem:[%s1085 + $0x518] sm:$0xff]
    %v4173 = vld [vmem:[%s1085 + $0x520] sm:$0xff]
    %v4174 = vld [vmem:[%s1085 + $0x528] sm:$0xff]
    %v4175 = vld [vmem:[%s1085 + $0x530] sm:$0xff]
    %v4176 = vld [vmem:[%s1085 + $0x538] sm:$0xff]
    %v4177 = vld [vmem:[%s1085 + $0x540] sm:$0xff]
    %v4178 = vld [vmem:[%s1085 + $0x548] sm:$0xff]
    %v4179 = vld [vmem:[%s1085 + $0x550] sm:$0xff]
    %v4180 = vld [vmem:[%s1085 + $0x558] sm:$0xff]
    %v4181 = vld [vmem:[%s1085 + $0x560] sm:$0xff]
    %v4182 = vld [vmem:[%s1085 + $0x568] sm:$0xff]
    %v4183 = vld [vmem:[%s1085 + $0x570] sm:$0xff]
    %v4184 = vld [vmem:[%s1085 + $0x578] sm:$0xff]
    %4185 = vmatpush.msra.mxu0 %v4184
    %4186 = vmatpush.msra.mxu0 %v4183
    %4187 = vmatpush.msra.mxu0 %v4182
    %4188 = vmatpush.msra.mxu0 %v4181
    %4189 = vmatpush.msra.mxu0 %v4180
    %4190 = vmatpush.msra.mxu0 %v4179
    %4191 = vmatpush.msra.mxu0 %v4178
    %4192 = vmatpush.msra.mxu0 %v4177
    %4193 = vmatpush.msra.mxu0 %v4176
    %4194 = vmatpush.msra.mxu0 %v4175
    %4195 = vmatpush.msra.mxu0 %v4174
    %4196 = vmatpush.msra.mxu0 %v4173
    %4197 = vmatpush.msra.mxu0 %v4172
    %4198 = vmatpush.msra.mxu0 %v4171
    %4199 = vmatpush.msra.mxu0 %v4170
    %4200 = vmatpush.msra.mxu0 %v4169
    %4201 = vmatmul.f32.gmra.mxu0 %v4168
    %v4202 = vpop.f32.mrf.mxu0
    %v4203 = vadd.f32 0.0, %v4202
    %4204 = vdwg.mxu0
    %v4205 = vadd.f32 %v4167, %v4203
    %v4206 = vld [vmem:[#allocation3 + $0x56] sm:$0x3]
    %v4207 = vld [vmem:[%s1085 + $0x580] sm:$0xff]
    %v4208 = vld [vmem:[%s1085 + $0x588] sm:$0xff]
    %v4209 = vld [vmem:[%s1085 + $0x590] sm:$0xff]
    %v4210 = vld [vmem:[%s1085 + $0x598] sm:$0xff]
    %v4211 = vld [vmem:[%s1085 + $0x5a0] sm:$0xff]
    %v4212 = vld [vmem:[%s1085 + $0x5a8] sm:$0xff]
    %v4213 = vld [vmem:[%s1085 + $0x5b0] sm:$0xff]
    %v4214 = vld [vmem:[%s1085 + $0x5b8] sm:$0xff]
    %v4215 = vld [vmem:[%s1085 + $0x5c0] sm:$0xff]
    %v4216 = vld [vmem:[%s1085 + $0x5c8] sm:$0xff]
    %v4217 = vld [vmem:[%s1085 + $0x5d0] sm:$0xff]
    %v4218 = vld [vmem:[%s1085 + $0x5d8] sm:$0xff]
    %v4219 = vld [vmem:[%s1085 + $0x5e0] sm:$0xff]
    %v4220 = vld [vmem:[%s1085 + $0x5e8] sm:$0xff]
    %v4221 = vld [vmem:[%s1085 + $0x5f0] sm:$0xff]
    %v4222 = vld [vmem:[%s1085 + $0x5f8] sm:$0xff]
    %4223 = vmatpush.msra.mxu0 %v4222
    %4224 = vmatpush.msra.mxu0 %v4221
    %4225 = vmatpush.msra.mxu0 %v4220
    %4226 = vmatpush.msra.mxu0 %v4219
    %4227 = vmatpush.msra.mxu0 %v4218
    %4228 = vmatpush.msra.mxu0 %v4217
    %4229 = vmatpush.msra.mxu0 %v4216
    %4230 = vmatpush.msra.mxu0 %v4215
    %4231 = vmatpush.msra.mxu0 %v4214
    %4232 = vmatpush.msra.mxu0 %v4213
    %4233 = vmatpush.msra.mxu0 %v4212
    %4234 = vmatpush.msra.mxu0 %v4211
    %4235 = vmatpush.msra.mxu0 %v4210
    %4236 = vmatpush.msra.mxu0 %v4209
    %4237 = vmatpush.msra.mxu0 %v4208
    %4238 = vmatpush.msra.mxu0 %v4207
    %4239 = vmatmul.f32.gmra.mxu0 %v4206
    %v4240 = vpop.f32.mrf.mxu0
    %v4241 = vadd.f32 0.0, %v4240
    %4242 = vdwg.mxu0
    %v4243 = vadd.f32 %v4205, %v4241
    %v4244 = vld [vmem:[#allocation3 + $0x58] sm:$0x3]
    %v4245 = vld [vmem:[%s1085 + $0x600] sm:$0xff]
    %v4246 = vld [vmem:[%s1085 + $0x608] sm:$0xff]
    %v4247 = vld [vmem:[%s1085 + $0x610] sm:$0xff]
    %v4248 = vld [vmem:[%s1085 + $0x618] sm:$0xff]
    %v4249 = vld [vmem:[%s1085 + $0x620] sm:$0xff]
    %v4250 = vld [vmem:[%s1085 + $0x628] sm:$0xff]
    %v4251 = vld [vmem:[%s1085 + $0x630] sm:$0xff]
    %v4252 = vld [vmem:[%s1085 + $0x638] sm:$0xff]
    %v4253 = vld [vmem:[%s1085 + $0x640] sm:$0xff]
    %v4254 = vld [vmem:[%s1085 + $0x648] sm:$0xff]
    %v4255 = vld [vmem:[%s1085 + $0x650] sm:$0xff]
    %v4256 = vld [vmem:[%s1085 + $0x658] sm:$0xff]
    %v4257 = vld [vmem:[%s1085 + $0x660] sm:$0xff]
    %v4258 = vld [vmem:[%s1085 + $0x668] sm:$0xff]
    %v4259 = vld [vmem:[%s1085 + $0x670] sm:$0xff]
    %v4260 = vld [vmem:[%s1085 + $0x678] sm:$0xff]
    %4261 = vmatpush.msra.mxu0 %v4260
    %4262 = vmatpush.msra.mxu0 %v4259
    %4263 = vmatpush.msra.mxu0 %v4258
    %4264 = vmatpush.msra.mxu0 %v4257
    %4265 = vmatpush.msra.mxu0 %v4256
    %4266 = vmatpush.msra.mxu0 %v4255
    %4267 = vmatpush.msra.mxu0 %v4254
    %4268 = vmatpush.msra.mxu0 %v4253
    %4269 = vmatpush.msra.mxu0 %v4252
    %4270 = vmatpush.msra.mxu0 %v4251
    %4271 = vmatpush.msra.mxu0 %v4250
    %4272 = vmatpush.msra.mxu0 %v4249
    %4273 = vmatpush.msra.mxu0 %v4248
    %4274 = vmatpush.msra.mxu0 %v4247
    %4275 = vmatpush.msra.mxu0 %v4246
    %4276 = vmatpush.msra.mxu0 %v4245
    %4277 = vmatmul.f32.gmra.mxu0 %v4244
    %v4278 = vpop.f32.mrf.mxu0
    %v4279 = vadd.f32 0.0, %v4278
    %4280 = vdwg.mxu0
    %v4281 = vadd.f32 %v4243, %v4279
    %v4282 = vld [vmem:[#allocation3 + $0x5a] sm:$0x3]
    %v4283 = vld [vmem:[%s1085 + $0x680] sm:$0xff]
    %v4284 = vld [vmem:[%s1085 + $0x688] sm:$0xff]
    %v4285 = vld [vmem:[%s1085 + $0x690] sm:$0xff]
    %v4286 = vld [vmem:[%s1085 + $0x698] sm:$0xff]
    %v4287 = vld [vmem:[%s1085 + $0x6a0] sm:$0xff]
    %v4288 = vld [vmem:[%s1085 + $0x6a8] sm:$0xff]
    %v4289 = vld [vmem:[%s1085 + $0x6b0] sm:$0xff]
    %v4290 = vld [vmem:[%s1085 + $0x6b8] sm:$0xff]
    %v4291 = vld [vmem:[%s1085 + $0x6c0] sm:$0xff]
    %v4292 = vld [vmem:[%s1085 + $0x6c8] sm:$0xff]
    %v4293 = vld [vmem:[%s1085 + $0x6d0] sm:$0xff]
    %v4294 = vld [vmem:[%s1085 + $0x6d8] sm:$0xff]
    %v4295 = vld [vmem:[%s1085 + $0x6e0] sm:$0xff]
    %v4296 = vld [vmem:[%s1085 + $0x6e8] sm:$0xff]
    %v4297 = vld [vmem:[%s1085 + $0x6f0] sm:$0xff]
    %v4298 = vld [vmem:[%s1085 + $0x6f8] sm:$0xff]
    %4299 = vmatpush.msra.mxu0 %v4298
    %4300 = vmatpush.msra.mxu0 %v4297
    %4301 = vmatpush.msra.mxu0 %v4296
    %4302 = vmatpush.msra.mxu0 %v4295
    %4303 = vmatpush.msra.mxu0 %v4294
    %4304 = vmatpush.msra.mxu0 %v4293
    %4305 = vmatpush.msra.mxu0 %v4292
    %4306 = vmatpush.msra.mxu0 %v4291
    %4307 = vmatpush.msra.mxu0 %v4290
    %4308 = vmatpush.msra.mxu0 %v4289
    %4309 = vmatpush.msra.mxu0 %v4288
    %4310 = vmatpush.msra.mxu0 %v4287
    %4311 = vmatpush.msra.mxu0 %v4286
    %4312 = vmatpush.msra.mxu0 %v4285
    %4313 = vmatpush.msra.mxu0 %v4284
    %4314 = vmatpush.msra.mxu0 %v4283
    %4315 = vmatmul.f32.gmra.mxu0 %v4282
    %v4316 = vpop.f32.mrf.mxu0
    %v4317 = vadd.f32 0.0, %v4316
    %4318 = vdwg.mxu0
    %v4319 = vadd.f32 %v4281, %v4317
    %v4320 = vld [vmem:[#allocation3 + $0x5c] sm:$0x3]
    %v4321 = vld [vmem:[%s1085 + $0x700] sm:$0xff]
    %v4322 = vld [vmem:[%s1085 + $0x708] sm:$0xff]
    %v4323 = vld [vmem:[%s1085 + $0x710] sm:$0xff]
    %v4324 = vld [vmem:[%s1085 + $0x718] sm:$0xff]
    %v4325 = vld [vmem:[%s1085 + $0x720] sm:$0xff]
    %v4326 = vld [vmem:[%s1085 + $0x728] sm:$0xff]
    %v4327 = vld [vmem:[%s1085 + $0x730] sm:$0xff]
    %v4328 = vld [vmem:[%s1085 + $0x738] sm:$0xff]
    %v4329 = vld [vmem:[%s1085 + $0x740] sm:$0xff]
    %v4330 = vld [vmem:[%s1085 + $0x748] sm:$0xff]
    %v4331 = vld [vmem:[%s1085 + $0x750] sm:$0xff]
    %v4332 = vld [vmem:[%s1085 + $0x758] sm:$0xff]
    %v4333 = vld [vmem:[%s1085 + $0x760] sm:$0xff]
    %v4334 = vld [vmem:[%s1085 + $0x768] sm:$0xff]
    %v4335 = vld [vmem:[%s1085 + $0x770] sm:$0xff]
    %v4336 = vld [vmem:[%s1085 + $0x778] sm:$0xff]
    %4337 = vmatpush.msra.mxu0 %v4336
    %4338 = vmatpush.msra.mxu0 %v4335
    %4339 = vmatpush.msra.mxu0 %v4334
    %4340 = vmatpush.msra.mxu0 %v4333
    %4341 = vmatpush.msra.mxu0 %v4332
    %4342 = vmatpush.msra.mxu0 %v4331
    %4343 = vmatpush.msra.mxu0 %v4330
    %4344 = vmatpush.msra.mxu0 %v4329
    %4345 = vmatpush.msra.mxu0 %v4328
    %4346 = vmatpush.msra.mxu0 %v4327
    %4347 = vmatpush.msra.mxu0 %v4326
    %4348 = vmatpush.msra.mxu0 %v4325
    %4349 = vmatpush.msra.mxu0 %v4324
    %4350 = vmatpush.msra.mxu0 %v4323
    %4351 = vmatpush.msra.mxu0 %v4322
    %4352 = vmatpush.msra.mxu0 %v4321
    %4353 = vmatmul.f32.gmra.mxu0 %v4320
    %v4354 = vpop.f32.mrf.mxu0
    %v4355 = vadd.f32 0.0, %v4354
    %4356 = vdwg.mxu0
    %v4357 = vadd.f32 %v4319, %v4355
    %v4358 = vld [vmem:[#allocation3 + $0x5e] sm:$0x3]
    %v4359 = vld [vmem:[%s1085 + $0x780] sm:$0xff]
    %v4360 = vld [vmem:[%s1085 + $0x788] sm:$0xff]
    %v4361 = vld [vmem:[%s1085 + $0x790] sm:$0xff]
    %v4362 = vld [vmem:[%s1085 + $0x798] sm:$0xff]
    %v4363 = vld [vmem:[%s1085 + $0x7a0] sm:$0xff]
    %v4364 = vld [vmem:[%s1085 + $0x7a8] sm:$0xff]
    %v4365 = vld [vmem:[%s1085 + $0x7b0] sm:$0xff]
    %v4366 = vld [vmem:[%s1085 + $0x7b8] sm:$0xff]
    %v4367 = vld [vmem:[%s1085 + $0x7c0] sm:$0xff]
    %v4368 = vld [vmem:[%s1085 + $0x7c8] sm:$0xff]
    %v4369 = vld [vmem:[%s1085 + $0x7d0] sm:$0xff]
    %v4370 = vld [vmem:[%s1085 + $0x7d8] sm:$0xff]
    %v4371 = vld [vmem:[%s1085 + $0x7e0] sm:$0xff]
    %v4372 = vld [vmem:[%s1085 + $0x7e8] sm:$0xff]
    %v4373 = vld [vmem:[%s1085 + $0x7f0] sm:$0xff]
    %v4374 = vld [vmem:[%s1085 + $0x7f8] sm:$0xff]
    %4375 = vmatpush.msra.mxu0 %v4374
    %4376 = vmatpush.msra.mxu0 %v4373
    %4377 = vmatpush.msra.mxu0 %v4372
    %4378 = vmatpush.msra.mxu0 %v4371
    %4379 = vmatpush.msra.mxu0 %v4370
    %4380 = vmatpush.msra.mxu0 %v4369
    %4381 = vmatpush.msra.mxu0 %v4368
    %4382 = vmatpush.msra.mxu0 %v4367
    %4383 = vmatpush.msra.mxu0 %v4366
    %4384 = vmatpush.msra.mxu0 %v4365
    %4385 = vmatpush.msra.mxu0 %v4364
    %4386 = vmatpush.msra.mxu0 %v4363
    %4387 = vmatpush.msra.mxu0 %v4362
    %4388 = vmatpush.msra.mxu0 %v4361
    %4389 = vmatpush.msra.mxu0 %v4360
    %4390 = vmatpush.msra.mxu0 %v4359
    %4391 = vmatmul.f32.gmra.mxu0 %v4358
    %v4392 = vpop.f32.mrf.mxu0
    %v4393 = vadd.f32 0.0, %v4392
    %4394 = vdwg.mxu0
    %v4395 = vadd.f32 %v4357, %v4393
    %s4396 = sshll.u32 %s2567, 4
    %4397 = dma.done %s1617, %s4396
    %v4398 = vld [vmem:[#allocation3 + $0x60] sm:$0x3]
    %v4399 = vld [vmem:[%s1616] sm:$0xff]
    %v4400 = vld [vmem:[%s1616 + $0x8] sm:$0xff]
    %v4401 = vld [vmem:[%s1616 + $0x10] sm:$0xff]
    %v4402 = vld [vmem:[%s1616 + $0x18] sm:$0xff]
    %v4403 = vld [vmem:[%s1616 + $0x20] sm:$0xff]
    %v4404 = vld [vmem:[%s1616 + $0x28] sm:$0xff]
    %v4405 = vld [vmem:[%s1616 + $0x30] sm:$0xff]
    %v4406 = vld [vmem:[%s1616 + $0x38] sm:$0xff]
    %v4407 = vld [vmem:[%s1616 + $0x40] sm:$0xff]
    %v4408 = vld [vmem:[%s1616 + $0x48] sm:$0xff]
    %v4409 = vld [vmem:[%s1616 + $0x50] sm:$0xff]
    %v4410 = vld [vmem:[%s1616 + $0x58] sm:$0xff]
    %v4411 = vld [vmem:[%s1616 + $0x60] sm:$0xff]
    %v4412 = vld [vmem:[%s1616 + $0x68] sm:$0xff]
    %v4413 = vld [vmem:[%s1616 + $0x70] sm:$0xff]
    %v4414 = vld [vmem:[%s1616 + $0x78] sm:$0xff]
    %4415 = vmatpush.msra.mxu0 %v4414
    %4416 = vmatpush.msra.mxu0 %v4413
    %4417 = vmatpush.msra.mxu0 %v4412
    %4418 = vmatpush.msra.mxu0 %v4411
    %4419 = vmatpush.msra.mxu0 %v4410
    %4420 = vmatpush.msra.mxu0 %v4409
    %4421 = vmatpush.msra.mxu0 %v4408
    %4422 = vmatpush.msra.mxu0 %v4407
    %4423 = vmatpush.msra.mxu0 %v4406
    %4424 = vmatpush.msra.mxu0 %v4405
    %4425 = vmatpush.msra.mxu0 %v4404
    %4426 = vmatpush.msra.mxu0 %v4403
    %4427 = vmatpush.msra.mxu0 %v4402
    %4428 = vmatpush.msra.mxu0 %v4401
    %4429 = vmatpush.msra.mxu0 %v4400
    %4430 = vmatpush.msra.mxu0 %v4399
    %4431 = vmatmul.f32.gmra.mxu0 %v4398
    %v4432 = vpop.f32.mrf.mxu0
    %v4433 = vadd.f32 0.0, %v4432
    %4434 = vdwg.mxu0
    %v4435 = vadd.f32 %v4395, %v4433
    %v4436 = vld [vmem:[#allocation3 + $0x62] sm:$0x3]
    %v4437 = vld [vmem:[%s1616 + $0x80] sm:$0xff]
    %v4438 = vld [vmem:[%s1616 + $0x88] sm:$0xff]
    %v4439 = vld [vmem:[%s1616 + $0x90] sm:$0xff]
    %v4440 = vld [vmem:[%s1616 + $0x98] sm:$0xff]
    %v4441 = vld [vmem:[%s1616 + $0xa0] sm:$0xff]
    %v4442 = vld [vmem:[%s1616 + $0xa8] sm:$0xff]
    %v4443 = vld [vmem:[%s1616 + $0xb0] sm:$0xff]
    %v4444 = vld [vmem:[%s1616 + $0xb8] sm:$0xff]
    %v4445 = vld [vmem:[%s1616 + $0xc0] sm:$0xff]
    %v4446 = vld [vmem:[%s1616 + $0xc8] sm:$0xff]
    %v4447 = vld [vmem:[%s1616 + $0xd0] sm:$0xff]
    %v4448 = vld [vmem:[%s1616 + $0xd8] sm:$0xff]
    %v4449 = vld [vmem:[%s1616 + $0xe0] sm:$0xff]
    %v4450 = vld [vmem:[%s1616 + $0xe8] sm:$0xff]
    %v4451 = vld [vmem:[%s1616 + $0xf0] sm:$0xff]
    %v4452 = vld [vmem:[%s1616 + $0xf8] sm:$0xff]
    %4453 = vmatpush.msra.mxu0 %v4452
    %4454 = vmatpush.msra.mxu0 %v4451
    %4455 = vmatpush.msra.mxu0 %v4450
    %4456 = vmatpush.msra.mxu0 %v4449
    %4457 = vmatpush.msra.mxu0 %v4448
    %4458 = vmatpush.msra.mxu0 %v4447
    %4459 = vmatpush.msra.mxu0 %v4446
    %4460 = vmatpush.msra.mxu0 %v4445
    %4461 = vmatpush.msra.mxu0 %v4444
    %4462 = vmatpush.msra.mxu0 %v4443
    %4463 = vmatpush.msra.mxu0 %v4442
    %4464 = vmatpush.msra.mxu0 %v4441
    %4465 = vmatpush.msra.mxu0 %v4440
    %4466 = vmatpush.msra.mxu0 %v4439
    %4467 = vmatpush.msra.mxu0 %v4438
    %4468 = vmatpush.msra.mxu0 %v4437
    %4469 = vmatmul.f32.gmra.mxu0 %v4436
    %v4470 = vpop.f32.mrf.mxu0
    %v4471 = vadd.f32 0.0, %v4470
    %4472 = vdwg.mxu0
    %v4473 = vadd.f32 %v4435, %v4471
    %v4474 = vld [vmem:[#allocation3 + $0x64] sm:$0x3]
    %v4475 = vld [vmem:[%s1616 + $0x100] sm:$0xff]
    %v4476 = vld [vmem:[%s1616 + $0x108] sm:$0xff]
    %v4477 = vld [vmem:[%s1616 + $0x110] sm:$0xff]
    %v4478 = vld [vmem:[%s1616 + $0x118] sm:$0xff]
    %v4479 = vld [vmem:[%s1616 + $0x120] sm:$0xff]
    %v4480 = vld [vmem:[%s1616 + $0x128] sm:$0xff]
    %v4481 = vld [vmem:[%s1616 + $0x130] sm:$0xff]
    %v4482 = vld [vmem:[%s1616 + $0x138] sm:$0xff]
    %v4483 = vld [vmem:[%s1616 + $0x140] sm:$0xff]
    %v4484 = vld [vmem:[%s1616 + $0x148] sm:$0xff]
    %v4485 = vld [vmem:[%s1616 + $0x150] sm:$0xff]
    %v4486 = vld [vmem:[%s1616 + $0x158] sm:$0xff]
    %v4487 = vld [vmem:[%s1616 + $0x160] sm:$0xff]
    %v4488 = vld [vmem:[%s1616 + $0x168] sm:$0xff]
    %v4489 = vld [vmem:[%s1616 + $0x170] sm:$0xff]
    %v4490 = vld [vmem:[%s1616 + $0x178] sm:$0xff]
    %4491 = vmatpush.msra.mxu0 %v4490
    %4492 = vmatpush.msra.mxu0 %v4489
    %4493 = vmatpush.msra.mxu0 %v4488
    %4494 = vmatpush.msra.mxu0 %v4487
    %4495 = vmatpush.msra.mxu0 %v4486
    %4496 = vmatpush.msra.mxu0 %v4485
    %4497 = vmatpush.msra.mxu0 %v4484
    %4498 = vmatpush.msra.mxu0 %v4483
    %4499 = vmatpush.msra.mxu0 %v4482
    %4500 = vmatpush.msra.mxu0 %v4481
    %4501 = vmatpush.msra.mxu0 %v4480
    %4502 = vmatpush.msra.mxu0 %v4479
    %4503 = vmatpush.msra.mxu0 %v4478
    %4504 = vmatpush.msra.mxu0 %v4477
    %4505 = vmatpush.msra.mxu0 %v4476
    %4506 = vmatpush.msra.mxu0 %v4475
    %4507 = vmatmul.f32.gmra.mxu0 %v4474
    %v4508 = vpop.f32.mrf.mxu0
    %v4509 = vadd.f32 0.0, %v4508
    %4510 = vdwg.mxu0
    %v4511 = vadd.f32 %v4473, %v4509
    %v4512 = vld [vmem:[#allocation3 + $0x66] sm:$0x3]
    %v4513 = vld [vmem:[%s1616 + $0x180] sm:$0xff]
    %v4514 = vld [vmem:[%s1616 + $0x188] sm:$0xff]
    %v4515 = vld [vmem:[%s1616 + $0x190] sm:$0xff]
    %v4516 = vld [vmem:[%s1616 + $0x198] sm:$0xff]
    %v4517 = vld [vmem:[%s1616 + $0x1a0] sm:$0xff]
    %v4518 = vld [vmem:[%s1616 + $0x1a8] sm:$0xff]
    %v4519 = vld [vmem:[%s1616 + $0x1b0] sm:$0xff]
    %v4520 = vld [vmem:[%s1616 + $0x1b8] sm:$0xff]
    %v4521 = vld [vmem:[%s1616 + $0x1c0] sm:$0xff]
    %v4522 = vld [vmem:[%s1616 + $0x1c8] sm:$0xff]
    %v4523 = vld [vmem:[%s1616 + $0x1d0] sm:$0xff]
    %v4524 = vld [vmem:[%s1616 + $0x1d8] sm:$0xff]
    %v4525 = vld [vmem:[%s1616 + $0x1e0] sm:$0xff]
    %v4526 = vld [vmem:[%s1616 + $0x1e8] sm:$0xff]
    %v4527 = vld [vmem:[%s1616 + $0x1f0] sm:$0xff]
    %v4528 = vld [vmem:[%s1616 + $0x1f8] sm:$0xff]
    %4529 = vmatpush.msra.mxu0 %v4528
    %4530 = vmatpush.msra.mxu0 %v4527
    %4531 = vmatpush.msra.mxu0 %v4526
    %4532 = vmatpush.msra.mxu0 %v4525
    %4533 = vmatpush.msra.mxu0 %v4524
    %4534 = vmatpush.msra.mxu0 %v4523
    %4535 = vmatpush.msra.mxu0 %v4522
    %4536 = vmatpush.msra.mxu0 %v4521
    %4537 = vmatpush.msra.mxu0 %v4520
    %4538 = vmatpush.msra.mxu0 %v4519
    %4539 = vmatpush.msra.mxu0 %v4518
    %4540 = vmatpush.msra.mxu0 %v4517
    %4541 = vmatpush.msra.mxu0 %v4516
    %4542 = vmatpush.msra.mxu0 %v4515
    %4543 = vmatpush.msra.mxu0 %v4514
    %4544 = vmatpush.msra.mxu0 %v4513
    %4545 = vmatmul.f32.gmra.mxu0 %v4512
    %v4546 = vpop.f32.mrf.mxu0
    %v4547 = vadd.f32 0.0, %v4546
    %4548 = vdwg.mxu0
    %v4549 = vadd.f32 %v4511, %v4547
    %v4550 = vld [vmem:[#allocation3 + $0x68] sm:$0x3]
    %v4551 = vld [vmem:[%s1616 + $0x200] sm:$0xff]
    %v4552 = vld [vmem:[%s1616 + $0x208] sm:$0xff]
    %v4553 = vld [vmem:[%s1616 + $0x210] sm:$0xff]
    %v4554 = vld [vmem:[%s1616 + $0x218] sm:$0xff]
    %v4555 = vld [vmem:[%s1616 + $0x220] sm:$0xff]
    %v4556 = vld [vmem:[%s1616 + $0x228] sm:$0xff]
    %v4557 = vld [vmem:[%s1616 + $0x230] sm:$0xff]
    %v4558 = vld [vmem:[%s1616 + $0x238] sm:$0xff]
    %v4559 = vld [vmem:[%s1616 + $0x240] sm:$0xff]
    %v4560 = vld [vmem:[%s1616 + $0x248] sm:$0xff]
    %v4561 = vld [vmem:[%s1616 + $0x250] sm:$0xff]
    %v4562 = vld [vmem:[%s1616 + $0x258] sm:$0xff]
    %v4563 = vld [vmem:[%s1616 + $0x260] sm:$0xff]
    %v4564 = vld [vmem:[%s1616 + $0x268] sm:$0xff]
    %v4565 = vld [vmem:[%s1616 + $0x270] sm:$0xff]
    %v4566 = vld [vmem:[%s1616 + $0x278] sm:$0xff]
    %4567 = vmatpush.msra.mxu0 %v4566
    %4568 = vmatpush.msra.mxu0 %v4565
    %4569 = vmatpush.msra.mxu0 %v4564
    %4570 = vmatpush.msra.mxu0 %v4563
    %4571 = vmatpush.msra.mxu0 %v4562
    %4572 = vmatpush.msra.mxu0 %v4561
    %4573 = vmatpush.msra.mxu0 %v4560
    %4574 = vmatpush.msra.mxu0 %v4559
    %4575 = vmatpush.msra.mxu0 %v4558
    %4576 = vmatpush.msra.mxu0 %v4557
    %4577 = vmatpush.msra.mxu0 %v4556
    %4578 = vmatpush.msra.mxu0 %v4555
    %4579 = vmatpush.msra.mxu0 %v4554
    %4580 = vmatpush.msra.mxu0 %v4553
    %4581 = vmatpush.msra.mxu0 %v4552
    %4582 = vmatpush.msra.mxu0 %v4551
    %4583 = vmatmul.f32.gmra.mxu0 %v4550
    %v4584 = vpop.f32.mrf.mxu0
    %v4585 = vadd.f32 0.0, %v4584
    %4586 = vdwg.mxu0
    %v4587 = vadd.f32 %v4549, %v4585
    %v4588 = vld [vmem:[#allocation3 + $0x6a] sm:$0x3]
    %v4589 = vld [vmem:[%s1616 + $0x280] sm:$0xff]
    %v4590 = vld [vmem:[%s1616 + $0x288] sm:$0xff]
    %v4591 = vld [vmem:[%s1616 + $0x290] sm:$0xff]
    %v4592 = vld [vmem:[%s1616 + $0x298] sm:$0xff]
    %v4593 = vld [vmem:[%s1616 + $0x2a0] sm:$0xff]
    %v4594 = vld [vmem:[%s1616 + $0x2a8] sm:$0xff]
    %v4595 = vld [vmem:[%s1616 + $0x2b0] sm:$0xff]
    %v4596 = vld [vmem:[%s1616 + $0x2b8] sm:$0xff]
    %v4597 = vld [vmem:[%s1616 + $0x2c0] sm:$0xff]
    %v4598 = vld [vmem:[%s1616 + $0x2c8] sm:$0xff]
    %v4599 = vld [vmem:[%s1616 + $0x2d0] sm:$0xff]
    %v4600 = vld [vmem:[%s1616 + $0x2d8] sm:$0xff]
    %v4601 = vld [vmem:[%s1616 + $0x2e0] sm:$0xff]
    %v4602 = vld [vmem:[%s1616 + $0x2e8] sm:$0xff]
    %v4603 = vld [vmem:[%s1616 + $0x2f0] sm:$0xff]
    %v4604 = vld [vmem:[%s1616 + $0x2f8] sm:$0xff]
    %4605 = vmatpush.msra.mxu0 %v4604
    %4606 = vmatpush.msra.mxu0 %v4603
    %4607 = vmatpush.msra.mxu0 %v4602
    %4608 = vmatpush.msra.mxu0 %v4601
    %4609 = vmatpush.msra.mxu0 %v4600
    %4610 = vmatpush.msra.mxu0 %v4599
    %4611 = vmatpush.msra.mxu0 %v4598
    %4612 = vmatpush.msra.mxu0 %v4597
    %4613 = vmatpush.msra.mxu0 %v4596
    %4614 = vmatpush.msra.mxu0 %v4595
    %4615 = vmatpush.msra.mxu0 %v4594
    %4616 = vmatpush.msra.mxu0 %v4593
    %4617 = vmatpush.msra.mxu0 %v4592
    %4618 = vmatpush.msra.mxu0 %v4591
    %4619 = vmatpush.msra.mxu0 %v4590
    %4620 = vmatpush.msra.mxu0 %v4589
    %4621 = vmatmul.f32.gmra.mxu0 %v4588
    %v4622 = vpop.f32.mrf.mxu0
    %v4623 = vadd.f32 0.0, %v4622
    %4624 = vdwg.mxu0
    %v4625 = vadd.f32 %v4587, %v4623
    %v4626 = vld [vmem:[#allocation3 + $0x6c] sm:$0x3]
    %v4627 = vld [vmem:[%s1616 + $0x300] sm:$0xff]
    %v4628 = vld [vmem:[%s1616 + $0x308] sm:$0xff]
    %v4629 = vld [vmem:[%s1616 + $0x310] sm:$0xff]
    %v4630 = vld [vmem:[%s1616 + $0x318] sm:$0xff]
    %v4631 = vld [vmem:[%s1616 + $0x320] sm:$0xff]
    %v4632 = vld [vmem:[%s1616 + $0x328] sm:$0xff]
    %v4633 = vld [vmem:[%s1616 + $0x330] sm:$0xff]
    %v4634 = vld [vmem:[%s1616 + $0x338] sm:$0xff]
    %v4635 = vld [vmem:[%s1616 + $0x340] sm:$0xff]
    %v4636 = vld [vmem:[%s1616 + $0x348] sm:$0xff]
    %v4637 = vld [vmem:[%s1616 + $0x350] sm:$0xff]
    %v4638 = vld [vmem:[%s1616 + $0x358] sm:$0xff]
    %v4639 = vld [vmem:[%s1616 + $0x360] sm:$0xff]
    %v4640 = vld [vmem:[%s1616 + $0x368] sm:$0xff]
    %v4641 = vld [vmem:[%s1616 + $0x370] sm:$0xff]
    %v4642 = vld [vmem:[%s1616 + $0x378] sm:$0xff]
    %4643 = vmatpush.msra.mxu0 %v4642
    %4644 = vmatpush.msra.mxu0 %v4641
    %4645 = vmatpush.msra.mxu0 %v4640
    %4646 = vmatpush.msra.mxu0 %v4639
    %4647 = vmatpush.msra.mxu0 %v4638
    %4648 = vmatpush.msra.mxu0 %v4637
    %4649 = vmatpush.msra.mxu0 %v4636
    %4650 = vmatpush.msra.mxu0 %v4635
    %4651 = vmatpush.msra.mxu0 %v4634
    %4652 = vmatpush.msra.mxu0 %v4633
    %4653 = vmatpush.msra.mxu0 %v4632
    %4654 = vmatpush.msra.mxu0 %v4631
    %4655 = vmatpush.msra.mxu0 %v4630
    %4656 = vmatpush.msra.mxu0 %v4629
    %4657 = vmatpush.msra.mxu0 %v4628
    %4658 = vmatpush.msra.mxu0 %v4627
    %4659 = vmatmul.f32.gmra.mxu0 %v4626
    %v4660 = vpop.f32.mrf.mxu0
    %v4661 = vadd.f32 0.0, %v4660
    %4662 = vdwg.mxu0
    %v4663 = vadd.f32 %v4625, %v4661
    %v4664 = vld [vmem:[#allocation3 + $0x6e] sm:$0x3]
    %v4665 = vld [vmem:[%s1616 + $0x380] sm:$0xff]
    %v4666 = vld [vmem:[%s1616 + $0x388] sm:$0xff]
    %v4667 = vld [vmem:[%s1616 + $0x390] sm:$0xff]
    %v4668 = vld [vmem:[%s1616 + $0x398] sm:$0xff]
    %v4669 = vld [vmem:[%s1616 + $0x3a0] sm:$0xff]
    %v4670 = vld [vmem:[%s1616 + $0x3a8] sm:$0xff]
    %v4671 = vld [vmem:[%s1616 + $0x3b0] sm:$0xff]
    %v4672 = vld [vmem:[%s1616 + $0x3b8] sm:$0xff]
    %v4673 = vld [vmem:[%s1616 + $0x3c0] sm:$0xff]
    %v4674 = vld [vmem:[%s1616 + $0x3c8] sm:$0xff]
    %v4675 = vld [vmem:[%s1616 + $0x3d0] sm:$0xff]
    %v4676 = vld [vmem:[%s1616 + $0x3d8] sm:$0xff]
    %v4677 = vld [vmem:[%s1616 + $0x3e0] sm:$0xff]
    %v4678 = vld [vmem:[%s1616 + $0x3e8] sm:$0xff]
    %v4679 = vld [vmem:[%s1616 + $0x3f0] sm:$0xff]
    %v4680 = vld [vmem:[%s1616 + $0x3f8] sm:$0xff]
    %4681 = vmatpush.msra.mxu0 %v4680
    %4682 = vmatpush.msra.mxu0 %v4679
    %4683 = vmatpush.msra.mxu0 %v4678
    %4684 = vmatpush.msra.mxu0 %v4677
    %4685 = vmatpush.msra.mxu0 %v4676
    %4686 = vmatpush.msra.mxu0 %v4675
    %4687 = vmatpush.msra.mxu0 %v4674
    %4688 = vmatpush.msra.mxu0 %v4673
    %4689 = vmatpush.msra.mxu0 %v4672
    %4690 = vmatpush.msra.mxu0 %v4671
    %4691 = vmatpush.msra.mxu0 %v4670
    %4692 = vmatpush.msra.mxu0 %v4669
    %4693 = vmatpush.msra.mxu0 %v4668
    %4694 = vmatpush.msra.mxu0 %v4667
    %4695 = vmatpush.msra.mxu0 %v4666
    %4696 = vmatpush.msra.mxu0 %v4665
    %4697 = vmatmul.f32.gmra.mxu0 %v4664
    %v4698 = vpop.f32.mrf.mxu0
    %v4699 = vadd.f32 0.0, %v4698
    %4700 = vdwg.mxu0
    %v4701 = vadd.f32 %v4663, %v4699
    %v4702 = vld [vmem:[#allocation3 + $0x70] sm:$0x3]
    %v4703 = vld [vmem:[%s1616 + $0x400] sm:$0xff]
    %v4704 = vld [vmem:[%s1616 + $0x408] sm:$0xff]
    %v4705 = vld [vmem:[%s1616 + $0x410] sm:$0xff]
    %v4706 = vld [vmem:[%s1616 + $0x418] sm:$0xff]
    %v4707 = vld [vmem:[%s1616 + $0x420] sm:$0xff]
    %v4708 = vld [vmem:[%s1616 + $0x428] sm:$0xff]
    %v4709 = vld [vmem:[%s1616 + $0x430] sm:$0xff]
    %v4710 = vld [vmem:[%s1616 + $0x438] sm:$0xff]
    %v4711 = vld [vmem:[%s1616 + $0x440] sm:$0xff]
    %v4712 = vld [vmem:[%s1616 + $0x448] sm:$0xff]
    %v4713 = vld [vmem:[%s1616 + $0x450] sm:$0xff]
    %v4714 = vld [vmem:[%s1616 + $0x458] sm:$0xff]
    %v4715 = vld [vmem:[%s1616 + $0x460] sm:$0xff]
    %v4716 = vld [vmem:[%s1616 + $0x468] sm:$0xff]
    %v4717 = vld [vmem:[%s1616 + $0x470] sm:$0xff]
    %v4718 = vld [vmem:[%s1616 + $0x478] sm:$0xff]
    %4719 = vmatpush.msra.mxu0 %v4718
    %4720 = vmatpush.msra.mxu0 %v4717
    %4721 = vmatpush.msra.mxu0 %v4716
    %4722 = vmatpush.msra.mxu0 %v4715
    %4723 = vmatpush.msra.mxu0 %v4714
    %4724 = vmatpush.msra.mxu0 %v4713
    %4725 = vmatpush.msra.mxu0 %v4712
    %4726 = vmatpush.msra.mxu0 %v4711
    %4727 = vmatpush.msra.mxu0 %v4710
    %4728 = vmatpush.msra.mxu0 %v4709
    %4729 = vmatpush.msra.mxu0 %v4708
    %4730 = vmatpush.msra.mxu0 %v4707
    %4731 = vmatpush.msra.mxu0 %v4706
    %4732 = vmatpush.msra.mxu0 %v4705
    %4733 = vmatpush.msra.mxu0 %v4704
    %4734 = vmatpush.msra.mxu0 %v4703
    %4735 = vmatmul.f32.gmra.mxu0 %v4702
    %v4736 = vpop.f32.mrf.mxu0
    %v4737 = vadd.f32 0.0, %v4736
    %4738 = vdwg.mxu0
    %v4739 = vadd.f32 %v4701, %v4737
    %v4740 = vld [vmem:[#allocation3 + $0x72] sm:$0x3]
    %v4741 = vld [vmem:[%s1616 + $0x480] sm:$0xff]
    %v4742 = vld [vmem:[%s1616 + $0x488] sm:$0xff]
    %v4743 = vld [vmem:[%s1616 + $0x490] sm:$0xff]
    %v4744 = vld [vmem:[%s1616 + $0x498] sm:$0xff]
    %v4745 = vld [vmem:[%s1616 + $0x4a0] sm:$0xff]
    %v4746 = vld [vmem:[%s1616 + $0x4a8] sm:$0xff]
    %v4747 = vld [vmem:[%s1616 + $0x4b0] sm:$0xff]
    %v4748 = vld [vmem:[%s1616 + $0x4b8] sm:$0xff]
    %v4749 = vld [vmem:[%s1616 + $0x4c0] sm:$0xff]
    %v4750 = vld [vmem:[%s1616 + $0x4c8] sm:$0xff]
    %v4751 = vld [vmem:[%s1616 + $0x4d0] sm:$0xff]
    %v4752 = vld [vmem:[%s1616 + $0x4d8] sm:$0xff]
    %v4753 = vld [vmem:[%s1616 + $0x4e0] sm:$0xff]
    %v4754 = vld [vmem:[%s1616 + $0x4e8] sm:$0xff]
    %v4755 = vld [vmem:[%s1616 + $0x4f0] sm:$0xff]
    %v4756 = vld [vmem:[%s1616 + $0x4f8] sm:$0xff]
    %4757 = vmatpush.msra.mxu0 %v4756
    %4758 = vmatpush.msra.mxu0 %v4755
    %4759 = vmatpush.msra.mxu0 %v4754
    %4760 = vmatpush.msra.mxu0 %v4753
    %4761 = vmatpush.msra.mxu0 %v4752
    %4762 = vmatpush.msra.mxu0 %v4751
    %4763 = vmatpush.msra.mxu0 %v4750
    %4764 = vmatpush.msra.mxu0 %v4749
    %4765 = vmatpush.msra.mxu0 %v4748
    %4766 = vmatpush.msra.mxu0 %v4747
    %4767 = vmatpush.msra.mxu0 %v4746
    %4768 = vmatpush.msra.mxu0 %v4745
    %4769 = vmatpush.msra.mxu0 %v4744
    %4770 = vmatpush.msra.mxu0 %v4743
    %4771 = vmatpush.msra.mxu0 %v4742
    %4772 = vmatpush.msra.mxu0 %v4741
    %4773 = vmatmul.f32.gmra.mxu0 %v4740
    %v4774 = vpop.f32.mrf.mxu0
    %v4775 = vadd.f32 0.0, %v4774
    %4776 = vdwg.mxu0
    %v4777 = vadd.f32 %v4739, %v4775
    %v4778 = vld [vmem:[#allocation3 + $0x74] sm:$0x3]
    %v4779 = vld [vmem:[%s1616 + $0x500] sm:$0xff]
    %v4780 = vld [vmem:[%s1616 + $0x508] sm:$0xff]
    %v4781 = vld [vmem:[%s1616 + $0x510] sm:$0xff]
    %v4782 = vld [vmem:[%s1616 + $0x518] sm:$0xff]
    %v4783 = vld [vmem:[%s1616 + $0x520] sm:$0xff]
    %v4784 = vld [vmem:[%s1616 + $0x528] sm:$0xff]
    %v4785 = vld [vmem:[%s1616 + $0x530] sm:$0xff]
    %v4786 = vld [vmem:[%s1616 + $0x538] sm:$0xff]
    %v4787 = vld [vmem:[%s1616 + $0x540] sm:$0xff]
    %v4788 = vld [vmem:[%s1616 + $0x548] sm:$0xff]
    %v4789 = vld [vmem:[%s1616 + $0x550] sm:$0xff]
    %v4790 = vld [vmem:[%s1616 + $0x558] sm:$0xff]
    %v4791 = vld [vmem:[%s1616 + $0x560] sm:$0xff]
    %v4792 = vld [vmem:[%s1616 + $0x568] sm:$0xff]
    %v4793 = vld [vmem:[%s1616 + $0x570] sm:$0xff]
    %v4794 = vld [vmem:[%s1616 + $0x578] sm:$0xff]
    %4795 = vmatpush.msra.mxu0 %v4794
    %4796 = vmatpush.msra.mxu0 %v4793
    %4797 = vmatpush.msra.mxu0 %v4792
    %4798 = vmatpush.msra.mxu0 %v4791
    %4799 = vmatpush.msra.mxu0 %v4790
    %4800 = vmatpush.msra.mxu0 %v4789
    %4801 = vmatpush.msra.mxu0 %v4788
    %4802 = vmatpush.msra.mxu0 %v4787
    %4803 = vmatpush.msra.mxu0 %v4786
    %4804 = vmatpush.msra.mxu0 %v4785
    %4805 = vmatpush.msra.mxu0 %v4784
    %4806 = vmatpush.msra.mxu0 %v4783
    %4807 = vmatpush.msra.mxu0 %v4782
    %4808 = vmatpush.msra.mxu0 %v4781
    %4809 = vmatpush.msra.mxu0 %v4780
    %4810 = vmatpush.msra.mxu0 %v4779
    %4811 = vmatmul.f32.gmra.mxu0 %v4778
    %v4812 = vpop.f32.mrf.mxu0
    %v4813 = vadd.f32 0.0, %v4812
    %4814 = vdwg.mxu0
    %v4815 = vadd.f32 %v4777, %v4813
    %v4816 = vld [vmem:[#allocation3 + $0x76] sm:$0x3]
    %v4817 = vld [vmem:[%s1616 + $0x580] sm:$0xff]
    %v4818 = vld [vmem:[%s1616 + $0x588] sm:$0xff]
    %v4819 = vld [vmem:[%s1616 + $0x590] sm:$0xff]
    %v4820 = vld [vmem:[%s1616 + $0x598] sm:$0xff]
    %v4821 = vld [vmem:[%s1616 + $0x5a0] sm:$0xff]
    %v4822 = vld [vmem:[%s1616 + $0x5a8] sm:$0xff]
    %v4823 = vld [vmem:[%s1616 + $0x5b0] sm:$0xff]
    %v4824 = vld [vmem:[%s1616 + $0x5b8] sm:$0xff]
    %v4825 = vld [vmem:[%s1616 + $0x5c0] sm:$0xff]
    %v4826 = vld [vmem:[%s1616 + $0x5c8] sm:$0xff]
    %v4827 = vld [vmem:[%s1616 + $0x5d0] sm:$0xff]
    %v4828 = vld [vmem:[%s1616 + $0x5d8] sm:$0xff]
    %v4829 = vld [vmem:[%s1616 + $0x5e0] sm:$0xff]
    %v4830 = vld [vmem:[%s1616 + $0x5e8] sm:$0xff]
    %v4831 = vld [vmem:[%s1616 + $0x5f0] sm:$0xff]
    %v4832 = vld [vmem:[%s1616 + $0x5f8] sm:$0xff]
    %4833 = vmatpush.msra.mxu0 %v4832
    %4834 = vmatpush.msra.mxu0 %v4831
    %4835 = vmatpush.msra.mxu0 %v4830
    %4836 = vmatpush.msra.mxu0 %v4829
    %4837 = vmatpush.msra.mxu0 %v4828
    %4838 = vmatpush.msra.mxu0 %v4827
    %4839 = vmatpush.msra.mxu0 %v4826
    %4840 = vmatpush.msra.mxu0 %v4825
    %4841 = vmatpush.msra.mxu0 %v4824
    %4842 = vmatpush.msra.mxu0 %v4823
    %4843 = vmatpush.msra.mxu0 %v4822
    %4844 = vmatpush.msra.mxu0 %v4821
    %4845 = vmatpush.msra.mxu0 %v4820
    %4846 = vmatpush.msra.mxu0 %v4819
    %4847 = vmatpush.msra.mxu0 %v4818
    %4848 = vmatpush.msra.mxu0 %v4817
    %4849 = vmatmul.f32.gmra.mxu0 %v4816
    %v4850 = vpop.f32.mrf.mxu0
    %v4851 = vadd.f32 0.0, %v4850
    %4852 = vdwg.mxu0
    %v4853 = vadd.f32 %v4815, %v4851
    %v4854 = vld [vmem:[#allocation3 + $0x78] sm:$0x3]
    %v4855 = vld [vmem:[%s1616 + $0x600] sm:$0xff]
    %v4856 = vld [vmem:[%s1616 + $0x608] sm:$0xff]
    %v4857 = vld [vmem:[%s1616 + $0x610] sm:$0xff]
    %v4858 = vld [vmem:[%s1616 + $0x618] sm:$0xff]
    %v4859 = vld [vmem:[%s1616 + $0x620] sm:$0xff]
    %v4860 = vld [vmem:[%s1616 + $0x628] sm:$0xff]
    %v4861 = vld [vmem:[%s1616 + $0x630] sm:$0xff]
    %v4862 = vld [vmem:[%s1616 + $0x638] sm:$0xff]
    %v4863 = vld [vmem:[%s1616 + $0x640] sm:$0xff]
    %v4864 = vld [vmem:[%s1616 + $0x648] sm:$0xff]
    %v4865 = vld [vmem:[%s1616 + $0x650] sm:$0xff]
    %v4866 = vld [vmem:[%s1616 + $0x658] sm:$0xff]
    %v4867 = vld [vmem:[%s1616 + $0x660] sm:$0xff]
    %v4868 = vld [vmem:[%s1616 + $0x668] sm:$0xff]
    %v4869 = vld [vmem:[%s1616 + $0x670] sm:$0xff]
    %v4870 = vld [vmem:[%s1616 + $0x678] sm:$0xff]
    %4871 = vmatpush.msra.mxu0 %v4870
    %4872 = vmatpush.msra.mxu0 %v4869
    %4873 = vmatpush.msra.mxu0 %v4868
    %4874 = vmatpush.msra.mxu0 %v4867
    %4875 = vmatpush.msra.mxu0 %v4866
    %4876 = vmatpush.msra.mxu0 %v4865
    %4877 = vmatpush.msra.mxu0 %v4864
    %4878 = vmatpush.msra.mxu0 %v4863
    %4879 = vmatpush.msra.mxu0 %v4862
    %4880 = vmatpush.msra.mxu0 %v4861
    %4881 = vmatpush.msra.mxu0 %v4860
    %4882 = vmatpush.msra.mxu0 %v4859
    %4883 = vmatpush.msra.mxu0 %v4858
    %4884 = vmatpush.msra.mxu0 %v4857
    %4885 = vmatpush.msra.mxu0 %v4856
    %4886 = vmatpush.msra.mxu0 %v4855
    %4887 = vmatmul.f32.gmra.mxu0 %v4854
    %v4888 = vpop.f32.mrf.mxu0
    %v4889 = vadd.f32 0.0, %v4888
    %4890 = vdwg.mxu0
    %v4891 = vadd.f32 %v4853, %v4889
    %v4892 = vld [vmem:[#allocation3 + $0x7a] sm:$0x3]
    %v4893 = vld [vmem:[%s1616 + $0x680] sm:$0xff]
    %v4894 = vld [vmem:[%s1616 + $0x688] sm:$0xff]
    %v4895 = vld [vmem:[%s1616 + $0x690] sm:$0xff]
    %v4896 = vld [vmem:[%s1616 + $0x698] sm:$0xff]
    %v4897 = vld [vmem:[%s1616 + $0x6a0] sm:$0xff]
    %v4898 = vld [vmem:[%s1616 + $0x6a8] sm:$0xff]
    %v4899 = vld [vmem:[%s1616 + $0x6b0] sm:$0xff]
    %v4900 = vld [vmem:[%s1616 + $0x6b8] sm:$0xff]
    %v4901 = vld [vmem:[%s1616 + $0x6c0] sm:$0xff]
    %v4902 = vld [vmem:[%s1616 + $0x6c8] sm:$0xff]
    %v4903 = vld [vmem:[%s1616 + $0x6d0] sm:$0xff]
    %v4904 = vld [vmem:[%s1616 + $0x6d8] sm:$0xff]
    %v4905 = vld [vmem:[%s1616 + $0x6e0] sm:$0xff]
    %v4906 = vld [vmem:[%s1616 + $0x6e8] sm:$0xff]
    %v4907 = vld [vmem:[%s1616 + $0x6f0] sm:$0xff]
    %v4908 = vld [vmem:[%s1616 + $0x6f8] sm:$0xff]
    %4909 = vmatpush.msra.mxu0 %v4908
    %4910 = vmatpush.msra.mxu0 %v4907
    %4911 = vmatpush.msra.mxu0 %v4906
    %4912 = vmatpush.msra.mxu0 %v4905
    %4913 = vmatpush.msra.mxu0 %v4904
    %4914 = vmatpush.msra.mxu0 %v4903
    %4915 = vmatpush.msra.mxu0 %v4902
    %4916 = vmatpush.msra.mxu0 %v4901
    %4917 = vmatpush.msra.mxu0 %v4900
    %4918 = vmatpush.msra.mxu0 %v4899
    %4919 = vmatpush.msra.mxu0 %v4898
    %4920 = vmatpush.msra.mxu0 %v4897
    %4921 = vmatpush.msra.mxu0 %v4896
    %4922 = vmatpush.msra.mxu0 %v4895
    %4923 = vmatpush.msra.mxu0 %v4894
    %4924 = vmatpush.msra.mxu0 %v4893
    %4925 = vmatmul.f32.gmra.mxu0 %v4892
    %v4926 = vpop.f32.mrf.mxu0
    %v4927 = vadd.f32 0.0, %v4926
    %4928 = vdwg.mxu0
    %v4929 = vadd.f32 %v4891, %v4927
    %v4930 = vld [vmem:[#allocation3 + $0x7c] sm:$0x3]
    %v4931 = vld [vmem:[%s1616 + $0x700] sm:$0xff]
    %v4932 = vld [vmem:[%s1616 + $0x708] sm:$0xff]
    %v4933 = vld [vmem:[%s1616 + $0x710] sm:$0xff]
    %v4934 = vld [vmem:[%s1616 + $0x718] sm:$0xff]
    %v4935 = vld [vmem:[%s1616 + $0x720] sm:$0xff]
    %v4936 = vld [vmem:[%s1616 + $0x728] sm:$0xff]
    %v4937 = vld [vmem:[%s1616 + $0x730] sm:$0xff]
    %v4938 = vld [vmem:[%s1616 + $0x738] sm:$0xff]
    %v4939 = vld [vmem:[%s1616 + $0x740] sm:$0xff]
    %v4940 = vld [vmem:[%s1616 + $0x748] sm:$0xff]
    %v4941 = vld [vmem:[%s1616 + $0x750] sm:$0xff]
    %v4942 = vld [vmem:[%s1616 + $0x758] sm:$0xff]
    %v4943 = vld [vmem:[%s1616 + $0x760] sm:$0xff]
    %v4944 = vld [vmem:[%s1616 + $0x768] sm:$0xff]
    %v4945 = vld [vmem:[%s1616 + $0x770] sm:$0xff]
    %v4946 = vld [vmem:[%s1616 + $0x778] sm:$0xff]
    %4947 = vmatpush.msra.mxu0 %v4946
    %4948 = vmatpush.msra.mxu0 %v4945
    %4949 = vmatpush.msra.mxu0 %v4944
    %4950 = vmatpush.msra.mxu0 %v4943
    %4951 = vmatpush.msra.mxu0 %v4942
    %4952 = vmatpush.msra.mxu0 %v4941
    %4953 = vmatpush.msra.mxu0 %v4940
    %4954 = vmatpush.msra.mxu0 %v4939
    %4955 = vmatpush.msra.mxu0 %v4938
    %4956 = vmatpush.msra.mxu0 %v4937
    %4957 = vmatpush.msra.mxu0 %v4936
    %4958 = vmatpush.msra.mxu0 %v4935
    %4959 = vmatpush.msra.mxu0 %v4934
    %4960 = vmatpush.msra.mxu0 %v4933
    %4961 = vmatpush.msra.mxu0 %v4932
    %4962 = vmatpush.msra.mxu0 %v4931
    %4963 = vmatmul.f32.gmra.mxu0 %v4930
    %v4964 = vpop.f32.mrf.mxu0
    %v4965 = vadd.f32 0.0, %v4964
    %4966 = vdwg.mxu0
    %v4967 = vadd.f32 %v4929, %v4965
    %v4968 = vld [vmem:[#allocation3 + $0x7e] sm:$0x3]
    %v4969 = vld [vmem:[%s1616 + $0x780] sm:$0xff]
    %v4970 = vld [vmem:[%s1616 + $0x788] sm:$0xff]
    %v4971 = vld [vmem:[%s1616 + $0x790] sm:$0xff]
    %v4972 = vld [vmem:[%s1616 + $0x798] sm:$0xff]
    %v4973 = vld [vmem:[%s1616 + $0x7a0] sm:$0xff]
    %v4974 = vld [vmem:[%s1616 + $0x7a8] sm:$0xff]
    %v4975 = vld [vmem:[%s1616 + $0x7b0] sm:$0xff]
    %v4976 = vld [vmem:[%s1616 + $0x7b8] sm:$0xff]
    %v4977 = vld [vmem:[%s1616 + $0x7c0] sm:$0xff]
    %v4978 = vld [vmem:[%s1616 + $0x7c8] sm:$0xff]
    %v4979 = vld [vmem:[%s1616 + $0x7d0] sm:$0xff]
    %v4980 = vld [vmem:[%s1616 + $0x7d8] sm:$0xff]
    %v4981 = vld [vmem:[%s1616 + $0x7e0] sm:$0xff]
    %v4982 = vld [vmem:[%s1616 + $0x7e8] sm:$0xff]
    %v4983 = vld [vmem:[%s1616 + $0x7f0] sm:$0xff]
    %v4984 = vld [vmem:[%s1616 + $0x7f8] sm:$0xff]
    %4985 = vmatpush.msra.mxu0 %v4984
    %4986 = vmatpush.msra.mxu0 %v4983
    %4987 = vmatpush.msra.mxu0 %v4982
    %4988 = vmatpush.msra.mxu0 %v4981
    %4989 = vmatpush.msra.mxu0 %v4980
    %4990 = vmatpush.msra.mxu0 %v4979
    %4991 = vmatpush.msra.mxu0 %v4978
    %4992 = vmatpush.msra.mxu0 %v4977
    %4993 = vmatpush.msra.mxu0 %v4976
    %4994 = vmatpush.msra.mxu0 %v4975
    %4995 = vmatpush.msra.mxu0 %v4974
    %4996 = vmatpush.msra.mxu0 %v4973
    %4997 = vmatpush.msra.mxu0 %v4972
    %4998 = vmatpush.msra.mxu0 %v4971
    %4999 = vmatpush.msra.mxu0 %v4970
    %5000 = vmatpush.msra.mxu0 %v4969
    %5001 = vmatmul.f32.gmra.mxu0 %v4968
    %v5002 = vpop.f32.mrf.mxu0
    %v5003 = vadd.f32 0.0, %v5002
    %5004 = vdwg.mxu0
    %v5005 = vadd.f32 %v4967, %v5003
    %v5006 = vld [vmem:[%s4] sm:$0x1]
    %v5008 = vperm.slane %v5006, 0
    %v5010 = vadd.f32 %v5005, %v5008
    %v5011 = vld [vmem:[%s5] sm:$0xff]
    %v5012 = vld [vmem:[%s5 + $0x8] sm:$0xff]
    %v5013 = vld [vmem:[%s5 + $0x10] sm:$0xff]
    %v5014 = vld [vmem:[%s5 + $0x18] sm:$0xff]
    %v5015 = vld [vmem:[%s5 + $0x20] sm:$0xff]
    %v5016 = vld [vmem:[%s5 + $0x28] sm:$0xff]
    %v5017 = vld [vmem:[%s5 + $0x30] sm:$0xff]
    %v5018 = vld [vmem:[%s5 + $0x38] sm:$0xff]
    %v5019 = vld [vmem:[%s5 + $0x40] sm:$0xff]
    %v5020 = vld [vmem:[%s5 + $0x48] sm:$0xff]
    %v5021 = vld [vmem:[%s5 + $0x50] sm:$0xff]
    %v5022 = vld [vmem:[%s5 + $0x58] sm:$0xff]
    %v5023 = vld [vmem:[%s5 + $0x60] sm:$0xff]
    %v5024 = vld [vmem:[%s5 + $0x68] sm:$0xff]
    %v5025 = vld [vmem:[%s5 + $0x70] sm:$0xff]
    %v5026 = vld [vmem:[%s5 + $0x78] sm:$0xff]
    %v5027 = vld [vmem:[%s6] sm:$0x1]
    %v5029 = vperm.slane %v5027, 0
    %5031 = vmatpush.msra.mxu0 %v5026
    %5032 = vmatpush.msra.mxu0 %v5025
    %5033 = vmatpush.msra.mxu0 %v5024
    %5034 = vmatpush.msra.mxu0 %v5023
    %5035 = vmatpush.msra.mxu0 %v5022
    %5036 = vmatpush.msra.mxu0 %v5021
    %5037 = vmatpush.msra.mxu0 %v5020
    %5038 = vmatpush.msra.mxu0 %v5019
    %5039 = vmatpush.msra.mxu0 %v5018
    %5040 = vmatpush.msra.mxu0 %v5017
    %5041 = vmatpush.msra.mxu0 %v5016
    %5042 = vmatpush.msra.mxu0 %v5015
    %5043 = vmatpush.msra.mxu0 %v5014
    %5044 = vmatpush.msra.mxu0 %v5013
    %5045 = vmatpush.msra.mxu0 %v5012
    %5046 = vmatpush.msra.mxu0 %v5011
    %5047 = vmatmul.f32.gmra.mxu0 %v5010
    %v5048 = vpop.f32.mrf.mxu0
    %v5049 = vadd.f32 %v5029, %v5048
    %5050 = vdwg.mxu0
    %vm5051 = vcmask 74752
    %5052 = vst.msk [vmem:[#allocation5] sm:$0x3] %vm5051, %v5049
    // Predicated region
    $region102: #{net_forward.1} parent=1 // pred_check
      _
    $region103: #{net_forward.1} parent=1 // pred_check_branch
      %5054 = sbr.rel (0) target = $region105
    $region104: #{net_forward.1} parent=1 // pred_region
      %5056 = vsyncadd [#allocation6], 0
      %s5058 = sshll.u32 [#allocation5], 4
      %s5059 = int_to_ptr.vmem [resolvable:$true] %s5058
      %s5060 = sshll.u32 %s7, 4
      %s5061 = int_to_ptr.hbm [resolvable:$true] %s5060
      %5063 = dma.vmem_to_hbm [thread:$0]  %s5059, 32, %s5061, [#allocation6]
    $region105: #{net_forward.1} parent=1 // pred_fallthru
      _
    // Predicated region
    $region106: #{net_forward.1} parent=1 // pred_check
      _
    $region107: #{net_forward.1} parent=1 // pred_check_branch
      %5065 = sbr.rel (0) target = $region109
    $region108: #{net_forward.1} parent=1 // pred_region
      %5067 = dma.done [#allocation6], 32
    $region109: #{net_forward.1} parent=1 // pred_fallthru
      _
    %5068 = vsyncpa [#allocation6], 1
  %5069 = vsyncmov [#allocation4]
  %s5070 = vpop.sfrf %5069
  %p5071 = scmp.eq.s32.totalorder %s5070, 0
  %p5072 = pneg %p5071
  %5074 = shalt.err (%p5072)
  %s5075 = scalar_lea.sflag [#allocation4], 1
  %5076 = vsyncmov %s5075
  %s5077 = vpop.sfrf %5076
  %p5078 = scmp.eq.s32.totalorder %s5077, 0
  %p5079 = pneg %p5078
  %5081 = shalt.err (%p5079)
  %s5082 = scalar_lea.sflag [#allocation4], 2
  %5083 = vsyncmov %s5082
  %s5084 = vpop.sfrf %5083
  %p5085 = scmp.eq.s32.totalorder %s5084, 0
  %p5086 = pneg %p5085
  %5088 = shalt.err (%p5086)
  %s5089 = scalar_lea.sflag [#allocation4], 3
  %5090 = vsyncmov %s5089
  %s5091 = vpop.sfrf %5090
  %p5092 = scmp.eq.s32.totalorder %s5091, 0
  %p5093 = pneg %p5092
  %5095 = shalt.err (%p5093)

</llo_original>
